<compile_context>
chip_gen: v6e
topology: v6e:2x2x1
jax: 0.10.0
libtpu: 0.0.40
codegen_flags: <defaults>
</compile_context>

<pallas_src>
import functools

import jax
import jax.numpy as jnp
from jax.experimental import pallas as pl
from jax.experimental.pallas import tpu as pltpu

# ---- model hyper-parameters (match the PyTorch module) ----
D_MODEL = 256          # input_size / d_model
N_HEADS = 8            # nhead
HEAD_DIM = D_MODEL // N_HEADS
D_FF = 2048            # nn.TransformerEncoderLayer default dim_feedforward
N_LAYERS = 6           # num_layers
OUT_SIZE = 2           # output_size
OUT_PAD = 128          # lane-dense padded width of the final Linear output
LN_EPS = 1e-5          # nn.LayerNorm default eps

# ---- packed per-layer vector slab layout (all offsets 128-lane aligned) ----
_VEC_FIELDS = (
    ("in_proj_b", 3 * D_MODEL),
    ("out_proj_b", D_MODEL),
    ("lin1_b", D_FF),
    ("lin2_b", D_MODEL),
    ("ln1_w", D_MODEL),
    ("ln1_b", D_MODEL),
    ("ln2_w", D_MODEL),
    ("ln2_b", D_MODEL),
)
_VEC_OFF = {}
_off = 0
for _n, _w in _VEC_FIELDS:
    _VEC_OFF[_n] = (_off, _w)
    _off += _w
VEC_W = _off            # 4352 = 34 * 128


# =====================  fused whole-stack kernel  =====================

def _layernorm(x, w, b):
    mean = jnp.mean(x, axis=-1, keepdims=True)
    xc = x - mean
    var = jnp.mean(xc * xc, axis=-1, keepdims=True)
    inv = jax.lax.rsqrt(var + LN_EPS)
    return xc * inv * w + b


def _mm(x, w, b):
    # bf16 x bf16 on the MXU, f32 accumulation, f32 bias add.
    y = jnp.dot(x.astype(jnp.bfloat16), w, preferred_element_type=jnp.float32)
    return y + b


def _stack_kernel(
    x_ref,                                   # (rows, D) f32 input activations
    in_proj_w, out_proj_w, lin1_w, lin2_w,   # per-layer bf16 weight matrices
    vec_ref,                                 # (1, VEC_W) f32 packed vectors
    fc_w, fc_b,                              # (D, OUT_PAD) bf16, (1, OUT_PAD) f32
    o_ref,                                   # (rows, OUT_PAD) f32
    x_sc, qkv_sc,                            # VMEM scratch (carry, bf16 qkv)
    *, batch, seq):
    layer = pl.program_id(1)
    rows = batch * seq

    # Load this token block's input once; afterwards the activation is carried
    # in VMEM scratch across the (sequential) layer axis.
    @pl.when(layer == 0)
    def _():
        x_sc[...] = x_ref[...]

    x = x_sc[...]                                        # (rows, D) f32

    def vec(name):                                       # packed vector slice
        off, w = _VEC_OFF[name]
        return vec_ref[:, off:off + w]                   # (1, w) f32

    # ---------------- self-attention block ----------------
    # qkv projection (1/sqrt(head_dim) already folded into the Q columns).
    qkv = _mm(x, in_proj_w[...], vec("in_proj_b"))       # (rows, 3D) f32
    qkv_sc[...] = qkv.reshape(batch, seq, 3 * D_MODEL).astype(jnp.bfloat16)

    head_outs = []
    for h in range(N_HEADS):
        c = h * HEAD_DIM
        q = qkv_sc[:, :, c:c + HEAD_DIM]                                 # (B,S,Hd) bf16
        k = qkv_sc[:, :, D_MODEL + c:D_MODEL + c + HEAD_DIM]
        v = qkv_sc[:, :, 2 * D_MODEL + c:2 * D_MODEL + c + HEAD_DIM]
        # batched over the token-block batches; no explicit k transpose.
        s = jnp.einsum("bqd,bkd->bqk", q, k,
                       preferred_element_type=jnp.float32)               # (B,S,S) f32
        m = jnp.max(s, axis=-1, keepdims=True)
        p = jnp.exp(s - m)
        denom = jnp.sum(p, axis=-1, keepdims=True)
        p = (p * pl.reciprocal(denom, approx=True)).astype(jnp.bfloat16)  # EUP slot
        head_outs.append(jnp.einsum("bqk,bkd->bqd", p, v,
                                    preferred_element_type=jnp.float32))  # (B,S,Hd)

    # lane-dense (rows, D) attention output straight from registers.
    attn = jnp.concatenate(head_outs, axis=-1).reshape(rows, D_MODEL)

    # out_proj with fused residual-add + LayerNorm epilogue (post-LN).
    x1 = _layernorm(_mm(attn, out_proj_w[...], vec("out_proj_b")) + x,
                    vec("ln1_w"), vec("ln1_b"))

    # ---------------- feed-forward block ----------------
    hid = jnp.maximum(_mm(x1, lin1_w[...], vec("lin1_b")), 0.0)   # ReLU fused
    ff = _mm(hid, lin2_w[...], vec("lin2_b"))
    x2 = _layernorm(ff + x1, vec("ln2_w"), vec("ln2_b"))

    x_sc[...] = x2                                       # carry to next layer

    # ---------------- final Linear, last layer only ----------------
    @pl.when(layer == pl.num_programs(1) - 1)
    def _():
        o_ref[...] = _mm(x2, fc_w[...], fc_b[...])       # (rows, OUT_PAD) lane-dense


def transformer_forward(x, kparams, *, batches_per_block=None):
    """Full TransformerModel forward.  x: (B, S, D_MODEL) f32.

    `batches_per_block` controls the leading "parallel" grid axis (use smaller
    blocks on v7x to engage both TensorCores at realistic batch sizes)."""
    B, S, D = x.shape
    assert D == D_MODEL
    if batches_per_block is None:
        batches_per_block = B
    assert B % batches_per_block == 0
    num_blocks = B // batches_per_block
    rows_blk = batches_per_block * S
    N = B * S
    xf = x.reshape(N, D)

    layer_w = lambda r, c: pl.BlockSpec((None, r, c), lambda t, l: (l, 0, 0))
    blk_act = lambda c: pl.BlockSpec((rows_blk, c), lambda t, l: (t, 0))
    const_2d = lambda r, c: pl.BlockSpec((r, c), lambda t, l: (0, 0))

    grid_spec = pltpu.PrefetchScalarGridSpec(
        num_scalar_prefetch=0,
        grid=(num_blocks, N_LAYERS),
        in_specs=[
            blk_act(D_MODEL),                      # x (loaded once per block)
            layer_w(D_MODEL, 3 * D_MODEL),         # in_proj_w (scale folded)
            layer_w(D_MODEL, D_MODEL),             # out_proj_w
            layer_w(D_MODEL, D_FF),                # lin1_w
            layer_w(D_FF, D_MODEL),                # lin2_w
            layer_w(1, VEC_W),                     # packed biases + LN params
            const_2d(D_MODEL, OUT_PAD),            # fc_w (padded, lane-dense)
            const_2d(1, OUT_PAD),                  # fc_b (padded)
        ],
        out_specs=blk_act(OUT_PAD),
        scratch_shapes=[
            pltpu.VMEM((rows_blk, D_MODEL), jnp.float32),                  # carry
            pltpu.VMEM((batches_per_block, S, 3 * D_MODEL), jnp.bfloat16),  # qkv
        ],
    )

    out = pl.pallas_call(
        functools.partial(_stack_kernel, batch=batches_per_block, seq=S),
        out_shape=jax.ShapeDtypeStruct((N, OUT_PAD), jnp.float32),
        grid_spec=grid_spec,
        compiler_params=pltpu.CompilerParams(
            dimension_semantics=("parallel", "arbitrary"),
            vmem_limit_bytes=32 * 1024 * 1024,
        ),
    )(xf,
      kparams["in_proj_w"], kparams["out_proj_w"],
      kparams["lin1_w"], kparams["lin2_w"],
      kparams["vec"], kparams["fc_w"], kparams["fc_b"])

    return out[:, :OUT_SIZE].reshape(B, S, OUT_SIZE)


# =====================  weight prep (one-time, offline)  =====================

def prepare_params(params):
    """Fold 1/sqrt(head_dim) into the Q columns of in_proj, pack the 8 small
    per-layer vectors into one lane-aligned slab, cast matrices to bf16 and
    pad the fc head to a lane-dense width."""
    scale = HEAD_DIM ** -0.5
    ipw = params["in_proj_w"].at[:, :, :D_MODEL].multiply(scale)
    ipb = params["in_proj_b"].at[:, :, :D_MODEL].multiply(scale)

    vec = jnp.concatenate(
        [ipb, params["out_proj_b"], params["lin1_b"], params["lin2_b"],
         params["ln1_w"], params["ln1_b"], params["ln2_w"], params["ln2_b"]],
        axis=-1).astype(jnp.float32)                     # (L, 1, VEC_W)
    assert vec.shape[-1] == VEC_W

    fc_w = jnp.zeros((D_MODEL, OUT_PAD), jnp.float32).at[:, :OUT_SIZE].set(
        params["fc_w"])
    fc_b = jnp.zeros((1, OUT_PAD), jnp.float32).at[:, :OUT_SIZE].set(
        params["fc_b"])

    return {
        "in_proj_w": ipw.astype(jnp.bfloat16),
        "out_proj_w": params["out_proj_w"].astype(jnp.bfloat16),
        "lin1_w": params["lin1_w"].astype(jnp.bfloat16),
        "lin2_w": params["lin2_w"].astype(jnp.bfloat16),
        "vec": vec,
        "fc_w": fc_w.astype(jnp.bfloat16),
        "fc_b": fc_b,
    }


# =====================  pure-JAX reference (same bf16 matmul policy)  ==========

def _ref_forward(x, params):
    B, S, D = x.shape
    xf = x.reshape(B * S, D)

    def mm(a, w, b):
        return jnp.dot(a.astype(jnp.bfloat16), w.astype(jnp.bfloat16),
                       preferred_element_type=jnp.float32) + b

    def ln(a, w, b):
        mean = jnp.mean(a, axis=-1, keepdims=True)
        ac = a - mean
        var = jnp.mean(ac * ac, axis=-1, keepdims=True)
        return ac * jax.lax.rsqrt(var + LN_EPS) * w + b

    for l in range(N_LAYERS):
        qkv = mm(xf, params["in_proj_w"][l], params["in_proj_b"][l])
        q, k, v = jnp.split(qkv, 3, axis=-1)

        def heads(t):
            return t.reshape(B, S, N_HEADS, HEAD_DIM).transpose(0, 2, 1, 3)

        qh, kh, vh = heads(q), heads(k), heads(v)
        s = jnp.einsum("bhqd,bhkd->bhqk",
                       qh.astype(jnp.bfloat16), kh.astype(jnp.bfloat16),
                       preferred_element_type=jnp.float32)
        s = s / jnp.sqrt(jnp.float32(HEAD_DIM))
        p = jax.nn.softmax(s, axis=-1)
        o = jnp.einsum("bhqk,bhkd->bhqd",
                       p.astype(jnp.bfloat16), vh.astype(jnp.bfloat16),
                       preferred_element_type=jnp.float32)
        o = o.transpose(0, 2, 1, 3).reshape(B * S, D)

        attn = mm(o, params["out_proj_w"][l], params["out_proj_b"][l])
        x1 = ln(attn + xf, params["ln1_w"][l], params["ln1_b"][l])
        h = jnp.maximum(mm(x1, params["lin1_w"][l], params["lin1_b"][l]), 0.0)
        ff = mm(h, params["lin2_w"][l], params["lin2_b"][l])
        xf = ln(ff + x1, params["ln2_w"][l], params["ln2_b"][l])

    y = mm(xf, params["fc_w"], params["fc_b"])
    return y.reshape(B, S, OUT_SIZE)


# =====================  deterministic parameter init  =====================

def init_params(key):
    def dense(k, din, dout, scale=0.02):
        kw, kb = jax.random.split(k)
        return (scale * jax.random.normal(kw, (din, dout), jnp.float32),
                scale * jax.random.normal(kb, (1, dout), jnp.float32))

    names = ["in_proj_w", "in_proj_b", "out_proj_w", "out_proj_b",
             "lin1_w", "lin1_b", "lin2_w", "lin2_b",
             "ln1_w", "ln1_b", "ln2_w", "ln2_b"]
    stacks = {n: [] for n in names}

    keys = jax.random.split(key, N_LAYERS + 1)
    for lk in keys[:N_LAYERS]:
        k1, k2, k3, k4 = jax.random.split(lk, 4)
        ipw, ipb = dense(k1, D_MODEL, 3 * D_MODEL)
        opw, opb = dense(k2, D_MODEL, D_MODEL)
        l1w, l1b = dense(k3, D_MODEL, D_FF)
        l2w, l2b = dense(k4, D_FF, D_MODEL)
        stacks["in_proj_w"].append(ipw);  stacks["in_proj_b"].append(ipb)
        stacks["out_proj_w"].append(opw); stacks["out_proj_b"].append(opb)
        stacks["lin1_w"].append(l1w);     stacks["lin1_b"].append(l1b)
        stacks["lin2_w"].append(l2w);     stacks["lin2_b"].append(l2b)
        stacks["ln1_w"].append(jnp.ones((1, D_MODEL), jnp.float32))
        stacks["ln1_b"].append(jnp.zeros((1, D_MODEL), jnp.float32))
        stacks["ln2_w"].append(jnp.ones((1, D_MODEL), jnp.float32))
        stacks["ln2_b"].append(jnp.zeros((1, D_MODEL), jnp.float32))

    params = {n: jnp.stack(v, axis=0) for n, v in stacks.items()}

    fcw, fcb = dense(keys[-1], D_MODEL, OUT_SIZE)
    params["fc_w"] = fcw          # (D, OUT_SIZE) f32 (logical)
    params["fc_b"] = fcb          # (1, OUT_SIZE) f32 (logical)
    return params


# =====================  main  =====================

if __name__ == "__main__":
    key = jax.random.PRNGKey(0)
    k_param, k_x = jax.random.split(key)

    B, S = 2, 8                                  # small batch / sequence
    x = jax.random.normal(k_x, (B, S, D_MODEL), jnp.float32)

    params = init_params(k_param)                # logical (PyTorch-style) params
    kparams = prepare_params(params)             # one-time kernel weight prep

    out = jax.jit(transformer_forward)(x, kparams)
    out = jax.block_until_ready(out)

    assert out.shape == (B, S, OUT_SIZE)
    assert bool(jnp.all(jnp.isfinite(out)))

    # Correctness check against a pure-JAX reference with the same bf16 matmul
    # policy (small deltas expected from the approx softmax reciprocal and the
    # pre-folded 1/sqrt(head_dim) scale).
    ref = jax.jit(_ref_forward)(x, params)
    assert bool(jnp.allclose(out, ref, atol=2e-2, rtol=2e-2)), float(
        jnp.max(jnp.abs(out - ref)))

    print("KERNEL_OK")
</pallas_src>

<mosaic_0001>
module attributes {stable_mosaic.version = 11 : i64} {
  func.func @_stack_kernel(%arg0: i32, %arg1: i32, %arg2: memref<16x256xf32, #tpu.memory_space<vmem>>, %arg3: memref<1x256x768xbf16, #tpu.memory_space<vmem>>, %arg4: memref<1x256x256xbf16, #tpu.memory_space<vmem>>, %arg5: memref<1x256x2048xbf16, #tpu.memory_space<vmem>>, %arg6: memref<1x2048x256xbf16, #tpu.memory_space<vmem>>, %arg7: memref<1x1x4352xf32, #tpu.memory_space<vmem>>, %arg8: memref<256x128xbf16, #tpu.memory_space<vmem>>, %arg9: memref<1x128xf32, #tpu.memory_space<vmem>>, %arg10: memref<16x128xf32, #tpu.memory_space<vmem>>, %arg11: memref<16x256xf32, #tpu.memory_space<vmem>>, %arg12: memref<2x8x768xbf16, #tpu.memory_space<vmem>>) attributes {dimension_semantics = [#tpu.dimension_semantics<parallel>, #tpu.dimension_semantics<arbitrary>], iteration_bounds = array<i64: 1, 6>, scalar_prefetch = 0 : i64, scratch_operands = 2 : i64, tpu.core_type = #tpu.core_type<tc>, window_params = [{transform_indices = @transform_0, window_bounds = array<i64: 16, 256>}, {transform_indices = @transform_1, window_bounds = array<i64: 1, 256, 768>}, {transform_indices = @transform_2, window_bounds = array<i64: 1, 256, 256>}, {transform_indices = @transform_3, window_bounds = array<i64: 1, 256, 2048>}, {transform_indices = @transform_4, window_bounds = array<i64: 1, 2048, 256>}, {transform_indices = @transform_5, window_bounds = array<i64: 1, 1, 4352>}, {pipeline_mode = #tpu.pipeline_mode<synchronous>, transform_indices = @transform_6, window_bounds = array<i64: 256, 128>}, {pipeline_mode = #tpu.pipeline_mode<synchronous>, transform_indices = @transform_7, window_bounds = array<i64: 1, 128>}, {transform_indices = @transform_8, window_bounds = array<i64: 16, 128>}]} {
    %c0_i32 = arith.constant 0 : i32
    %0 = arith.cmpi eq, %arg1, %c0_i32 : i32
    %1 = arith.extui %0 : i1 to i32
    %c0_i32_0 = arith.constant 0 : i32
    %2 = arith.cmpi ne, %1, %c0_i32_0 : i32
    scf.if %2 {
      %c0_132 = arith.constant 0 : index
      %c0_133 = arith.constant 0 : index
      %225 = vector.load %arg2[%c0_132, %c0_133] : memref<16x256xf32, #tpu.memory_space<vmem>>, vector<16x256xf32>
      %c0_134 = arith.constant 0 : index
      %c0_135 = arith.constant 0 : index
      %226 = vector.load %arg11[%c0_134, %c0_135] : memref<16x256xf32, #tpu.memory_space<vmem>>, vector<16x256xf32>
      tpu.vector_store %arg11[%c0_134, %c0_135], %225 {strides = array<i32>} : memref<16x256xf32, #tpu.memory_space<vmem>>, vector<16x256xf32>,
    } else {
    }
    %c0 = arith.constant 0 : index
    %c0_1 = arith.constant 0 : index
    %3 = vector.load %arg11[%c0, %c0_1] : memref<16x256xf32, #tpu.memory_space<vmem>>, vector<16x256xf32>
    %c0_2 = arith.constant 0 : index
    %c0_3 = arith.constant 0 : index
    %c0_4 = arith.constant 0 : index
    %4 = vector.load %arg3[%c0_2, %c0_3, %c0_4] : memref<1x256x768xbf16, #tpu.memory_space<vmem>>, vector<1x256x768xbf16>
    %5 = vector.shape_cast %4 : vector<1x256x768xbf16> to vector<256x768xbf16>
    %c0_5 = arith.constant 0 : index
    %c0_6 = arith.constant 0 : index
    %c0_7 = arith.constant 0 : index
    %6 = vector.load %arg7[%c0_5, %c0_6, %c0_7] : memref<1x1x4352xf32, #tpu.memory_space<vmem>>, vector<1x1x768xf32>
    %7 = vector.shape_cast %6 : vector<1x1x768xf32> to vector<1x768xf32>
    %8 = arith.truncf %3 : vector<16x256xf32> to vector<16x256xbf16>
    %cst = arith.constant dense<0.000000e+00> : vector<16x768xf32>
    %9 = tpu.matmul %8, %5, %cst {dimension_numbers = #tpu.dot_dimension_numbers<[1], [0], [0], [1], [0, 0, 1, 1], [], []>} : vector<16x256xbf16>, vector<256x768xbf16>, vector<16x768xf32> -> vector<16x768xf32>
    %10 = vector.broadcast %7 : vector<1x768xf32> to vector<16x768xf32>
    %11 = arith.addf %9, %10 : vector<16x768xf32>
    %12 = vector.shape_cast %11 : vector<16x768xf32> to vector<2x8x768xf32>
    %13 = arith.truncf %12 : vector<2x8x768xf32> to vector<2x8x768xbf16>
    %c0_8 = arith.constant 0 : index
    %c0_9 = arith.constant 0 : index
    %c0_10 = arith.constant 0 : index
    %14 = vector.load %arg12[%c0_8, %c0_9, %c0_10] : memref<2x8x768xbf16, #tpu.memory_space<vmem>>, vector<2x8x768xbf16>
    tpu.vector_store %arg12[%c0_8, %c0_9, %c0_10], %13 {strides = array<i32>} : memref<2x8x768xbf16, #tpu.memory_space<vmem>>, vector<2x8x768xbf16>,
    %c0_11 = arith.constant 0 : index
    %c0_12 = arith.constant 0 : index
    %c0_13 = arith.constant 0 : index
    %15 = vector.load %arg12[%c0_11, %c0_12, %c0_13] : memref<2x8x768xbf16, #tpu.memory_space<vmem>>, vector<2x8x32xbf16>
    %c0_14 = arith.constant 0 : index
    %c0_15 = arith.constant 0 : index
    %c256 = arith.constant 256 : index
    %16 = vector.load %arg12[%c0_14, %c0_15, %c256] : memref<2x8x768xbf16, #tpu.memory_space<vmem>>, vector<2x8x32xbf16>
    %c0_16 = arith.constant 0 : index
    %c0_17 = arith.constant 0 : index
    %c512 = arith.constant 512 : index
    %17 = vector.load %arg12[%c0_16, %c0_17, %c512] : memref<2x8x768xbf16, #tpu.memory_space<vmem>>, vector<2x8x32xbf16>
    "tpu.trace_start"() <{level = 10 : i32, message = "bqd,bkd->bqk"}> : () -> ()
    %cst_18 = arith.constant dense<0.000000e+00> : vector<2x8x8xf32>
    %18 = tpu.matmul %15, %16, %cst_18 {dimension_numbers = #tpu.dot_dimension_numbers<[2], [2], [1], [1], [0, 0, 0, 1, 1, 1], [0], [0]>} : vector<2x8x32xbf16>, vector<2x8x32xbf16>, vector<2x8x8xf32> -> vector<2x8x8xf32>
    "tpu.trace_stop"() : () -> ()
    %cst_19 = arith.constant dense<0xFF800000> : vector<2x8xf32>
    %19 = vector.multi_reduction <maximumf>, %18, %cst_19 [2] : vector<2x8x8xf32> to vector<2x8xf32>
    %20 = vector.shape_cast %19 : vector<2x8xf32> to vector<2x8x1xf32>
    %21 = vector.broadcast %20 : vector<2x8x1xf32> to vector<2x8x8xf32>
    %22 = arith.subf %18, %21 : vector<2x8x8xf32>
    %23 = math.exp %22 : vector<2x8x8xf32>
    %cst_20 = arith.constant dense<0.000000e+00> : vector<2x8xf32>
    %24 = vector.multi_reduction <add>, %23, %cst_20 [2] : vector<2x8x8xf32> to vector<2x8xf32>
    %25 = vector.shape_cast %24 : vector<2x8xf32> to vector<2x8x1xf32>
    %26 = tpu.reciprocal %25 {approx = true} : vector<2x8x1xf32> -> vector<2x8x1xf32>
    %27 = vector.broadcast %26 : vector<2x8x1xf32> to vector<2x8x8xf32>
    %28 = arith.mulf %23, %27 : vector<2x8x8xf32>
    %29 = arith.truncf %28 : vector<2x8x8xf32> to vector<2x8x8xbf16>
    "tpu.trace_start"() <{level = 10 : i32, message = "bqk,bkd->bqd"}> : () -> ()
    %cst_21 = arith.constant dense<0.000000e+00> : vector<2x8x32xf32>
    %30 = tpu.matmul %29, %17, %cst_21 {dimension_numbers = #tpu.dot_dimension_numbers<[2], [1], [1], [2], [0, 0, 0, 1, 1, 2], [0], [0]>} : vector<2x8x8xbf16>, vector<2x8x32xbf16>, vector<2x8x32xf32> -> vector<2x8x32xf32>
    "tpu.trace_stop"() : () -> ()
    %c0_22 = arith.constant 0 : index
    %c0_23 = arith.constant 0 : index
    %c32 = arith.constant 32 : index
    %31 = vector.load %arg12[%c0_22, %c0_23, %c32] : memref<2x8x768xbf16, #tpu.memory_space<vmem>>, vector<2x8x32xbf16>
    %c0_24 = arith.constant 0 : index
    %c0_25 = arith.constant 0 : index
    %c288 = arith.constant 288 : index
    %32 = vector.load %arg12[%c0_24, %c0_25, %c288] : memref<2x8x768xbf16, #tpu.memory_space<vmem>>, vector<2x8x32xbf16>
    %c0_26 = arith.constant 0 : index
    %c0_27 = arith.constant 0 : index
    %c544 = arith.constant 544 : index
    %33 = vector.load %arg12[%c0_26, %c0_27, %c544] : memref<2x8x768xbf16, #tpu.memory_space<vmem>>, vector<2x8x32xbf16>
    "tpu.trace_start"() <{level = 10 : i32, message = "bqd,bkd->bqk"}> : () -> ()
    %cst_28 = arith.constant dense<0.000000e+00> : vector<2x8x8xf32>
    %34 = tpu.matmul %31, %32, %cst_28 {dimension_numbers = #tpu.dot_dimension_numbers<[2], [2], [1], [1], [0, 0, 0, 1, 1, 1], [0], [0]>} : vector<2x8x32xbf16>, vector<2x8x32xbf16>, vector<2x8x8xf32> -> vector<2x8x8xf32>
    "tpu.trace_stop"() : () -> ()
    %cst_29 = arith.constant dense<0xFF800000> : vector<2x8xf32>
    %35 = vector.multi_reduction <maximumf>, %34, %cst_29 [2] : vector<2x8x8xf32> to vector<2x8xf32>
    %36 = vector.shape_cast %35 : vector<2x8xf32> to vector<2x8x1xf32>
    %37 = vector.broadcast %36 : vector<2x8x1xf32> to vector<2x8x8xf32>
    %38 = arith.subf %34, %37 : vector<2x8x8xf32>
    %39 = math.exp %38 : vector<2x8x8xf32>
    %cst_30 = arith.constant dense<0.000000e+00> : vector<2x8xf32>
    %40 = vector.multi_reduction <add>, %39, %cst_30 [2] : vector<2x8x8xf32> to vector<2x8xf32>
    %41 = vector.shape_cast %40 : vector<2x8xf32> to vector<2x8x1xf32>
    %42 = tpu.reciprocal %41 {approx = true} : vector<2x8x1xf32> -> vector<2x8x1xf32>
    %43 = vector.broadcast %42 : vector<2x8x1xf32> to vector<2x8x8xf32>
    %44 = arith.mulf %39, %43 : vector<2x8x8xf32>
    %45 = arith.truncf %44 : vector<2x8x8xf32> to vector<2x8x8xbf16>
    "tpu.trace_start"() <{level = 10 : i32, message = "bqk,bkd->bqd"}> : () -> ()
    %cst_31 = arith.constant dense<0.000000e+00> : vector<2x8x32xf32>
    %46 = tpu.matmul %45, %33, %cst_31 {dimension_numbers = #tpu.dot_dimension_numbers<[2], [1], [1], [2], [0, 0, 0, 1, 1, 2], [0], [0]>} : vector<2x8x8xbf16>, vector<2x8x32xbf16>, vector<2x8x32xf32> -> vector<2x8x32xf32>
    "tpu.trace_stop"() : () -> ()
    %c0_32 = arith.constant 0 : index
    %c0_33 = arith.constant 0 : index
    %c64 = arith.constant 64 : index
    %47 = vector.load %arg12[%c0_32, %c0_33, %c64] : memref<2x8x768xbf16, #tpu.memory_space<vmem>>, vector<2x8x32xbf16>
    %c0_34 = arith.constant 0 : index
    %c0_35 = arith.constant 0 : index
    %c320 = arith.constant 320 : index
    %48 = vector.load %arg12[%c0_34, %c0_35, %c320] : memref<2x8x768xbf16, #tpu.memory_space<vmem>>, vector<2x8x32xbf16>
    %c0_36 = arith.constant 0 : index
    %c0_37 = arith.constant 0 : index
    %c576 = arith.constant 576 : index
    %49 = vector.load %arg12[%c0_36, %c0_37, %c576] : memref<2x8x768xbf16, #tpu.memory_space<vmem>>, vector<2x8x32xbf16>
    "tpu.trace_start"() <{level = 10 : i32, message = "bqd,bkd->bqk"}> : () -> ()
    %cst_38 = arith.constant dense<0.000000e+00> : vector<2x8x8xf32>
    %50 = tpu.matmul %47, %48, %cst_38 {dimension_numbers = #tpu.dot_dimension_numbers<[2], [2], [1], [1], [0, 0, 0, 1, 1, 1], [0], [0]>} : vector<2x8x32xbf16>, vector<2x8x32xbf16>, vector<2x8x8xf32> -> vector<2x8x8xf32>
    "tpu.trace_stop"() : () -> ()
    %cst_39 = arith.constant dense<0xFF800000> : vector<2x8xf32>
    %51 = vector.multi_reduction <maximumf>, %50, %cst_39 [2] : vector<2x8x8xf32> to vector<2x8xf32>
    %52 = vector.shape_cast %51 : vector<2x8xf32> to vector<2x8x1xf32>
    %53 = vector.broadcast %52 : vector<2x8x1xf32> to vector<2x8x8xf32>
    %54 = arith.subf %50, %53 : vector<2x8x8xf32>
    %55 = math.exp %54 : vector<2x8x8xf32>
    %cst_40 = arith.constant dense<0.000000e+00> : vector<2x8xf32>
    %56 = vector.multi_reduction <add>, %55, %cst_40 [2] : vector<2x8x8xf32> to vector<2x8xf32>
    %57 = vector.shape_cast %56 : vector<2x8xf32> to vector<2x8x1xf32>
    %58 = tpu.reciprocal %57 {approx = true} : vector<2x8x1xf32> -> vector<2x8x1xf32>
    %59 = vector.broadcast %58 : vector<2x8x1xf32> to vector<2x8x8xf32>
    %60 = arith.mulf %55, %59 : vector<2x8x8xf32>
    %61 = arith.truncf %60 : vector<2x8x8xf32> to vector<2x8x8xbf16>
    "tpu.trace_start"() <{level = 10 : i32, message = "bqk,bkd->bqd"}> : () -> ()
    %cst_41 = arith.constant dense<0.000000e+00> : vector<2x8x32xf32>
    %62 = tpu.matmul %61, %49, %cst_41 {dimension_numbers = #tpu.dot_dimension_numbers<[2], [1], [1], [2], [0, 0, 0, 1, 1, 2], [0], [0]>} : vector<2x8x8xbf16>, vector<2x8x32xbf16>, vector<2x8x32xf32> -> vector<2x8x32xf32>
    "tpu.trace_stop"() : () -> ()
    %c0_42 = arith.constant 0 : index
    %c0_43 = arith.constant 0 : index
    %c96 = arith.constant 96 : index
    %63 = vector.load %arg12[%c0_42, %c0_43, %c96] : memref<2x8x768xbf16, #tpu.memory_space<vmem>>, vector<2x8x32xbf16>
    %c0_44 = arith.constant 0 : index
    %c0_45 = arith.constant 0 : index
    %c352 = arith.constant 352 : index
    %64 = vector.load %arg12[%c0_44, %c0_45, %c352] : memref<2x8x768xbf16, #tpu.memory_space<vmem>>, vector<2x8x32xbf16>
    %c0_46 = arith.constant 0 : index
    %c0_47 = arith.constant 0 : index
    %c608 = arith.constant 608 : index
    %65 = vector.load %arg12[%c0_46, %c0_47, %c608] : memref<2x8x768xbf16, #tpu.memory_space<vmem>>, vector<2x8x32xbf16>
    "tpu.trace_start"() <{level = 10 : i32, message = "bqd,bkd->bqk"}> : () -> ()
    %cst_48 = arith.constant dense<0.000000e+00> : vector<2x8x8xf32>
    %66 = tpu.matmul %63, %64, %cst_48 {dimension_numbers = #tpu.dot_dimension_numbers<[2], [2], [1], [1], [0, 0, 0, 1, 1, 1], [0], [0]>} : vector<2x8x32xbf16>, vector<2x8x32xbf16>, vector<2x8x8xf32> -> vector<2x8x8xf32>
    "tpu.trace_stop"() : () -> ()
    %cst_49 = arith.constant dense<0xFF800000> : vector<2x8xf32>
    %67 = vector.multi_reduction <maximumf>, %66, %cst_49 [2] : vector<2x8x8xf32> to vector<2x8xf32>
    %68 = vector.shape_cast %67 : vector<2x8xf32> to vector<2x8x1xf32>
    %69 = vector.broadcast %68 : vector<2x8x1xf32> to vector<2x8x8xf32>
    %70 = arith.subf %66, %69 : vector<2x8x8xf32>
    %71 = math.exp %70 : vector<2x8x8xf32>
    %cst_50 = arith.constant dense<0.000000e+00> : vector<2x8xf32>
    %72 = vector.multi_reduction <add>, %71, %cst_50 [2] : vector<2x8x8xf32> to vector<2x8xf32>
    %73 = vector.shape_cast %72 : vector<2x8xf32> to vector<2x8x1xf32>
    %74 = tpu.reciprocal %73 {approx = true} : vector<2x8x1xf32> -> vector<2x8x1xf32>
    %75 = vector.broadcast %74 : vector<2x8x1xf32> to vector<2x8x8xf32>
    %76 = arith.mulf %71, %75 : vector<2x8x8xf32>
    %77 = arith.truncf %76 : vector<2x8x8xf32> to vector<2x8x8xbf16>
    "tpu.trace_start"() <{level = 10 : i32, message = "bqk,bkd->bqd"}> : () -> ()
    %cst_51 = arith.constant dense<0.000000e+00> : vector<2x8x32xf32>
    %78 = tpu.matmul %77, %65, %cst_51 {dimension_numbers = #tpu.dot_dimension_numbers<[2], [1], [1], [2], [0, 0, 0, 1, 1, 2], [0], [0]>} : vector<2x8x8xbf16>, vector<2x8x32xbf16>, vector<2x8x32xf32> -> vector<2x8x32xf32>
    "tpu.trace_stop"() : () -> ()
    %c0_52 = arith.constant 0 : index
    %c0_53 = arith.constant 0 : index
    %c128 = arith.constant 128 : index
    %79 = vector.load %arg12[%c0_52, %c0_53, %c128] : memref<2x8x768xbf16, #tpu.memory_space<vmem>>, vector<2x8x32xbf16>
    %c0_54 = arith.constant 0 : index
    %c0_55 = arith.constant 0 : index
    %c384 = arith.constant 384 : index
    %80 = vector.load %arg12[%c0_54, %c0_55, %c384] : memref<2x8x768xbf16, #tpu.memory_space<vmem>>, vector<2x8x32xbf16>
    %c0_56 = arith.constant 0 : index
    %c0_57 = arith.constant 0 : index
    %c640 = arith.constant 640 : index
    %81 = vector.load %arg12[%c0_56, %c0_57, %c640] : memref<2x8x768xbf16, #tpu.memory_space<vmem>>, vector<2x8x32xbf16>
    "tpu.trace_start"() <{level = 10 : i32, message = "bqd,bkd->bqk"}> : () -> ()
    %cst_58 = arith.constant dense<0.000000e+00> : vector<2x8x8xf32>
    %82 = tpu.matmul %79, %80, %cst_58 {dimension_numbers = #tpu.dot_dimension_numbers<[2], [2], [1], [1], [0, 0, 0, 1, 1, 1], [0], [0]>} : vector<2x8x32xbf16>, vector<2x8x32xbf16>, vector<2x8x8xf32> -> vector<2x8x8xf32>
    "tpu.trace_stop"() : () -> ()
    %cst_59 = arith.constant dense<0xFF800000> : vector<2x8xf32>
    %83 = vector.multi_reduction <maximumf>, %82, %cst_59 [2] : vector<2x8x8xf32> to vector<2x8xf32>
    %84 = vector.shape_cast %83 : vector<2x8xf32> to vector<2x8x1xf32>
    %85 = vector.broadcast %84 : vector<2x8x1xf32> to vector<2x8x8xf32>
    %86 = arith.subf %82, %85 : vector<2x8x8xf32>
    %87 = math.exp %86 : vector<2x8x8xf32>
    %cst_60 = arith.constant dense<0.000000e+00> : vector<2x8xf32>
    %88 = vector.multi_reduction <add>, %87, %cst_60 [2] : vector<2x8x8xf32> to vector<2x8xf32>
    %89 = vector.shape_cast %88 : vector<2x8xf32> to vector<2x8x1xf32>
    %90 = tpu.reciprocal %89 {approx = true} : vector<2x8x1xf32> -> vector<2x8x1xf32>
    %91 = vector.broadcast %90 : vector<2x8x1xf32> to vector<2x8x8xf32>
    %92 = arith.mulf %87, %91 : vector<2x8x8xf32>
    %93 = arith.truncf %92 : vector<2x8x8xf32> to vector<2x8x8xbf16>
    "tpu.trace_start"() <{level = 10 : i32, message = "bqk,bkd->bqd"}> : () -> ()
    %cst_61 = arith.constant dense<0.000000e+00> : vector<2x8x32xf32>
    %94 = tpu.matmul %93, %81, %cst_61 {dimension_numbers = #tpu.dot_dimension_numbers<[2], [1], [1], [2], [0, 0, 0, 1, 1, 2], [0], [0]>} : vector<2x8x8xbf16>, vector<2x8x32xbf16>, vector<2x8x32xf32> -> vector<2x8x32xf32>
    "tpu.trace_stop"() : () -> ()
    %c0_62 = arith.constant 0 : index
    %c0_63 = arith.constant 0 : index
    %c160 = arith.constant 160 : index
    %95 = vector.load %arg12[%c0_62, %c0_63, %c160] : memref<2x8x768xbf16, #tpu.memory_space<vmem>>, vector<2x8x32xbf16>
    %c0_64 = arith.constant 0 : index
    %c0_65 = arith.constant 0 : index
    %c416 = arith.constant 416 : index
    %96 = vector.load %arg12[%c0_64, %c0_65, %c416] : memref<2x8x768xbf16, #tpu.memory_space<vmem>>, vector<2x8x32xbf16>
    %c0_66 = arith.constant 0 : index
    %c0_67 = arith.constant 0 : index
    %c672 = arith.constant 672 : index
    %97 = vector.load %arg12[%c0_66, %c0_67, %c672] : memref<2x8x768xbf16, #tpu.memory_space<vmem>>, vector<2x8x32xbf16>
    "tpu.trace_start"() <{level = 10 : i32, message = "bqd,bkd->bqk"}> : () -> ()
    %cst_68 = arith.constant dense<0.000000e+00> : vector<2x8x8xf32>
    %98 = tpu.matmul %95, %96, %cst_68 {dimension_numbers = #tpu.dot_dimension_numbers<[2], [2], [1], [1], [0, 0, 0, 1, 1, 1], [0], [0]>} : vector<2x8x32xbf16>, vector<2x8x32xbf16>, vector<2x8x8xf32> -> vector<2x8x8xf32>
    "tpu.trace_stop"() : () -> ()
    %cst_69 = arith.constant dense<0xFF800000> : vector<2x8xf32>
    %99 = vector.multi_reduction <maximumf>, %98, %cst_69 [2] : vector<2x8x8xf32> to vector<2x8xf32>
    %100 = vector.shape_cast %99 : vector<2x8xf32> to vector<2x8x1xf32>
    %101 = vector.broadcast %100 : vector<2x8x1xf32> to vector<2x8x8xf32>
    %102 = arith.subf %98, %101 : vector<2x8x8xf32>
    %103 = math.exp %102 : vector<2x8x8xf32>
    %cst_70 = arith.constant dense<0.000000e+00> : vector<2x8xf32>
    %104 = vector.multi_reduction <add>, %103, %cst_70 [2] : vector<2x8x8xf32> to vector<2x8xf32>
    %105 = vector.shape_cast %104 : vector<2x8xf32> to vector<2x8x1xf32>
    %106 = tpu.reciprocal %105 {approx = true} : vector<2x8x1xf32> -> vector<2x8x1xf32>
    %107 = vector.broadcast %106 : vector<2x8x1xf32> to vector<2x8x8xf32>
    %108 = arith.mulf %103, %107 : vector<2x8x8xf32>
    %109 = arith.truncf %108 : vector<2x8x8xf32> to vector<2x8x8xbf16>
    "tpu.trace_start"() <{level = 10 : i32, message = "bqk,bkd->bqd"}> : () -> ()
    %cst_71 = arith.constant dense<0.000000e+00> : vector<2x8x32xf32>
    %110 = tpu.matmul %109, %97, %cst_71 {dimension_numbers = #tpu.dot_dimension_numbers<[2], [1], [1], [2], [0, 0, 0, 1, 1, 2], [0], [0]>} : vector<2x8x8xbf16>, vector<2x8x32xbf16>, vector<2x8x32xf32> -> vector<2x8x32xf32>
    "tpu.trace_stop"() : () -> ()
    %c0_72 = arith.constant 0 : index
    %c0_73 = arith.constant 0 : index
    %c192 = arith.constant 192 : index
    %111 = vector.load %arg12[%c0_72, %c0_73, %c192] : memref<2x8x768xbf16, #tpu.memory_space<vmem>>, vector<2x8x32xbf16>
    %c0_74 = arith.constant 0 : index
    %c0_75 = arith.constant 0 : index
    %c448 = arith.constant 448 : index
    %112 = vector.load %arg12[%c0_74, %c0_75, %c448] : memref<2x8x768xbf16, #tpu.memory_space<vmem>>, vector<2x8x32xbf16>
    %c0_76 = arith.constant 0 : index
    %c0_77 = arith.constant 0 : index
    %c704 = arith.constant 704 : index
    %113 = vector.load %arg12[%c0_76, %c0_77, %c704] : memref<2x8x768xbf16, #tpu.memory_space<vmem>>, vector<2x8x32xbf16>
    "tpu.trace_start"() <{level = 10 : i32, message = "bqd,bkd->bqk"}> : () -> ()
    %cst_78 = arith.constant dense<0.000000e+00> : vector<2x8x8xf32>
    %114 = tpu.matmul %111, %112, %cst_78 {dimension_numbers = #tpu.dot_dimension_numbers<[2], [2], [1], [1], [0, 0, 0, 1, 1, 1], [0], [0]>} : vector<2x8x32xbf16>, vector<2x8x32xbf16>, vector<2x8x8xf32> -> vector<2x8x8xf32>
    "tpu.trace_stop"() : () -> ()
    %cst_79 = arith.constant dense<0xFF800000> : vector<2x8xf32>
    %115 = vector.multi_reduction <maximumf>, %114, %cst_79 [2] : vector<2x8x8xf32> to vector<2x8xf32>
    %116 = vector.shape_cast %115 : vector<2x8xf32> to vector<2x8x1xf32>
    %117 = vector.broadcast %116 : vector<2x8x1xf32> to vector<2x8x8xf32>
    %118 = arith.subf %114, %117 : vector<2x8x8xf32>
    %119 = math.exp %118 : vector<2x8x8xf32>
    %cst_80 = arith.constant dense<0.000000e+00> : vector<2x8xf32>
    %120 = vector.multi_reduction <add>, %119, %cst_80 [2] : vector<2x8x8xf32> to vector<2x8xf32>
    %121 = vector.shape_cast %120 : vector<2x8xf32> to vector<2x8x1xf32>
    %122 = tpu.reciprocal %121 {approx = true} : vector<2x8x1xf32> -> vector<2x8x1xf32>
    %123 = vector.broadcast %122 : vector<2x8x1xf32> to vector<2x8x8xf32>
    %124 = arith.mulf %119, %123 : vector<2x8x8xf32>
    %125 = arith.truncf %124 : vector<2x8x8xf32> to vector<2x8x8xbf16>
    "tpu.trace_start"() <{level = 10 : i32, message = "bqk,bkd->bqd"}> : () -> ()
    %cst_81 = arith.constant dense<0.000000e+00> : vector<2x8x32xf32>
    %126 = tpu.matmul %125, %113, %cst_81 {dimension_numbers = #tpu.dot_dimension_numbers<[2], [1], [1], [2], [0, 0, 0, 1, 1, 2], [0], [0]>} : vector<2x8x8xbf16>, vector<2x8x32xbf16>, vector<2x8x32xf32> -> vector<2x8x32xf32>
    "tpu.trace_stop"() : () -> ()
    %c0_82 = arith.constant 0 : index
    %c0_83 = arith.constant 0 : index
    %c224 = arith.constant 224 : index
    %127 = vector.load %arg12[%c0_82, %c0_83, %c224] : memref<2x8x768xbf16, #tpu.memory_space<vmem>>, vector<2x8x32xbf16>
    %c0_84 = arith.constant 0 : index
    %c0_85 = arith.constant 0 : index
    %c480 = arith.constant 480 : index
    %128 = vector.load %arg12[%c0_84, %c0_85, %c480] : memref<2x8x768xbf16, #tpu.memory_space<vmem>>, vector<2x8x32xbf16>
    %c0_86 = arith.constant 0 : index
    %c0_87 = arith.constant 0 : index
    %c736 = arith.constant 736 : index
    %129 = vector.load %arg12[%c0_86, %c0_87, %c736] : memref<2x8x768xbf16, #tpu.memory_space<vmem>>, vector<2x8x32xbf16>
    "tpu.trace_start"() <{level = 10 : i32, message = "bqd,bkd->bqk"}> : () -> ()
    %cst_88 = arith.constant dense<0.000000e+00> : vector<2x8x8xf32>
    %130 = tpu.matmul %127, %128, %cst_88 {dimension_numbers = #tpu.dot_dimension_numbers<[2], [2], [1], [1], [0, 0, 0, 1, 1, 1], [0], [0]>} : vector<2x8x32xbf16>, vector<2x8x32xbf16>, vector<2x8x8xf32> -> vector<2x8x8xf32>
    "tpu.trace_stop"() : () -> ()
    %cst_89 = arith.constant dense<0xFF800000> : vector<2x8xf32>
    %131 = vector.multi_reduction <maximumf>, %130, %cst_89 [2] : vector<2x8x8xf32> to vector<2x8xf32>
    %132 = vector.shape_cast %131 : vector<2x8xf32> to vector<2x8x1xf32>
    %133 = vector.broadcast %132 : vector<2x8x1xf32> to vector<2x8x8xf32>
    %134 = arith.subf %130, %133 : vector<2x8x8xf32>
    %135 = math.exp %134 : vector<2x8x8xf32>
    %cst_90 = arith.constant dense<0.000000e+00> : vector<2x8xf32>
    %136 = vector.multi_reduction <add>, %135, %cst_90 [2] : vector<2x8x8xf32> to vector<2x8xf32>
    %137 = vector.shape_cast %136 : vector<2x8xf32> to vector<2x8x1xf32>
    %138 = tpu.reciprocal %137 {approx = true} : vector<2x8x1xf32> -> vector<2x8x1xf32>
    %139 = vector.broadcast %138 : vector<2x8x1xf32> to vector<2x8x8xf32>
    %140 = arith.mulf %135, %139 : vector<2x8x8xf32>
    %141 = arith.truncf %140 : vector<2x8x8xf32> to vector<2x8x8xbf16>
    "tpu.trace_start"() <{level = 10 : i32, message = "bqk,bkd->bqd"}> : () -> ()
    %cst_91 = arith.constant dense<0.000000e+00> : vector<2x8x32xf32>
    %142 = tpu.matmul %141, %129, %cst_91 {dimension_numbers = #tpu.dot_dimension_numbers<[2], [1], [1], [2], [0, 0, 0, 1, 1, 2], [0], [0]>} : vector<2x8x8xbf16>, vector<2x8x32xbf16>, vector<2x8x32xf32> -> vector<2x8x32xf32>
    "tpu.trace_stop"() : () -> ()
    %143 = tpu.concatenate %30, %46, %62, %78, %94, %110, %126, %142 in 2 : vector<2x8x32xf32>, vector<2x8x32xf32>, vector<2x8x32xf32>, vector<2x8x32xf32>, vector<2x8x32xf32>, vector<2x8x32xf32>, vector<2x8x32xf32>, vector<2x8x32xf32> -> vector<2x8x256xf32>
    %144 = vector.shape_cast %143 : vector<2x8x256xf32> to vector<16x256xf32>
    %c0_92 = arith.constant 0 : index
    %c0_93 = arith.constant 0 : index
    %c0_94 = arith.constant 0 : index
    %145 = vector.load %arg4[%c0_92, %c0_93, %c0_94] : memref<1x256x256xbf16, #tpu.memory_space<vmem>>, vector<1x256x256xbf16>
    %146 = vector.shape_cast %145 : vector<1x256x256xbf16> to vector<256x256xbf16>
    %c0_95 = arith.constant 0 : index
    %c0_96 = arith.constant 0 : index
    %c768 = arith.constant 768 : index
    %147 = vector.load %arg7[%c0_95, %c0_96, %c768] : memref<1x1x4352xf32, #tpu.memory_space<vmem>>, vector<1x1x256xf32>
    %148 = vector.shape_cast %147 : vector<1x1x256xf32> to vector<1x256xf32>
    %149 = arith.truncf %144 : vector<16x256xf32> to vector<16x256xbf16>
    %cst_97 = arith.constant dense<0.000000e+00> : vector<16x256xf32>
    %150 = tpu.matmul %149, %146, %cst_97 {dimension_numbers = #tpu.dot_dimension_numbers<[1], [0], [0], [1], [0, 0, 1, 1], [], []>} : vector<16x256xbf16>, vector<256x256xbf16>, vector<16x256xf32> -> vector<16x256xf32>
    %151 = vector.broadcast %148 : vector<1x256xf32> to vector<16x256xf32>
    %152 = arith.addf %150, %151 : vector<16x256xf32>
    %153 = arith.addf %152, %3 : vector<16x256xf32>
    %c0_98 = arith.constant 0 : index
    %c0_99 = arith.constant 0 : index
    %c3328 = arith.constant 3328 : index
    %154 = vector.load %arg7[%c0_98, %c0_99, %c3328] : memref<1x1x4352xf32, #tpu.memory_space<vmem>>, vector<1x1x256xf32>
    %155 = vector.shape_cast %154 : vector<1x1x256xf32> to vector<1x256xf32>
    %c0_100 = arith.constant 0 : index
    %c0_101 = arith.constant 0 : index
    %c3584 = arith.constant 3584 : index
    %156 = vector.load %arg7[%c0_100, %c0_101, %c3584] : memref<1x1x4352xf32, #tpu.memory_space<vmem>>, vector<1x1x256xf32>
    %157 = vector.shape_cast %156 : vector<1x1x256xf32> to vector<1x256xf32>
    %cst_102 = arith.constant dense<0.000000e+00> : vector<16xf32>
    %158 = vector.multi_reduction <add>, %153, %cst_102 [1] : vector<16x256xf32> to vector<16xf32>
    %159 = vector.shape_cast %158 : vector<16xf32> to vector<16x1xf32>
    %cst_103 = arith.constant 2.560000e+02 : f32
    %160 = vector.broadcast %cst_103 : f32 to vector<16x1xf32>
    %161 = arith.divf %159, %160 : vector<16x1xf32>
    %162 = vector.broadcast %161 : vector<16x1xf32> to vector<16x256xf32>
    %163 = arith.subf %153, %162 : vector<16x256xf32>
    %164 = arith.mulf %163, %163 : vector<16x256xf32>
    %cst_104 = arith.constant dense<0.000000e+00> : vector<16xf32>
    %165 = vector.multi_reduction <add>, %164, %cst_104 [1] : vector<16x256xf32> to vector<16xf32>
    %166 = vector.shape_cast %165 : vector<16xf32> to vector<16x1xf32>
    %cst_105 = arith.constant 2.560000e+02 : f32
    %167 = vector.broadcast %cst_105 : f32 to vector<16x1xf32>
    %168 = arith.divf %166, %167 : vector<16x1xf32>
    %cst_106 = arith.constant 9.99999974E-6 : f32
    %169 = vector.broadcast %cst_106 : f32 to vector<16x1xf32>
    %170 = arith.addf %168, %169 : vector<16x1xf32>
    %171 = math.rsqrt %170 : vector<16x1xf32>
    %172 = vector.broadcast %171 : vector<16x1xf32> to vector<16x256xf32>
    %173 = arith.mulf %163, %172 : vector<16x256xf32>
    %174 = vector.broadcast %155 : vector<1x256xf32> to vector<16x256xf32>
    %175 = arith.mulf %173, %174 : vector<16x256xf32>
    %176 = vector.broadcast %157 : vector<1x256xf32> to vector<16x256xf32>
    %177 = arith.addf %175, %176 : vector<16x256xf32>
    %c0_107 = arith.constant 0 : index
    %c0_108 = arith.constant 0 : index
    %c0_109 = arith.constant 0 : index
    %178 = vector.load %arg5[%c0_107, %c0_108, %c0_109] : memref<1x256x2048xbf16, #tpu.memory_space<vmem>>, vector<1x256x2048xbf16>
    %179 = vector.shape_cast %178 : vector<1x256x2048xbf16> to vector<256x2048xbf16>
    %c0_110 = arith.constant 0 : index
    %c0_111 = arith.constant 0 : index
    %c1024 = arith.constant 1024 : index
    %180 = vector.load %arg7[%c0_110, %c0_111, %c1024] : memref<1x1x4352xf32, #tpu.memory_space<vmem>>, vector<1x1x2048xf32>
    %181 = vector.shape_cast %180 : vector<1x1x2048xf32> to vector<1x2048xf32>
    %182 = arith.truncf %177 : vector<16x256xf32> to vector<16x256xbf16>
    %cst_112 = arith.constant dense<0.000000e+00> : vector<16x2048xf32>
    %183 = tpu.matmul %182, %179, %cst_112 {dimension_numbers = #tpu.dot_dimension_numbers<[1], [0], [0], [1], [0, 0, 1, 1], [], []>} : vector<16x256xbf16>, vector<256x2048xbf16>, vector<16x2048xf32> -> vector<16x2048xf32>
    %184 = vector.broadcast %181 : vector<1x2048xf32> to vector<16x2048xf32>
    %185 = arith.addf %183, %184 : vector<16x2048xf32>
    %cst_113 = arith.constant 0.000000e+00 : f32
    %186 = vector.broadcast %cst_113 : f32 to vector<16x2048xf32>
    %187 = arith.maximumf %185, %186 : vector<16x2048xf32>
    %c0_114 = arith.constant 0 : index
    %c0_115 = arith.constant 0 : index
    %c0_116 = arith.constant 0 : index
    %188 = vector.load %arg6[%c0_114, %c0_115, %c0_116] : memref<1x2048x256xbf16, #tpu.memory_space<vmem>>, vector<1x2048x256xbf16>
    %189 = vector.shape_cast %188 : vector<1x2048x256xbf16> to vector<2048x256xbf16>
    %c0_117 = arith.constant 0 : index
    %c0_118 = arith.constant 0 : index
    %c3072 = arith.constant 3072 : index
    %190 = vector.load %arg7[%c0_117, %c0_118, %c3072] : memref<1x1x4352xf32, #tpu.memory_space<vmem>>, vector<1x1x256xf32>
    %191 = vector.shape_cast %190 : vector<1x1x256xf32> to vector<1x256xf32>
    %192 = arith.truncf %187 : vector<16x2048xf32> to vector<16x2048xbf16>
    %cst_119 = arith.constant dense<0.000000e+00> : vector<16x256xf32>
    %193 = tpu.matmul %192, %189, %cst_119 {dimension_numbers = #tpu.dot_dimension_numbers<[1], [0], [0], [1], [0, 0, 1, 1], [], []>} : vector<16x2048xbf16>, vector<2048x256xbf16>, vector<16x256xf32> -> vector<16x256xf32>
    %194 = vector.broadcast %191 : vector<1x256xf32> to vector<16x256xf32>
    %195 = arith.addf %193, %194 : vector<16x256xf32>
    %196 = arith.addf %195, %177 : vector<16x256xf32>
    %c0_120 = arith.constant 0 : index
    %c0_121 = arith.constant 0 : index
    %c3840 = arith.constant 3840 : index
    %197 = vector.load %arg7[%c0_120, %c0_121, %c3840] : memref<1x1x4352xf32, #tpu.memory_space<vmem>>, vector<1x1x256xf32>
    %198 = vector.shape_cast %197 : vector<1x1x256xf32> to vector<1x256xf32>
    %c0_122 = arith.constant 0 : index
    %c0_123 = arith.constant 0 : index
    %c4096 = arith.constant 4096 : index
    %199 = vector.load %arg7[%c0_122, %c0_123, %c4096] : memref<1x1x4352xf32, #tpu.memory_space<vmem>>, vector<1x1x256xf32>
    %200 = vector.shape_cast %199 : vector<1x1x256xf32> to vector<1x256xf32>
    %cst_124 = arith.constant dense<0.000000e+00> : vector<16xf32>
    %201 = vector.multi_reduction <add>, %196, %cst_124 [1] : vector<16x256xf32> to vector<16xf32>
    %202 = vector.shape_cast %201 : vector<16xf32> to vector<16x1xf32>
    %cst_125 = arith.constant 2.560000e+02 : f32
    %203 = vector.broadcast %cst_125 : f32 to vector<16x1xf32>
    %204 = arith.divf %202, %203 : vector<16x1xf32>
    %205 = vector.broadcast %204 : vector<16x1xf32> to vector<16x256xf32>
    %206 = arith.subf %196, %205 : vector<16x256xf32>
    %207 = arith.mulf %206, %206 : vector<16x256xf32>
    %cst_126 = arith.constant dense<0.000000e+00> : vector<16xf32>
    %208 = vector.multi_reduction <add>, %207, %cst_126 [1] : vector<16x256xf32> to vector<16xf32>
    %209 = vector.shape_cast %208 : vector<16xf32> to vector<16x1xf32>
    %cst_127 = arith.constant 2.560000e+02 : f32
    %210 = vector.broadcast %cst_127 : f32 to vector<16x1xf32>
    %211 = arith.divf %209, %210 : vector<16x1xf32>
    %cst_128 = arith.constant 9.99999974E-6 : f32
    %212 = vector.broadcast %cst_128 : f32 to vector<16x1xf32>
    %213 = arith.addf %211, %212 : vector<16x1xf32>
    %214 = math.rsqrt %213 : vector<16x1xf32>
    %215 = vector.broadcast %214 : vector<16x1xf32> to vector<16x256xf32>
    %216 = arith.mulf %206, %215 : vector<16x256xf32>
    %217 = vector.broadcast %198 : vector<1x256xf32> to vector<16x256xf32>
    %218 = arith.mulf %216, %217 : vector<16x256xf32>
    %219 = vector.broadcast %200 : vector<1x256xf32> to vector<16x256xf32>
    %220 = arith.addf %218, %219 : vector<16x256xf32>
    %c0_129 = arith.constant 0 : index
    %c0_130 = arith.constant 0 : index
    %221 = vector.load %arg11[%c0_129, %c0_130] : memref<16x256xf32, #tpu.memory_space<vmem>>, vector<16x256xf32>
    tpu.vector_store %arg11[%c0_129, %c0_130], %220 {strides = array<i32>} : memref<16x256xf32, #tpu.memory_space<vmem>>, vector<16x256xf32>,
    %c5_i32 = arith.constant 5 : i32
    %222 = arith.cmpi eq, %arg1, %c5_i32 : i32
    %223 = arith.extui %222 : i1 to i32
    %c0_i32_131 = arith.constant 0 : i32
    %224 = arith.cmpi ne, %223, %c0_i32_131 : i32
    scf.if %224 {
      %c0_132 = arith.constant 0 : index
      %c0_133 = arith.constant 0 : index
      %225 = vector.load %arg8[%c0_132, %c0_133] : memref<256x128xbf16, #tpu.memory_space<vmem>>, vector<256x128xbf16>
      %c0_134 = arith.constant 0 : index
      %c0_135 = arith.constant 0 : index
      %226 = vector.load %arg9[%c0_134, %c0_135] : memref<1x128xf32, #tpu.memory_space<vmem>>, vector<1x128xf32>
      %227 = arith.truncf %220 : vector<16x256xf32> to vector<16x256xbf16>
      %cst_136 = arith.constant dense<0.000000e+00> : vector<16x128xf32>
      %228 = tpu.matmul %227, %225, %cst_136 {dimension_numbers = #tpu.dot_dimension_numbers<[1], [0], [0], [1], [0, 0, 1, 1], [], []>} : vector<16x256xbf16>, vector<256x128xbf16>, vector<16x128xf32> -> vector<16x128xf32>
      %229 = vector.broadcast %226 : vector<1x128xf32> to vector<16x128xf32>
      %230 = arith.addf %228, %229 : vector<16x128xf32>
      %c0_137 = arith.constant 0 : index
      %c0_138 = arith.constant 0 : index
      %231 = vector.load %arg10[%c0_137, %c0_138] : memref<16x128xf32, #tpu.memory_space<vmem>>, vector<16x128xf32>
      tpu.vector_store %arg10[%c0_137, %c0_138], %230 {strides = array<i32>} : memref<16x128xf32, #tpu.memory_space<vmem>>, vector<16x128xf32>,
    } else {
    }
    return
  }
  func.func @transform_0(%arg0: i32, %arg1: i32) -> (i32, i32) {
    %c0_i32 = arith.constant 0 : i32
    %c0_i32_0 = arith.constant 0 : i32
    return %arg0, %c0_i32 : i32, i32
  }
  func.func @transform_1(%arg0: i32, %arg1: i32) -> (i32, i32, i32) {
    %c0_i32 = arith.constant 0 : i32
    %c0_i32_0 = arith.constant 0 : i32
    %c0_i32_1 = arith.constant 0 : i32
    return %arg1, %c0_i32, %c0_i32_0 : i32, i32, i32
  }
  func.func @transform_2(%arg0: i32, %arg1: i32) -> (i32, i32, i32) {
    %c0_i32 = arith.constant 0 : i32
    %c0_i32_0 = arith.constant 0 : i32
    %c0_i32_1 = arith.constant 0 : i32
    return %arg1, %c0_i32, %c0_i32_0 : i32, i32, i32
  }
  func.func @transform_3(%arg0: i32, %arg1: i32) -> (i32, i32, i32) {
    %c0_i32 = arith.constant 0 : i32
    %c0_i32_0 = arith.constant 0 : i32
    %c0_i32_1 = arith.constant 0 : i32
    return %arg1, %c0_i32, %c0_i32_0 : i32, i32, i32
  }
  func.func @transform_4(%arg0: i32, %arg1: i32) -> (i32, i32, i32) {
    %c0_i32 = arith.constant 0 : i32
    %c0_i32_0 = arith.constant 0 : i32
    %c0_i32_1 = arith.constant 0 : i32
    return %arg1, %c0_i32, %c0_i32_0 : i32, i32, i32
  }
  func.func @transform_5(%arg0: i32, %arg1: i32) -> (i32, i32, i32) {
    %c0_i32 = arith.constant 0 : i32
    %c0_i32_0 = arith.constant 0 : i32
    %c0_i32_1 = arith.constant 0 : i32
    return %arg1, %c0_i32, %c0_i32_0 : i32, i32, i32
  }
  func.func @transform_6(%arg0: i32, %arg1: i32) -> (i32, i32) {
    %c0_i32 = arith.constant 0 : i32
    %c0_i32_0 = arith.constant 0 : i32
    %c0_i32_1 = arith.constant 0 : i32
    return %c0_i32, %c0_i32_0 : i32, i32
  }
  func.func @transform_7(%arg0: i32, %arg1: i32) -> (i32, i32) {
    %c0_i32 = arith.constant 0 : i32
    %c0_i32_0 = arith.constant 0 : i32
    %c0_i32_1 = arith.constant 0 : i32
    return %c0_i32, %c0_i32_0 : i32, i32
  }
  func.func @transform_8(%arg0: i32, %arg1: i32) -> (i32, i32) {
    %c0_i32 = arith.constant 0 : i32
    %c0_i32_0 = arith.constant 0 : i32
    return %arg0, %c0_i32 : i32, i32
  }
}

</mosaic_0001>

<llo_original>
// kernel: transformer_forward.1
$region0: #{transformer_forward.1}
  #allocation0 [shape = 'u32[]', space=smem, size = 0x4, offset = 0x4, fixed_abs, tag = 'smem constant byte address 0x4 - core index']
  #allocation1 [shape = 'u32[144,128]{1,0:T(1,128)}', space=vmem, size = 0x12000, scoped, tag = 'internal scratch']
  #allocation2 [shape = 'f32[16,256]{1,0:T(8,128)}', space=vmem, size = 0x4000, scoped, tag = 'scratch operand']
  #allocation3 [shape = 'bf16[2,8,768]{2,1,0:T(8,128)(2,1)}', space=vmem, size = 0x6000, scoped, tag = 'scratch operand']
  %s0 = inlined_call_operand.hbm [shape: f32[16,256], index: 0, kind: input, shape index: {}]
  %s1 = inlined_call_operand.hbm [shape: bf16[6,256,768], index: 1, kind: input, shape index: {}]
  %s2 = inlined_call_operand.hbm [shape: bf16[6,256,256], index: 2, kind: input, shape index: {}]
  %s3 = inlined_call_operand.hbm [shape: bf16[6,256,2048], index: 3, kind: input, shape index: {}]
  %s4 = inlined_call_operand.hbm [shape: bf16[6,2048,256], index: 4, kind: input, shape index: {}]
  %s5 = inlined_call_operand.hbm [shape: f32[6,1,4352], index: 5, kind: input, shape index: {}]
  %s6 = inlined_call_operand.hbm [shape: bf16[256,128], index: 6, kind: input, shape index: {}]
  %s7 = inlined_call_operand.hbm [shape: f32[1,128], index: 7, kind: input, shape index: {}]
  %s8 = inlined_call_operand.vmem [shape: f32[16,128], index: 8, kind: output, shape index: {}]
  %s9 = sld [smem:[#allocation0]]
  $region105: #{transformer_forward.1} parent=0
    _
  %s11 = ssub.s32 1, %s9
  %s12 = scalar_select 0, %s11, %s9
  $region1: #{transformer_forward.1} parent=0
    #allocation4 [shape = 'u8[16384]{0}', space=vmem, size = 0x4000, scoped, tag = 'input window, operand 0, single buffered']
    #allocation5 [shape = 's32[2]{0}', space=sflag, size = 0x8, scoped, tag = 'scoped memory for transformer_forward.1']
    #allocation6 [shape = 'u8[786432]{0}', space=vmem, size = 0xc0000, scoped, tag = 'input window, operand 1']
    #allocation7 [shape = 's32[2]{0}', space=sflag, size = 0x8, scoped, tag = 'scoped memory for transformer_forward.1']
    #allocation8 [shape = 'u8[262144]{0}', space=vmem, size = 0x40000, scoped, tag = 'input window, operand 2']
    #allocation9 [shape = 'u8[2097152]{0}', space=vmem, size = 0x200000, scoped, tag = 'input window, operand 3']
    #allocation10 [shape = 's32[2]{0}', space=sflag, size = 0x8, scoped, tag = 'scoped memory for transformer_forward.1']
    #allocation11 [shape = 'u8[2097152]{0}', space=vmem, size = 0x200000, scoped, tag = 'input window, operand 4']
    #allocation12 [shape = 'u8[34816]{0}', space=vmem, size = 0x8800, scoped, tag = 'input window, operand 5']
    #allocation13 [shape = 's32[2]{0}', space=sflag, size = 0x8, scoped, tag = 'scoped memory for transformer_forward.1']
    #allocation14 [shape = 'u8[65536]{0}', space=vmem, size = 0x10000, scoped, tag = 'input window, operand 6, single buffered']
    #allocation15 [shape = 'u8[512]{0}', space=vmem, size = 0x400, scoped, tag = 'input window, operand 7, single buffered']
    #allocation16 [shape = 's32[1]{0}', space=sflag, size = 0x4, scoped, tag = 'scoped memory for transformer_forward.1']
    %13 = vsyncpa [#allocation5], 0
    %14 = vsyncpa [#allocation7], 0
    %s15 = scalar_lea.sflag [#allocation7], 1
    %16 = vsyncpa %s15, 0
    %17 = vsyncpa [#allocation10], 0
    %s18 = scalar_lea.sflag [#allocation10], 1
    %19 = vsyncpa %s18, 0
    %20 = vsyncpa [#allocation13], 0
    %s21 = scalar_lea.sflag [#allocation13], 1
    %22 = vsyncpa %s21, 0
    %23 = vsyncpa [#allocation16], 0
    loop: start=0, step=1, limit=8
    $region2: #{transformer_forward.1} parent=1 // loop_pre_header
      _
    $region3: #{transformer_forward.1} parent=1 // loop_header
      %s25 = sphi 0, %s29
      %p26 = scmp.ge.s32.totalorder %s25, 8
      %s32 = sphi 0, %s44
      %s33 = sphi 0, %s40
      %s34 = sphi 0, %s32
      %s35 = sphi 0, %s33
      %s36 = sphi 0, %s34
      %s37 = sphi 0, %s35
      %s47 = sphi 0, %s49
      %s50 = sphi 0, %s47
      %s51 = sphi 0, %s50
      %s67 = sphi 0, %s51
      %s73 = sphi 0, %s75
      %s76 = sphi 0, %s73
      %s77 = sphi 0, %s76
      %s93 = sphi 0, %s77
      %s99 = sphi 0, %s101
      %s102 = sphi 0, %s99
      %s103 = sphi 0, %s102
      %s119 = sphi 0, %s103
      %s125 = sphi 0, %s127
      %s128 = sphi 0, %s125
      %s129 = sphi 0, %s128
      %s145 = sphi 0, %s129
      %s151 = sphi 0, %s153
      %s154 = sphi 0, %s151
      %s155 = sphi 0, %s154
      %s171 = sphi 0, %s155
      %s177 = sphi 0, %s179
      %s180 = sphi 0, %s177
      %s181 = sphi 0, %s180
      %s197 = sphi 0, %s181
      %s201 = sphi 0, %s201
      %s203 = sphi 0, %s201
      %s204 = sphi 0, %s203
      %s218 = sphi 0, %s204
      %s222 = sphi 0, %s222
      %s224 = sphi 0, %s222
      %s225 = sphi 0, %s224
      %s239 = sphi 0, %s225
      %s245 = sphi 0, %s247
      %s248 = sphi 0, %s245
      %s249 = sphi 0, %s248
      %s265 = sphi 0, %s249
    $region4: #{transformer_forward.1} parent=1 // loop_header_branch
      %28 = sbr.rel (%p26) target = $region8
    $region5: #{transformer_forward.1} parent=1 // loop_body
      %s30 = ssub.s32 %s25, 1
      %s31 = ssub.s32 %s25, 2
      %s38 = sadd.s32 1, %s33
      %p39 = scmp.ge.s32.totalorder %s38, 6
      %s40 = scalar_select %p39, 0, %s38
      %s41 = sadd.s32 1, %s32
      %s42 = scalar_select %p39, %s41, %s32
      %p43 = scmp.ge.s32.totalorder %s42, 1
      %s44 = scalar_select %p43, 0, %s42
      %s45 = ssub.s32 %s32, %s44
      %p46 = scmp.eq.s32.totalorder %s45, 0
      %s48 = sadd.s32 %s47, 1
      %s49 = scalar_select %p46, %s47, %s48
      %p52 = pneg %p46
      %p53 = scmp.eq.s32.totalorder %s25, 5
      %p54 = por %p52, %p53
      %p55 = scmp.ne.s32.totalorder %s47, %s50
      %p56 = scmp.eq.s32.totalorder %s25, 0
      %p57 = por %p55, %p56
      %p58 = scmp.ne.s32.totalorder %s47, %s50
      %p59 = scmp.eq.s32.totalorder %s30, 5
      %p60 = por %p58, %p59
      %p61 = scmp.ne.s32.totalorder %s50, %s51
      %p62 = scmp.eq.s32.totalorder %s30, 0
      %p63 = por %p61, %p62
      %p64 = scmp.ne.s32.totalorder %s50, %s51
      %p65 = scmp.eq.s32.totalorder %s31, 5
      %p66 = por %p64, %p65
      %p68 = scmp.ne.s32.totalorder %s51, %s67
      %p69 = scmp.eq.s32.totalorder %s31, 0
      %p70 = por %p68, %p69
      %s71 = ssub.s32 %s33, %s40
      %p72 = scmp.eq.s32.totalorder %s71, 0
      %s74 = sadd.s32 %s73, 1
      %s75 = scalar_select %p72, %s73, %s74
      %p78 = pneg %p72
      %p79 = scmp.eq.s32.totalorder %s25, 5
      %p80 = por %p78, %p79
      %p81 = scmp.ne.s32.totalorder %s73, %s76
      %p82 = scmp.eq.s32.totalorder %s25, 0
      %p83 = por %p81, %p82
      %p84 = scmp.ne.s32.totalorder %s73, %s76
      %p85 = scmp.eq.s32.totalorder %s30, 5
      %p86 = por %p84, %p85
      %p87 = scmp.ne.s32.totalorder %s76, %s77
      %p88 = scmp.eq.s32.totalorder %s30, 0
      %p89 = por %p87, %p88
      %p90 = scmp.ne.s32.totalorder %s76, %s77
      %p91 = scmp.eq.s32.totalorder %s31, 5
      %p92 = por %p90, %p91
      %p94 = scmp.ne.s32.totalorder %s77, %s93
      %p95 = scmp.eq.s32.totalorder %s31, 0
      %p96 = por %p94, %p95
      %s97 = ssub.s32 %s33, %s40
      %p98 = scmp.eq.s32.totalorder %s97, 0
      %s100 = sadd.s32 %s99, 1
      %s101 = scalar_select %p98, %s99, %s100
      %p104 = pneg %p98
      %p105 = scmp.eq.s32.totalorder %s25, 5
      %p106 = por %p104, %p105
      %p107 = scmp.ne.s32.totalorder %s99, %s102
      %p108 = scmp.eq.s32.totalorder %s25, 0
      %p109 = por %p107, %p108
      %p110 = scmp.ne.s32.totalorder %s99, %s102
      %p111 = scmp.eq.s32.totalorder %s30, 5
      %p112 = por %p110, %p111
      %p113 = scmp.ne.s32.totalorder %s102, %s103
      %p114 = scmp.eq.s32.totalorder %s30, 0
      %p115 = por %p113, %p114
      %p116 = scmp.ne.s32.totalorder %s102, %s103
      %p117 = scmp.eq.s32.totalorder %s31, 5
      %p118 = por %p116, %p117
      %p120 = scmp.ne.s32.totalorder %s103, %s119
      %p121 = scmp.eq.s32.totalorder %s31, 0
      %p122 = por %p120, %p121
      %s123 = ssub.s32 %s33, %s40
      %p124 = scmp.eq.s32.totalorder %s123, 0
      %s126 = sadd.s32 %s125, 1
      %s127 = scalar_select %p124, %s125, %s126
      %p130 = pneg %p124
      %p131 = scmp.eq.s32.totalorder %s25, 5
      %p132 = por %p130, %p131
      %p133 = scmp.ne.s32.totalorder %s125, %s128
      %p134 = scmp.eq.s32.totalorder %s25, 0
      %p135 = por %p133, %p134
      %p136 = scmp.ne.s32.totalorder %s125, %s128
      %p137 = scmp.eq.s32.totalorder %s30, 5
      %p138 = por %p136, %p137
      %p139 = scmp.ne.s32.totalorder %s128, %s129
      %p140 = scmp.eq.s32.totalorder %s30, 0
      %p141 = por %p139, %p140
      %p142 = scmp.ne.s32.totalorder %s128, %s129
      %p143 = scmp.eq.s32.totalorder %s31, 5
      %p144 = por %p142, %p143
      %p146 = scmp.ne.s32.totalorder %s129, %s145
      %p147 = scmp.eq.s32.totalorder %s31, 0
      %p148 = por %p146, %p147
      %s149 = ssub.s32 %s33, %s40
      %p150 = scmp.eq.s32.totalorder %s149, 0
      %s152 = sadd.s32 %s151, 1
      %s153 = scalar_select %p150, %s151, %s152
      %p156 = pneg %p150
      %p157 = scmp.eq.s32.totalorder %s25, 5
      %p158 = por %p156, %p157
      %p159 = scmp.ne.s32.totalorder %s151, %s154
      %p160 = scmp.eq.s32.totalorder %s25, 0
      %p161 = por %p159, %p160
      %p162 = scmp.ne.s32.totalorder %s151, %s154
      %p163 = scmp.eq.s32.totalorder %s30, 5
      %p164 = por %p162, %p163
      %p165 = scmp.ne.s32.totalorder %s154, %s155
      %p166 = scmp.eq.s32.totalorder %s30, 0
      %p167 = por %p165, %p166
      %p168 = scmp.ne.s32.totalorder %s154, %s155
      %p169 = scmp.eq.s32.totalorder %s31, 5
      %p170 = por %p168, %p169
      %p172 = scmp.ne.s32.totalorder %s155, %s171
      %p173 = scmp.eq.s32.totalorder %s31, 0
      %p174 = por %p172, %p173
      %s175 = ssub.s32 %s33, %s40
      %p176 = scmp.eq.s32.totalorder %s175, 0
      %s178 = sadd.s32 %s177, 1
      %s179 = scalar_select %p176, %s177, %s178
      %p182 = pneg %p176
      %p183 = scmp.eq.s32.totalorder %s25, 5
      %p184 = por %p182, %p183
      %p185 = scmp.ne.s32.totalorder %s177, %s180
      %p186 = scmp.eq.s32.totalorder %s25, 0
      %p187 = por %p185, %p186
      %p188 = scmp.ne.s32.totalorder %s177, %s180
      %p189 = scmp.eq.s32.totalorder %s30, 5
      %p190 = por %p188, %p189
      %p191 = scmp.ne.s32.totalorder %s180, %s181
      %p192 = scmp.eq.s32.totalorder %s30, 0
      %p193 = por %p191, %p192
      %p194 = scmp.ne.s32.totalorder %s180, %s181
      %p195 = scmp.eq.s32.totalorder %s31, 5
      %p196 = por %p194, %p195
      %p198 = scmp.ne.s32.totalorder %s181, %s197
      %p199 = scmp.eq.s32.totalorder %s31, 0
      %p200 = por %p198, %p199
      %s202 = sadd.s32 %s201, 1
      %p205 = scmp.eq.s32.totalorder %s25, 5
      %p206 = scmp.ne.s32.totalorder %s201, %s203
      %p207 = scmp.eq.s32.totalorder %s25, 0
      %p208 = por %p206, %p207
      %p209 = scmp.ne.s32.totalorder %s201, %s203
      %p210 = scmp.eq.s32.totalorder %s30, 5
      %p211 = por %p209, %p210
      %p212 = scmp.ne.s32.totalorder %s203, %s204
      %p213 = scmp.eq.s32.totalorder %s30, 0
      %p214 = por %p212, %p213
      %p215 = scmp.ne.s32.totalorder %s203, %s204
      %p216 = scmp.eq.s32.totalorder %s31, 5
      %p217 = por %p215, %p216
      %p219 = scmp.ne.s32.totalorder %s204, %s218
      %p220 = scmp.eq.s32.totalorder %s31, 0
      %p221 = por %p219, %p220
      %s223 = sadd.s32 %s222, 1
      %p226 = scmp.eq.s32.totalorder %s25, 5
      %p227 = scmp.ne.s32.totalorder %s222, %s224
      %p228 = scmp.eq.s32.totalorder %s25, 0
      %p229 = por %p227, %p228
      %p230 = scmp.ne.s32.totalorder %s222, %s224
      %p231 = scmp.eq.s32.totalorder %s30, 5
      %p232 = por %p230, %p231
      %p233 = scmp.ne.s32.totalorder %s224, %s225
      %p234 = scmp.eq.s32.totalorder %s30, 0
      %p235 = por %p233, %p234
      %p236 = scmp.ne.s32.totalorder %s224, %s225
      %p237 = scmp.eq.s32.totalorder %s31, 5
      %p238 = por %p236, %p237
      %p240 = scmp.ne.s32.totalorder %s225, %s239
      %p241 = scmp.eq.s32.totalorder %s31, 0
      %p242 = por %p240, %p241
      %s243 = ssub.s32 %s32, %s44
      %p244 = scmp.eq.s32.totalorder %s243, 0
      %s246 = sadd.s32 %s245, 1
      %s247 = scalar_select %p244, %s245, %s246
      %p250 = pneg %p244
      %p251 = scmp.eq.s32.totalorder %s25, 5
      %p252 = por %p250, %p251
      %p253 = scmp.ne.s32.totalorder %s245, %s248
      %p254 = scmp.eq.s32.totalorder %s25, 0
      %p255 = por %p253, %p254
      %p256 = scmp.ne.s32.totalorder %s245, %s248
      %p257 = scmp.eq.s32.totalorder %s30, 5
      %p258 = por %p256, %p257
      %p259 = scmp.ne.s32.totalorder %s248, %s249
      %p260 = scmp.eq.s32.totalorder %s30, 0
      %p261 = por %p259, %p260
      %p262 = scmp.ne.s32.totalorder %s248, %s249
      %p263 = scmp.eq.s32.totalorder %s31, 5
      %p264 = por %p262, %p263
      %p266 = scmp.ne.s32.totalorder %s249, %s265
      %p267 = scmp.eq.s32.totalorder %s31, 0
      %p268 = por %p266, %p267
      %p269 = scmp.le.s32.totalorder 1, %s25
      %p270 = scmp.lt.s32.totalorder %s25, 7
      %p271 = pnand %p269, %p270
      %p272 = pneg %p271
      // Predicated region
      $region9: #{transformer_forward.1} parent=5 // pred_check
        _
      $region10: #{transformer_forward.1} parent=5 // pred_check_branch
        %274 = sbr.rel (%p271) target = $region12
      $region11: #{transformer_forward.1} parent=5 // pred_region
        %s275 = ssub.s32 %s25, 1
        // Predicated region
        $region13: #{transformer_forward.1} parent=11 // pred_check
          %p276 = pneg %p63
        $region14: #{transformer_forward.1} parent=11 // pred_check_branch
          %278 = sbr.rel (%p276) target = $region16
        $region15: #{transformer_forward.1} parent=11 // pred_region
          %s279 = smul.u32 2, %s34
          %s281 = ssub.s32 512, 512
          %282 = vsyncadd [#allocation5], %s281
          %s283 = smul.addr %s279, 2
          %s284 = smul.addr %s283, 128
          %s285 = scalar_lea.hbm %s0, %s284
          %s286 = sshll.u32 [#allocation4], 4
          %s287 = int_to_ptr.vmem [resolvable:$true] %s286
          %292 = dma.hbm_to_vmem [thread:$0]  %s285, 512, %s287, [#allocation5], 256, 256, 16
        $region16: #{transformer_forward.1} parent=11 // pred_fallthru
          _
        // Predicated region
        $region17: #{transformer_forward.1} parent=11 // pred_check
          %p293 = pneg %p214
        $region18: #{transformer_forward.1} parent=11 // pred_check_branch
          %295 = sbr.rel (%p293) target = $region20
        $region19: #{transformer_forward.1} parent=11 // pred_region
          %s297 = ssub.s32 2048, 2048
          %298 = vsyncadd [#allocation13], %s297
          %s299 = sshll.u32 [#allocation14], 4
          %s300 = int_to_ptr.vmem [resolvable:$true] %s299
          %305 = dma.hbm_to_vmem [thread:$0]  %s6, 2048, %s300, [#allocation13], 64, 64, 4
        $region20: #{transformer_forward.1} parent=11 // pred_fallthru
          _
        // Predicated region
        $region21: #{transformer_forward.1} parent=11 // pred_check
          %p306 = pneg %p235
        $region22: #{transformer_forward.1} parent=11 // pred_check_branch
          %308 = sbr.rel (%p306) target = $region24
        $region23: #{transformer_forward.1} parent=11 // pred_region
          %s310 = ssub.s32 16, 16
          %311 = vsyncadd [#allocation16], %s310
          %s313 = sshll.u32 [#allocation15], 4
          %s314 = int_to_ptr.vmem [resolvable:$true] %s313
          %316 = dma.hbm_to_vmem [thread:$0]  %s7, 16, %s314, [#allocation16]
        $region24: #{transformer_forward.1} parent=11 // pred_fallthru
          _
      $region12: #{transformer_forward.1} parent=5 // pred_fallthru
        _
      %p317 = scmp.lt.s32.totalorder %s25, 6
      // Predicated region
      $region25: #{transformer_forward.1} parent=5 // pred_check
        %p318 = pneg %p317
      $region26: #{transformer_forward.1} parent=5 // pred_check_branch
        %320 = sbr.rel (%p318) target = $region28
      $region27: #{transformer_forward.1} parent=5 // pred_region
        // Predicated region
        $region29: #{transformer_forward.1} parent=27 // pred_check
          %p321 = pneg %p83
        $region30: #{transformer_forward.1} parent=27 // pred_check_branch
          %323 = sbr.rel (%p321) target = $region32
        $region31: #{transformer_forward.1} parent=27 // pred_region
          %s324 = sand.u32 %s25, 1
          %s325 = scalar_lea.sflag [#allocation7], %s324
          %s326 = sand.u32 %s73, 1
          %s327 = smul.addr %s326, 768
          %s328 = scalar_lea.vmem [#allocation6], %s327
          %s330 = ssub.s32 12288, 12288
          %331 = vsyncadd %s325, %s330
          %s332 = smul.addr %s33, 192
          %s333 = smul.addr %s332, 64
          %s334 = scalar_lea.hbm %s1, %s333
          %s335 = sshll.u32 %s328, 4
          %s336 = int_to_ptr.vmem [resolvable:$true] %s335
          %341 = dma.hbm_to_vmem [thread:$0]  %s334, 12288, %s336, %s325, 384, 384, 24
        $region32: #{transformer_forward.1} parent=27 // pred_fallthru
          _
        // Predicated region
        $region33: #{transformer_forward.1} parent=27 // pred_check
          %p342 = pneg %p109
        $region34: #{transformer_forward.1} parent=27 // pred_check_branch
          %344 = sbr.rel (%p342) target = $region36
        $region35: #{transformer_forward.1} parent=27 // pred_region
          %s345 = sand.u32 %s25, 1
          %s346 = scalar_lea.sflag [#allocation7], %s345
          %s347 = sand.u32 %s99, 1
          %s348 = smul.addr %s347, 256
          %s349 = scalar_lea.vmem [#allocation8], %s348
          %s351 = ssub.s32 4096, 4096
          %352 = vsyncadd %s346, %s351
          %s353 = smul.addr %s33, 64
          %s354 = smul.addr %s353, 64
          %s355 = scalar_lea.hbm %s2, %s354
          %s356 = sshll.u32 %s349, 4
          %s357 = int_to_ptr.vmem [resolvable:$true] %s356
          %362 = dma.hbm_to_vmem [thread:$0]  %s355, 4096, %s357, %s346, 128, 128, 8
        $region36: #{transformer_forward.1} parent=27 // pred_fallthru
          _
        // Predicated region
        $region37: #{transformer_forward.1} parent=27 // pred_check
          %p363 = pneg %p135
        $region38: #{transformer_forward.1} parent=27 // pred_check_branch
          %365 = sbr.rel (%p363) target = $region40
        $region39: #{transformer_forward.1} parent=27 // pred_region
          %s366 = sand.u32 %s25, 1
          %s367 = scalar_lea.sflag [#allocation10], %s366
          %s368 = sand.u32 %s125, 1
          %s369 = smul.addr %s368, 2048
          %s370 = scalar_lea.vmem [#allocation9], %s369
          %s372 = ssub.s32 32768, 32768
          %373 = vsyncadd %s367, %s372
          %s374 = smul.addr %s33, 512
          %s375 = smul.addr %s374, 64
          %s376 = scalar_lea.hbm %s3, %s375
          %s377 = sshll.u32 %s370, 4
          %s378 = int_to_ptr.vmem [resolvable:$true] %s377
          %383 = dma.hbm_to_vmem [thread:$0]  %s376, 32768, %s378, %s367, 1024, 1024, 64
        $region40: #{transformer_forward.1} parent=27 // pred_fallthru
          _
        // Predicated region
        $region41: #{transformer_forward.1} parent=27 // pred_check
          %p384 = pneg %p161
        $region42: #{transformer_forward.1} parent=27 // pred_check_branch
          %386 = sbr.rel (%p384) target = $region44
        $region43: #{transformer_forward.1} parent=27 // pred_region
          %s387 = sand.u32 %s25, 1
          %s388 = scalar_lea.sflag [#allocation10], %s387
          %s389 = sand.u32 %s151, 1
          %s390 = smul.addr %s389, 2048
          %s391 = scalar_lea.vmem [#allocation11], %s390
          %s393 = ssub.s32 32768, 32768
          %394 = vsyncadd %s388, %s393
          %s395 = smul.addr %s33, 512
          %s396 = smul.addr %s395, 64
          %s397 = scalar_lea.hbm %s4, %s396
          %s398 = sshll.u32 %s391, 4
          %s399 = int_to_ptr.vmem [resolvable:$true] %s398
          %404 = dma.hbm_to_vmem [thread:$0]  %s397, 32768, %s399, %s388, 128, 128, 8
        $region44: #{transformer_forward.1} parent=27 // pred_fallthru
          _
        // Predicated region
        $region45: #{transformer_forward.1} parent=27 // pred_check
          %p405 = pneg %p187
        $region46: #{transformer_forward.1} parent=27 // pred_check_branch
          %407 = sbr.rel (%p405) target = $region48
        $region47: #{transformer_forward.1} parent=27 // pred_region
          %s408 = sand.u32 %s25, 1
          %s409 = scalar_lea.sflag [#allocation13], %s408
          %s410 = sand.u32 %s177, 1
          %s411 = smul.addr %s410, 34
          %s412 = scalar_lea.vmem [#allocation12], %s411
          %s414 = ssub.s32 544, 544
          %415 = vsyncadd %s409, %s414
          %s416 = smul.addr %s33, 34
          %s417 = smul.addr %s416, 16
          %s418 = scalar_lea.hbm %s5, %s417
          %s420 = sshll.u32 %s412, 4
          %s421 = int_to_ptr.vmem [resolvable:$true] %s420
          %423 = dma.hbm_to_vmem [thread:$0]  %s418, 544, %s421, %s409
        $region48: #{transformer_forward.1} parent=27 // pred_fallthru
          _
      $region28: #{transformer_forward.1} parent=5 // pred_fallthru
        _
      %p424 = scmp.le.s32.totalorder 1, %s25
      %p425 = scmp.lt.s32.totalorder %s25, 7
      %p426 = pnand %p424, %p425
      %p427 = pneg %p426
      // Predicated region
      $region49: #{transformer_forward.1} parent=5 // pred_check
        _
      $region50: #{transformer_forward.1} parent=5 // pred_check_branch
        %429 = sbr.rel (%p426) target = $region52
      $region51: #{transformer_forward.1} parent=5 // pred_region
        %s430 = ssub.s32 %s25, 1
        // Predicated region
        $region53: #{transformer_forward.1} parent=51 // pred_check
          %p431 = pneg %p63
        $region54: #{transformer_forward.1} parent=51 // pred_check_branch
          %433 = sbr.rel (%p431) target = $region56
        $region55: #{transformer_forward.1} parent=51 // pred_region
          %434 = dma.done [#allocation5], 512
        $region56: #{transformer_forward.1} parent=51 // pred_fallthru
          _
        %s435 = sand.u32 %s30, 1
        %s436 = scalar_lea.sflag [#allocation7], %s435
        %s437 = sand.u32 %s76, 1
        %s438 = smul.addr %s437, 768
        %s439 = scalar_lea.vmem [#allocation6], %s438
        // Predicated region
        $region57: #{transformer_forward.1} parent=51 // pred_check
          %p440 = pneg %p89
        $region58: #{transformer_forward.1} parent=51 // pred_check_branch
          %442 = sbr.rel (%p440) target = $region60
        $region59: #{transformer_forward.1} parent=51 // pred_region
          %443 = dma.done %s436, 12288
        $region60: #{transformer_forward.1} parent=51 // pred_fallthru
          _
        %s444 = sand.u32 %s30, 1
        %s445 = scalar_lea.sflag [#allocation7], %s444
        %s446 = sand.u32 %s102, 1
        %s447 = smul.addr %s446, 256
        %s448 = scalar_lea.vmem [#allocation8], %s447
        // Predicated region
        $region61: #{transformer_forward.1} parent=51 // pred_check
          %p449 = pneg %p115
        $region62: #{transformer_forward.1} parent=51 // pred_check_branch
          %451 = sbr.rel (%p449) target = $region64
        $region63: #{transformer_forward.1} parent=51 // pred_region
          %452 = dma.done %s445, 4096
        $region64: #{transformer_forward.1} parent=51 // pred_fallthru
          _
        %s453 = sand.u32 %s30, 1
        %s454 = scalar_lea.sflag [#allocation10], %s453
        %s455 = sand.u32 %s128, 1
        %s456 = smul.addr %s455, 2048
        %s457 = scalar_lea.vmem [#allocation9], %s456
        // Predicated region
        $region65: #{transformer_forward.1} parent=51 // pred_check
          %p458 = pneg %p141
        $region66: #{transformer_forward.1} parent=51 // pred_check_branch
          %460 = sbr.rel (%p458) target = $region68
        $region67: #{transformer_forward.1} parent=51 // pred_region
          %461 = dma.done %s454, 32768
        $region68: #{transformer_forward.1} parent=51 // pred_fallthru
          _
        %s462 = sand.u32 %s30, 1
        %s463 = scalar_lea.sflag [#allocation10], %s462
        %s464 = sand.u32 %s154, 1
        %s465 = smul.addr %s464, 2048
        %s466 = scalar_lea.vmem [#allocation11], %s465
        // Predicated region
        $region69: #{transformer_forward.1} parent=51 // pred_check
          %p467 = pneg %p167
        $region70: #{transformer_forward.1} parent=51 // pred_check_branch
          %469 = sbr.rel (%p467) target = $region72
        $region71: #{transformer_forward.1} parent=51 // pred_region
          %470 = dma.done %s463, 32768
        $region72: #{transformer_forward.1} parent=51 // pred_fallthru
          _
        %s471 = sand.u32 %s30, 1
        %s472 = scalar_lea.sflag [#allocation13], %s471
        %s473 = sand.u32 %s180, 1
        %s474 = smul.addr %s473, 34
        %s475 = scalar_lea.vmem [#allocation12], %s474
        // Predicated region
        $region73: #{transformer_forward.1} parent=51 // pred_check
          %p476 = pneg %p193
        $region74: #{transformer_forward.1} parent=51 // pred_check_branch
          %478 = sbr.rel (%p476) target = $region76
        $region75: #{transformer_forward.1} parent=51 // pred_region
          %479 = dma.done %s472, 544
        $region76: #{transformer_forward.1} parent=51 // pred_fallthru
          _
        // Predicated region
        $region77: #{transformer_forward.1} parent=51 // pred_check
          %p480 = pneg %p214
        $region78: #{transformer_forward.1} parent=51 // pred_check_branch
          %482 = sbr.rel (%p480) target = $region80
        $region79: #{transformer_forward.1} parent=51 // pred_region
          %483 = dma.done [#allocation13], 2048
        $region80: #{transformer_forward.1} parent=51 // pred_fallthru
          _
        // Predicated region
        $region81: #{transformer_forward.1} parent=51 // pred_check
          %p484 = pneg %p235
        $region82: #{transformer_forward.1} parent=51 // pred_check_branch
          %486 = sbr.rel (%p484) target = $region84
        $region83: #{transformer_forward.1} parent=51 // pred_region
          %487 = dma.done [#allocation16], 16
        $region84: #{transformer_forward.1} parent=51 // pred_fallthru
          _
        %p488 = pneg %p63
        %p489 = pneg %p60
        %s490 = sand.u32 %s30, 1
        %s491 = scalar_lea.sflag [#allocation7], %s490
        %s492 = sand.u32 %s76, 1
        %s493 = smul.addr %s492, 768
        %s494 = scalar_lea.vmem [#allocation6], %s493
        %p495 = pneg %p89
        %p496 = pneg %p86
        %s497 = sand.u32 %s30, 1
        %s498 = scalar_lea.sflag [#allocation7], %s497
        %s499 = sand.u32 %s102, 1
        %s500 = smul.addr %s499, 256
        %s501 = scalar_lea.vmem [#allocation8], %s500
        %p502 = pneg %p115
        %p503 = pneg %p112
        %s504 = sand.u32 %s30, 1
        %s505 = scalar_lea.sflag [#allocation10], %s504
        %s506 = sand.u32 %s128, 1
        %s507 = smul.addr %s506, 2048
        %s508 = scalar_lea.vmem [#allocation9], %s507
        %p509 = pneg %p141
        %p510 = pneg %p138
        %s511 = sand.u32 %s30, 1
        %s512 = scalar_lea.sflag [#allocation10], %s511
        %s513 = sand.u32 %s154, 1
        %s514 = smul.addr %s513, 2048
        %s515 = scalar_lea.vmem [#allocation11], %s514
        %p516 = pneg %p167
        %p517 = pneg %p164
        %s518 = sand.u32 %s30, 1
        %s519 = scalar_lea.sflag [#allocation13], %s518
        %s520 = sand.u32 %s180, 1
        %s521 = smul.addr %s520, 34
        %s522 = scalar_lea.vmem [#allocation12], %s521
        %p523 = pneg %p193
        %p524 = pneg %p190
        %p525 = pneg %p214
        %p526 = pneg %p211
        %p527 = pneg %p235
        %p528 = pneg %p232
        %p529 = pneg %p261
        %p530 = pneg %p258
        %s531 = smul.u32 2, %s34
        %p532 = scmp.lt.s32.totalorder %s531, 1
        %s533 = scalar_select %p532, %s531, 1
        %s534 = smul.addr %s533, 8
        %s535 = scalar_lea.vmem %s8, %s534
        %s536 = smul.u32 2, %s34
        %s537 = smul.u32 2, %s34
        %p538 = scmp.lt.s32.totalorder %s537, 1
        %s539 = scalar_select %p538, %s537, 1
        %s540 = smul.addr %s539, 8
        %s541 = scalar_lea.vmem %s8, %s540
        %s542 = smul.u32 2, %s34
        %p544 = scmp.eq.s32.totalorder %s35, 0
        // Predicated region
        $region85: #{transformer_forward.1} parent=51 // pred_check
          %p545 = pneg %p544
        $region86: #{transformer_forward.1} parent=51 // pred_check_branch
          %547 = sbr.rel (%p545) target = $region88
        $region87: #{transformer_forward.1} parent=51 // pred_region
          %v548 = vld [vmem:[#allocation4] sm:$0xff]
          %v549 = vld [vmem:[#allocation4 + $0x8] sm:$0xff]
          %v550 = vld [vmem:[#allocation4 + $0x10] sm:$0xff]
          %v551 = vld [vmem:[#allocation4 + $0x18] sm:$0xff]
          %552 = vst [vmem:[#allocation2] sm:$0xff] %v548
          %553 = vst [vmem:[#allocation2 + $0x8] sm:$0xff] %v549
          %554 = vst [vmem:[#allocation2 + $0x10] sm:$0xff] %v550
          %555 = vst [vmem:[#allocation2 + $0x18] sm:$0xff] %v551
        $region88: #{transformer_forward.1} parent=51 // pred_fallthru
          _
        %v556 = vld [vmem:[#allocation2] sm:$0xff]
        %v557 = vld [vmem:[#allocation2 + $0x8] sm:$0xff]
        %v558 = vld [vmem:[#allocation2 + $0x10] sm:$0xff]
        %v559 = vld [vmem:[#allocation2 + $0x18] sm:$0xff]
        %v560 = vld [vmem:[%s439] sm:$0xff]
        %v561 = vld [vmem:[%s439 + $0x8] sm:$0xff]
        %v562 = vld [vmem:[%s439 + $0x10] sm:$0xff]
        %v563 = vld [vmem:[%s439 + $0x18] sm:$0xff]
        %v564 = vld [vmem:[%s439 + $0x20] sm:$0xff]
        %v565 = vld [vmem:[%s439 + $0x28] sm:$0xff]
        %v566 = vld [vmem:[%s439 + $0x30] sm:$0xff]
        %v567 = vld [vmem:[%s439 + $0x38] sm:$0xff]
        %v568 = vld [vmem:[%s439 + $0x40] sm:$0xff]
        %v569 = vld [vmem:[%s439 + $0x48] sm:$0xff]
        %v570 = vld [vmem:[%s439 + $0x50] sm:$0xff]
        %v571 = vld [vmem:[%s439 + $0x58] sm:$0xff]
        %v572 = vld [vmem:[%s439 + $0x60] sm:$0xff]
        %v573 = vld [vmem:[%s439 + $0x68] sm:$0xff]
        %v574 = vld [vmem:[%s439 + $0x70] sm:$0xff]
        %v575 = vld [vmem:[%s439 + $0x78] sm:$0xff]
        %v576 = vld [vmem:[%s439 + $0x80] sm:$0xff]
        %v577 = vld [vmem:[%s439 + $0x88] sm:$0xff]
        %v578 = vld [vmem:[%s439 + $0x90] sm:$0xff]
        %v579 = vld [vmem:[%s439 + $0x98] sm:$0xff]
        %v580 = vld [vmem:[%s439 + $0xa0] sm:$0xff]
        %v581 = vld [vmem:[%s439 + $0xa8] sm:$0xff]
        %v582 = vld [vmem:[%s439 + $0xb0] sm:$0xff]
        %v583 = vld [vmem:[%s439 + $0xb8] sm:$0xff]
        %v584 = vld [vmem:[%s439 + $0xc0] sm:$0xff]
        %v585 = vld [vmem:[%s439 + $0xc8] sm:$0xff]
        %v586 = vld [vmem:[%s439 + $0xd0] sm:$0xff]
        %v587 = vld [vmem:[%s439 + $0xd8] sm:$0xff]
        %v588 = vld [vmem:[%s439 + $0xe0] sm:$0xff]
        %v589 = vld [vmem:[%s439 + $0xe8] sm:$0xff]
        %v590 = vld [vmem:[%s439 + $0xf0] sm:$0xff]
        %v591 = vld [vmem:[%s439 + $0xf8] sm:$0xff]
        %v592 = vld [vmem:[%s439 + $0x100] sm:$0xff]
        %v593 = vld [vmem:[%s439 + $0x108] sm:$0xff]
        %v594 = vld [vmem:[%s439 + $0x110] sm:$0xff]
        %v595 = vld [vmem:[%s439 + $0x118] sm:$0xff]
        %v596 = vld [vmem:[%s439 + $0x120] sm:$0xff]
        %v597 = vld [vmem:[%s439 + $0x128] sm:$0xff]
        %v598 = vld [vmem:[%s439 + $0x130] sm:$0xff]
        %v599 = vld [vmem:[%s439 + $0x138] sm:$0xff]
        %v600 = vld [vmem:[%s439 + $0x140] sm:$0xff]
        %v601 = vld [vmem:[%s439 + $0x148] sm:$0xff]
        %v602 = vld [vmem:[%s439 + $0x150] sm:$0xff]
        %v603 = vld [vmem:[%s439 + $0x158] sm:$0xff]
        %v604 = vld [vmem:[%s439 + $0x160] sm:$0xff]
        %v605 = vld [vmem:[%s439 + $0x168] sm:$0xff]
        %v606 = vld [vmem:[%s439 + $0x170] sm:$0xff]
        %v607 = vld [vmem:[%s439 + $0x178] sm:$0xff]
        %v608 = vld [vmem:[%s439 + $0x180] sm:$0xff]
        %v609 = vld [vmem:[%s439 + $0x188] sm:$0xff]
        %v610 = vld [vmem:[%s439 + $0x190] sm:$0xff]
        %v611 = vld [vmem:[%s439 + $0x198] sm:$0xff]
        %v612 = vld [vmem:[%s439 + $0x1a0] sm:$0xff]
        %v613 = vld [vmem:[%s439 + $0x1a8] sm:$0xff]
        %v614 = vld [vmem:[%s439 + $0x1b0] sm:$0xff]
        %v615 = vld [vmem:[%s439 + $0x1b8] sm:$0xff]
        %v616 = vld [vmem:[%s439 + $0x1c0] sm:$0xff]
        %v617 = vld [vmem:[%s439 + $0x1c8] sm:$0xff]
        %v618 = vld [vmem:[%s439 + $0x1d0] sm:$0xff]
        %v619 = vld [vmem:[%s439 + $0x1d8] sm:$0xff]
        %v620 = vld [vmem:[%s439 + $0x1e0] sm:$0xff]
        %v621 = vld [vmem:[%s439 + $0x1e8] sm:$0xff]
        %v622 = vld [vmem:[%s439 + $0x1f0] sm:$0xff]
        %v623 = vld [vmem:[%s439 + $0x1f8] sm:$0xff]
        %v624 = vld [vmem:[%s439 + $0x200] sm:$0xff]
        %v625 = vld [vmem:[%s439 + $0x208] sm:$0xff]
        %v626 = vld [vmem:[%s439 + $0x210] sm:$0xff]
        %v627 = vld [vmem:[%s439 + $0x218] sm:$0xff]
        %v628 = vld [vmem:[%s439 + $0x220] sm:$0xff]
        %v629 = vld [vmem:[%s439 + $0x228] sm:$0xff]
        %v630 = vld [vmem:[%s439 + $0x230] sm:$0xff]
        %v631 = vld [vmem:[%s439 + $0x238] sm:$0xff]
        %v632 = vld [vmem:[%s439 + $0x240] sm:$0xff]
        %v633 = vld [vmem:[%s439 + $0x248] sm:$0xff]
        %v634 = vld [vmem:[%s439 + $0x250] sm:$0xff]
        %v635 = vld [vmem:[%s439 + $0x258] sm:$0xff]
        %v636 = vld [vmem:[%s439 + $0x260] sm:$0xff]
        %v637 = vld [vmem:[%s439 + $0x268] sm:$0xff]
        %v638 = vld [vmem:[%s439 + $0x270] sm:$0xff]
        %v639 = vld [vmem:[%s439 + $0x278] sm:$0xff]
        %v640 = vld [vmem:[%s439 + $0x280] sm:$0xff]
        %v641 = vld [vmem:[%s439 + $0x288] sm:$0xff]
        %v642 = vld [vmem:[%s439 + $0x290] sm:$0xff]
        %v643 = vld [vmem:[%s439 + $0x298] sm:$0xff]
        %v644 = vld [vmem:[%s439 + $0x2a0] sm:$0xff]
        %v645 = vld [vmem:[%s439 + $0x2a8] sm:$0xff]
        %v646 = vld [vmem:[%s439 + $0x2b0] sm:$0xff]
        %v647 = vld [vmem:[%s439 + $0x2b8] sm:$0xff]
        %v648 = vld [vmem:[%s439 + $0x2c0] sm:$0xff]
        %v649 = vld [vmem:[%s439 + $0x2c8] sm:$0xff]
        %v650 = vld [vmem:[%s439 + $0x2d0] sm:$0xff]
        %v651 = vld [vmem:[%s439 + $0x2d8] sm:$0xff]
        %v652 = vld [vmem:[%s439 + $0x2e0] sm:$0xff]
        %v653 = vld [vmem:[%s439 + $0x2e8] sm:$0xff]
        %v654 = vld [vmem:[%s439 + $0x2f0] sm:$0xff]
        %v655 = vld [vmem:[%s439 + $0x2f8] sm:$0xff]
        %v656 = vld [vmem:[%s475] sm:$0x3f]
        %v657 = vpack.c.bf16 %v558, %v556
        %v658 = vpack.c.bf16 %v559, %v557
        %v660 = vlaneseq
        %v661 = vshrl.u32 %v660, 7
        %v662 = vsub.s32 0, %v661
        %v663 = vrot.slane %v656, %v662
        %v664 = vlaneseq
        %v665 = vshrl.u32 %v664, 7
        %v666 = vsub.s32 1, %v665
        %v667 = vrot.slane %v656, %v666
        %v668 = vlaneseq
        %v669 = vshrl.u32 %v668, 7
        %v670 = vsub.s32 2, %v669
        %v671 = vrot.slane %v656, %v670
        %v672 = vlaneseq
        %v673 = vshrl.u32 %v672, 7
        %v674 = vsub.s32 3, %v673
        %v675 = vrot.slane %v656, %v674
        %v676 = vlaneseq
        %v677 = vshrl.u32 %v676, 7
        %v678 = vsub.s32 4, %v677
        %v679 = vrot.slane %v656, %v678
        %v680 = vlaneseq
        %v681 = vshrl.u32 %v680, 7
        %v682 = vsub.s32 5, %v681
        %v683 = vrot.slane %v656, %v682
        %v786 = vunpack.c.l.b16 %v560
        %v787 = vunpack.c.h.b16 %v560
        %v788 = vunpack.c.l.b16 %v561
        %v789 = vunpack.c.h.b16 %v561
        %v790 = vunpack.c.l.b16 %v562
        %v791 = vunpack.c.h.b16 %v562
        %v792 = vunpack.c.l.b16 %v563
        %v793 = vunpack.c.h.b16 %v563
        %v794 = vunpack.c.l.b16 %v564
        %v795 = vunpack.c.h.b16 %v564
        %v796 = vunpack.c.l.b16 %v565
        %v797 = vunpack.c.h.b16 %v565
        %v798 = vunpack.c.l.b16 %v566
        %v799 = vunpack.c.h.b16 %v566
        %v800 = vunpack.c.l.b16 %v567
        %v801 = vunpack.c.h.b16 %v567
        %v802 = vunpack.c.l.b16 %v568
        %v803 = vunpack.c.h.b16 %v568
        %v804 = vunpack.c.l.b16 %v569
        %v805 = vunpack.c.h.b16 %v569
        %v806 = vunpack.c.l.b16 %v570
        %v807 = vunpack.c.h.b16 %v570
        %v808 = vunpack.c.l.b16 %v571
        %v809 = vunpack.c.h.b16 %v571
        %v810 = vunpack.c.l.b16 %v572
        %v811 = vunpack.c.h.b16 %v572
        %v812 = vunpack.c.l.b16 %v573
        %v813 = vunpack.c.h.b16 %v573
        %v814 = vunpack.c.l.b16 %v574
        %v815 = vunpack.c.h.b16 %v574
        %v816 = vunpack.c.l.b16 %v575
        %v817 = vunpack.c.h.b16 %v575
        %v818 = vunpack.c.l.b16 %v576
        %v819 = vunpack.c.h.b16 %v576
        %v820 = vunpack.c.l.b16 %v577
        %v821 = vunpack.c.h.b16 %v577
        %v822 = vunpack.c.l.b16 %v578
        %v823 = vunpack.c.h.b16 %v578
        %v824 = vunpack.c.l.b16 %v579
        %v825 = vunpack.c.h.b16 %v579
        %v826 = vunpack.c.l.b16 %v580
        %v827 = vunpack.c.h.b16 %v580
        %v828 = vunpack.c.l.b16 %v581
        %v829 = vunpack.c.h.b16 %v581
        %v830 = vunpack.c.l.b16 %v582
        %v831 = vunpack.c.h.b16 %v582
        %v832 = vunpack.c.l.b16 %v583
        %v833 = vunpack.c.h.b16 %v583
        %v834 = vunpack.c.l.b16 %v584
        %v835 = vunpack.c.h.b16 %v584
        %v836 = vunpack.c.l.b16 %v585
        %v837 = vunpack.c.h.b16 %v585
        %v838 = vunpack.c.l.b16 %v586
        %v839 = vunpack.c.h.b16 %v586
        %v840 = vunpack.c.l.b16 %v587
        %v841 = vunpack.c.h.b16 %v587
        %v842 = vunpack.c.l.b16 %v588
        %v843 = vunpack.c.h.b16 %v588
        %v844 = vunpack.c.l.b16 %v589
        %v845 = vunpack.c.h.b16 %v589
        %v846 = vunpack.c.l.b16 %v590
        %v847 = vunpack.c.h.b16 %v590
        %v848 = vunpack.c.l.b16 %v591
        %v849 = vunpack.c.h.b16 %v591
        %v850 = vunpack.c.l.b16 %v592
        %v851 = vunpack.c.h.b16 %v592
        %v852 = vunpack.c.l.b16 %v593
        %v853 = vunpack.c.h.b16 %v593
        %v854 = vunpack.c.l.b16 %v594
        %v855 = vunpack.c.h.b16 %v594
        %v856 = vunpack.c.l.b16 %v595
        %v857 = vunpack.c.h.b16 %v595
        %v858 = vunpack.c.l.b16 %v596
        %v859 = vunpack.c.h.b16 %v596
        %v860 = vunpack.c.l.b16 %v597
        %v861 = vunpack.c.h.b16 %v597
        %v862 = vunpack.c.l.b16 %v598
        %v863 = vunpack.c.h.b16 %v598
        %v864 = vunpack.c.l.b16 %v599
        %v865 = vunpack.c.h.b16 %v599
        %v866 = vunpack.c.l.b16 %v600
        %v867 = vunpack.c.h.b16 %v600
        %v868 = vunpack.c.l.b16 %v601
        %v869 = vunpack.c.h.b16 %v601
        %v870 = vunpack.c.l.b16 %v602
        %v871 = vunpack.c.h.b16 %v602
        %v872 = vunpack.c.l.b16 %v603
        %v873 = vunpack.c.h.b16 %v603
        %v874 = vunpack.c.l.b16 %v604
        %v875 = vunpack.c.h.b16 %v604
        %v876 = vunpack.c.l.b16 %v605
        %v877 = vunpack.c.h.b16 %v605
        %v878 = vunpack.c.l.b16 %v606
        %v879 = vunpack.c.h.b16 %v606
        %v880 = vunpack.c.l.b16 %v607
        %v881 = vunpack.c.h.b16 %v607
        %v882 = vunpack.c.l.b16 %v608
        %v883 = vunpack.c.h.b16 %v608
        %v884 = vunpack.c.l.b16 %v609
        %v885 = vunpack.c.h.b16 %v609
        %v886 = vunpack.c.l.b16 %v610
        %v887 = vunpack.c.h.b16 %v610
        %v888 = vunpack.c.l.b16 %v611
        %v889 = vunpack.c.h.b16 %v611
        %v890 = vunpack.c.l.b16 %v612
        %v891 = vunpack.c.h.b16 %v612
        %v892 = vunpack.c.l.b16 %v613
        %v893 = vunpack.c.h.b16 %v613
        %v894 = vunpack.c.l.b16 %v614
        %v895 = vunpack.c.h.b16 %v614
        %v896 = vunpack.c.l.b16 %v615
        %v897 = vunpack.c.h.b16 %v615
        %v898 = vunpack.c.l.b16 %v616
        %v899 = vunpack.c.h.b16 %v616
        %v900 = vunpack.c.l.b16 %v617
        %v901 = vunpack.c.h.b16 %v617
        %v902 = vunpack.c.l.b16 %v618
        %v903 = vunpack.c.h.b16 %v618
        %v904 = vunpack.c.l.b16 %v619
        %v905 = vunpack.c.h.b16 %v619
        %v906 = vunpack.c.l.b16 %v620
        %v907 = vunpack.c.h.b16 %v620
        %v908 = vunpack.c.l.b16 %v621
        %v909 = vunpack.c.h.b16 %v621
        %v910 = vunpack.c.l.b16 %v622
        %v911 = vunpack.c.h.b16 %v622
        %v912 = vunpack.c.l.b16 %v623
        %v913 = vunpack.c.h.b16 %v623
        %v914 = vunpack.c.l.b16 %v624
        %v915 = vunpack.c.h.b16 %v624
        %v916 = vunpack.c.l.b16 %v625
        %v917 = vunpack.c.h.b16 %v625
        %v918 = vunpack.c.l.b16 %v626
        %v919 = vunpack.c.h.b16 %v626
        %v920 = vunpack.c.l.b16 %v627
        %v921 = vunpack.c.h.b16 %v627
        %v922 = vunpack.c.l.b16 %v628
        %v923 = vunpack.c.h.b16 %v628
        %v924 = vunpack.c.l.b16 %v629
        %v925 = vunpack.c.h.b16 %v629
        %v926 = vunpack.c.l.b16 %v630
        %v927 = vunpack.c.h.b16 %v630
        %v928 = vunpack.c.l.b16 %v631
        %v929 = vunpack.c.h.b16 %v631
        %v930 = vunpack.c.l.b16 %v632
        %v931 = vunpack.c.h.b16 %v632
        %v932 = vunpack.c.l.b16 %v633
        %v933 = vunpack.c.h.b16 %v633
        %v934 = vunpack.c.l.b16 %v634
        %v935 = vunpack.c.h.b16 %v634
        %v936 = vunpack.c.l.b16 %v635
        %v937 = vunpack.c.h.b16 %v635
        %v938 = vunpack.c.l.b16 %v636
        %v939 = vunpack.c.h.b16 %v636
        %v940 = vunpack.c.l.b16 %v637
        %v941 = vunpack.c.h.b16 %v637
        %v942 = vunpack.c.l.b16 %v638
        %v943 = vunpack.c.h.b16 %v638
        %v944 = vunpack.c.l.b16 %v639
        %v945 = vunpack.c.h.b16 %v639
        %v946 = vunpack.c.l.b16 %v640
        %v947 = vunpack.c.h.b16 %v640
        %v948 = vunpack.c.l.b16 %v641
        %v949 = vunpack.c.h.b16 %v641
        %v950 = vunpack.c.l.b16 %v642
        %v951 = vunpack.c.h.b16 %v642
        %v952 = vunpack.c.l.b16 %v643
        %v953 = vunpack.c.h.b16 %v643
        %v954 = vunpack.c.l.b16 %v644
        %v955 = vunpack.c.h.b16 %v644
        %v956 = vunpack.c.l.b16 %v645
        %v957 = vunpack.c.h.b16 %v645
        %v958 = vunpack.c.l.b16 %v646
        %v959 = vunpack.c.h.b16 %v646
        %v960 = vunpack.c.l.b16 %v647
        %v961 = vunpack.c.h.b16 %v647
        %v962 = vunpack.c.l.b16 %v648
        %v963 = vunpack.c.h.b16 %v648
        %v964 = vunpack.c.l.b16 %v649
        %v965 = vunpack.c.h.b16 %v649
        %v966 = vunpack.c.l.b16 %v650
        %v967 = vunpack.c.h.b16 %v650
        %v968 = vunpack.c.l.b16 %v651
        %v969 = vunpack.c.h.b16 %v651
        %v970 = vunpack.c.l.b16 %v652
        %v971 = vunpack.c.h.b16 %v652
        %v972 = vunpack.c.l.b16 %v653
        %v973 = vunpack.c.h.b16 %v653
        %v974 = vunpack.c.l.b16 %v654
        %v975 = vunpack.c.h.b16 %v654
        %v976 = vunpack.c.l.b16 %v655
        %v977 = vunpack.c.h.b16 %v655
        %v978 = vpack.c.b16 %v792, %v786
        %v979 = vpack.c.b16 %v793, %v787
        %v980 = vpack.c.b16 %v794, %v788
        %v981 = vpack.c.b16 %v795, %v789
        %v982 = vpack.c.b16 %v796, %v790
        %v983 = vpack.c.b16 %v797, %v791
        %v984 = vpack.c.b16 %v804, %v798
        %v985 = vpack.c.b16 %v805, %v799
        %v986 = vpack.c.b16 %v806, %v800
        %v987 = vpack.c.b16 %v807, %v801
        %v988 = vpack.c.b16 %v808, %v802
        %v989 = vpack.c.b16 %v809, %v803
        %v990 = vpack.c.b16 %v816, %v810
        %v991 = vpack.c.b16 %v817, %v811
        %v992 = vpack.c.b16 %v818, %v812
        %v993 = vpack.c.b16 %v819, %v813
        %v994 = vpack.c.b16 %v820, %v814
        %v995 = vpack.c.b16 %v821, %v815
        %v996 = vpack.c.b16 %v828, %v822
        %v997 = vpack.c.b16 %v829, %v823
        %v998 = vpack.c.b16 %v830, %v824
        %v999 = vpack.c.b16 %v831, %v825
        %v1000 = vpack.c.b16 %v832, %v826
        %v1001 = vpack.c.b16 %v833, %v827
        %v1002 = vpack.c.b16 %v840, %v834
        %v1003 = vpack.c.b16 %v841, %v835
        %v1004 = vpack.c.b16 %v842, %v836
        %v1005 = vpack.c.b16 %v843, %v837
        %v1006 = vpack.c.b16 %v844, %v838
        %v1007 = vpack.c.b16 %v845, %v839
        %v1008 = vpack.c.b16 %v852, %v846
        %v1009 = vpack.c.b16 %v853, %v847
        %v1010 = vpack.c.b16 %v854, %v848
        %v1011 = vpack.c.b16 %v855, %v849
        %v1012 = vpack.c.b16 %v856, %v850
        %v1013 = vpack.c.b16 %v857, %v851
        %v1014 = vpack.c.b16 %v864, %v858
        %v1015 = vpack.c.b16 %v865, %v859
        %v1016 = vpack.c.b16 %v866, %v860
        %v1017 = vpack.c.b16 %v867, %v861
        %v1018 = vpack.c.b16 %v868, %v862
        %v1019 = vpack.c.b16 %v869, %v863
        %v1020 = vpack.c.b16 %v876, %v870
        %v1021 = vpack.c.b16 %v877, %v871
        %v1022 = vpack.c.b16 %v878, %v872
        %v1023 = vpack.c.b16 %v879, %v873
        %v1024 = vpack.c.b16 %v880, %v874
        %v1025 = vpack.c.b16 %v881, %v875
        %v1026 = vpack.c.b16 %v888, %v882
        %v1027 = vpack.c.b16 %v889, %v883
        %v1028 = vpack.c.b16 %v890, %v884
        %v1029 = vpack.c.b16 %v891, %v885
        %v1030 = vpack.c.b16 %v892, %v886
        %v1031 = vpack.c.b16 %v893, %v887
        %v1032 = vpack.c.b16 %v900, %v894
        %v1033 = vpack.c.b16 %v901, %v895
        %v1034 = vpack.c.b16 %v902, %v896
        %v1035 = vpack.c.b16 %v903, %v897
        %v1036 = vpack.c.b16 %v904, %v898
        %v1037 = vpack.c.b16 %v905, %v899
        %v1038 = vpack.c.b16 %v912, %v906
        %v1039 = vpack.c.b16 %v913, %v907
        %v1040 = vpack.c.b16 %v914, %v908
        %v1041 = vpack.c.b16 %v915, %v909
        %v1042 = vpack.c.b16 %v916, %v910
        %v1043 = vpack.c.b16 %v917, %v911
        %v1044 = vpack.c.b16 %v924, %v918
        %v1045 = vpack.c.b16 %v925, %v919
        %v1046 = vpack.c.b16 %v926, %v920
        %v1047 = vpack.c.b16 %v927, %v921
        %v1048 = vpack.c.b16 %v928, %v922
        %v1049 = vpack.c.b16 %v929, %v923
        %v1050 = vpack.c.b16 %v936, %v930
        %v1051 = vpack.c.b16 %v937, %v931
        %v1052 = vpack.c.b16 %v938, %v932
        %v1053 = vpack.c.b16 %v939, %v933
        %v1054 = vpack.c.b16 %v940, %v934
        %v1055 = vpack.c.b16 %v941, %v935
        %v1056 = vpack.c.b16 %v948, %v942
        %v1057 = vpack.c.b16 %v949, %v943
        %v1058 = vpack.c.b16 %v950, %v944
        %v1059 = vpack.c.b16 %v951, %v945
        %v1060 = vpack.c.b16 %v952, %v946
        %v1061 = vpack.c.b16 %v953, %v947
        %v1062 = vpack.c.b16 %v960, %v954
        %v1063 = vpack.c.b16 %v961, %v955
        %v1064 = vpack.c.b16 %v962, %v956
        %v1065 = vpack.c.b16 %v963, %v957
        %v1066 = vpack.c.b16 %v964, %v958
        %v1067 = vpack.c.b16 %v965, %v959
        %v1068 = vpack.c.b16 %v972, %v966
        %v1069 = vpack.c.b16 %v973, %v967
        %v1070 = vpack.c.b16 %v974, %v968
        %v1071 = vpack.c.b16 %v975, %v969
        %v1072 = vpack.c.b16 %v976, %v970
        %v1073 = vpack.c.b16 %v977, %v971
        %1170 = vmatprep.subr.bf16.mxu0 %v1021
        %1171 = vmatpush1.bf16.msra.mxu0 %v1020
        %1172 = vmatprep.subr.bf16.mxu0 %v1015
        %1173 = vmatpush1.bf16.msra.mxu0 %v1014
        %1174 = vmatprep.subr.bf16.mxu0 %v1009
        %1175 = vmatpush1.bf16.msra.mxu0 %v1008
        %1176 = vmatprep.subr.bf16.mxu0 %v1003
        %1177 = vmatpush1.bf16.msra.mxu0 %v1002
        %1178 = vmatprep.subr.bf16.mxu0 %v997
        %1179 = vmatpush1.bf16.msra.mxu0 %v996
        %1180 = vmatprep.subr.bf16.mxu0 %v991
        %1181 = vmatpush1.bf16.msra.mxu0 %v990
        %1182 = vmatprep.subr.bf16.mxu0 %v985
        %1183 = vmatpush1.bf16.msra.mxu0 %v984
        %1184 = vmatprep.subr.bf16.mxu0 %v979
        %1185 = vmatpush1.bf16.msra.mxu0 %v978
        %1186 = vmatprep.subr.bf16.mxu0 %v1069
        %1187 = vmatpush2.bf16.msra.mxu0 %v1068
        %1188 = vmatprep.subr.bf16.mxu0 %v1063
        %1189 = vmatpush2.bf16.msra.mxu0 %v1062
        %1190 = vmatprep.subr.bf16.mxu0 %v1057
        %1191 = vmatpush2.bf16.msra.mxu0 %v1056
        %1192 = vmatprep.subr.bf16.mxu0 %v1051
        %1193 = vmatpush2.bf16.msra.mxu0 %v1050
        %1194 = vmatprep.subr.bf16.mxu0 %v1045
        %1195 = vmatpush2.bf16.msra.mxu0 %v1044
        %1196 = vmatprep.subr.bf16.mxu0 %v1039
        %1197 = vmatpush2.bf16.msra.mxu0 %v1038
        %1198 = vmatprep.subr.bf16.mxu0 %v1033
        %1199 = vmatpush2.bf16.msra.mxu0 %v1032
        %1200 = vmatprep.subr.bf16.mxu0 %v1027
        %1201 = vmatpush2.bf16.msra.mxu0 %v1026
        %1202 = vmatprep.mubr.bf16.mxu0 %v658
        %1203 = vmatmul.mubr.bf16.gmra.mxu0 %v657
        %v1204 = vpop.f32.mrf.mxu0
        %v1205 = vadd.f32 %v663, %v1204
        %v1206 = vpop.f32.mrf.mxu0
        %v1207 = vadd.f32 %v667, %v1206
        %v1208 = vpop.f32.mrf.mxu0
        %v1209 = vadd.f32 %v663, %v1208
        %v1210 = vpop.f32.mrf.mxu0
        %v1211 = vadd.f32 %v667, %v1210
        %1212 = vdwg.mxu0
        %1213 = vmatprep.subr.bf16.mxu0 %v1023
        %1214 = vmatpush1.bf16.msra.mxu0 %v1022
        %1215 = vmatprep.subr.bf16.mxu0 %v1017
        %1216 = vmatpush1.bf16.msra.mxu0 %v1016
        %1217 = vmatprep.subr.bf16.mxu0 %v1011
        %1218 = vmatpush1.bf16.msra.mxu0 %v1010
        %1219 = vmatprep.subr.bf16.mxu0 %v1005
        %1220 = vmatpush1.bf16.msra.mxu0 %v1004
        %1221 = vmatprep.subr.bf16.mxu0 %v999
        %1222 = vmatpush1.bf16.msra.mxu0 %v998
        %1223 = vmatprep.subr.bf16.mxu0 %v993
        %1224 = vmatpush1.bf16.msra.mxu0 %v992
        %1225 = vmatprep.subr.bf16.mxu0 %v987
        %1226 = vmatpush1.bf16.msra.mxu0 %v986
        %1227 = vmatprep.subr.bf16.mxu0 %v981
        %1228 = vmatpush1.bf16.msra.mxu0 %v980
        %1229 = vmatprep.subr.bf16.mxu0 %v1071
        %1230 = vmatpush2.bf16.msra.mxu0 %v1070
        %1231 = vmatprep.subr.bf16.mxu0 %v1065
        %1232 = vmatpush2.bf16.msra.mxu0 %v1064
        %1233 = vmatprep.subr.bf16.mxu0 %v1059
        %1234 = vmatpush2.bf16.msra.mxu0 %v1058
        %1235 = vmatprep.subr.bf16.mxu0 %v1053
        %1236 = vmatpush2.bf16.msra.mxu0 %v1052
        %1237 = vmatprep.subr.bf16.mxu0 %v1047
        %1238 = vmatpush2.bf16.msra.mxu0 %v1046
        %1239 = vmatprep.subr.bf16.mxu0 %v1041
        %1240 = vmatpush2.bf16.msra.mxu0 %v1040
        %1241 = vmatprep.subr.bf16.mxu0 %v1035
        %1242 = vmatpush2.bf16.msra.mxu0 %v1034
        %1243 = vmatprep.subr.bf16.mxu0 %v1029
        %1244 = vmatpush2.bf16.msra.mxu0 %v1028
        %1245 = vmatprep.mubr.bf16.mxu0 %v658
        %1246 = vmatmul.mubr.bf16.gmra.mxu0 %v657
        %v1247 = vpop.f32.mrf.mxu0
        %v1248 = vadd.f32 %v671, %v1247
        %v1249 = vpop.f32.mrf.mxu0
        %v1250 = vadd.f32 %v675, %v1249
        %v1251 = vpop.f32.mrf.mxu0
        %v1252 = vadd.f32 %v671, %v1251
        %v1253 = vpop.f32.mrf.mxu0
        %v1254 = vadd.f32 %v675, %v1253
        %1255 = vdwg.mxu0
        %1256 = vmatprep.subr.bf16.mxu0 %v1025
        %1257 = vmatpush1.bf16.msra.mxu0 %v1024
        %1258 = vmatprep.subr.bf16.mxu0 %v1019
        %1259 = vmatpush1.bf16.msra.mxu0 %v1018
        %1260 = vmatprep.subr.bf16.mxu0 %v1013
        %1261 = vmatpush1.bf16.msra.mxu0 %v1012
        %1262 = vmatprep.subr.bf16.mxu0 %v1007
        %1263 = vmatpush1.bf16.msra.mxu0 %v1006
        %1264 = vmatprep.subr.bf16.mxu0 %v1001
        %1265 = vmatpush1.bf16.msra.mxu0 %v1000
        %1266 = vmatprep.subr.bf16.mxu0 %v995
        %1267 = vmatpush1.bf16.msra.mxu0 %v994
        %1268 = vmatprep.subr.bf16.mxu0 %v989
        %1269 = vmatpush1.bf16.msra.mxu0 %v988
        %1270 = vmatprep.subr.bf16.mxu0 %v983
        %1271 = vmatpush1.bf16.msra.mxu0 %v982
        %1272 = vmatprep.subr.bf16.mxu0 %v1073
        %1273 = vmatpush2.bf16.msra.mxu0 %v1072
        %1274 = vmatprep.subr.bf16.mxu0 %v1067
        %1275 = vmatpush2.bf16.msra.mxu0 %v1066
        %1276 = vmatprep.subr.bf16.mxu0 %v1061
        %1277 = vmatpush2.bf16.msra.mxu0 %v1060
        %1278 = vmatprep.subr.bf16.mxu0 %v1055
        %1279 = vmatpush2.bf16.msra.mxu0 %v1054
        %1280 = vmatprep.subr.bf16.mxu0 %v1049
        %1281 = vmatpush2.bf16.msra.mxu0 %v1048
        %1282 = vmatprep.subr.bf16.mxu0 %v1043
        %1283 = vmatpush2.bf16.msra.mxu0 %v1042
        %1284 = vmatprep.subr.bf16.mxu0 %v1037
        %1285 = vmatpush2.bf16.msra.mxu0 %v1036
        %1286 = vmatprep.subr.bf16.mxu0 %v1031
        %1287 = vmatpush2.bf16.msra.mxu0 %v1030
        %1288 = vmatprep.mubr.bf16.mxu0 %v658
        %1289 = vmatmul.mubr.bf16.gmra.mxu0 %v657
        %v1290 = vpop.f32.mrf.mxu0
        %v1291 = vadd.f32 %v679, %v1290
        %v1292 = vpop.f32.mrf.mxu0
        %v1293 = vadd.f32 %v683, %v1292
        %v1294 = vpop.f32.mrf.mxu0
        %v1295 = vadd.f32 %v679, %v1294
        %v1296 = vpop.f32.mrf.mxu0
        %v1297 = vadd.f32 %v683, %v1296
        %1298 = vdwg.mxu0
        %v1299 = vpack.c.bf16 %v1205, %v1205
        %v1300 = vpack.c.bf16 %v1207, %v1207
        %v1301 = vpack.c.bf16 %v1248, %v1248
        %v1302 = vpack.c.bf16 %v1250, %v1250
        %v1303 = vpack.c.bf16 %v1291, %v1291
        %v1304 = vpack.c.bf16 %v1293, %v1293
        %v1305 = vpack.c.bf16 %v1209, %v1209
        %v1306 = vpack.c.bf16 %v1211, %v1211
        %v1307 = vpack.c.bf16 %v1252, %v1252
        %v1308 = vpack.c.bf16 %v1254, %v1254
        %v1309 = vpack.c.bf16 %v1295, %v1295
        %v1310 = vpack.c.bf16 %v1297, %v1297
        %v1323 = vunpack.c.l.b16 %v1299
        %v1324 = vunpack.c.l.b16 %v1300
        %v1325 = vunpack.c.l.b16 %v1301
        %v1326 = vunpack.c.l.b16 %v1302
        %v1327 = vunpack.c.l.b16 %v1303
        %v1328 = vunpack.c.l.b16 %v1304
        %v1329 = vunpack.c.l.b16 %v1305
        %v1330 = vunpack.c.l.b16 %v1306
        %v1331 = vunpack.c.l.b16 %v1307
        %v1332 = vunpack.c.l.b16 %v1308
        %v1333 = vunpack.c.l.b16 %v1309
        %v1334 = vunpack.c.l.b16 %v1310
        %v1335 = vpack.c.b16 %v1324, %v1323
        %v1336 = vpack.c.b16 %v1326, %v1325
        %v1337 = vpack.c.b16 %v1328, %v1327
        %v1338 = vpack.c.b16 %v1330, %v1329
        %v1339 = vpack.c.b16 %v1332, %v1331
        %v1340 = vpack.c.b16 %v1334, %v1333
        %1347 = vst [vmem:[#allocation3] sm:$0xff] %v1335
        %1348 = vst [vmem:[#allocation3 + $0x8] sm:$0xff] %v1336
        %1349 = vst [vmem:[#allocation3 + $0x10] sm:$0xff] %v1337
        %1350 = vst [vmem:[#allocation3 + $0x18] sm:$0xff] %v1338
        %1351 = vst [vmem:[#allocation3 + $0x20] sm:$0xff] %v1339
        %1352 = vst [vmem:[#allocation3 + $0x28] sm:$0xff] %v1340
        %v1353 = vld [vmem:[#allocation3] sm:$0xf]
        %v1354 = vld [vmem:[#allocation3 + $0x18] sm:$0xf]
        %v1355 = vld [vmem:[#allocation3 + $0x8] sm:$0xf]
        %v1356 = vld [vmem:[#allocation3 + $0x20] sm:$0xf]
        %v1357 = vld [vmem:[#allocation3 + $0x10] sm:$0xf]
        %v1358 = vld [vmem:[#allocation3 + $0x28] sm:$0xf]
        %vm1359 = vcmask 261120
        %v1361 = vsel %vm1359, %v1353, 0
        %v1364 = vsel %vm1359, %v1355, 0
        %1366 = vmatprep.subr.bf16.mxu0 0
        %1367 = vmatpush1.bf16.xpose.msra.mxu0 0
        %1368 = vmatprep.subr.bf16.mxu0 0
        %1369 = vmatpush1.bf16.xpose.msra.mxu0 0
        %1370 = vmatprep.subr.bf16.mxu0 0
        %1371 = vmatpush1.bf16.xpose.msra.mxu0 0
        %1372 = vmatprep.subr.bf16.mxu0 0
        %1373 = vmatpush1.bf16.xpose.msra.mxu0 0
        %1374 = vmatprep.subr.bf16.mxu0 0
        %1375 = vmatpush1.bf16.xpose.msra.mxu0 0
        %1376 = vmatprep.subr.bf16.mxu0 0
        %1377 = vmatpush1.bf16.xpose.msra.mxu0 0
        %1378 = vmatprep.subr.bf16.mxu0 0
        %1379 = vmatpush1.bf16.xpose.msra.mxu0 0
        %1380 = vmatprep.subr.bf16.mxu0 0
        %1381 = vmatpush1.bf16.xpose.msra.mxu0 %v1364
        %1382 = vmatprep.subr.bf16.mxu0 0
        %1383 = vmatpush2.bf16.xpose.msra.mxu0 0
        %1384 = vmatprep.subr.bf16.mxu0 0
        %1385 = vmatpush2.bf16.xpose.msra.mxu0 0
        %1386 = vmatprep.subr.bf16.mxu0 0
        %1387 = vmatpush2.bf16.xpose.msra.mxu0 0
        %1388 = vmatprep.subr.bf16.mxu0 0
        %1389 = vmatpush2.bf16.xpose.msra.mxu0 0
        %1390 = vmatprep.subr.bf16.mxu0 0
        %1391 = vmatpush2.bf16.xpose.msra.mxu0 0
        %1392 = vmatprep.subr.bf16.mxu0 0
        %1393 = vmatpush2.bf16.xpose.msra.mxu0 0
        %1394 = vmatprep.subr.bf16.mxu0 0
        %1395 = vmatpush2.bf16.xpose.msra.mxu0 0
        %1396 = vmatprep.subr.bf16.mxu0 0
        %1397 = vmatpush2.bf16.xpose.msra.mxu0 0
        %1398 = vmatprep.mubr.bf16.mxu0 0
        %1399 = vmatmul.mubr.bf16.gmra.mxu0 %v1361
        %v1400 = vpop.f32.mrf.mxu0
        %v1401 = vadd.f32 0.0, %v1400
        %v1402 = vpop.f32.mrf.mxu0
        %v1403 = vpop.f32.mrf.mxu0
        %v1404 = vpop.f32.mrf.mxu0
        %1405 = vdwg.mxu0
        %v1407 = vsel %vm1359, %v1354, 0
        %v1410 = vsel %vm1359, %v1356, 0
        %1412 = vmatprep.subr.bf16.mxu0 0
        %1413 = vmatpush1.bf16.xpose.msra.mxu0 0
        %1414 = vmatprep.subr.bf16.mxu0 0
        %1415 = vmatpush1.bf16.xpose.msra.mxu0 0
        %1416 = vmatprep.subr.bf16.mxu0 0
        %1417 = vmatpush1.bf16.xpose.msra.mxu0 0
        %1418 = vmatprep.subr.bf16.mxu0 0
        %1419 = vmatpush1.bf16.xpose.msra.mxu0 0
        %1420 = vmatprep.subr.bf16.mxu0 0
        %1421 = vmatpush1.bf16.xpose.msra.mxu0 0
        %1422 = vmatprep.subr.bf16.mxu0 0
        %1423 = vmatpush1.bf16.xpose.msra.mxu0 0
        %1424 = vmatprep.subr.bf16.mxu0 0
        %1425 = vmatpush1.bf16.xpose.msra.mxu0 0
        %1426 = vmatprep.subr.bf16.mxu0 0
        %1427 = vmatpush1.bf16.xpose.msra.mxu0 %v1410
        %1428 = vmatprep.subr.bf16.mxu0 0
        %1429 = vmatpush2.bf16.xpose.msra.mxu0 0
        %1430 = vmatprep.subr.bf16.mxu0 0
        %1431 = vmatpush2.bf16.xpose.msra.mxu0 0
        %1432 = vmatprep.subr.bf16.mxu0 0
        %1433 = vmatpush2.bf16.xpose.msra.mxu0 0
        %1434 = vmatprep.subr.bf16.mxu0 0
        %1435 = vmatpush2.bf16.xpose.msra.mxu0 0
        %1436 = vmatprep.subr.bf16.mxu0 0
        %1437 = vmatpush2.bf16.xpose.msra.mxu0 0
        %1438 = vmatprep.subr.bf16.mxu0 0
        %1439 = vmatpush2.bf16.xpose.msra.mxu0 0
        %1440 = vmatprep.subr.bf16.mxu0 0
        %1441 = vmatpush2.bf16.xpose.msra.mxu0 0
        %1442 = vmatprep.subr.bf16.mxu0 0
        %1443 = vmatpush2.bf16.xpose.msra.mxu0 0
        %1444 = vmatprep.mubr.bf16.mxu0 0
        %1445 = vmatmul.mubr.bf16.gmra.mxu0 %v1407
        %v1446 = vpop.f32.mrf.mxu0
        %v1447 = vadd.f32 0.0, %v1446
        %v1448 = vpop.f32.mrf.mxu0
        %v1449 = vpop.f32.mrf.mxu0
        %v1450 = vpop.f32.mrf.mxu0
        %1451 = vdwg.mxu0
        %vm1452 = vcmask 64512
        %v1453 = vsel %vm1452, %v1401, -inf
        %1454 = vmax.xlane.f32.xlu0 %v1453
        %v1455 = vpop.xlane.xlu0 %1454
        %v1456 = vsel %vm1452, %v1447, -inf
        %1457 = vmax.xlane.f32.xlu0 %v1456
        %v1458 = vpop.xlane.xlu0 %1457
        %v1459 = vsub.f32 %v1401, %v1455
        %v1460 = vsub.f32 %v1447, %v1458
        %v1461 = vmul.f32 %v1459, 1.442695
        %v1462 = vpow.pop %v1461
        %v1463 = vmul.f32 %v1460, 1.442695
        %v1464 = vpow.pop %v1463
        %v1465 = vsel %vm1452, %v1462, 0.0
        %1466 = vadd.xlane.f32.xlu0 %v1465
        %v1467 = vpop.xlane.xlu0 %1466
        %v1468 = vsel %vm1452, %v1464, 0.0
        %1469 = vadd.xlane.f32.xlu0 %v1468
        %v1470 = vpop.xlane.xlu0 %1469
        %v1471 = vrcp.pop %v1467
        %v1472 = vrcp.pop %v1470
        %v1473 = vmul.f32 %v1462, %v1471
        %v1474 = vmul.f32 %v1464, %v1472
        %v1475 = vpack.c.bf16 %v1473, %v1473
        %v1476 = vpack.c.bf16 %v1474, %v1474
        %v1478 = vsel %vm1452, %v1475, 0
        %vm1480 = vcmask 1043456
        %v1482 = vsel %vm1480, %v1357, 0
        %1484 = vmatprep.subr.bf16.mxu0 0
        %1485 = vmatpush1.bf16.msra.mxu0 0
        %1486 = vmatprep.subr.bf16.mxu0 0
        %1487 = vmatpush1.bf16.msra.mxu0 0
        %1488 = vmatprep.subr.bf16.mxu0 0
        %1489 = vmatpush1.bf16.msra.mxu0 0
        %1490 = vmatprep.subr.bf16.mxu0 0
        %1491 = vmatpush1.bf16.msra.mxu0 0
        %1492 = vmatprep.subr.bf16.mxu0 0
        %1493 = vmatpush1.bf16.msra.mxu0 0
        %1494 = vmatprep.subr.bf16.mxu0 0
        %1495 = vmatpush1.bf16.msra.mxu0 0
        %1496 = vmatprep.subr.bf16.mxu0 0
        %1497 = vmatpush1.bf16.msra.mxu0 0
        %1498 = vmatprep.subr.bf16.mxu0 0
        %1499 = vmatpush1.bf16.msra.mxu0 %v1482
        %1500 = vmatprep.subr.bf16.mxu0 0
        %1501 = vmatpush2.bf16.msra.mxu0 0
        %1502 = vmatprep.subr.bf16.mxu0 0
        %1503 = vmatpush2.bf16.msra.mxu0 0
        %1504 = vmatprep.subr.bf16.mxu0 0
        %1505 = vmatpush2.bf16.msra.mxu0 0
        %1506 = vmatprep.subr.bf16.mxu0 0
        %1507 = vmatpush2.bf16.msra.mxu0 0
        %1508 = vmatprep.subr.bf16.mxu0 0
        %1509 = vmatpush2.bf16.msra.mxu0 0
        %1510 = vmatprep.subr.bf16.mxu0 0
        %1511 = vmatpush2.bf16.msra.mxu0 0
        %1512 = vmatprep.subr.bf16.mxu0 0
        %1513 = vmatpush2.bf16.msra.mxu0 0
        %1514 = vmatprep.subr.bf16.mxu0 0
        %1515 = vmatpush2.bf16.msra.mxu0 0
        %1516 = vmatprep.mubr.bf16.mxu0 0
        %1517 = vmatmul.mubr.bf16.gmra.mxu0 %v1478
        %v1518 = vpop.f32.mrf.mxu0
        %v1519 = vadd.f32 0.0, %v1518
        %v1520 = vpop.f32.mrf.mxu0
        %v1521 = vpop.f32.mrf.mxu0
        %v1522 = vpop.f32.mrf.mxu0
        %1523 = vdwg.mxu0
        %v1525 = vsel %vm1452, %v1476, 0
        %v1528 = vsel %vm1480, %v1358, 0
        %1530 = vmatprep.subr.bf16.mxu0 0
        %1531 = vmatpush1.bf16.msra.mxu0 0
        %1532 = vmatprep.subr.bf16.mxu0 0
        %1533 = vmatpush1.bf16.msra.mxu0 0
        %1534 = vmatprep.subr.bf16.mxu0 0
        %1535 = vmatpush1.bf16.msra.mxu0 0
        %1536 = vmatprep.subr.bf16.mxu0 0
        %1537 = vmatpush1.bf16.msra.mxu0 0
        %1538 = vmatprep.subr.bf16.mxu0 0
        %1539 = vmatpush1.bf16.msra.mxu0 0
        %1540 = vmatprep.subr.bf16.mxu0 0
        %1541 = vmatpush1.bf16.msra.mxu0 0
        %1542 = vmatprep.subr.bf16.mxu0 0
        %1543 = vmatpush1.bf16.msra.mxu0 0
        %1544 = vmatprep.subr.bf16.mxu0 0
        %1545 = vmatpush1.bf16.msra.mxu0 %v1528
        %1546 = vmatprep.subr.bf16.mxu0 0
        %1547 = vmatpush2.bf16.msra.mxu0 0
        %1548 = vmatprep.subr.bf16.mxu0 0
        %1549 = vmatpush2.bf16.msra.mxu0 0
        %1550 = vmatprep.subr.bf16.mxu0 0
        %1551 = vmatpush2.bf16.msra.mxu0 0
        %1552 = vmatprep.subr.bf16.mxu0 0
        %1553 = vmatpush2.bf16.msra.mxu0 0
        %1554 = vmatprep.subr.bf16.mxu0 0
        %1555 = vmatpush2.bf16.msra.mxu0 0
        %1556 = vmatprep.subr.bf16.mxu0 0
        %1557 = vmatpush2.bf16.msra.mxu0 0
        %1558 = vmatprep.subr.bf16.mxu0 0
        %1559 = vmatpush2.bf16.msra.mxu0 0
        %1560 = vmatprep.subr.bf16.mxu0 0
        %1561 = vmatpush2.bf16.msra.mxu0 0
        %1562 = vmatprep.mubr.bf16.mxu0 0
        %1563 = vmatmul.mubr.bf16.gmra.mxu0 %v1525
        %v1564 = vpop.f32.mrf.mxu0
        %v1565 = vadd.f32 0.0, %v1564
        %v1566 = vpop.f32.mrf.mxu0
        %v1567 = vpop.f32.mrf.mxu0
        %v1568 = vpop.f32.mrf.mxu0
        %1569 = vdwg.mxu0
        %v1570 = vld [vmem:[#allocation3] sm:$0xf]
        %v1571 = vld [vmem:[#allocation3 + $0x18] sm:$0xf]
        %v1572 = vld [vmem:[#allocation3 + $0x8] sm:$0xf]
        %v1573 = vld [vmem:[#allocation3 + $0x20] sm:$0xf]
        %v1574 = vld [vmem:[#allocation3 + $0x10] sm:$0xf]
        %v1575 = vld [vmem:[#allocation3 + $0x28] sm:$0xf]
        %v1577 = vunpack.c.l.b16 %v1570
        %v1578 = vpack.c.b16 %v1577, %v1577
        %1579 = vrot.lane.b32.xlu0 %v1578, 96
        %v1580 = vpop.permute.xlu0 %1579
        %v1582 = vunpack.c.l.b16 %v1572
        %v1583 = vpack.c.b16 %v1582, %v1582
        %1584 = vrot.lane.b32.xlu0 %v1583, 96
        %v1585 = vpop.permute.xlu0 %1584
        %v1587 = vsel %vm1359, %v1580, 0
        %v1590 = vsel %vm1359, %v1585, 0
        %1592 = vmatprep.subr.bf16.mxu0 0
        %1593 = vmatpush1.bf16.xpose.msra.mxu0 0
        %1594 = vmatprep.subr.bf16.mxu0 0
        %1595 = vmatpush1.bf16.xpose.msra.mxu0 0
        %1596 = vmatprep.subr.bf16.mxu0 0
        %1597 = vmatpush1.bf16.xpose.msra.mxu0 0
        %1598 = vmatprep.subr.bf16.mxu0 0
        %1599 = vmatpush1.bf16.xpose.msra.mxu0 0
        %1600 = vmatprep.subr.bf16.mxu0 0
        %1601 = vmatpush1.bf16.xpose.msra.mxu0 0
        %1602 = vmatprep.subr.bf16.mxu0 0
        %1603 = vmatpush1.bf16.xpose.msra.mxu0 0
        %1604 = vmatprep.subr.bf16.mxu0 0
        %1605 = vmatpush1.bf16.xpose.msra.mxu0 0
        %1606 = vmatprep.subr.bf16.mxu0 0
        %1607 = vmatpush1.bf16.xpose.msra.mxu0 %v1590
        %1608 = vmatprep.subr.bf16.mxu0 0
        %1609 = vmatpush2.bf16.xpose.msra.mxu0 0
        %1610 = vmatprep.subr.bf16.mxu0 0
        %1611 = vmatpush2.bf16.xpose.msra.mxu0 0
        %1612 = vmatprep.subr.bf16.mxu0 0
        %1613 = vmatpush2.bf16.xpose.msra.mxu0 0
        %1614 = vmatprep.subr.bf16.mxu0 0
        %1615 = vmatpush2.bf16.xpose.msra.mxu0 0
        %1616 = vmatprep.subr.bf16.mxu0 0
        %1617 = vmatpush2.bf16.xpose.msra.mxu0 0
        %1618 = vmatprep.subr.bf16.mxu0 0
        %1619 = vmatpush2.bf16.xpose.msra.mxu0 0
        %1620 = vmatprep.subr.bf16.mxu0 0
        %1621 = vmatpush2.bf16.xpose.msra.mxu0 0
        %1622 = vmatprep.subr.bf16.mxu0 0
        %1623 = vmatpush2.bf16.xpose.msra.mxu0 0
        %1624 = vmatprep.mubr.bf16.mxu0 0
        %1625 = vmatmul.mubr.bf16.gmra.mxu0 %v1587
        %v1626 = vpop.f32.mrf.mxu0
        %v1627 = vadd.f32 0.0, %v1626
        %v1628 = vpop.f32.mrf.mxu0
        %v1629 = vpop.f32.mrf.mxu0
        %v1630 = vpop.f32.mrf.mxu0
        %1631 = vdwg.mxu0
        %v1633 = vunpack.c.l.b16 %v1571
        %v1634 = vpack.c.b16 %v1633, %v1633
        %1635 = vrot.lane.b32.xlu0 %v1634, 96
        %v1636 = vpop.permute.xlu0 %1635
        %v1638 = vunpack.c.l.b16 %v1573
        %v1639 = vpack.c.b16 %v1638, %v1638
        %1640 = vrot.lane.b32.xlu0 %v1639, 96
        %v1641 = vpop.permute.xlu0 %1640
        %v1643 = vsel %vm1359, %v1636, 0
        %v1646 = vsel %vm1359, %v1641, 0
        %1648 = vmatprep.subr.bf16.mxu0 0
        %1649 = vmatpush1.bf16.xpose.msra.mxu0 0
        %1650 = vmatprep.subr.bf16.mxu0 0
        %1651 = vmatpush1.bf16.xpose.msra.mxu0 0
        %1652 = vmatprep.subr.bf16.mxu0 0
        %1653 = vmatpush1.bf16.xpose.msra.mxu0 0
        %1654 = vmatprep.subr.bf16.mxu0 0
        %1655 = vmatpush1.bf16.xpose.msra.mxu0 0
        %1656 = vmatprep.subr.bf16.mxu0 0
        %1657 = vmatpush1.bf16.xpose.msra.mxu0 0
        %1658 = vmatprep.subr.bf16.mxu0 0
        %1659 = vmatpush1.bf16.xpose.msra.mxu0 0
        %1660 = vmatprep.subr.bf16.mxu0 0
        %1661 = vmatpush1.bf16.xpose.msra.mxu0 0
        %1662 = vmatprep.subr.bf16.mxu0 0
        %1663 = vmatpush1.bf16.xpose.msra.mxu0 %v1646
        %1664 = vmatprep.subr.bf16.mxu0 0
        %1665 = vmatpush2.bf16.xpose.msra.mxu0 0
        %1666 = vmatprep.subr.bf16.mxu0 0
        %1667 = vmatpush2.bf16.xpose.msra.mxu0 0
        %1668 = vmatprep.subr.bf16.mxu0 0
        %1669 = vmatpush2.bf16.xpose.msra.mxu0 0
        %1670 = vmatprep.subr.bf16.mxu0 0
        %1671 = vmatpush2.bf16.xpose.msra.mxu0 0
        %1672 = vmatprep.subr.bf16.mxu0 0
        %1673 = vmatpush2.bf16.xpose.msra.mxu0 0
        %1674 = vmatprep.subr.bf16.mxu0 0
        %1675 = vmatpush2.bf16.xpose.msra.mxu0 0
        %1676 = vmatprep.subr.bf16.mxu0 0
        %1677 = vmatpush2.bf16.xpose.msra.mxu0 0
        %1678 = vmatprep.subr.bf16.mxu0 0
        %1679 = vmatpush2.bf16.xpose.msra.mxu0 0
        %1680 = vmatprep.mubr.bf16.mxu0 0
        %1681 = vmatmul.mubr.bf16.gmra.mxu0 %v1643
        %v1682 = vpop.f32.mrf.mxu0
        %v1683 = vadd.f32 0.0, %v1682
        %v1684 = vpop.f32.mrf.mxu0
        %v1685 = vpop.f32.mrf.mxu0
        %v1686 = vpop.f32.mrf.mxu0
        %1687 = vdwg.mxu0
        %v1688 = vsel %vm1452, %v1627, -inf
        %1689 = vmax.xlane.f32.xlu0 %v1688
        %v1690 = vpop.xlane.xlu0 %1689
        %v1691 = vsel %vm1452, %v1683, -inf
        %1692 = vmax.xlane.f32.xlu0 %v1691
        %v1693 = vpop.xlane.xlu0 %1692
        %v1694 = vsub.f32 %v1627, %v1690
        %v1695 = vsub.f32 %v1683, %v1693
        %v1696 = vmul.f32 %v1694, 1.442695
        %v1697 = vpow.pop %v1696
        %v1698 = vmul.f32 %v1695, 1.442695
        %v1699 = vpow.pop %v1698
        %v1700 = vsel %vm1452, %v1697, 0.0
        %1701 = vadd.xlane.f32.xlu0 %v1700
        %v1702 = vpop.xlane.xlu0 %1701
        %v1703 = vsel %vm1452, %v1699, 0.0
        %1704 = vadd.xlane.f32.xlu0 %v1703
        %v1705 = vpop.xlane.xlu0 %1704
        %v1706 = vrcp.pop %v1702
        %v1707 = vrcp.pop %v1705
        %v1708 = vmul.f32 %v1697, %v1706
        %v1709 = vmul.f32 %v1699, %v1707
        %v1710 = vpack.c.bf16 %v1708, %v1708
        %v1711 = vpack.c.bf16 %v1709, %v1709
        %v1713 = vunpack.c.l.b16 %v1574
        %v1714 = vpack.c.b16 %v1713, %v1713
        %1715 = vrot.lane.b32.xlu0 %v1714, 96
        %v1716 = vpop.permute.xlu0 %1715
        %v1718 = vsel %vm1452, %v1710, 0
        %v1721 = vsel %vm1480, %v1716, 0
        %1723 = vmatprep.subr.bf16.mxu0 0
        %1724 = vmatpush1.bf16.msra.mxu0 0
        %1725 = vmatprep.subr.bf16.mxu0 0
        %1726 = vmatpush1.bf16.msra.mxu0 0
        %1727 = vmatprep.subr.bf16.mxu0 0
        %1728 = vmatpush1.bf16.msra.mxu0 0
        %1729 = vmatprep.subr.bf16.mxu0 0
        %1730 = vmatpush1.bf16.msra.mxu0 0
        %1731 = vmatprep.subr.bf16.mxu0 0
        %1732 = vmatpush1.bf16.msra.mxu0 0
        %1733 = vmatprep.subr.bf16.mxu0 0
        %1734 = vmatpush1.bf16.msra.mxu0 0
        %1735 = vmatprep.subr.bf16.mxu0 0
        %1736 = vmatpush1.bf16.msra.mxu0 0
        %1737 = vmatprep.subr.bf16.mxu0 0
        %1738 = vmatpush1.bf16.msra.mxu0 %v1721
        %1739 = vmatprep.subr.bf16.mxu0 0
        %1740 = vmatpush2.bf16.msra.mxu0 0
        %1741 = vmatprep.subr.bf16.mxu0 0
        %1742 = vmatpush2.bf16.msra.mxu0 0
        %1743 = vmatprep.subr.bf16.mxu0 0
        %1744 = vmatpush2.bf16.msra.mxu0 0
        %1745 = vmatprep.subr.bf16.mxu0 0
        %1746 = vmatpush2.bf16.msra.mxu0 0
        %1747 = vmatprep.subr.bf16.mxu0 0
        %1748 = vmatpush2.bf16.msra.mxu0 0
        %1749 = vmatprep.subr.bf16.mxu0 0
        %1750 = vmatpush2.bf16.msra.mxu0 0
        %1751 = vmatprep.subr.bf16.mxu0 0
        %1752 = vmatpush2.bf16.msra.mxu0 0
        %1753 = vmatprep.subr.bf16.mxu0 0
        %1754 = vmatpush2.bf16.msra.mxu0 0
        %1755 = vmatprep.mubr.bf16.mxu0 0
        %1756 = vmatmul.mubr.bf16.gmra.mxu0 %v1718
        %v1757 = vpop.f32.mrf.mxu0
        %v1758 = vadd.f32 0.0, %v1757
        %v1759 = vpop.f32.mrf.mxu0
        %v1760 = vpop.f32.mrf.mxu0
        %v1761 = vpop.f32.mrf.mxu0
        %1762 = vdwg.mxu0
        %v1764 = vunpack.c.l.b16 %v1575
        %v1765 = vpack.c.b16 %v1764, %v1764
        %1766 = vrot.lane.b32.xlu0 %v1765, 96
        %v1767 = vpop.permute.xlu0 %1766
        %v1769 = vsel %vm1452, %v1711, 0
        %v1772 = vsel %vm1480, %v1767, 0
        %1774 = vmatprep.subr.bf16.mxu0 0
        %1775 = vmatpush1.bf16.msra.mxu0 0
        %1776 = vmatprep.subr.bf16.mxu0 0
        %1777 = vmatpush1.bf16.msra.mxu0 0
        %1778 = vmatprep.subr.bf16.mxu0 0
        %1779 = vmatpush1.bf16.msra.mxu0 0
        %1780 = vmatprep.subr.bf16.mxu0 0
        %1781 = vmatpush1.bf16.msra.mxu0 0
        %1782 = vmatprep.subr.bf16.mxu0 0
        %1783 = vmatpush1.bf16.msra.mxu0 0
        %1784 = vmatprep.subr.bf16.mxu0 0
        %1785 = vmatpush1.bf16.msra.mxu0 0
        %1786 = vmatprep.subr.bf16.mxu0 0
        %1787 = vmatpush1.bf16.msra.mxu0 0
        %1788 = vmatprep.subr.bf16.mxu0 0
        %1789 = vmatpush1.bf16.msra.mxu0 %v1772
        %1790 = vmatprep.subr.bf16.mxu0 0
        %1791 = vmatpush2.bf16.msra.mxu0 0
        %1792 = vmatprep.subr.bf16.mxu0 0
        %1793 = vmatpush2.bf16.msra.mxu0 0
        %1794 = vmatprep.subr.bf16.mxu0 0
        %1795 = vmatpush2.bf16.msra.mxu0 0
        %1796 = vmatprep.subr.bf16.mxu0 0
        %1797 = vmatpush2.bf16.msra.mxu0 0
        %1798 = vmatprep.subr.bf16.mxu0 0
        %1799 = vmatpush2.bf16.msra.mxu0 0
        %1800 = vmatprep.subr.bf16.mxu0 0
        %1801 = vmatpush2.bf16.msra.mxu0 0
        %1802 = vmatprep.subr.bf16.mxu0 0
        %1803 = vmatpush2.bf16.msra.mxu0 0
        %1804 = vmatprep.subr.bf16.mxu0 0
        %1805 = vmatpush2.bf16.msra.mxu0 0
        %1806 = vmatprep.mubr.bf16.mxu0 0
        %1807 = vmatmul.mubr.bf16.gmra.mxu0 %v1769
        %v1808 = vpop.f32.mrf.mxu0
        %v1809 = vadd.f32 0.0, %v1808
        %v1810 = vpop.f32.mrf.mxu0
        %v1811 = vpop.f32.mrf.mxu0
        %v1812 = vpop.f32.mrf.mxu0
        %1813 = vdwg.mxu0
        %v1814 = vld [vmem:[#allocation3] sm:$0xf]
        %v1815 = vld [vmem:[#allocation3 + $0x18] sm:$0xf]
        %v1816 = vld [vmem:[#allocation3 + $0x8] sm:$0xf]
        %v1817 = vld [vmem:[#allocation3 + $0x20] sm:$0xf]
        %v1818 = vld [vmem:[#allocation3 + $0x10] sm:$0xf]
        %v1819 = vld [vmem:[#allocation3 + $0x28] sm:$0xf]
        %v1821 = vunpack.c.l.b16 %v1814
        %v1822 = vpack.c.b16 %v1821, %v1821
        %1823 = vrot.lane.b32.xlu0 %v1822, 64
        %v1824 = vpop.permute.xlu0 %1823
        %v1826 = vunpack.c.l.b16 %v1816
        %v1827 = vpack.c.b16 %v1826, %v1826
        %1828 = vrot.lane.b32.xlu0 %v1827, 64
        %v1829 = vpop.permute.xlu0 %1828
        %v1831 = vsel %vm1359, %v1824, 0
        %v1834 = vsel %vm1359, %v1829, 0
        %1836 = vmatprep.subr.bf16.mxu0 0
        %1837 = vmatpush1.bf16.xpose.msra.mxu0 0
        %1838 = vmatprep.subr.bf16.mxu0 0
        %1839 = vmatpush1.bf16.xpose.msra.mxu0 0
        %1840 = vmatprep.subr.bf16.mxu0 0
        %1841 = vmatpush1.bf16.xpose.msra.mxu0 0
        %1842 = vmatprep.subr.bf16.mxu0 0
        %1843 = vmatpush1.bf16.xpose.msra.mxu0 0
        %1844 = vmatprep.subr.bf16.mxu0 0
        %1845 = vmatpush1.bf16.xpose.msra.mxu0 0
        %1846 = vmatprep.subr.bf16.mxu0 0
        %1847 = vmatpush1.bf16.xpose.msra.mxu0 0
        %1848 = vmatprep.subr.bf16.mxu0 0
        %1849 = vmatpush1.bf16.xpose.msra.mxu0 0
        %1850 = vmatprep.subr.bf16.mxu0 0
        %1851 = vmatpush1.bf16.xpose.msra.mxu0 %v1834
        %1852 = vmatprep.subr.bf16.mxu0 0
        %1853 = vmatpush2.bf16.xpose.msra.mxu0 0
        %1854 = vmatprep.subr.bf16.mxu0 0
        %1855 = vmatpush2.bf16.xpose.msra.mxu0 0
        %1856 = vmatprep.subr.bf16.mxu0 0
        %1857 = vmatpush2.bf16.xpose.msra.mxu0 0
        %1858 = vmatprep.subr.bf16.mxu0 0
        %1859 = vmatpush2.bf16.xpose.msra.mxu0 0
        %1860 = vmatprep.subr.bf16.mxu0 0
        %1861 = vmatpush2.bf16.xpose.msra.mxu0 0
        %1862 = vmatprep.subr.bf16.mxu0 0
        %1863 = vmatpush2.bf16.xpose.msra.mxu0 0
        %1864 = vmatprep.subr.bf16.mxu0 0
        %1865 = vmatpush2.bf16.xpose.msra.mxu0 0
        %1866 = vmatprep.subr.bf16.mxu0 0
        %1867 = vmatpush2.bf16.xpose.msra.mxu0 0
        %1868 = vmatprep.mubr.bf16.mxu0 0
        %1869 = vmatmul.mubr.bf16.gmra.mxu0 %v1831
        %v1870 = vpop.f32.mrf.mxu0
        %v1871 = vadd.f32 0.0, %v1870
        %v1872 = vpop.f32.mrf.mxu0
        %v1873 = vpop.f32.mrf.mxu0
        %v1874 = vpop.f32.mrf.mxu0
        %1875 = vdwg.mxu0
        %v1877 = vunpack.c.l.b16 %v1815
        %v1878 = vpack.c.b16 %v1877, %v1877
        %1879 = vrot.lane.b32.xlu0 %v1878, 64
        %v1880 = vpop.permute.xlu0 %1879
        %v1882 = vunpack.c.l.b16 %v1817
        %v1883 = vpack.c.b16 %v1882, %v1882
        %1884 = vrot.lane.b32.xlu0 %v1883, 64
        %v1885 = vpop.permute.xlu0 %1884
        %v1887 = vsel %vm1359, %v1880, 0
        %v1890 = vsel %vm1359, %v1885, 0
        %1892 = vmatprep.subr.bf16.mxu0 0
        %1893 = vmatpush1.bf16.xpose.msra.mxu0 0
        %1894 = vmatprep.subr.bf16.mxu0 0
        %1895 = vmatpush1.bf16.xpose.msra.mxu0 0
        %1896 = vmatprep.subr.bf16.mxu0 0
        %1897 = vmatpush1.bf16.xpose.msra.mxu0 0
        %1898 = vmatprep.subr.bf16.mxu0 0
        %1899 = vmatpush1.bf16.xpose.msra.mxu0 0
        %1900 = vmatprep.subr.bf16.mxu0 0
        %1901 = vmatpush1.bf16.xpose.msra.mxu0 0
        %1902 = vmatprep.subr.bf16.mxu0 0
        %1903 = vmatpush1.bf16.xpose.msra.mxu0 0
        %1904 = vmatprep.subr.bf16.mxu0 0
        %1905 = vmatpush1.bf16.xpose.msra.mxu0 0
        %1906 = vmatprep.subr.bf16.mxu0 0
        %1907 = vmatpush1.bf16.xpose.msra.mxu0 %v1890
        %1908 = vmatprep.subr.bf16.mxu0 0
        %1909 = vmatpush2.bf16.xpose.msra.mxu0 0
        %1910 = vmatprep.subr.bf16.mxu0 0
        %1911 = vmatpush2.bf16.xpose.msra.mxu0 0
        %1912 = vmatprep.subr.bf16.mxu0 0
        %1913 = vmatpush2.bf16.xpose.msra.mxu0 0
        %1914 = vmatprep.subr.bf16.mxu0 0
        %1915 = vmatpush2.bf16.xpose.msra.mxu0 0
        %1916 = vmatprep.subr.bf16.mxu0 0
        %1917 = vmatpush2.bf16.xpose.msra.mxu0 0
        %1918 = vmatprep.subr.bf16.mxu0 0
        %1919 = vmatpush2.bf16.xpose.msra.mxu0 0
        %1920 = vmatprep.subr.bf16.mxu0 0
        %1921 = vmatpush2.bf16.xpose.msra.mxu0 0
        %1922 = vmatprep.subr.bf16.mxu0 0
        %1923 = vmatpush2.bf16.xpose.msra.mxu0 0
        %1924 = vmatprep.mubr.bf16.mxu0 0
        %1925 = vmatmul.mubr.bf16.gmra.mxu0 %v1887
        %v1926 = vpop.f32.mrf.mxu0
        %v1927 = vadd.f32 0.0, %v1926
        %v1928 = vpop.f32.mrf.mxu0
        %v1929 = vpop.f32.mrf.mxu0
        %v1930 = vpop.f32.mrf.mxu0
        %1931 = vdwg.mxu0
        %v1932 = vsel %vm1452, %v1871, -inf
        %1933 = vmax.xlane.f32.xlu0 %v1932
        %v1934 = vpop.xlane.xlu0 %1933
        %v1935 = vsel %vm1452, %v1927, -inf
        %1936 = vmax.xlane.f32.xlu0 %v1935
        %v1937 = vpop.xlane.xlu0 %1936
        %v1938 = vsub.f32 %v1871, %v1934
        %v1939 = vsub.f32 %v1927, %v1937
        %v1940 = vmul.f32 %v1938, 1.442695
        %v1941 = vpow.pop %v1940
        %v1942 = vmul.f32 %v1939, 1.442695
        %v1943 = vpow.pop %v1942
        %v1944 = vsel %vm1452, %v1941, 0.0
        %1945 = vadd.xlane.f32.xlu0 %v1944
        %v1946 = vpop.xlane.xlu0 %1945
        %v1947 = vsel %vm1452, %v1943, 0.0
        %1948 = vadd.xlane.f32.xlu0 %v1947
        %v1949 = vpop.xlane.xlu0 %1948
        %v1950 = vrcp.pop %v1946
        %v1951 = vrcp.pop %v1949
        %v1952 = vmul.f32 %v1941, %v1950
        %v1953 = vmul.f32 %v1943, %v1951
        %v1954 = vpack.c.bf16 %v1952, %v1952
        %v1955 = vpack.c.bf16 %v1953, %v1953
        %v1957 = vunpack.c.l.b16 %v1818
        %v1958 = vpack.c.b16 %v1957, %v1957
        %1959 = vrot.lane.b32.xlu0 %v1958, 64
        %v1960 = vpop.permute.xlu0 %1959
        %v1962 = vsel %vm1452, %v1954, 0
        %v1965 = vsel %vm1480, %v1960, 0
        %1967 = vmatprep.subr.bf16.mxu0 0
        %1968 = vmatpush1.bf16.msra.mxu0 0
        %1969 = vmatprep.subr.bf16.mxu0 0
        %1970 = vmatpush1.bf16.msra.mxu0 0
        %1971 = vmatprep.subr.bf16.mxu0 0
        %1972 = vmatpush1.bf16.msra.mxu0 0
        %1973 = vmatprep.subr.bf16.mxu0 0
        %1974 = vmatpush1.bf16.msra.mxu0 0
        %1975 = vmatprep.subr.bf16.mxu0 0
        %1976 = vmatpush1.bf16.msra.mxu0 0
        %1977 = vmatprep.subr.bf16.mxu0 0
        %1978 = vmatpush1.bf16.msra.mxu0 0
        %1979 = vmatprep.subr.bf16.mxu0 0
        %1980 = vmatpush1.bf16.msra.mxu0 0
        %1981 = vmatprep.subr.bf16.mxu0 0
        %1982 = vmatpush1.bf16.msra.mxu0 %v1965
        %1983 = vmatprep.subr.bf16.mxu0 0
        %1984 = vmatpush2.bf16.msra.mxu0 0
        %1985 = vmatprep.subr.bf16.mxu0 0
        %1986 = vmatpush2.bf16.msra.mxu0 0
        %1987 = vmatprep.subr.bf16.mxu0 0
        %1988 = vmatpush2.bf16.msra.mxu0 0
        %1989 = vmatprep.subr.bf16.mxu0 0
        %1990 = vmatpush2.bf16.msra.mxu0 0
        %1991 = vmatprep.subr.bf16.mxu0 0
        %1992 = vmatpush2.bf16.msra.mxu0 0
        %1993 = vmatprep.subr.bf16.mxu0 0
        %1994 = vmatpush2.bf16.msra.mxu0 0
        %1995 = vmatprep.subr.bf16.mxu0 0
        %1996 = vmatpush2.bf16.msra.mxu0 0
        %1997 = vmatprep.subr.bf16.mxu0 0
        %1998 = vmatpush2.bf16.msra.mxu0 0
        %1999 = vmatprep.mubr.bf16.mxu0 0
        %2000 = vmatmul.mubr.bf16.gmra.mxu0 %v1962
        %v2001 = vpop.f32.mrf.mxu0
        %v2002 = vadd.f32 0.0, %v2001
        %v2003 = vpop.f32.mrf.mxu0
        %v2004 = vpop.f32.mrf.mxu0
        %v2005 = vpop.f32.mrf.mxu0
        %2006 = vdwg.mxu0
        %v2008 = vunpack.c.l.b16 %v1819
        %v2009 = vpack.c.b16 %v2008, %v2008
        %2010 = vrot.lane.b32.xlu0 %v2009, 64
        %v2011 = vpop.permute.xlu0 %2010
        %v2013 = vsel %vm1452, %v1955, 0
        %v2016 = vsel %vm1480, %v2011, 0
        %2018 = vmatprep.subr.bf16.mxu0 0
        %2019 = vmatpush1.bf16.msra.mxu0 0
        %2020 = vmatprep.subr.bf16.mxu0 0
        %2021 = vmatpush1.bf16.msra.mxu0 0
        %2022 = vmatprep.subr.bf16.mxu0 0
        %2023 = vmatpush1.bf16.msra.mxu0 0
        %2024 = vmatprep.subr.bf16.mxu0 0
        %2025 = vmatpush1.bf16.msra.mxu0 0
        %2026 = vmatprep.subr.bf16.mxu0 0
        %2027 = vmatpush1.bf16.msra.mxu0 0
        %2028 = vmatprep.subr.bf16.mxu0 0
        %2029 = vmatpush1.bf16.msra.mxu0 0
        %2030 = vmatprep.subr.bf16.mxu0 0
        %2031 = vmatpush1.bf16.msra.mxu0 0
        %2032 = vmatprep.subr.bf16.mxu0 0
        %2033 = vmatpush1.bf16.msra.mxu0 %v2016
        %2034 = vmatprep.subr.bf16.mxu0 0
        %2035 = vmatpush2.bf16.msra.mxu0 0
        %2036 = vmatprep.subr.bf16.mxu0 0
        %2037 = vmatpush2.bf16.msra.mxu0 0
        %2038 = vmatprep.subr.bf16.mxu0 0
        %2039 = vmatpush2.bf16.msra.mxu0 0
        %2040 = vmatprep.subr.bf16.mxu0 0
        %2041 = vmatpush2.bf16.msra.mxu0 0
        %2042 = vmatprep.subr.bf16.mxu0 0
        %2043 = vmatpush2.bf16.msra.mxu0 0
        %2044 = vmatprep.subr.bf16.mxu0 0
        %2045 = vmatpush2.bf16.msra.mxu0 0
        %2046 = vmatprep.subr.bf16.mxu0 0
        %2047 = vmatpush2.bf16.msra.mxu0 0
        %2048 = vmatprep.subr.bf16.mxu0 0
        %2049 = vmatpush2.bf16.msra.mxu0 0
        %2050 = vmatprep.mubr.bf16.mxu0 0
        %2051 = vmatmul.mubr.bf16.gmra.mxu0 %v2013
        %v2052 = vpop.f32.mrf.mxu0
        %v2053 = vadd.f32 0.0, %v2052
        %v2054 = vpop.f32.mrf.mxu0
        %v2055 = vpop.f32.mrf.mxu0
        %v2056 = vpop.f32.mrf.mxu0
        %2057 = vdwg.mxu0
        %v2058 = vld [vmem:[#allocation3] sm:$0xf]
        %v2059 = vld [vmem:[#allocation3 + $0x18] sm:$0xf]
        %v2060 = vld [vmem:[#allocation3 + $0x8] sm:$0xf]
        %v2061 = vld [vmem:[#allocation3 + $0x20] sm:$0xf]
        %v2062 = vld [vmem:[#allocation3 + $0x10] sm:$0xf]
        %v2063 = vld [vmem:[#allocation3 + $0x28] sm:$0xf]
        %v2065 = vunpack.c.l.b16 %v2058
        %v2066 = vpack.c.b16 %v2065, %v2065
        %2067 = vrot.lane.b32.xlu0 %v2066, 32
        %v2068 = vpop.permute.xlu0 %2067
        %v2070 = vunpack.c.l.b16 %v2060
        %v2071 = vpack.c.b16 %v2070, %v2070
        %2072 = vrot.lane.b32.xlu0 %v2071, 32
        %v2073 = vpop.permute.xlu0 %2072
        %v2075 = vsel %vm1359, %v2068, 0
        %v2078 = vsel %vm1359, %v2073, 0
        %2080 = vmatprep.subr.bf16.mxu0 0
        %2081 = vmatpush1.bf16.xpose.msra.mxu0 0
        %2082 = vmatprep.subr.bf16.mxu0 0
        %2083 = vmatpush1.bf16.xpose.msra.mxu0 0
        %2084 = vmatprep.subr.bf16.mxu0 0
        %2085 = vmatpush1.bf16.xpose.msra.mxu0 0
        %2086 = vmatprep.subr.bf16.mxu0 0
        %2087 = vmatpush1.bf16.xpose.msra.mxu0 0
        %2088 = vmatprep.subr.bf16.mxu0 0
        %2089 = vmatpush1.bf16.xpose.msra.mxu0 0
        %2090 = vmatprep.subr.bf16.mxu0 0
        %2091 = vmatpush1.bf16.xpose.msra.mxu0 0
        %2092 = vmatprep.subr.bf16.mxu0 0
        %2093 = vmatpush1.bf16.xpose.msra.mxu0 0
        %2094 = vmatprep.subr.bf16.mxu0 0
        %2095 = vmatpush1.bf16.xpose.msra.mxu0 %v2078
        %2096 = vmatprep.subr.bf16.mxu0 0
        %2097 = vmatpush2.bf16.xpose.msra.mxu0 0
        %2098 = vmatprep.subr.bf16.mxu0 0
        %2099 = vmatpush2.bf16.xpose.msra.mxu0 0
        %2100 = vmatprep.subr.bf16.mxu0 0
        %2101 = vmatpush2.bf16.xpose.msra.mxu0 0
        %2102 = vmatprep.subr.bf16.mxu0 0
        %2103 = vmatpush2.bf16.xpose.msra.mxu0 0
        %2104 = vmatprep.subr.bf16.mxu0 0
        %2105 = vmatpush2.bf16.xpose.msra.mxu0 0
        %2106 = vmatprep.subr.bf16.mxu0 0
        %2107 = vmatpush2.bf16.xpose.msra.mxu0 0
        %2108 = vmatprep.subr.bf16.mxu0 0
        %2109 = vmatpush2.bf16.xpose.msra.mxu0 0
        %2110 = vmatprep.subr.bf16.mxu0 0
        %2111 = vmatpush2.bf16.xpose.msra.mxu0 0
        %2112 = vmatprep.mubr.bf16.mxu0 0
        %2113 = vmatmul.mubr.bf16.gmra.mxu0 %v2075
        %v2114 = vpop.f32.mrf.mxu0
        %v2115 = vadd.f32 0.0, %v2114
        %v2116 = vpop.f32.mrf.mxu0
        %v2117 = vpop.f32.mrf.mxu0
        %v2118 = vpop.f32.mrf.mxu0
        %2119 = vdwg.mxu0
        %v2121 = vunpack.c.l.b16 %v2059
        %v2122 = vpack.c.b16 %v2121, %v2121
        %2123 = vrot.lane.b32.xlu0 %v2122, 32
        %v2124 = vpop.permute.xlu0 %2123
        %v2126 = vunpack.c.l.b16 %v2061
        %v2127 = vpack.c.b16 %v2126, %v2126
        %2128 = vrot.lane.b32.xlu0 %v2127, 32
        %v2129 = vpop.permute.xlu0 %2128
        %v2131 = vsel %vm1359, %v2124, 0
        %v2134 = vsel %vm1359, %v2129, 0
        %2136 = vmatprep.subr.bf16.mxu0 0
        %2137 = vmatpush1.bf16.xpose.msra.mxu0 0
        %2138 = vmatprep.subr.bf16.mxu0 0
        %2139 = vmatpush1.bf16.xpose.msra.mxu0 0
        %2140 = vmatprep.subr.bf16.mxu0 0
        %2141 = vmatpush1.bf16.xpose.msra.mxu0 0
        %2142 = vmatprep.subr.bf16.mxu0 0
        %2143 = vmatpush1.bf16.xpose.msra.mxu0 0
        %2144 = vmatprep.subr.bf16.mxu0 0
        %2145 = vmatpush1.bf16.xpose.msra.mxu0 0
        %2146 = vmatprep.subr.bf16.mxu0 0
        %2147 = vmatpush1.bf16.xpose.msra.mxu0 0
        %2148 = vmatprep.subr.bf16.mxu0 0
        %2149 = vmatpush1.bf16.xpose.msra.mxu0 0
        %2150 = vmatprep.subr.bf16.mxu0 0
        %2151 = vmatpush1.bf16.xpose.msra.mxu0 %v2134
        %2152 = vmatprep.subr.bf16.mxu0 0
        %2153 = vmatpush2.bf16.xpose.msra.mxu0 0
        %2154 = vmatprep.subr.bf16.mxu0 0
        %2155 = vmatpush2.bf16.xpose.msra.mxu0 0
        %2156 = vmatprep.subr.bf16.mxu0 0
        %2157 = vmatpush2.bf16.xpose.msra.mxu0 0
        %2158 = vmatprep.subr.bf16.mxu0 0
        %2159 = vmatpush2.bf16.xpose.msra.mxu0 0
        %2160 = vmatprep.subr.bf16.mxu0 0
        %2161 = vmatpush2.bf16.xpose.msra.mxu0 0
        %2162 = vmatprep.subr.bf16.mxu0 0
        %2163 = vmatpush2.bf16.xpose.msra.mxu0 0
        %2164 = vmatprep.subr.bf16.mxu0 0
        %2165 = vmatpush2.bf16.xpose.msra.mxu0 0
        %2166 = vmatprep.subr.bf16.mxu0 0
        %2167 = vmatpush2.bf16.xpose.msra.mxu0 0
        %2168 = vmatprep.mubr.bf16.mxu0 0
        %2169 = vmatmul.mubr.bf16.gmra.mxu0 %v2131
        %v2170 = vpop.f32.mrf.mxu0
        %v2171 = vadd.f32 0.0, %v2170
        %v2172 = vpop.f32.mrf.mxu0
        %v2173 = vpop.f32.mrf.mxu0
        %v2174 = vpop.f32.mrf.mxu0
        %2175 = vdwg.mxu0
        %v2176 = vsel %vm1452, %v2115, -inf
        %2177 = vmax.xlane.f32.xlu0 %v2176
        %v2178 = vpop.xlane.xlu0 %2177
        %v2179 = vsel %vm1452, %v2171, -inf
        %2180 = vmax.xlane.f32.xlu0 %v2179
        %v2181 = vpop.xlane.xlu0 %2180
        %v2182 = vsub.f32 %v2115, %v2178
        %v2183 = vsub.f32 %v2171, %v2181
        %v2184 = vmul.f32 %v2182, 1.442695
        %v2185 = vpow.pop %v2184
        %v2186 = vmul.f32 %v2183, 1.442695
        %v2187 = vpow.pop %v2186
        %v2188 = vsel %vm1452, %v2185, 0.0
        %2189 = vadd.xlane.f32.xlu0 %v2188
        %v2190 = vpop.xlane.xlu0 %2189
        %v2191 = vsel %vm1452, %v2187, 0.0
        %2192 = vadd.xlane.f32.xlu0 %v2191
        %v2193 = vpop.xlane.xlu0 %2192
        %v2194 = vrcp.pop %v2190
        %v2195 = vrcp.pop %v2193
        %v2196 = vmul.f32 %v2185, %v2194
        %v2197 = vmul.f32 %v2187, %v2195
        %v2198 = vpack.c.bf16 %v2196, %v2196
        %v2199 = vpack.c.bf16 %v2197, %v2197
        %v2201 = vunpack.c.l.b16 %v2062
        %v2202 = vpack.c.b16 %v2201, %v2201
        %2203 = vrot.lane.b32.xlu0 %v2202, 32
        %v2204 = vpop.permute.xlu0 %2203
        %v2206 = vsel %vm1452, %v2198, 0
        %v2209 = vsel %vm1480, %v2204, 0
        %2211 = vmatprep.subr.bf16.mxu0 0
        %2212 = vmatpush1.bf16.msra.mxu0 0
        %2213 = vmatprep.subr.bf16.mxu0 0
        %2214 = vmatpush1.bf16.msra.mxu0 0
        %2215 = vmatprep.subr.bf16.mxu0 0
        %2216 = vmatpush1.bf16.msra.mxu0 0
        %2217 = vmatprep.subr.bf16.mxu0 0
        %2218 = vmatpush1.bf16.msra.mxu0 0
        %2219 = vmatprep.subr.bf16.mxu0 0
        %2220 = vmatpush1.bf16.msra.mxu0 0
        %2221 = vmatprep.subr.bf16.mxu0 0
        %2222 = vmatpush1.bf16.msra.mxu0 0
        %2223 = vmatprep.subr.bf16.mxu0 0
        %2224 = vmatpush1.bf16.msra.mxu0 0
        %2225 = vmatprep.subr.bf16.mxu0 0
        %2226 = vmatpush1.bf16.msra.mxu0 %v2209
        %2227 = vmatprep.subr.bf16.mxu0 0
        %2228 = vmatpush2.bf16.msra.mxu0 0
        %2229 = vmatprep.subr.bf16.mxu0 0
        %2230 = vmatpush2.bf16.msra.mxu0 0
        %2231 = vmatprep.subr.bf16.mxu0 0
        %2232 = vmatpush2.bf16.msra.mxu0 0
        %2233 = vmatprep.subr.bf16.mxu0 0
        %2234 = vmatpush2.bf16.msra.mxu0 0
        %2235 = vmatprep.subr.bf16.mxu0 0
        %2236 = vmatpush2.bf16.msra.mxu0 0
        %2237 = vmatprep.subr.bf16.mxu0 0
        %2238 = vmatpush2.bf16.msra.mxu0 0
        %2239 = vmatprep.subr.bf16.mxu0 0
        %2240 = vmatpush2.bf16.msra.mxu0 0
        %2241 = vmatprep.subr.bf16.mxu0 0
        %2242 = vmatpush2.bf16.msra.mxu0 0
        %2243 = vmatprep.mubr.bf16.mxu0 0
        %2244 = vmatmul.mubr.bf16.gmra.mxu0 %v2206
        %v2245 = vpop.f32.mrf.mxu0
        %v2246 = vadd.f32 0.0, %v2245
        %v2247 = vpop.f32.mrf.mxu0
        %v2248 = vpop.f32.mrf.mxu0
        %v2249 = vpop.f32.mrf.mxu0
        %2250 = vdwg.mxu0
        %v2252 = vunpack.c.l.b16 %v2063
        %v2253 = vpack.c.b16 %v2252, %v2252
        %2254 = vrot.lane.b32.xlu0 %v2253, 32
        %v2255 = vpop.permute.xlu0 %2254
        %v2257 = vsel %vm1452, %v2199, 0
        %v2260 = vsel %vm1480, %v2255, 0
        %2262 = vmatprep.subr.bf16.mxu0 0
        %2263 = vmatpush1.bf16.msra.mxu0 0
        %2264 = vmatprep.subr.bf16.mxu0 0
        %2265 = vmatpush1.bf16.msra.mxu0 0
        %2266 = vmatprep.subr.bf16.mxu0 0
        %2267 = vmatpush1.bf16.msra.mxu0 0
        %2268 = vmatprep.subr.bf16.mxu0 0
        %2269 = vmatpush1.bf16.msra.mxu0 0
        %2270 = vmatprep.subr.bf16.mxu0 0
        %2271 = vmatpush1.bf16.msra.mxu0 0
        %2272 = vmatprep.subr.bf16.mxu0 0
        %2273 = vmatpush1.bf16.msra.mxu0 0
        %2274 = vmatprep.subr.bf16.mxu0 0
        %2275 = vmatpush1.bf16.msra.mxu0 0
        %2276 = vmatprep.subr.bf16.mxu0 0
        %2277 = vmatpush1.bf16.msra.mxu0 %v2260
        %2278 = vmatprep.subr.bf16.mxu0 0
        %2279 = vmatpush2.bf16.msra.mxu0 0
        %2280 = vmatprep.subr.bf16.mxu0 0
        %2281 = vmatpush2.bf16.msra.mxu0 0
        %2282 = vmatprep.subr.bf16.mxu0 0
        %2283 = vmatpush2.bf16.msra.mxu0 0
        %2284 = vmatprep.subr.bf16.mxu0 0
        %2285 = vmatpush2.bf16.msra.mxu0 0
        %2286 = vmatprep.subr.bf16.mxu0 0
        %2287 = vmatpush2.bf16.msra.mxu0 0
        %2288 = vmatprep.subr.bf16.mxu0 0
        %2289 = vmatpush2.bf16.msra.mxu0 0
        %2290 = vmatprep.subr.bf16.mxu0 0
        %2291 = vmatpush2.bf16.msra.mxu0 0
        %2292 = vmatprep.subr.bf16.mxu0 0
        %2293 = vmatpush2.bf16.msra.mxu0 0
        %2294 = vmatprep.mubr.bf16.mxu0 0
        %2295 = vmatmul.mubr.bf16.gmra.mxu0 %v2257
        %v2296 = vpop.f32.mrf.mxu0
        %v2297 = vadd.f32 0.0, %v2296
        %v2298 = vpop.f32.mrf.mxu0
        %v2299 = vpop.f32.mrf.mxu0
        %v2300 = vpop.f32.mrf.mxu0
        %2301 = vdwg.mxu0
        %v2302 = vld [vmem:[#allocation3 + $0x4] sm:$0xf]
        %v2303 = vld [vmem:[#allocation3 + $0x1c] sm:$0xf]
        %v2304 = vld [vmem:[#allocation3 + $0xc] sm:$0xf]
        %v2305 = vld [vmem:[#allocation3 + $0x24] sm:$0xf]
        %v2306 = vld [vmem:[#allocation3 + $0x14] sm:$0xf]
        %v2307 = vld [vmem:[#allocation3 + $0x2c] sm:$0xf]
        %v2309 = vsel %vm1359, %v2302, 0
        %v2312 = vsel %vm1359, %v2304, 0
        %2314 = vmatprep.subr.bf16.mxu0 0
        %2315 = vmatpush1.bf16.xpose.msra.mxu0 0
        %2316 = vmatprep.subr.bf16.mxu0 0
        %2317 = vmatpush1.bf16.xpose.msra.mxu0 0
        %2318 = vmatprep.subr.bf16.mxu0 0
        %2319 = vmatpush1.bf16.xpose.msra.mxu0 0
        %2320 = vmatprep.subr.bf16.mxu0 0
        %2321 = vmatpush1.bf16.xpose.msra.mxu0 0
        %2322 = vmatprep.subr.bf16.mxu0 0
        %2323 = vmatpush1.bf16.xpose.msra.mxu0 0
        %2324 = vmatprep.subr.bf16.mxu0 0
        %2325 = vmatpush1.bf16.xpose.msra.mxu0 0
        %2326 = vmatprep.subr.bf16.mxu0 0
        %2327 = vmatpush1.bf16.xpose.msra.mxu0 0
        %2328 = vmatprep.subr.bf16.mxu0 0
        %2329 = vmatpush1.bf16.xpose.msra.mxu0 %v2312
        %2330 = vmatprep.subr.bf16.mxu0 0
        %2331 = vmatpush2.bf16.xpose.msra.mxu0 0
        %2332 = vmatprep.subr.bf16.mxu0 0
        %2333 = vmatpush2.bf16.xpose.msra.mxu0 0
        %2334 = vmatprep.subr.bf16.mxu0 0
        %2335 = vmatpush2.bf16.xpose.msra.mxu0 0
        %2336 = vmatprep.subr.bf16.mxu0 0
        %2337 = vmatpush2.bf16.xpose.msra.mxu0 0
        %2338 = vmatprep.subr.bf16.mxu0 0
        %2339 = vmatpush2.bf16.xpose.msra.mxu0 0
        %2340 = vmatprep.subr.bf16.mxu0 0
        %2341 = vmatpush2.bf16.xpose.msra.mxu0 0
        %2342 = vmatprep.subr.bf16.mxu0 0
        %2343 = vmatpush2.bf16.xpose.msra.mxu0 0
        %2344 = vmatprep.subr.bf16.mxu0 0
        %2345 = vmatpush2.bf16.xpose.msra.mxu0 0
        %2346 = vmatprep.mubr.bf16.mxu0 0
        %2347 = vmatmul.mubr.bf16.gmra.mxu0 %v2309
        %v2348 = vpop.f32.mrf.mxu0
        %v2349 = vadd.f32 0.0, %v2348
        %v2350 = vpop.f32.mrf.mxu0
        %v2351 = vpop.f32.mrf.mxu0
        %v2352 = vpop.f32.mrf.mxu0
        %2353 = vdwg.mxu0
        %v2355 = vsel %vm1359, %v2303, 0
        %v2358 = vsel %vm1359, %v2305, 0
        %2360 = vmatprep.subr.bf16.mxu0 0
        %2361 = vmatpush1.bf16.xpose.msra.mxu0 0
        %2362 = vmatprep.subr.bf16.mxu0 0
        %2363 = vmatpush1.bf16.xpose.msra.mxu0 0
        %2364 = vmatprep.subr.bf16.mxu0 0
        %2365 = vmatpush1.bf16.xpose.msra.mxu0 0
        %2366 = vmatprep.subr.bf16.mxu0 0
        %2367 = vmatpush1.bf16.xpose.msra.mxu0 0
        %2368 = vmatprep.subr.bf16.mxu0 0
        %2369 = vmatpush1.bf16.xpose.msra.mxu0 0
        %2370 = vmatprep.subr.bf16.mxu0 0
        %2371 = vmatpush1.bf16.xpose.msra.mxu0 0
        %2372 = vmatprep.subr.bf16.mxu0 0
        %2373 = vmatpush1.bf16.xpose.msra.mxu0 0
        %2374 = vmatprep.subr.bf16.mxu0 0
        %2375 = vmatpush1.bf16.xpose.msra.mxu0 %v2358
        %2376 = vmatprep.subr.bf16.mxu0 0
        %2377 = vmatpush2.bf16.xpose.msra.mxu0 0
        %2378 = vmatprep.subr.bf16.mxu0 0
        %2379 = vmatpush2.bf16.xpose.msra.mxu0 0
        %2380 = vmatprep.subr.bf16.mxu0 0
        %2381 = vmatpush2.bf16.xpose.msra.mxu0 0
        %2382 = vmatprep.subr.bf16.mxu0 0
        %2383 = vmatpush2.bf16.xpose.msra.mxu0 0
        %2384 = vmatprep.subr.bf16.mxu0 0
        %2385 = vmatpush2.bf16.xpose.msra.mxu0 0
        %2386 = vmatprep.subr.bf16.mxu0 0
        %2387 = vmatpush2.bf16.xpose.msra.mxu0 0
        %2388 = vmatprep.subr.bf16.mxu0 0
        %2389 = vmatpush2.bf16.xpose.msra.mxu0 0
        %2390 = vmatprep.subr.bf16.mxu0 0
        %2391 = vmatpush2.bf16.xpose.msra.mxu0 0
        %2392 = vmatprep.mubr.bf16.mxu0 0
        %2393 = vmatmul.mubr.bf16.gmra.mxu0 %v2355
        %v2394 = vpop.f32.mrf.mxu0
        %v2395 = vadd.f32 0.0, %v2394
        %v2396 = vpop.f32.mrf.mxu0
        %v2397 = vpop.f32.mrf.mxu0
        %v2398 = vpop.f32.mrf.mxu0
        %2399 = vdwg.mxu0
        %v2400 = vsel %vm1452, %v2349, -inf
        %2401 = vmax.xlane.f32.xlu0 %v2400
        %v2402 = vpop.xlane.xlu0 %2401
        %v2403 = vsel %vm1452, %v2395, -inf
        %2404 = vmax.xlane.f32.xlu0 %v2403
        %v2405 = vpop.xlane.xlu0 %2404
        %v2406 = vsub.f32 %v2349, %v2402
        %v2407 = vsub.f32 %v2395, %v2405
        %v2408 = vmul.f32 %v2406, 1.442695
        %v2409 = vpow.pop %v2408
        %v2410 = vmul.f32 %v2407, 1.442695
        %v2411 = vpow.pop %v2410
        %v2412 = vsel %vm1452, %v2409, 0.0
        %2413 = vadd.xlane.f32.xlu0 %v2412
        %v2414 = vpop.xlane.xlu0 %2413
        %v2415 = vsel %vm1452, %v2411, 0.0
        %2416 = vadd.xlane.f32.xlu0 %v2415
        %v2417 = vpop.xlane.xlu0 %2416
        %v2418 = vrcp.pop %v2414
        %v2419 = vrcp.pop %v2417
        %v2420 = vmul.f32 %v2409, %v2418
        %v2421 = vmul.f32 %v2411, %v2419
        %v2422 = vpack.c.bf16 %v2420, %v2420
        %v2423 = vpack.c.bf16 %v2421, %v2421
        %v2425 = vsel %vm1452, %v2422, 0
        %v2428 = vsel %vm1480, %v2306, 0
        %2430 = vmatprep.subr.bf16.mxu0 0
        %2431 = vmatpush1.bf16.msra.mxu0 0
        %2432 = vmatprep.subr.bf16.mxu0 0
        %2433 = vmatpush1.bf16.msra.mxu0 0
        %2434 = vmatprep.subr.bf16.mxu0 0
        %2435 = vmatpush1.bf16.msra.mxu0 0
        %2436 = vmatprep.subr.bf16.mxu0 0
        %2437 = vmatpush1.bf16.msra.mxu0 0
        %2438 = vmatprep.subr.bf16.mxu0 0
        %2439 = vmatpush1.bf16.msra.mxu0 0
        %2440 = vmatprep.subr.bf16.mxu0 0
        %2441 = vmatpush1.bf16.msra.mxu0 0
        %2442 = vmatprep.subr.bf16.mxu0 0
        %2443 = vmatpush1.bf16.msra.mxu0 0
        %2444 = vmatprep.subr.bf16.mxu0 0
        %2445 = vmatpush1.bf16.msra.mxu0 %v2428
        %2446 = vmatprep.subr.bf16.mxu0 0
        %2447 = vmatpush2.bf16.msra.mxu0 0
        %2448 = vmatprep.subr.bf16.mxu0 0
        %2449 = vmatpush2.bf16.msra.mxu0 0
        %2450 = vmatprep.subr.bf16.mxu0 0
        %2451 = vmatpush2.bf16.msra.mxu0 0
        %2452 = vmatprep.subr.bf16.mxu0 0
        %2453 = vmatpush2.bf16.msra.mxu0 0
        %2454 = vmatprep.subr.bf16.mxu0 0
        %2455 = vmatpush2.bf16.msra.mxu0 0
        %2456 = vmatprep.subr.bf16.mxu0 0
        %2457 = vmatpush2.bf16.msra.mxu0 0
        %2458 = vmatprep.subr.bf16.mxu0 0
        %2459 = vmatpush2.bf16.msra.mxu0 0
        %2460 = vmatprep.subr.bf16.mxu0 0
        %2461 = vmatpush2.bf16.msra.mxu0 0
        %2462 = vmatprep.mubr.bf16.mxu0 0
        %2463 = vmatmul.mubr.bf16.gmra.mxu0 %v2425
        %v2464 = vpop.f32.mrf.mxu0
        %v2465 = vadd.f32 0.0, %v2464
        %v2466 = vpop.f32.mrf.mxu0
        %v2467 = vpop.f32.mrf.mxu0
        %v2468 = vpop.f32.mrf.mxu0
        %2469 = vdwg.mxu0
        %v2471 = vsel %vm1452, %v2423, 0
        %v2474 = vsel %vm1480, %v2307, 0
        %2476 = vmatprep.subr.bf16.mxu0 0
        %2477 = vmatpush1.bf16.msra.mxu0 0
        %2478 = vmatprep.subr.bf16.mxu0 0
        %2479 = vmatpush1.bf16.msra.mxu0 0
        %2480 = vmatprep.subr.bf16.mxu0 0
        %2481 = vmatpush1.bf16.msra.mxu0 0
        %2482 = vmatprep.subr.bf16.mxu0 0
        %2483 = vmatpush1.bf16.msra.mxu0 0
        %2484 = vmatprep.subr.bf16.mxu0 0
        %2485 = vmatpush1.bf16.msra.mxu0 0
        %2486 = vmatprep.subr.bf16.mxu0 0
        %2487 = vmatpush1.bf16.msra.mxu0 0
        %2488 = vmatprep.subr.bf16.mxu0 0
        %2489 = vmatpush1.bf16.msra.mxu0 0
        %2490 = vmatprep.subr.bf16.mxu0 0
        %2491 = vmatpush1.bf16.msra.mxu0 %v2474
        %2492 = vmatprep.subr.bf16.mxu0 0
        %2493 = vmatpush2.bf16.msra.mxu0 0
        %2494 = vmatprep.subr.bf16.mxu0 0
        %2495 = vmatpush2.bf16.msra.mxu0 0
        %2496 = vmatprep.subr.bf16.mxu0 0
        %2497 = vmatpush2.bf16.msra.mxu0 0
        %2498 = vmatprep.subr.bf16.mxu0 0
        %2499 = vmatpush2.bf16.msra.mxu0 0
        %2500 = vmatprep.subr.bf16.mxu0 0
        %2501 = vmatpush2.bf16.msra.mxu0 0
        %2502 = vmatprep.subr.bf16.mxu0 0
        %2503 = vmatpush2.bf16.msra.mxu0 0
        %2504 = vmatprep.subr.bf16.mxu0 0
        %2505 = vmatpush2.bf16.msra.mxu0 0
        %2506 = vmatprep.subr.bf16.mxu0 0
        %2507 = vmatpush2.bf16.msra.mxu0 0
        %2508 = vmatprep.mubr.bf16.mxu0 0
        %2509 = vmatmul.mubr.bf16.gmra.mxu0 %v2471
        %v2510 = vpop.f32.mrf.mxu0
        %v2511 = vadd.f32 0.0, %v2510
        %v2512 = vpop.f32.mrf.mxu0
        %v2513 = vpop.f32.mrf.mxu0
        %v2514 = vpop.f32.mrf.mxu0
        %2515 = vdwg.mxu0
        %v2516 = vld [vmem:[#allocation3 + $0x4] sm:$0xf]
        %v2517 = vld [vmem:[#allocation3 + $0x1c] sm:$0xf]
        %v2518 = vld [vmem:[#allocation3 + $0xc] sm:$0xf]
        %v2519 = vld [vmem:[#allocation3 + $0x24] sm:$0xf]
        %v2520 = vld [vmem:[#allocation3 + $0x14] sm:$0xf]
        %v2521 = vld [vmem:[#allocation3 + $0x2c] sm:$0xf]
        %v2523 = vunpack.c.l.b16 %v2516
        %v2524 = vpack.c.b16 %v2523, %v2523
        %2525 = vrot.lane.b32.xlu0 %v2524, 96
        %v2526 = vpop.permute.xlu0 %2525
        %v2528 = vunpack.c.l.b16 %v2518
        %v2529 = vpack.c.b16 %v2528, %v2528
        %2530 = vrot.lane.b32.xlu0 %v2529, 96
        %v2531 = vpop.permute.xlu0 %2530
        %v2533 = vsel %vm1359, %v2526, 0
        %v2536 = vsel %vm1359, %v2531, 0
        %2538 = vmatprep.subr.bf16.mxu0 0
        %2539 = vmatpush1.bf16.xpose.msra.mxu0 0
        %2540 = vmatprep.subr.bf16.mxu0 0
        %2541 = vmatpush1.bf16.xpose.msra.mxu0 0
        %2542 = vmatprep.subr.bf16.mxu0 0
        %2543 = vmatpush1.bf16.xpose.msra.mxu0 0
        %2544 = vmatprep.subr.bf16.mxu0 0
        %2545 = vmatpush1.bf16.xpose.msra.mxu0 0
        %2546 = vmatprep.subr.bf16.mxu0 0
        %2547 = vmatpush1.bf16.xpose.msra.mxu0 0
        %2548 = vmatprep.subr.bf16.mxu0 0
        %2549 = vmatpush1.bf16.xpose.msra.mxu0 0
        %2550 = vmatprep.subr.bf16.mxu0 0
        %2551 = vmatpush1.bf16.xpose.msra.mxu0 0
        %2552 = vmatprep.subr.bf16.mxu0 0
        %2553 = vmatpush1.bf16.xpose.msra.mxu0 %v2536
        %2554 = vmatprep.subr.bf16.mxu0 0
        %2555 = vmatpush2.bf16.xpose.msra.mxu0 0
        %2556 = vmatprep.subr.bf16.mxu0 0
        %2557 = vmatpush2.bf16.xpose.msra.mxu0 0
        %2558 = vmatprep.subr.bf16.mxu0 0
        %2559 = vmatpush2.bf16.xpose.msra.mxu0 0
        %2560 = vmatprep.subr.bf16.mxu0 0
        %2561 = vmatpush2.bf16.xpose.msra.mxu0 0
        %2562 = vmatprep.subr.bf16.mxu0 0
        %2563 = vmatpush2.bf16.xpose.msra.mxu0 0
        %2564 = vmatprep.subr.bf16.mxu0 0
        %2565 = vmatpush2.bf16.xpose.msra.mxu0 0
        %2566 = vmatprep.subr.bf16.mxu0 0
        %2567 = vmatpush2.bf16.xpose.msra.mxu0 0
        %2568 = vmatprep.subr.bf16.mxu0 0
        %2569 = vmatpush2.bf16.xpose.msra.mxu0 0
        %2570 = vmatprep.mubr.bf16.mxu0 0
        %2571 = vmatmul.mubr.bf16.gmra.mxu0 %v2533
        %v2572 = vpop.f32.mrf.mxu0
        %v2573 = vadd.f32 0.0, %v2572
        %v2574 = vpop.f32.mrf.mxu0
        %v2575 = vpop.f32.mrf.mxu0
        %v2576 = vpop.f32.mrf.mxu0
        %2577 = vdwg.mxu0
        %v2579 = vunpack.c.l.b16 %v2517
        %v2580 = vpack.c.b16 %v2579, %v2579
        %2581 = vrot.lane.b32.xlu0 %v2580, 96
        %v2582 = vpop.permute.xlu0 %2581
        %v2584 = vunpack.c.l.b16 %v2519
        %v2585 = vpack.c.b16 %v2584, %v2584
        %2586 = vrot.lane.b32.xlu0 %v2585, 96
        %v2587 = vpop.permute.xlu0 %2586
        %v2589 = vsel %vm1359, %v2582, 0
        %v2592 = vsel %vm1359, %v2587, 0
        %2594 = vmatprep.subr.bf16.mxu0 0
        %2595 = vmatpush1.bf16.xpose.msra.mxu0 0
        %2596 = vmatprep.subr.bf16.mxu0 0
        %2597 = vmatpush1.bf16.xpose.msra.mxu0 0
        %2598 = vmatprep.subr.bf16.mxu0 0
        %2599 = vmatpush1.bf16.xpose.msra.mxu0 0
        %2600 = vmatprep.subr.bf16.mxu0 0
        %2601 = vmatpush1.bf16.xpose.msra.mxu0 0
        %2602 = vmatprep.subr.bf16.mxu0 0
        %2603 = vmatpush1.bf16.xpose.msra.mxu0 0
        %2604 = vmatprep.subr.bf16.mxu0 0
        %2605 = vmatpush1.bf16.xpose.msra.mxu0 0
        %2606 = vmatprep.subr.bf16.mxu0 0
        %2607 = vmatpush1.bf16.xpose.msra.mxu0 0
        %2608 = vmatprep.subr.bf16.mxu0 0
        %2609 = vmatpush1.bf16.xpose.msra.mxu0 %v2592
        %2610 = vmatprep.subr.bf16.mxu0 0
        %2611 = vmatpush2.bf16.xpose.msra.mxu0 0
        %2612 = vmatprep.subr.bf16.mxu0 0
        %2613 = vmatpush2.bf16.xpose.msra.mxu0 0
        %2614 = vmatprep.subr.bf16.mxu0 0
        %2615 = vmatpush2.bf16.xpose.msra.mxu0 0
        %2616 = vmatprep.subr.bf16.mxu0 0
        %2617 = vmatpush2.bf16.xpose.msra.mxu0 0
        %2618 = vmatprep.subr.bf16.mxu0 0
        %2619 = vmatpush2.bf16.xpose.msra.mxu0 0
        %2620 = vmatprep.subr.bf16.mxu0 0
        %2621 = vmatpush2.bf16.xpose.msra.mxu0 0
        %2622 = vmatprep.subr.bf16.mxu0 0
        %2623 = vmatpush2.bf16.xpose.msra.mxu0 0
        %2624 = vmatprep.subr.bf16.mxu0 0
        %2625 = vmatpush2.bf16.xpose.msra.mxu0 0
        %2626 = vmatprep.mubr.bf16.mxu0 0
        %2627 = vmatmul.mubr.bf16.gmra.mxu0 %v2589
        %v2628 = vpop.f32.mrf.mxu0
        %v2629 = vadd.f32 0.0, %v2628
        %v2630 = vpop.f32.mrf.mxu0
        %v2631 = vpop.f32.mrf.mxu0
        %v2632 = vpop.f32.mrf.mxu0
        %2633 = vdwg.mxu0
        %v2634 = vsel %vm1452, %v2573, -inf
        %2635 = vmax.xlane.f32.xlu0 %v2634
        %v2636 = vpop.xlane.xlu0 %2635
        %v2637 = vsel %vm1452, %v2629, -inf
        %2638 = vmax.xlane.f32.xlu0 %v2637
        %v2639 = vpop.xlane.xlu0 %2638
        %v2640 = vsub.f32 %v2573, %v2636
        %v2641 = vsub.f32 %v2629, %v2639
        %v2642 = vmul.f32 %v2640, 1.442695
        %v2643 = vpow.pop %v2642
        %v2644 = vmul.f32 %v2641, 1.442695
        %v2645 = vpow.pop %v2644
        %v2646 = vsel %vm1452, %v2643, 0.0
        %2647 = vadd.xlane.f32.xlu0 %v2646
        %v2648 = vpop.xlane.xlu0 %2647
        %v2649 = vsel %vm1452, %v2645, 0.0
        %2650 = vadd.xlane.f32.xlu0 %v2649
        %v2651 = vpop.xlane.xlu0 %2650
        %v2652 = vrcp.pop %v2648
        %v2653 = vrcp.pop %v2651
        %v2654 = vmul.f32 %v2643, %v2652
        %v2655 = vmul.f32 %v2645, %v2653
        %v2656 = vpack.c.bf16 %v2654, %v2654
        %v2657 = vpack.c.bf16 %v2655, %v2655
        %v2659 = vunpack.c.l.b16 %v2520
        %v2660 = vpack.c.b16 %v2659, %v2659
        %2661 = vrot.lane.b32.xlu0 %v2660, 96
        %v2662 = vpop.permute.xlu0 %2661
        %v2664 = vsel %vm1452, %v2656, 0
        %v2667 = vsel %vm1480, %v2662, 0
        %2669 = vmatprep.subr.bf16.mxu0 0
        %2670 = vmatpush1.bf16.msra.mxu0 0
        %2671 = vmatprep.subr.bf16.mxu0 0
        %2672 = vmatpush1.bf16.msra.mxu0 0
        %2673 = vmatprep.subr.bf16.mxu0 0
        %2674 = vmatpush1.bf16.msra.mxu0 0
        %2675 = vmatprep.subr.bf16.mxu0 0
        %2676 = vmatpush1.bf16.msra.mxu0 0
        %2677 = vmatprep.subr.bf16.mxu0 0
        %2678 = vmatpush1.bf16.msra.mxu0 0
        %2679 = vmatprep.subr.bf16.mxu0 0
        %2680 = vmatpush1.bf16.msra.mxu0 0
        %2681 = vmatprep.subr.bf16.mxu0 0
        %2682 = vmatpush1.bf16.msra.mxu0 0
        %2683 = vmatprep.subr.bf16.mxu0 0
        %2684 = vmatpush1.bf16.msra.mxu0 %v2667
        %2685 = vmatprep.subr.bf16.mxu0 0
        %2686 = vmatpush2.bf16.msra.mxu0 0
        %2687 = vmatprep.subr.bf16.mxu0 0
        %2688 = vmatpush2.bf16.msra.mxu0 0
        %2689 = vmatprep.subr.bf16.mxu0 0
        %2690 = vmatpush2.bf16.msra.mxu0 0
        %2691 = vmatprep.subr.bf16.mxu0 0
        %2692 = vmatpush2.bf16.msra.mxu0 0
        %2693 = vmatprep.subr.bf16.mxu0 0
        %2694 = vmatpush2.bf16.msra.mxu0 0
        %2695 = vmatprep.subr.bf16.mxu0 0
        %2696 = vmatpush2.bf16.msra.mxu0 0
        %2697 = vmatprep.subr.bf16.mxu0 0
        %2698 = vmatpush2.bf16.msra.mxu0 0
        %2699 = vmatprep.subr.bf16.mxu0 0
        %2700 = vmatpush2.bf16.msra.mxu0 0
        %2701 = vmatprep.mubr.bf16.mxu0 0
        %2702 = vmatmul.mubr.bf16.gmra.mxu0 %v2664
        %v2703 = vpop.f32.mrf.mxu0
        %v2704 = vadd.f32 0.0, %v2703
        %v2705 = vpop.f32.mrf.mxu0
        %v2706 = vpop.f32.mrf.mxu0
        %v2707 = vpop.f32.mrf.mxu0
        %2708 = vdwg.mxu0
        %v2710 = vunpack.c.l.b16 %v2521
        %v2711 = vpack.c.b16 %v2710, %v2710
        %2712 = vrot.lane.b32.xlu0 %v2711, 96
        %v2713 = vpop.permute.xlu0 %2712
        %v2715 = vsel %vm1452, %v2657, 0
        %v2718 = vsel %vm1480, %v2713, 0
        %2720 = vmatprep.subr.bf16.mxu0 0
        %2721 = vmatpush1.bf16.msra.mxu0 0
        %2722 = vmatprep.subr.bf16.mxu0 0
        %2723 = vmatpush1.bf16.msra.mxu0 0
        %2724 = vmatprep.subr.bf16.mxu0 0
        %2725 = vmatpush1.bf16.msra.mxu0 0
        %2726 = vmatprep.subr.bf16.mxu0 0
        %2727 = vmatpush1.bf16.msra.mxu0 0
        %2728 = vmatprep.subr.bf16.mxu0 0
        %2729 = vmatpush1.bf16.msra.mxu0 0
        %2730 = vmatprep.subr.bf16.mxu0 0
        %2731 = vmatpush1.bf16.msra.mxu0 0
        %2732 = vmatprep.subr.bf16.mxu0 0
        %2733 = vmatpush1.bf16.msra.mxu0 0
        %2734 = vmatprep.subr.bf16.mxu0 0
        %2735 = vmatpush1.bf16.msra.mxu0 %v2718
        %2736 = vmatprep.subr.bf16.mxu0 0
        %2737 = vmatpush2.bf16.msra.mxu0 0
        %2738 = vmatprep.subr.bf16.mxu0 0
        %2739 = vmatpush2.bf16.msra.mxu0 0
        %2740 = vmatprep.subr.bf16.mxu0 0
        %2741 = vmatpush2.bf16.msra.mxu0 0
        %2742 = vmatprep.subr.bf16.mxu0 0
        %2743 = vmatpush2.bf16.msra.mxu0 0
        %2744 = vmatprep.subr.bf16.mxu0 0
        %2745 = vmatpush2.bf16.msra.mxu0 0
        %2746 = vmatprep.subr.bf16.mxu0 0
        %2747 = vmatpush2.bf16.msra.mxu0 0
        %2748 = vmatprep.subr.bf16.mxu0 0
        %2749 = vmatpush2.bf16.msra.mxu0 0
        %2750 = vmatprep.subr.bf16.mxu0 0
        %2751 = vmatpush2.bf16.msra.mxu0 0
        %2752 = vmatprep.mubr.bf16.mxu0 0
        %2753 = vmatmul.mubr.bf16.gmra.mxu0 %v2715
        %v2754 = vpop.f32.mrf.mxu0
        %v2755 = vadd.f32 0.0, %v2754
        %v2756 = vpop.f32.mrf.mxu0
        %v2757 = vpop.f32.mrf.mxu0
        %v2758 = vpop.f32.mrf.mxu0
        %2759 = vdwg.mxu0
        %v2760 = vld [vmem:[#allocation3 + $0x4] sm:$0xf]
        %v2761 = vld [vmem:[#allocation3 + $0x1c] sm:$0xf]
        %v2762 = vld [vmem:[#allocation3 + $0xc] sm:$0xf]
        %v2763 = vld [vmem:[#allocation3 + $0x24] sm:$0xf]
        %v2764 = vld [vmem:[#allocation3 + $0x14] sm:$0xf]
        %v2765 = vld [vmem:[#allocation3 + $0x2c] sm:$0xf]
        %v2767 = vunpack.c.l.b16 %v2760
        %v2768 = vpack.c.b16 %v2767, %v2767
        %2769 = vrot.lane.b32.xlu0 %v2768, 64
        %v2770 = vpop.permute.xlu0 %2769
        %v2772 = vunpack.c.l.b16 %v2762
        %v2773 = vpack.c.b16 %v2772, %v2772
        %2774 = vrot.lane.b32.xlu0 %v2773, 64
        %v2775 = vpop.permute.xlu0 %2774
        %v2777 = vsel %vm1359, %v2770, 0
        %v2780 = vsel %vm1359, %v2775, 0
        %2782 = vmatprep.subr.bf16.mxu0 0
        %2783 = vmatpush1.bf16.xpose.msra.mxu0 0
        %2784 = vmatprep.subr.bf16.mxu0 0
        %2785 = vmatpush1.bf16.xpose.msra.mxu0 0
        %2786 = vmatprep.subr.bf16.mxu0 0
        %2787 = vmatpush1.bf16.xpose.msra.mxu0 0
        %2788 = vmatprep.subr.bf16.mxu0 0
        %2789 = vmatpush1.bf16.xpose.msra.mxu0 0
        %2790 = vmatprep.subr.bf16.mxu0 0
        %2791 = vmatpush1.bf16.xpose.msra.mxu0 0
        %2792 = vmatprep.subr.bf16.mxu0 0
        %2793 = vmatpush1.bf16.xpose.msra.mxu0 0
        %2794 = vmatprep.subr.bf16.mxu0 0
        %2795 = vmatpush1.bf16.xpose.msra.mxu0 0
        %2796 = vmatprep.subr.bf16.mxu0 0
        %2797 = vmatpush1.bf16.xpose.msra.mxu0 %v2780
        %2798 = vmatprep.subr.bf16.mxu0 0
        %2799 = vmatpush2.bf16.xpose.msra.mxu0 0
        %2800 = vmatprep.subr.bf16.mxu0 0
        %2801 = vmatpush2.bf16.xpose.msra.mxu0 0
        %2802 = vmatprep.subr.bf16.mxu0 0
        %2803 = vmatpush2.bf16.xpose.msra.mxu0 0
        %2804 = vmatprep.subr.bf16.mxu0 0
        %2805 = vmatpush2.bf16.xpose.msra.mxu0 0
        %2806 = vmatprep.subr.bf16.mxu0 0
        %2807 = vmatpush2.bf16.xpose.msra.mxu0 0
        %2808 = vmatprep.subr.bf16.mxu0 0
        %2809 = vmatpush2.bf16.xpose.msra.mxu0 0
        %2810 = vmatprep.subr.bf16.mxu0 0
        %2811 = vmatpush2.bf16.xpose.msra.mxu0 0
        %2812 = vmatprep.subr.bf16.mxu0 0
        %2813 = vmatpush2.bf16.xpose.msra.mxu0 0
        %2814 = vmatprep.mubr.bf16.mxu0 0
        %2815 = vmatmul.mubr.bf16.gmra.mxu0 %v2777
        %v2816 = vpop.f32.mrf.mxu0
        %v2817 = vadd.f32 0.0, %v2816
        %v2818 = vpop.f32.mrf.mxu0
        %v2819 = vpop.f32.mrf.mxu0
        %v2820 = vpop.f32.mrf.mxu0
        %2821 = vdwg.mxu0
        %v2823 = vunpack.c.l.b16 %v2761
        %v2824 = vpack.c.b16 %v2823, %v2823
        %2825 = vrot.lane.b32.xlu0 %v2824, 64
        %v2826 = vpop.permute.xlu0 %2825
        %v2828 = vunpack.c.l.b16 %v2763
        %v2829 = vpack.c.b16 %v2828, %v2828
        %2830 = vrot.lane.b32.xlu0 %v2829, 64
        %v2831 = vpop.permute.xlu0 %2830
        %v2833 = vsel %vm1359, %v2826, 0
        %v2836 = vsel %vm1359, %v2831, 0
        %2838 = vmatprep.subr.bf16.mxu0 0
        %2839 = vmatpush1.bf16.xpose.msra.mxu0 0
        %2840 = vmatprep.subr.bf16.mxu0 0
        %2841 = vmatpush1.bf16.xpose.msra.mxu0 0
        %2842 = vmatprep.subr.bf16.mxu0 0
        %2843 = vmatpush1.bf16.xpose.msra.mxu0 0
        %2844 = vmatprep.subr.bf16.mxu0 0
        %2845 = vmatpush1.bf16.xpose.msra.mxu0 0
        %2846 = vmatprep.subr.bf16.mxu0 0
        %2847 = vmatpush1.bf16.xpose.msra.mxu0 0
        %2848 = vmatprep.subr.bf16.mxu0 0
        %2849 = vmatpush1.bf16.xpose.msra.mxu0 0
        %2850 = vmatprep.subr.bf16.mxu0 0
        %2851 = vmatpush1.bf16.xpose.msra.mxu0 0
        %2852 = vmatprep.subr.bf16.mxu0 0
        %2853 = vmatpush1.bf16.xpose.msra.mxu0 %v2836
        %2854 = vmatprep.subr.bf16.mxu0 0
        %2855 = vmatpush2.bf16.xpose.msra.mxu0 0
        %2856 = vmatprep.subr.bf16.mxu0 0
        %2857 = vmatpush2.bf16.xpose.msra.mxu0 0
        %2858 = vmatprep.subr.bf16.mxu0 0
        %2859 = vmatpush2.bf16.xpose.msra.mxu0 0
        %2860 = vmatprep.subr.bf16.mxu0 0
        %2861 = vmatpush2.bf16.xpose.msra.mxu0 0
        %2862 = vmatprep.subr.bf16.mxu0 0
        %2863 = vmatpush2.bf16.xpose.msra.mxu0 0
        %2864 = vmatprep.subr.bf16.mxu0 0
        %2865 = vmatpush2.bf16.xpose.msra.mxu0 0
        %2866 = vmatprep.subr.bf16.mxu0 0
        %2867 = vmatpush2.bf16.xpose.msra.mxu0 0
        %2868 = vmatprep.subr.bf16.mxu0 0
        %2869 = vmatpush2.bf16.xpose.msra.mxu0 0
        %2870 = vmatprep.mubr.bf16.mxu0 0
        %2871 = vmatmul.mubr.bf16.gmra.mxu0 %v2833
        %v2872 = vpop.f32.mrf.mxu0
        %v2873 = vadd.f32 0.0, %v2872
        %v2874 = vpop.f32.mrf.mxu0
        %v2875 = vpop.f32.mrf.mxu0
        %v2876 = vpop.f32.mrf.mxu0
        %2877 = vdwg.mxu0
        %v2878 = vsel %vm1452, %v2817, -inf
        %2879 = vmax.xlane.f32.xlu0 %v2878
        %v2880 = vpop.xlane.xlu0 %2879
        %v2881 = vsel %vm1452, %v2873, -inf
        %2882 = vmax.xlane.f32.xlu0 %v2881
        %v2883 = vpop.xlane.xlu0 %2882
        %v2884 = vsub.f32 %v2817, %v2880
        %v2885 = vsub.f32 %v2873, %v2883
        %v2886 = vmul.f32 %v2884, 1.442695
        %v2887 = vpow.pop %v2886
        %v2888 = vmul.f32 %v2885, 1.442695
        %v2889 = vpow.pop %v2888
        %v2890 = vsel %vm1452, %v2887, 0.0
        %2891 = vadd.xlane.f32.xlu0 %v2890
        %v2892 = vpop.xlane.xlu0 %2891
        %v2893 = vsel %vm1452, %v2889, 0.0
        %2894 = vadd.xlane.f32.xlu0 %v2893
        %v2895 = vpop.xlane.xlu0 %2894
        %v2896 = vrcp.pop %v2892
        %v2897 = vrcp.pop %v2895
        %v2898 = vmul.f32 %v2887, %v2896
        %v2899 = vmul.f32 %v2889, %v2897
        %v2900 = vpack.c.bf16 %v2898, %v2898
        %v2901 = vpack.c.bf16 %v2899, %v2899
        %v2903 = vunpack.c.l.b16 %v2764
        %v2904 = vpack.c.b16 %v2903, %v2903
        %2905 = vrot.lane.b32.xlu0 %v2904, 64
        %v2906 = vpop.permute.xlu0 %2905
        %v2908 = vsel %vm1452, %v2900, 0
        %v2911 = vsel %vm1480, %v2906, 0
        %2913 = vmatprep.subr.bf16.mxu0 0
        %2914 = vmatpush1.bf16.msra.mxu0 0
        %2915 = vmatprep.subr.bf16.mxu0 0
        %2916 = vmatpush1.bf16.msra.mxu0 0
        %2917 = vmatprep.subr.bf16.mxu0 0
        %2918 = vmatpush1.bf16.msra.mxu0 0
        %2919 = vmatprep.subr.bf16.mxu0 0
        %2920 = vmatpush1.bf16.msra.mxu0 0
        %2921 = vmatprep.subr.bf16.mxu0 0
        %2922 = vmatpush1.bf16.msra.mxu0 0
        %2923 = vmatprep.subr.bf16.mxu0 0
        %2924 = vmatpush1.bf16.msra.mxu0 0
        %2925 = vmatprep.subr.bf16.mxu0 0
        %2926 = vmatpush1.bf16.msra.mxu0 0
        %2927 = vmatprep.subr.bf16.mxu0 0
        %2928 = vmatpush1.bf16.msra.mxu0 %v2911
        %2929 = vmatprep.subr.bf16.mxu0 0
        %2930 = vmatpush2.bf16.msra.mxu0 0
        %2931 = vmatprep.subr.bf16.mxu0 0
        %2932 = vmatpush2.bf16.msra.mxu0 0
        %2933 = vmatprep.subr.bf16.mxu0 0
        %2934 = vmatpush2.bf16.msra.mxu0 0
        %2935 = vmatprep.subr.bf16.mxu0 0
        %2936 = vmatpush2.bf16.msra.mxu0 0
        %2937 = vmatprep.subr.bf16.mxu0 0
        %2938 = vmatpush2.bf16.msra.mxu0 0
        %2939 = vmatprep.subr.bf16.mxu0 0
        %2940 = vmatpush2.bf16.msra.mxu0 0
        %2941 = vmatprep.subr.bf16.mxu0 0
        %2942 = vmatpush2.bf16.msra.mxu0 0
        %2943 = vmatprep.subr.bf16.mxu0 0
        %2944 = vmatpush2.bf16.msra.mxu0 0
        %2945 = vmatprep.mubr.bf16.mxu0 0
        %2946 = vmatmul.mubr.bf16.gmra.mxu0 %v2908
        %v2947 = vpop.f32.mrf.mxu0
        %v2948 = vadd.f32 0.0, %v2947
        %v2949 = vpop.f32.mrf.mxu0
        %v2950 = vpop.f32.mrf.mxu0
        %v2951 = vpop.f32.mrf.mxu0
        %2952 = vdwg.mxu0
        %v2954 = vunpack.c.l.b16 %v2765
        %v2955 = vpack.c.b16 %v2954, %v2954
        %2956 = vrot.lane.b32.xlu0 %v2955, 64
        %v2957 = vpop.permute.xlu0 %2956
        %v2959 = vsel %vm1452, %v2901, 0
        %v2962 = vsel %vm1480, %v2957, 0
        %2964 = vmatprep.subr.bf16.mxu0 0
        %2965 = vmatpush1.bf16.msra.mxu0 0
        %2966 = vmatprep.subr.bf16.mxu0 0
        %2967 = vmatpush1.bf16.msra.mxu0 0
        %2968 = vmatprep.subr.bf16.mxu0 0
        %2969 = vmatpush1.bf16.msra.mxu0 0
        %2970 = vmatprep.subr.bf16.mxu0 0
        %2971 = vmatpush1.bf16.msra.mxu0 0
        %2972 = vmatprep.subr.bf16.mxu0 0
        %2973 = vmatpush1.bf16.msra.mxu0 0
        %2974 = vmatprep.subr.bf16.mxu0 0
        %2975 = vmatpush1.bf16.msra.mxu0 0
        %2976 = vmatprep.subr.bf16.mxu0 0
        %2977 = vmatpush1.bf16.msra.mxu0 0
        %2978 = vmatprep.subr.bf16.mxu0 0
        %2979 = vmatpush1.bf16.msra.mxu0 %v2962
        %2980 = vmatprep.subr.bf16.mxu0 0
        %2981 = vmatpush2.bf16.msra.mxu0 0
        %2982 = vmatprep.subr.bf16.mxu0 0
        %2983 = vmatpush2.bf16.msra.mxu0 0
        %2984 = vmatprep.subr.bf16.mxu0 0
        %2985 = vmatpush2.bf16.msra.mxu0 0
        %2986 = vmatprep.subr.bf16.mxu0 0
        %2987 = vmatpush2.bf16.msra.mxu0 0
        %2988 = vmatprep.subr.bf16.mxu0 0
        %2989 = vmatpush2.bf16.msra.mxu0 0
        %2990 = vmatprep.subr.bf16.mxu0 0
        %2991 = vmatpush2.bf16.msra.mxu0 0
        %2992 = vmatprep.subr.bf16.mxu0 0
        %2993 = vmatpush2.bf16.msra.mxu0 0
        %2994 = vmatprep.subr.bf16.mxu0 0
        %2995 = vmatpush2.bf16.msra.mxu0 0
        %2996 = vmatprep.mubr.bf16.mxu0 0
        %2997 = vmatmul.mubr.bf16.gmra.mxu0 %v2959
        %v2998 = vpop.f32.mrf.mxu0
        %v2999 = vadd.f32 0.0, %v2998
        %v3000 = vpop.f32.mrf.mxu0
        %v3001 = vpop.f32.mrf.mxu0
        %v3002 = vpop.f32.mrf.mxu0
        %3003 = vdwg.mxu0
        %v3004 = vld [vmem:[#allocation3 + $0x4] sm:$0xf]
        %v3005 = vld [vmem:[#allocation3 + $0x1c] sm:$0xf]
        %v3006 = vld [vmem:[#allocation3 + $0xc] sm:$0xf]
        %v3007 = vld [vmem:[#allocation3 + $0x24] sm:$0xf]
        %v3008 = vld [vmem:[#allocation3 + $0x14] sm:$0xf]
        %v3009 = vld [vmem:[#allocation3 + $0x2c] sm:$0xf]
        %v3011 = vunpack.c.l.b16 %v3004
        %v3012 = vpack.c.b16 %v3011, %v3011
        %3013 = vrot.lane.b32.xlu0 %v3012, 32
        %v3014 = vpop.permute.xlu0 %3013
        %v3016 = vunpack.c.l.b16 %v3006
        %v3017 = vpack.c.b16 %v3016, %v3016
        %3018 = vrot.lane.b32.xlu0 %v3017, 32
        %v3019 = vpop.permute.xlu0 %3018
        %v3021 = vsel %vm1359, %v3014, 0
        %v3024 = vsel %vm1359, %v3019, 0
        %3026 = vmatprep.subr.bf16.mxu0 0
        %3027 = vmatpush1.bf16.xpose.msra.mxu0 0
        %3028 = vmatprep.subr.bf16.mxu0 0
        %3029 = vmatpush1.bf16.xpose.msra.mxu0 0
        %3030 = vmatprep.subr.bf16.mxu0 0
        %3031 = vmatpush1.bf16.xpose.msra.mxu0 0
        %3032 = vmatprep.subr.bf16.mxu0 0
        %3033 = vmatpush1.bf16.xpose.msra.mxu0 0
        %3034 = vmatprep.subr.bf16.mxu0 0
        %3035 = vmatpush1.bf16.xpose.msra.mxu0 0
        %3036 = vmatprep.subr.bf16.mxu0 0
        %3037 = vmatpush1.bf16.xpose.msra.mxu0 0
        %3038 = vmatprep.subr.bf16.mxu0 0
        %3039 = vmatpush1.bf16.xpose.msra.mxu0 0
        %3040 = vmatprep.subr.bf16.mxu0 0
        %3041 = vmatpush1.bf16.xpose.msra.mxu0 %v3024
        %3042 = vmatprep.subr.bf16.mxu0 0
        %3043 = vmatpush2.bf16.xpose.msra.mxu0 0
        %3044 = vmatprep.subr.bf16.mxu0 0
        %3045 = vmatpush2.bf16.xpose.msra.mxu0 0
        %3046 = vmatprep.subr.bf16.mxu0 0
        %3047 = vmatpush2.bf16.xpose.msra.mxu0 0
        %3048 = vmatprep.subr.bf16.mxu0 0
        %3049 = vmatpush2.bf16.xpose.msra.mxu0 0
        %3050 = vmatprep.subr.bf16.mxu0 0
        %3051 = vmatpush2.bf16.xpose.msra.mxu0 0
        %3052 = vmatprep.subr.bf16.mxu0 0
        %3053 = vmatpush2.bf16.xpose.msra.mxu0 0
        %3054 = vmatprep.subr.bf16.mxu0 0
        %3055 = vmatpush2.bf16.xpose.msra.mxu0 0
        %3056 = vmatprep.subr.bf16.mxu0 0
        %3057 = vmatpush2.bf16.xpose.msra.mxu0 0
        %3058 = vmatprep.mubr.bf16.mxu0 0
        %3059 = vmatmul.mubr.bf16.gmra.mxu0 %v3021
        %v3060 = vpop.f32.mrf.mxu0
        %v3061 = vadd.f32 0.0, %v3060
        %v3062 = vpop.f32.mrf.mxu0
        %v3063 = vpop.f32.mrf.mxu0
        %v3064 = vpop.f32.mrf.mxu0
        %3065 = vdwg.mxu0
        %v3067 = vunpack.c.l.b16 %v3005
        %v3068 = vpack.c.b16 %v3067, %v3067
        %3069 = vrot.lane.b32.xlu0 %v3068, 32
        %v3070 = vpop.permute.xlu0 %3069
        %v3072 = vunpack.c.l.b16 %v3007
        %v3073 = vpack.c.b16 %v3072, %v3072
        %3074 = vrot.lane.b32.xlu0 %v3073, 32
        %v3075 = vpop.permute.xlu0 %3074
        %v3077 = vsel %vm1359, %v3070, 0
        %v3080 = vsel %vm1359, %v3075, 0
        %3082 = vmatprep.subr.bf16.mxu0 0
        %3083 = vmatpush1.bf16.xpose.msra.mxu0 0
        %3084 = vmatprep.subr.bf16.mxu0 0
        %3085 = vmatpush1.bf16.xpose.msra.mxu0 0
        %3086 = vmatprep.subr.bf16.mxu0 0
        %3087 = vmatpush1.bf16.xpose.msra.mxu0 0
        %3088 = vmatprep.subr.bf16.mxu0 0
        %3089 = vmatpush1.bf16.xpose.msra.mxu0 0
        %3090 = vmatprep.subr.bf16.mxu0 0
        %3091 = vmatpush1.bf16.xpose.msra.mxu0 0
        %3092 = vmatprep.subr.bf16.mxu0 0
        %3093 = vmatpush1.bf16.xpose.msra.mxu0 0
        %3094 = vmatprep.subr.bf16.mxu0 0
        %3095 = vmatpush1.bf16.xpose.msra.mxu0 0
        %3096 = vmatprep.subr.bf16.mxu0 0
        %3097 = vmatpush1.bf16.xpose.msra.mxu0 %v3080
        %3098 = vmatprep.subr.bf16.mxu0 0
        %3099 = vmatpush2.bf16.xpose.msra.mxu0 0
        %3100 = vmatprep.subr.bf16.mxu0 0
        %3101 = vmatpush2.bf16.xpose.msra.mxu0 0
        %3102 = vmatprep.subr.bf16.mxu0 0
        %3103 = vmatpush2.bf16.xpose.msra.mxu0 0
        %3104 = vmatprep.subr.bf16.mxu0 0
        %3105 = vmatpush2.bf16.xpose.msra.mxu0 0
        %3106 = vmatprep.subr.bf16.mxu0 0
        %3107 = vmatpush2.bf16.xpose.msra.mxu0 0
        %3108 = vmatprep.subr.bf16.mxu0 0
        %3109 = vmatpush2.bf16.xpose.msra.mxu0 0
        %3110 = vmatprep.subr.bf16.mxu0 0
        %3111 = vmatpush2.bf16.xpose.msra.mxu0 0
        %3112 = vmatprep.subr.bf16.mxu0 0
        %3113 = vmatpush2.bf16.xpose.msra.mxu0 0
        %3114 = vmatprep.mubr.bf16.mxu0 0
        %3115 = vmatmul.mubr.bf16.gmra.mxu0 %v3077
        %v3116 = vpop.f32.mrf.mxu0
        %v3117 = vadd.f32 0.0, %v3116
        %v3118 = vpop.f32.mrf.mxu0
        %v3119 = vpop.f32.mrf.mxu0
        %v3120 = vpop.f32.mrf.mxu0
        %3121 = vdwg.mxu0
        %v3122 = vsel %vm1452, %v3061, -inf
        %3123 = vmax.xlane.f32.xlu0 %v3122
        %v3124 = vpop.xlane.xlu0 %3123
        %v3125 = vsel %vm1452, %v3117, -inf
        %3126 = vmax.xlane.f32.xlu0 %v3125
        %v3127 = vpop.xlane.xlu0 %3126
        %v3128 = vsub.f32 %v3061, %v3124
        %v3129 = vsub.f32 %v3117, %v3127
        %v3130 = vmul.f32 %v3128, 1.442695
        %v3131 = vpow.pop %v3130
        %v3132 = vmul.f32 %v3129, 1.442695
        %v3133 = vpow.pop %v3132
        %v3134 = vsel %vm1452, %v3131, 0.0
        %3135 = vadd.xlane.f32.xlu0 %v3134
        %v3136 = vpop.xlane.xlu0 %3135
        %v3137 = vsel %vm1452, %v3133, 0.0
        %3138 = vadd.xlane.f32.xlu0 %v3137
        %v3139 = vpop.xlane.xlu0 %3138
        %v3140 = vrcp.pop %v3136
        %v3141 = vrcp.pop %v3139
        %v3142 = vmul.f32 %v3131, %v3140
        %v3143 = vmul.f32 %v3133, %v3141
        %v3144 = vpack.c.bf16 %v3142, %v3142
        %v3145 = vpack.c.bf16 %v3143, %v3143
        %v3147 = vunpack.c.l.b16 %v3008
        %v3148 = vpack.c.b16 %v3147, %v3147
        %3149 = vrot.lane.b32.xlu0 %v3148, 32
        %v3150 = vpop.permute.xlu0 %3149
        %v3152 = vsel %vm1452, %v3144, 0
        %v3155 = vsel %vm1480, %v3150, 0
        %3157 = vmatprep.subr.bf16.mxu0 0
        %3158 = vmatpush1.bf16.msra.mxu0 0
        %3159 = vmatprep.subr.bf16.mxu0 0
        %3160 = vmatpush1.bf16.msra.mxu0 0
        %3161 = vmatprep.subr.bf16.mxu0 0
        %3162 = vmatpush1.bf16.msra.mxu0 0
        %3163 = vmatprep.subr.bf16.mxu0 0
        %3164 = vmatpush1.bf16.msra.mxu0 0
        %3165 = vmatprep.subr.bf16.mxu0 0
        %3166 = vmatpush1.bf16.msra.mxu0 0
        %3167 = vmatprep.subr.bf16.mxu0 0
        %3168 = vmatpush1.bf16.msra.mxu0 0
        %3169 = vmatprep.subr.bf16.mxu0 0
        %3170 = vmatpush1.bf16.msra.mxu0 0
        %3171 = vmatprep.subr.bf16.mxu0 0
        %3172 = vmatpush1.bf16.msra.mxu0 %v3155
        %3173 = vmatprep.subr.bf16.mxu0 0
        %3174 = vmatpush2.bf16.msra.mxu0 0
        %3175 = vmatprep.subr.bf16.mxu0 0
        %3176 = vmatpush2.bf16.msra.mxu0 0
        %3177 = vmatprep.subr.bf16.mxu0 0
        %3178 = vmatpush2.bf16.msra.mxu0 0
        %3179 = vmatprep.subr.bf16.mxu0 0
        %3180 = vmatpush2.bf16.msra.mxu0 0
        %3181 = vmatprep.subr.bf16.mxu0 0
        %3182 = vmatpush2.bf16.msra.mxu0 0
        %3183 = vmatprep.subr.bf16.mxu0 0
        %3184 = vmatpush2.bf16.msra.mxu0 0
        %3185 = vmatprep.subr.bf16.mxu0 0
        %3186 = vmatpush2.bf16.msra.mxu0 0
        %3187 = vmatprep.subr.bf16.mxu0 0
        %3188 = vmatpush2.bf16.msra.mxu0 0
        %3189 = vmatprep.mubr.bf16.mxu0 0
        %3190 = vmatmul.mubr.bf16.gmra.mxu0 %v3152
        %v3191 = vpop.f32.mrf.mxu0
        %v3192 = vadd.f32 0.0, %v3191
        %v3193 = vpop.f32.mrf.mxu0
        %v3194 = vpop.f32.mrf.mxu0
        %v3195 = vpop.f32.mrf.mxu0
        %3196 = vdwg.mxu0
        %v3198 = vunpack.c.l.b16 %v3009
        %v3199 = vpack.c.b16 %v3198, %v3198
        %3200 = vrot.lane.b32.xlu0 %v3199, 32
        %v3201 = vpop.permute.xlu0 %3200
        %v3203 = vsel %vm1452, %v3145, 0
        %v3206 = vsel %vm1480, %v3201, 0
        %3208 = vmatprep.subr.bf16.mxu0 0
        %3209 = vmatpush1.bf16.msra.mxu0 0
        %3210 = vmatprep.subr.bf16.mxu0 0
        %3211 = vmatpush1.bf16.msra.mxu0 0
        %3212 = vmatprep.subr.bf16.mxu0 0
        %3213 = vmatpush1.bf16.msra.mxu0 0
        %3214 = vmatprep.subr.bf16.mxu0 0
        %3215 = vmatpush1.bf16.msra.mxu0 0
        %3216 = vmatprep.subr.bf16.mxu0 0
        %3217 = vmatpush1.bf16.msra.mxu0 0
        %3218 = vmatprep.subr.bf16.mxu0 0
        %3219 = vmatpush1.bf16.msra.mxu0 0
        %3220 = vmatprep.subr.bf16.mxu0 0
        %3221 = vmatpush1.bf16.msra.mxu0 0
        %3222 = vmatprep.subr.bf16.mxu0 0
        %3223 = vmatpush1.bf16.msra.mxu0 %v3206
        %3224 = vmatprep.subr.bf16.mxu0 0
        %3225 = vmatpush2.bf16.msra.mxu0 0
        %3226 = vmatprep.subr.bf16.mxu0 0
        %3227 = vmatpush2.bf16.msra.mxu0 0
        %3228 = vmatprep.subr.bf16.mxu0 0
        %3229 = vmatpush2.bf16.msra.mxu0 0
        %3230 = vmatprep.subr.bf16.mxu0 0
        %3231 = vmatpush2.bf16.msra.mxu0 0
        %3232 = vmatprep.subr.bf16.mxu0 0
        %3233 = vmatpush2.bf16.msra.mxu0 0
        %3234 = vmatprep.subr.bf16.mxu0 0
        %3235 = vmatpush2.bf16.msra.mxu0 0
        %3236 = vmatprep.subr.bf16.mxu0 0
        %3237 = vmatpush2.bf16.msra.mxu0 0
        %3238 = vmatprep.subr.bf16.mxu0 0
        %3239 = vmatpush2.bf16.msra.mxu0 0
        %3240 = vmatprep.mubr.bf16.mxu0 0
        %3241 = vmatmul.mubr.bf16.gmra.mxu0 %v3203
        %v3242 = vpop.f32.mrf.mxu0
        %v3243 = vadd.f32 0.0, %v3242
        %v3244 = vpop.f32.mrf.mxu0
        %v3245 = vpop.f32.mrf.mxu0
        %v3246 = vpop.f32.mrf.mxu0
        %3247 = vdwg.mxu0
        %3250 = vrot.lane.b32.xlu0 %v1758, 32
        %v3251 = vpop.permute.xlu0 %3250
        %3252 = vrot.lane.b32.xlu0 %v1809, 32
        %v3253 = vpop.permute.xlu0 %3252
        %3258 = vrot.lane.b32.xlu0 %v2002, 64
        %v3259 = vpop.permute.xlu0 %3258
        %3260 = vrot.lane.b32.xlu0 %v2053, 64
        %v3261 = vpop.permute.xlu0 %3260
        %3266 = vrot.lane.b32.xlu0 %v2246, 96
        %v3267 = vpop.permute.xlu0 %3266
        %3268 = vrot.lane.b32.xlu0 %v2297, 96
        %v3269 = vpop.permute.xlu0 %3268
        %3274 = vrot.lane.b32.xlu0 %v2704, 32
        %v3275 = vpop.permute.xlu0 %3274
        %3276 = vrot.lane.b32.xlu0 %v2755, 32
        %v3277 = vpop.permute.xlu0 %3276
        %3282 = vrot.lane.b32.xlu0 %v2948, 64
        %v3283 = vpop.permute.xlu0 %3282
        %3284 = vrot.lane.b32.xlu0 %v2999, 64
        %v3285 = vpop.permute.xlu0 %3284
        %3290 = vrot.lane.b32.xlu0 %v3192, 96
        %v3291 = vpop.permute.xlu0 %3290
        %3292 = vrot.lane.b32.xlu0 %v3243, 96
        %v3293 = vpop.permute.xlu0 %3292
        %v3296 = vsel %vm1359, %v1519, %v3251
        %v3297 = vsel %vm1359, %v1565, %v3253
        %vm3298 = vcmask 523264
        %v3299 = vsel %vm3298, %v3296, %v3259
        %v3300 = vsel %vm3298, %v3297, %v3261
        %vm3301 = vcmask 785408
        %v3302 = vsel %vm3301, %v3299, %v3267
        %v3303 = vsel %vm3301, %v3300, %v3269
        %v3304 = vsel %vm1359, %v2465, %v3275
        %v3305 = vsel %vm1359, %v2511, %v3277
        %v3306 = vsel %vm3298, %v3304, %v3283
        %v3307 = vsel %vm3298, %v3305, %v3285
        %v3308 = vsel %vm3301, %v3306, %v3291
        %v3309 = vsel %vm3301, %v3307, %v3293
        %v3310 = vld [vmem:[%s448] sm:$0xff]
        %v3311 = vld [vmem:[%s448 + $0x8] sm:$0xff]
        %v3312 = vld [vmem:[%s448 + $0x10] sm:$0xff]
        %v3313 = vld [vmem:[%s448 + $0x18] sm:$0xff]
        %v3314 = vld [vmem:[%s448 + $0x20] sm:$0xff]
        %v3315 = vld [vmem:[%s448 + $0x28] sm:$0xff]
        %v3316 = vld [vmem:[%s448 + $0x30] sm:$0xff]
        %v3317 = vld [vmem:[%s448 + $0x38] sm:$0xff]
        %v3318 = vld [vmem:[%s448 + $0x40] sm:$0xff]
        %v3319 = vld [vmem:[%s448 + $0x48] sm:$0xff]
        %v3320 = vld [vmem:[%s448 + $0x50] sm:$0xff]
        %v3321 = vld [vmem:[%s448 + $0x58] sm:$0xff]
        %v3322 = vld [vmem:[%s448 + $0x60] sm:$0xff]
        %v3323 = vld [vmem:[%s448 + $0x68] sm:$0xff]
        %v3324 = vld [vmem:[%s448 + $0x70] sm:$0xff]
        %v3325 = vld [vmem:[%s448 + $0x78] sm:$0xff]
        %v3326 = vld [vmem:[%s448 + $0x80] sm:$0xff]
        %v3327 = vld [vmem:[%s448 + $0x88] sm:$0xff]
        %v3328 = vld [vmem:[%s448 + $0x90] sm:$0xff]
        %v3329 = vld [vmem:[%s448 + $0x98] sm:$0xff]
        %v3330 = vld [vmem:[%s448 + $0xa0] sm:$0xff]
        %v3331 = vld [vmem:[%s448 + $0xa8] sm:$0xff]
        %v3332 = vld [vmem:[%s448 + $0xb0] sm:$0xff]
        %v3333 = vld [vmem:[%s448 + $0xb8] sm:$0xff]
        %v3334 = vld [vmem:[%s448 + $0xc0] sm:$0xff]
        %v3335 = vld [vmem:[%s448 + $0xc8] sm:$0xff]
        %v3336 = vld [vmem:[%s448 + $0xd0] sm:$0xff]
        %v3337 = vld [vmem:[%s448 + $0xd8] sm:$0xff]
        %v3338 = vld [vmem:[%s448 + $0xe0] sm:$0xff]
        %v3339 = vld [vmem:[%s448 + $0xe8] sm:$0xff]
        %v3340 = vld [vmem:[%s448 + $0xf0] sm:$0xff]
        %v3341 = vld [vmem:[%s448 + $0xf8] sm:$0xff]
        %v3342 = vld [vmem:[%s475 + $0x6] sm:$0x3]
        %v3343 = vpack.c.bf16 %v3303, %v3302
        %v3344 = vpack.c.bf16 %v3309, %v3308
        %v3346 = vlaneseq
        %v3347 = vshrl.u32 %v3346, 7
        %v3348 = vsub.s32 0, %v3347
        %v3349 = vrot.slane %v3342, %v3348
        %v3350 = vlaneseq
        %v3351 = vshrl.u32 %v3350, 7
        %v3352 = vsub.s32 1, %v3351
        %v3353 = vrot.slane %v3342, %v3352
        %v3388 = vunpack.c.l.b16 %v3310
        %v3389 = vunpack.c.h.b16 %v3310
        %v3390 = vunpack.c.l.b16 %v3311
        %v3391 = vunpack.c.h.b16 %v3311
        %v3392 = vunpack.c.l.b16 %v3312
        %v3393 = vunpack.c.h.b16 %v3312
        %v3394 = vunpack.c.l.b16 %v3313
        %v3395 = vunpack.c.h.b16 %v3313
        %v3396 = vunpack.c.l.b16 %v3314
        %v3397 = vunpack.c.h.b16 %v3314
        %v3398 = vunpack.c.l.b16 %v3315
        %v3399 = vunpack.c.h.b16 %v3315
        %v3400 = vunpack.c.l.b16 %v3316
        %v3401 = vunpack.c.h.b16 %v3316
        %v3402 = vunpack.c.l.b16 %v3317
        %v3403 = vunpack.c.h.b16 %v3317
        %v3404 = vunpack.c.l.b16 %v3318
        %v3405 = vunpack.c.h.b16 %v3318
        %v3406 = vunpack.c.l.b16 %v3319
        %v3407 = vunpack.c.h.b16 %v3319
        %v3408 = vunpack.c.l.b16 %v3320
        %v3409 = vunpack.c.h.b16 %v3320
        %v3410 = vunpack.c.l.b16 %v3321
        %v3411 = vunpack.c.h.b16 %v3321
        %v3412 = vunpack.c.l.b16 %v3322
        %v3413 = vunpack.c.h.b16 %v3322
        %v3414 = vunpack.c.l.b16 %v3323
        %v3415 = vunpack.c.h.b16 %v3323
        %v3416 = vunpack.c.l.b16 %v3324
        %v3417 = vunpack.c.h.b16 %v3324
        %v3418 = vunpack.c.l.b16 %v3325
        %v3419 = vunpack.c.h.b16 %v3325
        %v3420 = vunpack.c.l.b16 %v3326
        %v3421 = vunpack.c.h.b16 %v3326
        %v3422 = vunpack.c.l.b16 %v3327
        %v3423 = vunpack.c.h.b16 %v3327
        %v3424 = vunpack.c.l.b16 %v3328
        %v3425 = vunpack.c.h.b16 %v3328
        %v3426 = vunpack.c.l.b16 %v3329
        %v3427 = vunpack.c.h.b16 %v3329
        %v3428 = vunpack.c.l.b16 %v3330
        %v3429 = vunpack.c.h.b16 %v3330
        %v3430 = vunpack.c.l.b16 %v3331
        %v3431 = vunpack.c.h.b16 %v3331
        %v3432 = vunpack.c.l.b16 %v3332
        %v3433 = vunpack.c.h.b16 %v3332
        %v3434 = vunpack.c.l.b16 %v3333
        %v3435 = vunpack.c.h.b16 %v3333
        %v3436 = vunpack.c.l.b16 %v3334
        %v3437 = vunpack.c.h.b16 %v3334
        %v3438 = vunpack.c.l.b16 %v3335
        %v3439 = vunpack.c.h.b16 %v3335
        %v3440 = vunpack.c.l.b16 %v3336
        %v3441 = vunpack.c.h.b16 %v3336
        %v3442 = vunpack.c.l.b16 %v3337
        %v3443 = vunpack.c.h.b16 %v3337
        %v3444 = vunpack.c.l.b16 %v3338
        %v3445 = vunpack.c.h.b16 %v3338
        %v3446 = vunpack.c.l.b16 %v3339
        %v3447 = vunpack.c.h.b16 %v3339
        %v3448 = vunpack.c.l.b16 %v3340
        %v3449 = vunpack.c.h.b16 %v3340
        %v3450 = vunpack.c.l.b16 %v3341
        %v3451 = vunpack.c.h.b16 %v3341
        %v3452 = vpack.c.b16 %v3390, %v3388
        %v3453 = vpack.c.b16 %v3391, %v3389
        %v3454 = vpack.c.b16 %v3394, %v3392
        %v3455 = vpack.c.b16 %v3395, %v3393
        %v3456 = vpack.c.b16 %v3398, %v3396
        %v3457 = vpack.c.b16 %v3399, %v3397
        %v3458 = vpack.c.b16 %v3402, %v3400
        %v3459 = vpack.c.b16 %v3403, %v3401
        %v3460 = vpack.c.b16 %v3406, %v3404
        %v3461 = vpack.c.b16 %v3407, %v3405
        %v3462 = vpack.c.b16 %v3410, %v3408
        %v3463 = vpack.c.b16 %v3411, %v3409
        %v3464 = vpack.c.b16 %v3414, %v3412
        %v3465 = vpack.c.b16 %v3415, %v3413
        %v3466 = vpack.c.b16 %v3418, %v3416
        %v3467 = vpack.c.b16 %v3419, %v3417
        %v3468 = vpack.c.b16 %v3422, %v3420
        %v3469 = vpack.c.b16 %v3423, %v3421
        %v3470 = vpack.c.b16 %v3426, %v3424
        %v3471 = vpack.c.b16 %v3427, %v3425
        %v3472 = vpack.c.b16 %v3430, %v3428
        %v3473 = vpack.c.b16 %v3431, %v3429
        %v3474 = vpack.c.b16 %v3434, %v3432
        %v3475 = vpack.c.b16 %v3435, %v3433
        %v3476 = vpack.c.b16 %v3438, %v3436
        %v3477 = vpack.c.b16 %v3439, %v3437
        %v3478 = vpack.c.b16 %v3442, %v3440
        %v3479 = vpack.c.b16 %v3443, %v3441
        %v3480 = vpack.c.b16 %v3446, %v3444
        %v3481 = vpack.c.b16 %v3447, %v3445
        %v3482 = vpack.c.b16 %v3450, %v3448
        %v3483 = vpack.c.b16 %v3451, %v3449
        %3516 = vmatprep.subr.bf16.mxu0 %v3467
        %3517 = vmatpush1.bf16.msra.mxu0 %v3466
        %3518 = vmatprep.subr.bf16.mxu0 %v3465
        %3519 = vmatpush1.bf16.msra.mxu0 %v3464
        %3520 = vmatprep.subr.bf16.mxu0 %v3463
        %3521 = vmatpush1.bf16.msra.mxu0 %v3462
        %3522 = vmatprep.subr.bf16.mxu0 %v3461
        %3523 = vmatpush1.bf16.msra.mxu0 %v3460
        %3524 = vmatprep.subr.bf16.mxu0 %v3459
        %3525 = vmatpush1.bf16.msra.mxu0 %v3458
        %3526 = vmatprep.subr.bf16.mxu0 %v3457
        %3527 = vmatpush1.bf16.msra.mxu0 %v3456
        %3528 = vmatprep.subr.bf16.mxu0 %v3455
        %3529 = vmatpush1.bf16.msra.mxu0 %v3454
        %3530 = vmatprep.subr.bf16.mxu0 %v3453
        %3531 = vmatpush1.bf16.msra.mxu0 %v3452
        %3532 = vmatprep.subr.bf16.mxu0 %v3483
        %3533 = vmatpush2.bf16.msra.mxu0 %v3482
        %3534 = vmatprep.subr.bf16.mxu0 %v3481
        %3535 = vmatpush2.bf16.msra.mxu0 %v3480
        %3536 = vmatprep.subr.bf16.mxu0 %v3479
        %3537 = vmatpush2.bf16.msra.mxu0 %v3478
        %3538 = vmatprep.subr.bf16.mxu0 %v3477
        %3539 = vmatpush2.bf16.msra.mxu0 %v3476
        %3540 = vmatprep.subr.bf16.mxu0 %v3475
        %3541 = vmatpush2.bf16.msra.mxu0 %v3474
        %3542 = vmatprep.subr.bf16.mxu0 %v3473
        %3543 = vmatpush2.bf16.msra.mxu0 %v3472
        %3544 = vmatprep.subr.bf16.mxu0 %v3471
        %3545 = vmatpush2.bf16.msra.mxu0 %v3470
        %3546 = vmatprep.subr.bf16.mxu0 %v3469
        %3547 = vmatpush2.bf16.msra.mxu0 %v3468
        %3548 = vmatprep.mubr.bf16.mxu0 %v3344
        %3549 = vmatmul.mubr.bf16.gmra.mxu0 %v3343
        %v3550 = vpop.f32.mrf.mxu0
        %v3551 = vadd.f32 %v3349, %v3550
        %v3552 = vpop.f32.mrf.mxu0
        %v3553 = vadd.f32 %v3353, %v3552
        %v3554 = vpop.f32.mrf.mxu0
        %v3555 = vadd.f32 %v3349, %v3554
        %v3556 = vpop.f32.mrf.mxu0
        %v3557 = vadd.f32 %v3353, %v3556
        %3558 = vdwg.mxu0
        %v3559 = vadd.f32 %v3551, %v556
        %v3560 = vadd.f32 %v3553, %v557
        %v3561 = vadd.f32 %v3555, %v558
        %v3562 = vadd.f32 %v3557, %v559
        %v3563 = vld [vmem:[%s475 + $0x1a] sm:$0x3]
        %v3564 = vld [vmem:[%s475 + $0x1c] sm:$0x3]
        %v3565 = vadd.f32 %v3559, %v3560
        %3566 = vadd.xlane.f32.xlu0 %v3565
        %v3567 = vpop.xlane.xlu0 %3566
        %v3568 = vadd.f32 %v3561, %v3562
        %3569 = vadd.xlane.f32.xlu0 %v3568
        %v3570 = vpop.xlane.xlu0 %3569
        %v3571 = vrcp.pop 256.0
        %v3572 = vmul.f32 %v3567, %v3571
        %v3573 = vmul.f32 %v3570, %v3571
        %v3574 = vsub.f32 %v3559, %v3572
        %v3575 = vsub.f32 %v3560, %v3572
        %v3576 = vsub.f32 %v3561, %v3573
        %v3577 = vsub.f32 %v3562, %v3573
        %v3578 = vmul.f32 %v3574, %v3574
        %v3579 = vmul.f32 %v3575, %v3575
        %v3580 = vmul.f32 %v3576, %v3576
        %v3581 = vmul.f32 %v3577, %v3577
        %v3582 = vadd.f32 %v3578, %v3579
        %3583 = vadd.xlane.f32.xlu0 %v3582
        %v3584 = vpop.xlane.xlu0 %3583
        %v3585 = vadd.f32 %v3580, %v3581
        %3586 = vadd.xlane.f32.xlu0 %v3585
        %v3587 = vpop.xlane.xlu0 %3586
        %v3588 = vmul.f32 %v3584, %v3571
        %v3589 = vmul.f32 %v3587, %v3571
        %v3590 = vadd.f32 %v3588, 1e-05
        %v3591 = vadd.f32 %v3589, 1e-05
        %v3592 = vrsqrt.pop %v3590
        %v3593 = vrsqrt.pop %v3591
        %v3594 = vmul.f32 %v3574, %v3592
        %v3595 = vmul.f32 %v3575, %v3592
        %v3596 = vmul.f32 %v3576, %v3593
        %v3597 = vmul.f32 %v3577, %v3593
        %v3599 = vlaneseq
        %v3600 = vshrl.u32 %v3599, 7
        %v3601 = vsub.s32 0, %v3600
        %v3602 = vrot.slane %v3563, %v3601
        %v3603 = vlaneseq
        %v3604 = vshrl.u32 %v3603, 7
        %v3605 = vsub.s32 1, %v3604
        %v3606 = vrot.slane %v3563, %v3605
        %v3609 = vmul.f32 %v3594, %v3602
        %v3610 = vmul.f32 %v3595, %v3606
        %v3611 = vmul.f32 %v3596, %v3602
        %v3612 = vmul.f32 %v3597, %v3606
        %v3614 = vlaneseq
        %v3615 = vshrl.u32 %v3614, 7
        %v3616 = vsub.s32 0, %v3615
        %v3617 = vrot.slane %v3564, %v3616
        %v3618 = vlaneseq
        %v3619 = vshrl.u32 %v3618, 7
        %v3620 = vsub.s32 1, %v3619
        %v3621 = vrot.slane %v3564, %v3620
        %v3624 = vadd.f32 %v3609, %v3617
        %v3625 = vadd.f32 %v3610, %v3621
        %v3626 = vadd.f32 %v3611, %v3617
        %v3627 = vadd.f32 %v3612, %v3621
        %v3628 = vld [vmem:[%s457] sm:$0xff]
        %v3629 = vld [vmem:[%s457 + $0x8] sm:$0xff]
        %v3630 = vld [vmem:[%s457 + $0x10] sm:$0xff]
        %v3631 = vld [vmem:[%s457 + $0x18] sm:$0xff]
        %v3632 = vld [vmem:[%s457 + $0x20] sm:$0xff]
        %v3633 = vld [vmem:[%s457 + $0x28] sm:$0xff]
        %v3634 = vld [vmem:[%s457 + $0x30] sm:$0xff]
        %v3635 = vld [vmem:[%s457 + $0x38] sm:$0xff]
        %v3636 = vld [vmem:[%s457 + $0x40] sm:$0xff]
        %v3637 = vld [vmem:[%s457 + $0x48] sm:$0xff]
        %v3638 = vld [vmem:[%s457 + $0x50] sm:$0xff]
        %v3639 = vld [vmem:[%s457 + $0x58] sm:$0xff]
        %v3640 = vld [vmem:[%s457 + $0x60] sm:$0xff]
        %v3641 = vld [vmem:[%s457 + $0x68] sm:$0xff]
        %v3642 = vld [vmem:[%s457 + $0x70] sm:$0xff]
        %v3643 = vld [vmem:[%s457 + $0x78] sm:$0xff]
        %v3644 = vld [vmem:[%s457 + $0x80] sm:$0xff]
        %v3645 = vld [vmem:[%s457 + $0x88] sm:$0xff]
        %v3646 = vld [vmem:[%s457 + $0x90] sm:$0xff]
        %v3647 = vld [vmem:[%s457 + $0x98] sm:$0xff]
        %v3648 = vld [vmem:[%s457 + $0xa0] sm:$0xff]
        %v3649 = vld [vmem:[%s457 + $0xa8] sm:$0xff]
        %v3650 = vld [vmem:[%s457 + $0xb0] sm:$0xff]
        %v3651 = vld [vmem:[%s457 + $0xb8] sm:$0xff]
        %v3652 = vld [vmem:[%s457 + $0xc0] sm:$0xff]
        %v3653 = vld [vmem:[%s457 + $0xc8] sm:$0xff]
        %v3654 = vld [vmem:[%s457 + $0xd0] sm:$0xff]
        %v3655 = vld [vmem:[%s457 + $0xd8] sm:$0xff]
        %v3656 = vld [vmem:[%s457 + $0xe0] sm:$0xff]
        %v3657 = vld [vmem:[%s457 + $0xe8] sm:$0xff]
        %v3658 = vld [vmem:[%s457 + $0xf0] sm:$0xff]
        %v3659 = vld [vmem:[%s457 + $0xf8] sm:$0xff]
        %v3660 = vld [vmem:[%s457 + $0x100] sm:$0xff]
        %v3661 = vld [vmem:[%s457 + $0x108] sm:$0xff]
        %v3662 = vld [vmem:[%s457 + $0x110] sm:$0xff]
        %v3663 = vld [vmem:[%s457 + $0x118] sm:$0xff]
        %v3664 = vld [vmem:[%s457 + $0x120] sm:$0xff]
        %v3665 = vld [vmem:[%s457 + $0x128] sm:$0xff]
        %v3666 = vld [vmem:[%s457 + $0x130] sm:$0xff]
        %v3667 = vld [vmem:[%s457 + $0x138] sm:$0xff]
        %v3668 = vld [vmem:[%s457 + $0x140] sm:$0xff]
        %v3669 = vld [vmem:[%s457 + $0x148] sm:$0xff]
        %v3670 = vld [vmem:[%s457 + $0x150] sm:$0xff]
        %v3671 = vld [vmem:[%s457 + $0x158] sm:$0xff]
        %v3672 = vld [vmem:[%s457 + $0x160] sm:$0xff]
        %v3673 = vld [vmem:[%s457 + $0x168] sm:$0xff]
        %v3674 = vld [vmem:[%s457 + $0x170] sm:$0xff]
        %v3675 = vld [vmem:[%s457 + $0x178] sm:$0xff]
        %v3676 = vld [vmem:[%s457 + $0x180] sm:$0xff]
        %v3677 = vld [vmem:[%s457 + $0x188] sm:$0xff]
        %v3678 = vld [vmem:[%s457 + $0x190] sm:$0xff]
        %v3679 = vld [vmem:[%s457 + $0x198] sm:$0xff]
        %v3680 = vld [vmem:[%s457 + $0x1a0] sm:$0xff]
        %v3681 = vld [vmem:[%s457 + $0x1a8] sm:$0xff]
        %v3682 = vld [vmem:[%s457 + $0x1b0] sm:$0xff]
        %v3683 = vld [vmem:[%s457 + $0x1b8] sm:$0xff]
        %v3684 = vld [vmem:[%s457 + $0x1c0] sm:$0xff]
        %v3685 = vld [vmem:[%s457 + $0x1c8] sm:$0xff]
        %v3686 = vld [vmem:[%s457 + $0x1d0] sm:$0xff]
        %v3687 = vld [vmem:[%s457 + $0x1d8] sm:$0xff]
        %v3688 = vld [vmem:[%s457 + $0x1e0] sm:$0xff]
        %v3689 = vld [vmem:[%s457 + $0x1e8] sm:$0xff]
        %v3690 = vld [vmem:[%s457 + $0x1f0] sm:$0xff]
        %v3691 = vld [vmem:[%s457 + $0x1f8] sm:$0xff]
        %v3692 = vld [vmem:[%s457 + $0x200] sm:$0xff]
        %v3693 = vld [vmem:[%s457 + $0x208] sm:$0xff]
        %v3694 = vld [vmem:[%s457 + $0x210] sm:$0xff]
        %v3695 = vld [vmem:[%s457 + $0x218] sm:$0xff]
        %v3696 = vld [vmem:[%s457 + $0x220] sm:$0xff]
        %v3697 = vld [vmem:[%s457 + $0x228] sm:$0xff]
        %v3698 = vld [vmem:[%s457 + $0x230] sm:$0xff]
        %v3699 = vld [vmem:[%s457 + $0x238] sm:$0xff]
        %v3700 = vld [vmem:[%s457 + $0x240] sm:$0xff]
        %v3701 = vld [vmem:[%s457 + $0x248] sm:$0xff]
        %v3702 = vld [vmem:[%s457 + $0x250] sm:$0xff]
        %v3703 = vld [vmem:[%s457 + $0x258] sm:$0xff]
        %v3704 = vld [vmem:[%s457 + $0x260] sm:$0xff]
        %v3705 = vld [vmem:[%s457 + $0x268] sm:$0xff]
        %v3706 = vld [vmem:[%s457 + $0x270] sm:$0xff]
        %v3707 = vld [vmem:[%s457 + $0x278] sm:$0xff]
        %v3708 = vld [vmem:[%s457 + $0x280] sm:$0xff]
        %v3709 = vld [vmem:[%s457 + $0x288] sm:$0xff]
        %v3710 = vld [vmem:[%s457 + $0x290] sm:$0xff]
        %v3711 = vld [vmem:[%s457 + $0x298] sm:$0xff]
        %v3712 = vld [vmem:[%s457 + $0x2a0] sm:$0xff]
        %v3713 = vld [vmem:[%s457 + $0x2a8] sm:$0xff]
        %v3714 = vld [vmem:[%s457 + $0x2b0] sm:$0xff]
        %v3715 = vld [vmem:[%s457 + $0x2b8] sm:$0xff]
        %v3716 = vld [vmem:[%s457 + $0x2c0] sm:$0xff]
        %v3717 = vld [vmem:[%s457 + $0x2c8] sm:$0xff]
        %v3718 = vld [vmem:[%s457 + $0x2d0] sm:$0xff]
        %v3719 = vld [vmem:[%s457 + $0x2d8] sm:$0xff]
        %v3720 = vld [vmem:[%s457 + $0x2e0] sm:$0xff]
        %v3721 = vld [vmem:[%s457 + $0x2e8] sm:$0xff]
        %v3722 = vld [vmem:[%s457 + $0x2f0] sm:$0xff]
        %v3723 = vld [vmem:[%s457 + $0x2f8] sm:$0xff]
        %v3724 = vld [vmem:[%s457 + $0x300] sm:$0xff]
        %v3725 = vld [vmem:[%s457 + $0x308] sm:$0xff]
        %v3726 = vld [vmem:[%s457 + $0x310] sm:$0xff]
        %v3727 = vld [vmem:[%s457 + $0x318] sm:$0xff]
        %v3728 = vld [vmem:[%s457 + $0x320] sm:$0xff]
        %v3729 = vld [vmem:[%s457 + $0x328] sm:$0xff]
        %v3730 = vld [vmem:[%s457 + $0x330] sm:$0xff]
        %v3731 = vld [vmem:[%s457 + $0x338] sm:$0xff]
        %v3732 = vld [vmem:[%s457 + $0x340] sm:$0xff]
        %v3733 = vld [vmem:[%s457 + $0x348] sm:$0xff]
        %v3734 = vld [vmem:[%s457 + $0x350] sm:$0xff]
        %v3735 = vld [vmem:[%s457 + $0x358] sm:$0xff]
        %v3736 = vld [vmem:[%s457 + $0x360] sm:$0xff]
        %v3737 = vld [vmem:[%s457 + $0x368] sm:$0xff]
        %v3738 = vld [vmem:[%s457 + $0x370] sm:$0xff]
        %v3739 = vld [vmem:[%s457 + $0x378] sm:$0xff]
        %v3740 = vld [vmem:[%s457 + $0x380] sm:$0xff]
        %v3741 = vld [vmem:[%s457 + $0x388] sm:$0xff]
        %v3742 = vld [vmem:[%s457 + $0x390] sm:$0xff]
        %v3743 = vld [vmem:[%s457 + $0x398] sm:$0xff]
        %v3744 = vld [vmem:[%s457 + $0x3a0] sm:$0xff]
        %v3745 = vld [vmem:[%s457 + $0x3a8] sm:$0xff]
        %v3746 = vld [vmem:[%s457 + $0x3b0] sm:$0xff]
        %v3747 = vld [vmem:[%s457 + $0x3b8] sm:$0xff]
        %v3748 = vld [vmem:[%s457 + $0x3c0] sm:$0xff]
        %v3749 = vld [vmem:[%s457 + $0x3c8] sm:$0xff]
        %v3750 = vld [vmem:[%s457 + $0x3d0] sm:$0xff]
        %v3751 = vld [vmem:[%s457 + $0x3d8] sm:$0xff]
        %v3752 = vld [vmem:[%s457 + $0x3e0] sm:$0xff]
        %v3753 = vld [vmem:[%s457 + $0x3e8] sm:$0xff]
        %v3754 = vld [vmem:[%s457 + $0x3f0] sm:$0xff]
        %v3755 = vld [vmem:[%s457 + $0x3f8] sm:$0xff]
        %v3756 = vld [vmem:[%s457 + $0x400] sm:$0xff]
        %v3757 = vld [vmem:[%s457 + $0x408] sm:$0xff]
        %v3758 = vld [vmem:[%s457 + $0x410] sm:$0xff]
        %v3759 = vld [vmem:[%s457 + $0x418] sm:$0xff]
        %v3760 = vld [vmem:[%s457 + $0x420] sm:$0xff]
        %v3761 = vld [vmem:[%s457 + $0x428] sm:$0xff]
        %v3762 = vld [vmem:[%s457 + $0x430] sm:$0xff]
        %v3763 = vld [vmem:[%s457 + $0x438] sm:$0xff]
        %v3764 = vld [vmem:[%s457 + $0x440] sm:$0xff]
        %v3765 = vld [vmem:[%s457 + $0x448] sm:$0xff]
        %v3766 = vld [vmem:[%s457 + $0x450] sm:$0xff]
        %v3767 = vld [vmem:[%s457 + $0x458] sm:$0xff]
        %v3768 = vld [vmem:[%s457 + $0x460] sm:$0xff]
        %v3769 = vld [vmem:[%s457 + $0x468] sm:$0xff]
        %v3770 = vld [vmem:[%s457 + $0x470] sm:$0xff]
        %v3771 = vld [vmem:[%s457 + $0x478] sm:$0xff]
        %v3772 = vld [vmem:[%s457 + $0x480] sm:$0xff]
        %v3773 = vld [vmem:[%s457 + $0x488] sm:$0xff]
        %v3774 = vld [vmem:[%s457 + $0x490] sm:$0xff]
        %v3775 = vld [vmem:[%s457 + $0x498] sm:$0xff]
        %v3776 = vld [vmem:[%s457 + $0x4a0] sm:$0xff]
        %v3777 = vld [vmem:[%s457 + $0x4a8] sm:$0xff]
        %v3778 = vld [vmem:[%s457 + $0x4b0] sm:$0xff]
        %v3779 = vld [vmem:[%s457 + $0x4b8] sm:$0xff]
        %v3780 = vld [vmem:[%s457 + $0x4c0] sm:$0xff]
        %v3781 = vld [vmem:[%s457 + $0x4c8] sm:$0xff]
        %v3782 = vld [vmem:[%s457 + $0x4d0] sm:$0xff]
        %v3783 = vld [vmem:[%s457 + $0x4d8] sm:$0xff]
        %v3784 = vld [vmem:[%s457 + $0x4e0] sm:$0xff]
        %v3785 = vld [vmem:[%s457 + $0x4e8] sm:$0xff]
        %v3786 = vld [vmem:[%s457 + $0x4f0] sm:$0xff]
        %v3787 = vld [vmem:[%s457 + $0x4f8] sm:$0xff]
        %v3788 = vld [vmem:[%s457 + $0x500] sm:$0xff]
        %v3789 = vld [vmem:[%s457 + $0x508] sm:$0xff]
        %v3790 = vld [vmem:[%s457 + $0x510] sm:$0xff]
        %v3791 = vld [vmem:[%s457 + $0x518] sm:$0xff]
        %v3792 = vld [vmem:[%s457 + $0x520] sm:$0xff]
        %v3793 = vld [vmem:[%s457 + $0x528] sm:$0xff]
        %v3794 = vld [vmem:[%s457 + $0x530] sm:$0xff]
        %v3795 = vld [vmem:[%s457 + $0x538] sm:$0xff]
        %v3796 = vld [vmem:[%s457 + $0x540] sm:$0xff]
        %v3797 = vld [vmem:[%s457 + $0x548] sm:$0xff]
        %v3798 = vld [vmem:[%s457 + $0x550] sm:$0xff]
        %v3799 = vld [vmem:[%s457 + $0x558] sm:$0xff]
        %v3800 = vld [vmem:[%s457 + $0x560] sm:$0xff]
        %v3801 = vld [vmem:[%s457 + $0x568] sm:$0xff]
        %v3802 = vld [vmem:[%s457 + $0x570] sm:$0xff]
        %v3803 = vld [vmem:[%s457 + $0x578] sm:$0xff]
        %v3804 = vld [vmem:[%s457 + $0x580] sm:$0xff]
        %v3805 = vld [vmem:[%s457 + $0x588] sm:$0xff]
        %v3806 = vld [vmem:[%s457 + $0x590] sm:$0xff]
        %v3807 = vld [vmem:[%s457 + $0x598] sm:$0xff]
        %v3808 = vld [vmem:[%s457 + $0x5a0] sm:$0xff]
        %v3809 = vld [vmem:[%s457 + $0x5a8] sm:$0xff]
        %v3810 = vld [vmem:[%s457 + $0x5b0] sm:$0xff]
        %v3811 = vld [vmem:[%s457 + $0x5b8] sm:$0xff]
        %v3812 = vld [vmem:[%s457 + $0x5c0] sm:$0xff]
        %v3813 = vld [vmem:[%s457 + $0x5c8] sm:$0xff]
        %v3814 = vld [vmem:[%s457 + $0x5d0] sm:$0xff]
        %v3815 = vld [vmem:[%s457 + $0x5d8] sm:$0xff]
        %v3816 = vld [vmem:[%s457 + $0x5e0] sm:$0xff]
        %v3817 = vld [vmem:[%s457 + $0x5e8] sm:$0xff]
        %v3818 = vld [vmem:[%s457 + $0x5f0] sm:$0xff]
        %v3819 = vld [vmem:[%s457 + $0x5f8] sm:$0xff]
        %v3820 = vld [vmem:[%s457 + $0x600] sm:$0xff]
        %v3821 = vld [vmem:[%s457 + $0x608] sm:$0xff]
        %v3822 = vld [vmem:[%s457 + $0x610] sm:$0xff]
        %v3823 = vld [vmem:[%s457 + $0x618] sm:$0xff]
        %v3824 = vld [vmem:[%s457 + $0x620] sm:$0xff]
        %v3825 = vld [vmem:[%s457 + $0x628] sm:$0xff]
        %v3826 = vld [vmem:[%s457 + $0x630] sm:$0xff]
        %v3827 = vld [vmem:[%s457 + $0x638] sm:$0xff]
        %v3828 = vld [vmem:[%s457 + $0x640] sm:$0xff]
        %v3829 = vld [vmem:[%s457 + $0x648] sm:$0xff]
        %v3830 = vld [vmem:[%s457 + $0x650] sm:$0xff]
        %v3831 = vld [vmem:[%s457 + $0x658] sm:$0xff]
        %v3832 = vld [vmem:[%s457 + $0x660] sm:$0xff]
        %v3833 = vld [vmem:[%s457 + $0x668] sm:$0xff]
        %v3834 = vld [vmem:[%s457 + $0x670] sm:$0xff]
        %v3835 = vld [vmem:[%s457 + $0x678] sm:$0xff]
        %v3836 = vld [vmem:[%s457 + $0x680] sm:$0xff]
        %v3837 = vld [vmem:[%s457 + $0x688] sm:$0xff]
        %v3838 = vld [vmem:[%s457 + $0x690] sm:$0xff]
        %v3839 = vld [vmem:[%s457 + $0x698] sm:$0xff]
        %v3840 = vld [vmem:[%s457 + $0x6a0] sm:$0xff]
        %v3841 = vld [vmem:[%s457 + $0x6a8] sm:$0xff]
        %v3842 = vld [vmem:[%s457 + $0x6b0] sm:$0xff]
        %v3843 = vld [vmem:[%s457 + $0x6b8] sm:$0xff]
        %v3844 = vld [vmem:[%s457 + $0x6c0] sm:$0xff]
        %v3845 = vld [vmem:[%s457 + $0x6c8] sm:$0xff]
        %v3846 = vld [vmem:[%s457 + $0x6d0] sm:$0xff]
        %v3847 = vld [vmem:[%s457 + $0x6d8] sm:$0xff]
        %v3848 = vld [vmem:[%s457 + $0x6e0] sm:$0xff]
        %v3849 = vld [vmem:[%s457 + $0x6e8] sm:$0xff]
        %v3850 = vld [vmem:[%s457 + $0x6f0] sm:$0xff]
        %v3851 = vld [vmem:[%s457 + $0x6f8] sm:$0xff]
        %v3852 = vld [vmem:[%s457 + $0x700] sm:$0xff]
        %v3853 = vld [vmem:[%s457 + $0x708] sm:$0xff]
        %v3854 = vld [vmem:[%s457 + $0x710] sm:$0xff]
        %v3855 = vld [vmem:[%s457 + $0x718] sm:$0xff]
        %v3856 = vld [vmem:[%s457 + $0x720] sm:$0xff]
        %v3857 = vld [vmem:[%s457 + $0x728] sm:$0xff]
        %v3858 = vld [vmem:[%s457 + $0x730] sm:$0xff]
        %v3859 = vld [vmem:[%s457 + $0x738] sm:$0xff]
        %v3860 = vld [vmem:[%s457 + $0x740] sm:$0xff]
        %v3861 = vld [vmem:[%s457 + $0x748] sm:$0xff]
        %v3862 = vld [vmem:[%s457 + $0x750] sm:$0xff]
        %v3863 = vld [vmem:[%s457 + $0x758] sm:$0xff]
        %v3864 = vld [vmem:[%s457 + $0x760] sm:$0xff]
        %v3865 = vld [vmem:[%s457 + $0x768] sm:$0xff]
        %v3866 = vld [vmem:[%s457 + $0x770] sm:$0xff]
        %v3867 = vld [vmem:[%s457 + $0x778] sm:$0xff]
        %v3868 = vld [vmem:[%s457 + $0x780] sm:$0xff]
        %v3869 = vld [vmem:[%s457 + $0x788] sm:$0xff]
        %v3870 = vld [vmem:[%s457 + $0x790] sm:$0xff]
        %v3871 = vld [vmem:[%s457 + $0x798] sm:$0xff]
        %v3872 = vld [vmem:[%s457 + $0x7a0] sm:$0xff]
        %v3873 = vld [vmem:[%s457 + $0x7a8] sm:$0xff]
        %v3874 = vld [vmem:[%s457 + $0x7b0] sm:$0xff]
        %v3875 = vld [vmem:[%s457 + $0x7b8] sm:$0xff]
        %v3876 = vld [vmem:[%s457 + $0x7c0] sm:$0xff]
        %v3877 = vld [vmem:[%s457 + $0x7c8] sm:$0xff]
        %v3878 = vld [vmem:[%s457 + $0x7d0] sm:$0xff]
        %v3879 = vld [vmem:[%s457 + $0x7d8] sm:$0xff]
        %v3880 = vld [vmem:[%s457 + $0x7e0] sm:$0xff]
        %v3881 = vld [vmem:[%s457 + $0x7e8] sm:$0xff]
        %v3882 = vld [vmem:[%s457 + $0x7f0] sm:$0xff]
        %v3883 = vld [vmem:[%s457 + $0x7f8] sm:$0xff]
        %v3884 = vld [vmem:[%s475 + $0x8] sm:$0xff]
        %v3885 = vld [vmem:[%s475 + $0x10] sm:$0xff]
        %v3886 = vpack.c.bf16 %v3626, %v3624
        %v3887 = vpack.c.bf16 %v3627, %v3625
        %v3890 = vlaneseq
        %v3891 = vshrl.u32 %v3890, 7
        %v3892 = vsub.s32 0, %v3891
        %v3893 = vrot.slane %v3884, %v3892
        %v3894 = vlaneseq
        %v3895 = vshrl.u32 %v3894, 7
        %v3896 = vsub.s32 1, %v3895
        %v3897 = vrot.slane %v3884, %v3896
        %v3898 = vlaneseq
        %v3899 = vshrl.u32 %v3898, 7
        %v3900 = vsub.s32 2, %v3899
        %v3901 = vrot.slane %v3884, %v3900
        %v3902 = vlaneseq
        %v3903 = vshrl.u32 %v3902, 7
        %v3904 = vsub.s32 3, %v3903
        %v3905 = vrot.slane %v3884, %v3904
        %v3906 = vlaneseq
        %v3907 = vshrl.u32 %v3906, 7
        %v3908 = vsub.s32 4, %v3907
        %v3909 = vrot.slane %v3884, %v3908
        %v3910 = vlaneseq
        %v3911 = vshrl.u32 %v3910, 7
        %v3912 = vsub.s32 5, %v3911
        %v3913 = vrot.slane %v3884, %v3912
        %v3914 = vlaneseq
        %v3915 = vshrl.u32 %v3914, 7
        %v3916 = vsub.s32 6, %v3915
        %v3917 = vrot.slane %v3884, %v3916
        %v3918 = vlaneseq
        %v3919 = vshrl.u32 %v3918, 7
        %v3920 = vsub.s32 7, %v3919
        %v3921 = vrot.slane %v3884, %v3920
        %v3922 = vlaneseq
        %v3923 = vshrl.u32 %v3922, 7
        %v3924 = vsub.s32 0, %v3923
        %v3925 = vrot.slane %v3885, %v3924
        %v3926 = vlaneseq
        %v3927 = vshrl.u32 %v3926, 7
        %v3928 = vsub.s32 1, %v3927
        %v3929 = vrot.slane %v3885, %v3928
        %v3930 = vlaneseq
        %v3931 = vshrl.u32 %v3930, 7
        %v3932 = vsub.s32 2, %v3931
        %v3933 = vrot.slane %v3885, %v3932
        %v3934 = vlaneseq
        %v3935 = vshrl.u32 %v3934, 7
        %v3936 = vsub.s32 3, %v3935
        %v3937 = vrot.slane %v3885, %v3936
        %v3938 = vlaneseq
        %v3939 = vshrl.u32 %v3938, 7
        %v3940 = vsub.s32 4, %v3939
        %v3941 = vrot.slane %v3885, %v3940
        %v3942 = vlaneseq
        %v3943 = vshrl.u32 %v3942, 7
        %v3944 = vsub.s32 5, %v3943
        %v3945 = vrot.slane %v3885, %v3944
        %v3946 = vlaneseq
        %v3947 = vshrl.u32 %v3946, 7
        %v3948 = vsub.s32 6, %v3947
        %v3949 = vrot.slane %v3885, %v3948
        %v3950 = vlaneseq
        %v3951 = vshrl.u32 %v3950, 7
        %v3952 = vsub.s32 7, %v3951
        %v3953 = vrot.slane %v3885, %v3952
        %v4226 = vunpack.c.l.b16 %v3628
        %v4227 = vunpack.c.h.b16 %v3628
        %v4228 = vunpack.c.l.b16 %v3629
        %v4229 = vunpack.c.h.b16 %v3629
        %v4230 = vunpack.c.l.b16 %v3630
        %v4231 = vunpack.c.h.b16 %v3630
        %v4232 = vunpack.c.l.b16 %v3631
        %v4233 = vunpack.c.h.b16 %v3631
        %v4234 = vunpack.c.l.b16 %v3632
        %v4235 = vunpack.c.h.b16 %v3632
        %v4236 = vunpack.c.l.b16 %v3633
        %v4237 = vunpack.c.h.b16 %v3633
        %v4238 = vunpack.c.l.b16 %v3634
        %v4239 = vunpack.c.h.b16 %v3634
        %v4240 = vunpack.c.l.b16 %v3635
        %v4241 = vunpack.c.h.b16 %v3635
        %v4242 = vunpack.c.l.b16 %v3636
        %v4243 = vunpack.c.h.b16 %v3636
        %v4244 = vunpack.c.l.b16 %v3637
        %v4245 = vunpack.c.h.b16 %v3637
        %v4246 = vunpack.c.l.b16 %v3638
        %v4247 = vunpack.c.h.b16 %v3638
        %v4248 = vunpack.c.l.b16 %v3639
        %v4249 = vunpack.c.h.b16 %v3639
        %v4250 = vunpack.c.l.b16 %v3640
        %v4251 = vunpack.c.h.b16 %v3640
        %v4252 = vunpack.c.l.b16 %v3641
        %v4253 = vunpack.c.h.b16 %v3641
        %v4254 = vunpack.c.l.b16 %v3642
        %v4255 = vunpack.c.h.b16 %v3642
        %v4256 = vunpack.c.l.b16 %v3643
        %v4257 = vunpack.c.h.b16 %v3643
        %v4258 = vunpack.c.l.b16 %v3644
        %v4259 = vunpack.c.h.b16 %v3644
        %v4260 = vunpack.c.l.b16 %v3645
        %v4261 = vunpack.c.h.b16 %v3645
        %v4262 = vunpack.c.l.b16 %v3646
        %v4263 = vunpack.c.h.b16 %v3646
        %v4264 = vunpack.c.l.b16 %v3647
        %v4265 = vunpack.c.h.b16 %v3647
        %v4266 = vunpack.c.l.b16 %v3648
        %v4267 = vunpack.c.h.b16 %v3648
        %v4268 = vunpack.c.l.b16 %v3649
        %v4269 = vunpack.c.h.b16 %v3649
        %v4270 = vunpack.c.l.b16 %v3650
        %v4271 = vunpack.c.h.b16 %v3650
        %v4272 = vunpack.c.l.b16 %v3651
        %v4273 = vunpack.c.h.b16 %v3651
        %v4274 = vunpack.c.l.b16 %v3652
        %v4275 = vunpack.c.h.b16 %v3652
        %v4276 = vunpack.c.l.b16 %v3653
        %v4277 = vunpack.c.h.b16 %v3653
        %v4278 = vunpack.c.l.b16 %v3654
        %v4279 = vunpack.c.h.b16 %v3654
        %v4280 = vunpack.c.l.b16 %v3655
        %v4281 = vunpack.c.h.b16 %v3655
        %v4282 = vunpack.c.l.b16 %v3656
        %v4283 = vunpack.c.h.b16 %v3656
        %v4284 = vunpack.c.l.b16 %v3657
        %v4285 = vunpack.c.h.b16 %v3657
        %v4286 = vunpack.c.l.b16 %v3658
        %v4287 = vunpack.c.h.b16 %v3658
        %v4288 = vunpack.c.l.b16 %v3659
        %v4289 = vunpack.c.h.b16 %v3659
        %v4290 = vunpack.c.l.b16 %v3660
        %v4291 = vunpack.c.h.b16 %v3660
        %v4292 = vunpack.c.l.b16 %v3661
        %v4293 = vunpack.c.h.b16 %v3661
        %v4294 = vunpack.c.l.b16 %v3662
        %v4295 = vunpack.c.h.b16 %v3662
        %v4296 = vunpack.c.l.b16 %v3663
        %v4297 = vunpack.c.h.b16 %v3663
        %v4298 = vunpack.c.l.b16 %v3664
        %v4299 = vunpack.c.h.b16 %v3664
        %v4300 = vunpack.c.l.b16 %v3665
        %v4301 = vunpack.c.h.b16 %v3665
        %v4302 = vunpack.c.l.b16 %v3666
        %v4303 = vunpack.c.h.b16 %v3666
        %v4304 = vunpack.c.l.b16 %v3667
        %v4305 = vunpack.c.h.b16 %v3667
        %v4306 = vunpack.c.l.b16 %v3668
        %v4307 = vunpack.c.h.b16 %v3668
        %v4308 = vunpack.c.l.b16 %v3669
        %v4309 = vunpack.c.h.b16 %v3669
        %v4310 = vunpack.c.l.b16 %v3670
        %v4311 = vunpack.c.h.b16 %v3670
        %v4312 = vunpack.c.l.b16 %v3671
        %v4313 = vunpack.c.h.b16 %v3671
        %v4314 = vunpack.c.l.b16 %v3672
        %v4315 = vunpack.c.h.b16 %v3672
        %v4316 = vunpack.c.l.b16 %v3673
        %v4317 = vunpack.c.h.b16 %v3673
        %v4318 = vunpack.c.l.b16 %v3674
        %v4319 = vunpack.c.h.b16 %v3674
        %v4320 = vunpack.c.l.b16 %v3675
        %v4321 = vunpack.c.h.b16 %v3675
        %v4322 = vunpack.c.l.b16 %v3676
        %v4323 = vunpack.c.h.b16 %v3676
        %v4324 = vunpack.c.l.b16 %v3677
        %v4325 = vunpack.c.h.b16 %v3677
        %v4326 = vunpack.c.l.b16 %v3678
        %v4327 = vunpack.c.h.b16 %v3678
        %v4328 = vunpack.c.l.b16 %v3679
        %v4329 = vunpack.c.h.b16 %v3679
        %v4330 = vunpack.c.l.b16 %v3680
        %v4331 = vunpack.c.h.b16 %v3680
        %v4332 = vunpack.c.l.b16 %v3681
        %v4333 = vunpack.c.h.b16 %v3681
        %v4334 = vunpack.c.l.b16 %v3682
        %v4335 = vunpack.c.h.b16 %v3682
        %v4336 = vunpack.c.l.b16 %v3683
        %v4337 = vunpack.c.h.b16 %v3683
        %v4338 = vunpack.c.l.b16 %v3684
        %v4339 = vunpack.c.h.b16 %v3684
        %v4340 = vunpack.c.l.b16 %v3685
        %v4341 = vunpack.c.h.b16 %v3685
        %v4342 = vunpack.c.l.b16 %v3686
        %v4343 = vunpack.c.h.b16 %v3686
        %v4344 = vunpack.c.l.b16 %v3687
        %v4345 = vunpack.c.h.b16 %v3687
        %v4346 = vunpack.c.l.b16 %v3688
        %v4347 = vunpack.c.h.b16 %v3688
        %v4348 = vunpack.c.l.b16 %v3689
        %v4349 = vunpack.c.h.b16 %v3689
        %v4350 = vunpack.c.l.b16 %v3690
        %v4351 = vunpack.c.h.b16 %v3690
        %v4352 = vunpack.c.l.b16 %v3691
        %v4353 = vunpack.c.h.b16 %v3691
        %v4354 = vunpack.c.l.b16 %v3692
        %v4355 = vunpack.c.h.b16 %v3692
        %v4356 = vunpack.c.l.b16 %v3693
        %v4357 = vunpack.c.h.b16 %v3693
        %v4358 = vunpack.c.l.b16 %v3694
        %v4359 = vunpack.c.h.b16 %v3694
        %v4360 = vunpack.c.l.b16 %v3695
        %v4361 = vunpack.c.h.b16 %v3695
        %v4362 = vunpack.c.l.b16 %v3696
        %v4363 = vunpack.c.h.b16 %v3696
        %v4364 = vunpack.c.l.b16 %v3697
        %v4365 = vunpack.c.h.b16 %v3697
        %v4366 = vunpack.c.l.b16 %v3698
        %v4367 = vunpack.c.h.b16 %v3698
        %v4368 = vunpack.c.l.b16 %v3699
        %v4369 = vunpack.c.h.b16 %v3699
        %v4370 = vunpack.c.l.b16 %v3700
        %v4371 = vunpack.c.h.b16 %v3700
        %v4372 = vunpack.c.l.b16 %v3701
        %v4373 = vunpack.c.h.b16 %v3701
        %v4374 = vunpack.c.l.b16 %v3702
        %v4375 = vunpack.c.h.b16 %v3702
        %v4376 = vunpack.c.l.b16 %v3703
        %v4377 = vunpack.c.h.b16 %v3703
        %v4378 = vunpack.c.l.b16 %v3704
        %v4379 = vunpack.c.h.b16 %v3704
        %v4380 = vunpack.c.l.b16 %v3705
        %v4381 = vunpack.c.h.b16 %v3705
        %v4382 = vunpack.c.l.b16 %v3706
        %v4383 = vunpack.c.h.b16 %v3706
        %v4384 = vunpack.c.l.b16 %v3707
        %v4385 = vunpack.c.h.b16 %v3707
        %v4386 = vunpack.c.l.b16 %v3708
        %v4387 = vunpack.c.h.b16 %v3708
        %v4388 = vunpack.c.l.b16 %v3709
        %v4389 = vunpack.c.h.b16 %v3709
        %v4390 = vunpack.c.l.b16 %v3710
        %v4391 = vunpack.c.h.b16 %v3710
        %v4392 = vunpack.c.l.b16 %v3711
        %v4393 = vunpack.c.h.b16 %v3711
        %v4394 = vunpack.c.l.b16 %v3712
        %v4395 = vunpack.c.h.b16 %v3712
        %v4396 = vunpack.c.l.b16 %v3713
        %v4397 = vunpack.c.h.b16 %v3713
        %v4398 = vunpack.c.l.b16 %v3714
        %v4399 = vunpack.c.h.b16 %v3714
        %v4400 = vunpack.c.l.b16 %v3715
        %v4401 = vunpack.c.h.b16 %v3715
        %v4402 = vunpack.c.l.b16 %v3716
        %v4403 = vunpack.c.h.b16 %v3716
        %v4404 = vunpack.c.l.b16 %v3717
        %v4405 = vunpack.c.h.b16 %v3717
        %v4406 = vunpack.c.l.b16 %v3718
        %v4407 = vunpack.c.h.b16 %v3718
        %v4408 = vunpack.c.l.b16 %v3719
        %v4409 = vunpack.c.h.b16 %v3719
        %v4410 = vunpack.c.l.b16 %v3720
        %v4411 = vunpack.c.h.b16 %v3720
        %v4412 = vunpack.c.l.b16 %v3721
        %v4413 = vunpack.c.h.b16 %v3721
        %v4414 = vunpack.c.l.b16 %v3722
        %v4415 = vunpack.c.h.b16 %v3722
        %v4416 = vunpack.c.l.b16 %v3723
        %v4417 = vunpack.c.h.b16 %v3723
        %v4418 = vunpack.c.l.b16 %v3724
        %v4419 = vunpack.c.h.b16 %v3724
        %v4420 = vunpack.c.l.b16 %v3725
        %v4421 = vunpack.c.h.b16 %v3725
        %v4422 = vunpack.c.l.b16 %v3726
        %v4423 = vunpack.c.h.b16 %v3726
        %v4424 = vunpack.c.l.b16 %v3727
        %v4425 = vunpack.c.h.b16 %v3727
        %v4426 = vunpack.c.l.b16 %v3728
        %v4427 = vunpack.c.h.b16 %v3728
        %v4428 = vunpack.c.l.b16 %v3729
        %v4429 = vunpack.c.h.b16 %v3729
        %v4430 = vunpack.c.l.b16 %v3730
        %v4431 = vunpack.c.h.b16 %v3730
        %v4432 = vunpack.c.l.b16 %v3731
        %v4433 = vunpack.c.h.b16 %v3731
        %v4434 = vunpack.c.l.b16 %v3732
        %v4435 = vunpack.c.h.b16 %v3732
        %v4436 = vunpack.c.l.b16 %v3733
        %v4437 = vunpack.c.h.b16 %v3733
        %v4438 = vunpack.c.l.b16 %v3734
        %v4439 = vunpack.c.h.b16 %v3734
        %v4440 = vunpack.c.l.b16 %v3735
        %v4441 = vunpack.c.h.b16 %v3735
        %v4442 = vunpack.c.l.b16 %v3736
        %v4443 = vunpack.c.h.b16 %v3736
        %v4444 = vunpack.c.l.b16 %v3737
        %v4445 = vunpack.c.h.b16 %v3737
        %v4446 = vunpack.c.l.b16 %v3738
        %v4447 = vunpack.c.h.b16 %v3738
        %v4448 = vunpack.c.l.b16 %v3739
        %v4449 = vunpack.c.h.b16 %v3739
        %v4450 = vunpack.c.l.b16 %v3740
        %v4451 = vunpack.c.h.b16 %v3740
        %v4452 = vunpack.c.l.b16 %v3741
        %v4453 = vunpack.c.h.b16 %v3741
        %v4454 = vunpack.c.l.b16 %v3742
        %v4455 = vunpack.c.h.b16 %v3742
        %v4456 = vunpack.c.l.b16 %v3743
        %v4457 = vunpack.c.h.b16 %v3743
        %v4458 = vunpack.c.l.b16 %v3744
        %v4459 = vunpack.c.h.b16 %v3744
        %v4460 = vunpack.c.l.b16 %v3745
        %v4461 = vunpack.c.h.b16 %v3745
        %v4462 = vunpack.c.l.b16 %v3746
        %v4463 = vunpack.c.h.b16 %v3746
        %v4464 = vunpack.c.l.b16 %v3747
        %v4465 = vunpack.c.h.b16 %v3747
        %v4466 = vunpack.c.l.b16 %v3748
        %v4467 = vunpack.c.h.b16 %v3748
        %v4468 = vunpack.c.l.b16 %v3749
        %v4469 = vunpack.c.h.b16 %v3749
        %v4470 = vunpack.c.l.b16 %v3750
        %v4471 = vunpack.c.h.b16 %v3750
        %v4472 = vunpack.c.l.b16 %v3751
        %v4473 = vunpack.c.h.b16 %v3751
        %v4474 = vunpack.c.l.b16 %v3752
        %v4475 = vunpack.c.h.b16 %v3752
        %v4476 = vunpack.c.l.b16 %v3753
        %v4477 = vunpack.c.h.b16 %v3753
        %v4478 = vunpack.c.l.b16 %v3754
        %v4479 = vunpack.c.h.b16 %v3754
        %v4480 = vunpack.c.l.b16 %v3755
        %v4481 = vunpack.c.h.b16 %v3755
        %v4482 = vunpack.c.l.b16 %v3756
        %v4483 = vunpack.c.h.b16 %v3756
        %v4484 = vunpack.c.l.b16 %v3757
        %v4485 = vunpack.c.h.b16 %v3757
        %v4486 = vunpack.c.l.b16 %v3758
        %v4487 = vunpack.c.h.b16 %v3758
        %v4488 = vunpack.c.l.b16 %v3759
        %v4489 = vunpack.c.h.b16 %v3759
        %v4490 = vunpack.c.l.b16 %v3760
        %v4491 = vunpack.c.h.b16 %v3760
        %v4492 = vunpack.c.l.b16 %v3761
        %v4493 = vunpack.c.h.b16 %v3761
        %v4494 = vunpack.c.l.b16 %v3762
        %v4495 = vunpack.c.h.b16 %v3762
        %v4496 = vunpack.c.l.b16 %v3763
        %v4497 = vunpack.c.h.b16 %v3763
        %v4498 = vunpack.c.l.b16 %v3764
        %v4499 = vunpack.c.h.b16 %v3764
        %v4500 = vunpack.c.l.b16 %v3765
        %v4501 = vunpack.c.h.b16 %v3765
        %v4502 = vunpack.c.l.b16 %v3766
        %v4503 = vunpack.c.h.b16 %v3766
        %v4504 = vunpack.c.l.b16 %v3767
        %v4505 = vunpack.c.h.b16 %v3767
        %v4506 = vunpack.c.l.b16 %v3768
        %v4507 = vunpack.c.h.b16 %v3768
        %v4508 = vunpack.c.l.b16 %v3769
        %v4509 = vunpack.c.h.b16 %v3769
        %v4510 = vunpack.c.l.b16 %v3770
        %v4511 = vunpack.c.h.b16 %v3770
        %v4512 = vunpack.c.l.b16 %v3771
        %v4513 = vunpack.c.h.b16 %v3771
        %v4514 = vunpack.c.l.b16 %v3772
        %v4515 = vunpack.c.h.b16 %v3772
        %v4516 = vunpack.c.l.b16 %v3773
        %v4517 = vunpack.c.h.b16 %v3773
        %v4518 = vunpack.c.l.b16 %v3774
        %v4519 = vunpack.c.h.b16 %v3774
        %v4520 = vunpack.c.l.b16 %v3775
        %v4521 = vunpack.c.h.b16 %v3775
        %v4522 = vunpack.c.l.b16 %v3776
        %v4523 = vunpack.c.h.b16 %v3776
        %v4524 = vunpack.c.l.b16 %v3777
        %v4525 = vunpack.c.h.b16 %v3777
        %v4526 = vunpack.c.l.b16 %v3778
        %v4527 = vunpack.c.h.b16 %v3778
        %v4528 = vunpack.c.l.b16 %v3779
        %v4529 = vunpack.c.h.b16 %v3779
        %v4530 = vunpack.c.l.b16 %v3780
        %v4531 = vunpack.c.h.b16 %v3780
        %v4532 = vunpack.c.l.b16 %v3781
        %v4533 = vunpack.c.h.b16 %v3781
        %v4534 = vunpack.c.l.b16 %v3782
        %v4535 = vunpack.c.h.b16 %v3782
        %v4536 = vunpack.c.l.b16 %v3783
        %v4537 = vunpack.c.h.b16 %v3783
        %v4538 = vunpack.c.l.b16 %v3784
        %v4539 = vunpack.c.h.b16 %v3784
        %v4540 = vunpack.c.l.b16 %v3785
        %v4541 = vunpack.c.h.b16 %v3785
        %v4542 = vunpack.c.l.b16 %v3786
        %v4543 = vunpack.c.h.b16 %v3786
        %v4544 = vunpack.c.l.b16 %v3787
        %v4545 = vunpack.c.h.b16 %v3787
        %v4546 = vunpack.c.l.b16 %v3788
        %v4547 = vunpack.c.h.b16 %v3788
        %v4548 = vunpack.c.l.b16 %v3789
        %v4549 = vunpack.c.h.b16 %v3789
        %v4550 = vunpack.c.l.b16 %v3790
        %v4551 = vunpack.c.h.b16 %v3790
        %v4552 = vunpack.c.l.b16 %v3791
        %v4553 = vunpack.c.h.b16 %v3791
        %v4554 = vunpack.c.l.b16 %v3792
        %v4555 = vunpack.c.h.b16 %v3792
        %v4556 = vunpack.c.l.b16 %v3793
        %v4557 = vunpack.c.h.b16 %v3793
        %v4558 = vunpack.c.l.b16 %v3794
        %v4559 = vunpack.c.h.b16 %v3794
        %v4560 = vunpack.c.l.b16 %v3795
        %v4561 = vunpack.c.h.b16 %v3795
        %v4562 = vunpack.c.l.b16 %v3796
        %v4563 = vunpack.c.h.b16 %v3796
        %v4564 = vunpack.c.l.b16 %v3797
        %v4565 = vunpack.c.h.b16 %v3797
        %v4566 = vunpack.c.l.b16 %v3798
        %v4567 = vunpack.c.h.b16 %v3798
        %v4568 = vunpack.c.l.b16 %v3799
        %v4569 = vunpack.c.h.b16 %v3799
        %v4570 = vunpack.c.l.b16 %v3800
        %v4571 = vunpack.c.h.b16 %v3800
        %v4572 = vunpack.c.l.b16 %v3801
        %v4573 = vunpack.c.h.b16 %v3801
        %v4574 = vunpack.c.l.b16 %v3802
        %v4575 = vunpack.c.h.b16 %v3802
        %v4576 = vunpack.c.l.b16 %v3803
        %v4577 = vunpack.c.h.b16 %v3803
        %v4578 = vunpack.c.l.b16 %v3804
        %v4579 = vunpack.c.h.b16 %v3804
        %v4580 = vunpack.c.l.b16 %v3805
        %v4581 = vunpack.c.h.b16 %v3805
        %v4582 = vunpack.c.l.b16 %v3806
        %v4583 = vunpack.c.h.b16 %v3806
        %v4584 = vunpack.c.l.b16 %v3807
        %v4585 = vunpack.c.h.b16 %v3807
        %v4586 = vunpack.c.l.b16 %v3808
        %v4587 = vunpack.c.h.b16 %v3808
        %v4588 = vunpack.c.l.b16 %v3809
        %v4589 = vunpack.c.h.b16 %v3809
        %v4590 = vunpack.c.l.b16 %v3810
        %v4591 = vunpack.c.h.b16 %v3810
        %v4592 = vunpack.c.l.b16 %v3811
        %v4593 = vunpack.c.h.b16 %v3811
        %v4594 = vunpack.c.l.b16 %v3812
        %v4595 = vunpack.c.h.b16 %v3812
        %v4596 = vunpack.c.l.b16 %v3813
        %v4597 = vunpack.c.h.b16 %v3813
        %v4598 = vunpack.c.l.b16 %v3814
        %v4599 = vunpack.c.h.b16 %v3814
        %v4600 = vunpack.c.l.b16 %v3815
        %v4601 = vunpack.c.h.b16 %v3815
        %v4602 = vunpack.c.l.b16 %v3816
        %v4603 = vunpack.c.h.b16 %v3816
        %v4604 = vunpack.c.l.b16 %v3817
        %v4605 = vunpack.c.h.b16 %v3817
        %v4606 = vunpack.c.l.b16 %v3818
        %v4607 = vunpack.c.h.b16 %v3818
        %v4608 = vunpack.c.l.b16 %v3819
        %v4609 = vunpack.c.h.b16 %v3819
        %v4610 = vunpack.c.l.b16 %v3820
        %v4611 = vunpack.c.h.b16 %v3820
        %v4612 = vunpack.c.l.b16 %v3821
        %v4613 = vunpack.c.h.b16 %v3821
        %v4614 = vunpack.c.l.b16 %v3822
        %v4615 = vunpack.c.h.b16 %v3822
        %v4616 = vunpack.c.l.b16 %v3823
        %v4617 = vunpack.c.h.b16 %v3823
        %v4618 = vunpack.c.l.b16 %v3824
        %v4619 = vunpack.c.h.b16 %v3824
        %v4620 = vunpack.c.l.b16 %v3825
        %v4621 = vunpack.c.h.b16 %v3825
        %v4622 = vunpack.c.l.b16 %v3826
        %v4623 = vunpack.c.h.b16 %v3826
        %v4624 = vunpack.c.l.b16 %v3827
        %v4625 = vunpack.c.h.b16 %v3827
        %v4626 = vunpack.c.l.b16 %v3828
        %v4627 = vunpack.c.h.b16 %v3828
        %v4628 = vunpack.c.l.b16 %v3829
        %v4629 = vunpack.c.h.b16 %v3829
        %v4630 = vunpack.c.l.b16 %v3830
        %v4631 = vunpack.c.h.b16 %v3830
        %v4632 = vunpack.c.l.b16 %v3831
        %v4633 = vunpack.c.h.b16 %v3831
        %v4634 = vunpack.c.l.b16 %v3832
        %v4635 = vunpack.c.h.b16 %v3832
        %v4636 = vunpack.c.l.b16 %v3833
        %v4637 = vunpack.c.h.b16 %v3833
        %v4638 = vunpack.c.l.b16 %v3834
        %v4639 = vunpack.c.h.b16 %v3834
        %v4640 = vunpack.c.l.b16 %v3835
        %v4641 = vunpack.c.h.b16 %v3835
        %v4642 = vunpack.c.l.b16 %v3836
        %v4643 = vunpack.c.h.b16 %v3836
        %v4644 = vunpack.c.l.b16 %v3837
        %v4645 = vunpack.c.h.b16 %v3837
        %v4646 = vunpack.c.l.b16 %v3838
        %v4647 = vunpack.c.h.b16 %v3838
        %v4648 = vunpack.c.l.b16 %v3839
        %v4649 = vunpack.c.h.b16 %v3839
        %v4650 = vunpack.c.l.b16 %v3840
        %v4651 = vunpack.c.h.b16 %v3840
        %v4652 = vunpack.c.l.b16 %v3841
        %v4653 = vunpack.c.h.b16 %v3841
        %v4654 = vunpack.c.l.b16 %v3842
        %v4655 = vunpack.c.h.b16 %v3842
        %v4656 = vunpack.c.l.b16 %v3843
        %v4657 = vunpack.c.h.b16 %v3843
        %v4658 = vunpack.c.l.b16 %v3844
        %v4659 = vunpack.c.h.b16 %v3844
        %v4660 = vunpack.c.l.b16 %v3845
        %v4661 = vunpack.c.h.b16 %v3845
        %v4662 = vunpack.c.l.b16 %v3846
        %v4663 = vunpack.c.h.b16 %v3846
        %v4664 = vunpack.c.l.b16 %v3847
        %v4665 = vunpack.c.h.b16 %v3847
        %v4666 = vunpack.c.l.b16 %v3848
        %v4667 = vunpack.c.h.b16 %v3848
        %v4668 = vunpack.c.l.b16 %v3849
        %v4669 = vunpack.c.h.b16 %v3849
        %v4670 = vunpack.c.l.b16 %v3850
        %v4671 = vunpack.c.h.b16 %v3850
        %v4672 = vunpack.c.l.b16 %v3851
        %v4673 = vunpack.c.h.b16 %v3851
        %v4674 = vunpack.c.l.b16 %v3852
        %v4675 = vunpack.c.h.b16 %v3852
        %v4676 = vunpack.c.l.b16 %v3853
        %v4677 = vunpack.c.h.b16 %v3853
        %v4678 = vunpack.c.l.b16 %v3854
        %v4679 = vunpack.c.h.b16 %v3854
        %v4680 = vunpack.c.l.b16 %v3855
        %v4681 = vunpack.c.h.b16 %v3855
        %v4682 = vunpack.c.l.b16 %v3856
        %v4683 = vunpack.c.h.b16 %v3856
        %v4684 = vunpack.c.l.b16 %v3857
        %v4685 = vunpack.c.h.b16 %v3857
        %v4686 = vunpack.c.l.b16 %v3858
        %v4687 = vunpack.c.h.b16 %v3858
        %v4688 = vunpack.c.l.b16 %v3859
        %v4689 = vunpack.c.h.b16 %v3859
        %v4690 = vunpack.c.l.b16 %v3860
        %v4691 = vunpack.c.h.b16 %v3860
        %v4692 = vunpack.c.l.b16 %v3861
        %v4693 = vunpack.c.h.b16 %v3861
        %v4694 = vunpack.c.l.b16 %v3862
        %v4695 = vunpack.c.h.b16 %v3862
        %v4696 = vunpack.c.l.b16 %v3863
        %v4697 = vunpack.c.h.b16 %v3863
        %v4698 = vunpack.c.l.b16 %v3864
        %v4699 = vunpack.c.h.b16 %v3864
        %v4700 = vunpack.c.l.b16 %v3865
        %v4701 = vunpack.c.h.b16 %v3865
        %v4702 = vunpack.c.l.b16 %v3866
        %v4703 = vunpack.c.h.b16 %v3866
        %v4704 = vunpack.c.l.b16 %v3867
        %v4705 = vunpack.c.h.b16 %v3867
        %v4706 = vunpack.c.l.b16 %v3868
        %v4707 = vunpack.c.h.b16 %v3868
        %v4708 = vunpack.c.l.b16 %v3869
        %v4709 = vunpack.c.h.b16 %v3869
        %v4710 = vunpack.c.l.b16 %v3870
        %v4711 = vunpack.c.h.b16 %v3870
        %v4712 = vunpack.c.l.b16 %v3871
        %v4713 = vunpack.c.h.b16 %v3871
        %v4714 = vunpack.c.l.b16 %v3872
        %v4715 = vunpack.c.h.b16 %v3872
        %v4716 = vunpack.c.l.b16 %v3873
        %v4717 = vunpack.c.h.b16 %v3873
        %v4718 = vunpack.c.l.b16 %v3874
        %v4719 = vunpack.c.h.b16 %v3874
        %v4720 = vunpack.c.l.b16 %v3875
        %v4721 = vunpack.c.h.b16 %v3875
        %v4722 = vunpack.c.l.b16 %v3876
        %v4723 = vunpack.c.h.b16 %v3876
        %v4724 = vunpack.c.l.b16 %v3877
        %v4725 = vunpack.c.h.b16 %v3877
        %v4726 = vunpack.c.l.b16 %v3878
        %v4727 = vunpack.c.h.b16 %v3878
        %v4728 = vunpack.c.l.b16 %v3879
        %v4729 = vunpack.c.h.b16 %v3879
        %v4730 = vunpack.c.l.b16 %v3880
        %v4731 = vunpack.c.h.b16 %v3880
        %v4732 = vunpack.c.l.b16 %v3881
        %v4733 = vunpack.c.h.b16 %v3881
        %v4734 = vunpack.c.l.b16 %v3882
        %v4735 = vunpack.c.h.b16 %v3882
        %v4736 = vunpack.c.l.b16 %v3883
        %v4737 = vunpack.c.h.b16 %v3883
        %v4738 = vpack.c.b16 %v4242, %v4226
        %v4739 = vpack.c.b16 %v4243, %v4227
        %v4740 = vpack.c.b16 %v4244, %v4228
        %v4741 = vpack.c.b16 %v4245, %v4229
        %v4742 = vpack.c.b16 %v4246, %v4230
        %v4743 = vpack.c.b16 %v4247, %v4231
        %v4744 = vpack.c.b16 %v4248, %v4232
        %v4745 = vpack.c.b16 %v4249, %v4233
        %v4746 = vpack.c.b16 %v4250, %v4234
        %v4747 = vpack.c.b16 %v4251, %v4235
        %v4748 = vpack.c.b16 %v4252, %v4236
        %v4749 = vpack.c.b16 %v4253, %v4237
        %v4750 = vpack.c.b16 %v4254, %v4238
        %v4751 = vpack.c.b16 %v4255, %v4239
        %v4752 = vpack.c.b16 %v4256, %v4240
        %v4753 = vpack.c.b16 %v4257, %v4241
        %v4754 = vpack.c.b16 %v4274, %v4258
        %v4755 = vpack.c.b16 %v4275, %v4259
        %v4756 = vpack.c.b16 %v4276, %v4260
        %v4757 = vpack.c.b16 %v4277, %v4261
        %v4758 = vpack.c.b16 %v4278, %v4262
        %v4759 = vpack.c.b16 %v4279, %v4263
        %v4760 = vpack.c.b16 %v4280, %v4264
        %v4761 = vpack.c.b16 %v4281, %v4265
        %v4762 = vpack.c.b16 %v4282, %v4266
        %v4763 = vpack.c.b16 %v4283, %v4267
        %v4764 = vpack.c.b16 %v4284, %v4268
        %v4765 = vpack.c.b16 %v4285, %v4269
        %v4766 = vpack.c.b16 %v4286, %v4270
        %v4767 = vpack.c.b16 %v4287, %v4271
        %v4768 = vpack.c.b16 %v4288, %v4272
        %v4769 = vpack.c.b16 %v4289, %v4273
        %v4770 = vpack.c.b16 %v4306, %v4290
        %v4771 = vpack.c.b16 %v4307, %v4291
        %v4772 = vpack.c.b16 %v4308, %v4292
        %v4773 = vpack.c.b16 %v4309, %v4293
        %v4774 = vpack.c.b16 %v4310, %v4294
        %v4775 = vpack.c.b16 %v4311, %v4295
        %v4776 = vpack.c.b16 %v4312, %v4296
        %v4777 = vpack.c.b16 %v4313, %v4297
        %v4778 = vpack.c.b16 %v4314, %v4298
        %v4779 = vpack.c.b16 %v4315, %v4299
        %v4780 = vpack.c.b16 %v4316, %v4300
        %v4781 = vpack.c.b16 %v4317, %v4301
        %v4782 = vpack.c.b16 %v4318, %v4302
        %v4783 = vpack.c.b16 %v4319, %v4303
        %v4784 = vpack.c.b16 %v4320, %v4304
        %v4785 = vpack.c.b16 %v4321, %v4305
        %v4786 = vpack.c.b16 %v4338, %v4322
        %v4787 = vpack.c.b16 %v4339, %v4323
        %v4788 = vpack.c.b16 %v4340, %v4324
        %v4789 = vpack.c.b16 %v4341, %v4325
        %v4790 = vpack.c.b16 %v4342, %v4326
        %v4791 = vpack.c.b16 %v4343, %v4327
        %v4792 = vpack.c.b16 %v4344, %v4328
        %v4793 = vpack.c.b16 %v4345, %v4329
        %v4794 = vpack.c.b16 %v4346, %v4330
        %v4795 = vpack.c.b16 %v4347, %v4331
        %v4796 = vpack.c.b16 %v4348, %v4332
        %v4797 = vpack.c.b16 %v4349, %v4333
        %v4798 = vpack.c.b16 %v4350, %v4334
        %v4799 = vpack.c.b16 %v4351, %v4335
        %v4800 = vpack.c.b16 %v4352, %v4336
        %v4801 = vpack.c.b16 %v4353, %v4337
        %v4802 = vpack.c.b16 %v4370, %v4354
        %v4803 = vpack.c.b16 %v4371, %v4355
        %v4804 = vpack.c.b16 %v4372, %v4356
        %v4805 = vpack.c.b16 %v4373, %v4357
        %v4806 = vpack.c.b16 %v4374, %v4358
        %v4807 = vpack.c.b16 %v4375, %v4359
        %v4808 = vpack.c.b16 %v4376, %v4360
        %v4809 = vpack.c.b16 %v4377, %v4361
        %v4810 = vpack.c.b16 %v4378, %v4362
        %v4811 = vpack.c.b16 %v4379, %v4363
        %v4812 = vpack.c.b16 %v4380, %v4364
        %v4813 = vpack.c.b16 %v4381, %v4365
        %v4814 = vpack.c.b16 %v4382, %v4366
        %v4815 = vpack.c.b16 %v4383, %v4367
        %v4816 = vpack.c.b16 %v4384, %v4368
        %v4817 = vpack.c.b16 %v4385, %v4369
        %v4818 = vpack.c.b16 %v4402, %v4386
        %v4819 = vpack.c.b16 %v4403, %v4387
        %v4820 = vpack.c.b16 %v4404, %v4388
        %v4821 = vpack.c.b16 %v4405, %v4389
        %v4822 = vpack.c.b16 %v4406, %v4390
        %v4823 = vpack.c.b16 %v4407, %v4391
        %v4824 = vpack.c.b16 %v4408, %v4392
        %v4825 = vpack.c.b16 %v4409, %v4393
        %v4826 = vpack.c.b16 %v4410, %v4394
        %v4827 = vpack.c.b16 %v4411, %v4395
        %v4828 = vpack.c.b16 %v4412, %v4396
        %v4829 = vpack.c.b16 %v4413, %v4397
        %v4830 = vpack.c.b16 %v4414, %v4398
        %v4831 = vpack.c.b16 %v4415, %v4399
        %v4832 = vpack.c.b16 %v4416, %v4400
        %v4833 = vpack.c.b16 %v4417, %v4401
        %v4834 = vpack.c.b16 %v4434, %v4418
        %v4835 = vpack.c.b16 %v4435, %v4419
        %v4836 = vpack.c.b16 %v4436, %v4420
        %v4837 = vpack.c.b16 %v4437, %v4421
        %v4838 = vpack.c.b16 %v4438, %v4422
        %v4839 = vpack.c.b16 %v4439, %v4423
        %v4840 = vpack.c.b16 %v4440, %v4424
        %v4841 = vpack.c.b16 %v4441, %v4425
        %v4842 = vpack.c.b16 %v4442, %v4426
        %v4843 = vpack.c.b16 %v4443, %v4427
        %v4844 = vpack.c.b16 %v4444, %v4428
        %v4845 = vpack.c.b16 %v4445, %v4429
        %v4846 = vpack.c.b16 %v4446, %v4430
        %v4847 = vpack.c.b16 %v4447, %v4431
        %v4848 = vpack.c.b16 %v4448, %v4432
        %v4849 = vpack.c.b16 %v4449, %v4433
        %v4850 = vpack.c.b16 %v4466, %v4450
        %v4851 = vpack.c.b16 %v4467, %v4451
        %v4852 = vpack.c.b16 %v4468, %v4452
        %v4853 = vpack.c.b16 %v4469, %v4453
        %v4854 = vpack.c.b16 %v4470, %v4454
        %v4855 = vpack.c.b16 %v4471, %v4455
        %v4856 = vpack.c.b16 %v4472, %v4456
        %v4857 = vpack.c.b16 %v4473, %v4457
        %v4858 = vpack.c.b16 %v4474, %v4458
        %v4859 = vpack.c.b16 %v4475, %v4459
        %v4860 = vpack.c.b16 %v4476, %v4460
        %v4861 = vpack.c.b16 %v4477, %v4461
        %v4862 = vpack.c.b16 %v4478, %v4462
        %v4863 = vpack.c.b16 %v4479, %v4463
        %v4864 = vpack.c.b16 %v4480, %v4464
        %v4865 = vpack.c.b16 %v4481, %v4465
        %v4866 = vpack.c.b16 %v4498, %v4482
        %v4867 = vpack.c.b16 %v4499, %v4483
        %v4868 = vpack.c.b16 %v4500, %v4484
        %v4869 = vpack.c.b16 %v4501, %v4485
        %v4870 = vpack.c.b16 %v4502, %v4486
        %v4871 = vpack.c.b16 %v4503, %v4487
        %v4872 = vpack.c.b16 %v4504, %v4488
        %v4873 = vpack.c.b16 %v4505, %v4489
        %v4874 = vpack.c.b16 %v4506, %v4490
        %v4875 = vpack.c.b16 %v4507, %v4491
        %v4876 = vpack.c.b16 %v4508, %v4492
        %v4877 = vpack.c.b16 %v4509, %v4493
        %v4878 = vpack.c.b16 %v4510, %v4494
        %v4879 = vpack.c.b16 %v4511, %v4495
        %v4880 = vpack.c.b16 %v4512, %v4496
        %v4881 = vpack.c.b16 %v4513, %v4497
        %v4882 = vpack.c.b16 %v4530, %v4514
        %v4883 = vpack.c.b16 %v4531, %v4515
        %v4884 = vpack.c.b16 %v4532, %v4516
        %v4885 = vpack.c.b16 %v4533, %v4517
        %v4886 = vpack.c.b16 %v4534, %v4518
        %v4887 = vpack.c.b16 %v4535, %v4519
        %v4888 = vpack.c.b16 %v4536, %v4520
        %v4889 = vpack.c.b16 %v4537, %v4521
        %v4890 = vpack.c.b16 %v4538, %v4522
        %v4891 = vpack.c.b16 %v4539, %v4523
        %v4892 = vpack.c.b16 %v4540, %v4524
        %v4893 = vpack.c.b16 %v4541, %v4525
        %v4894 = vpack.c.b16 %v4542, %v4526
        %v4895 = vpack.c.b16 %v4543, %v4527
        %v4896 = vpack.c.b16 %v4544, %v4528
        %v4897 = vpack.c.b16 %v4545, %v4529
        %v4898 = vpack.c.b16 %v4562, %v4546
        %v4899 = vpack.c.b16 %v4563, %v4547
        %v4900 = vpack.c.b16 %v4564, %v4548
        %v4901 = vpack.c.b16 %v4565, %v4549
        %v4902 = vpack.c.b16 %v4566, %v4550
        %v4903 = vpack.c.b16 %v4567, %v4551
        %v4904 = vpack.c.b16 %v4568, %v4552
        %v4905 = vpack.c.b16 %v4569, %v4553
        %v4906 = vpack.c.b16 %v4570, %v4554
        %v4907 = vpack.c.b16 %v4571, %v4555
        %v4908 = vpack.c.b16 %v4572, %v4556
        %v4909 = vpack.c.b16 %v4573, %v4557
        %v4910 = vpack.c.b16 %v4574, %v4558
        %v4911 = vpack.c.b16 %v4575, %v4559
        %v4912 = vpack.c.b16 %v4576, %v4560
        %v4913 = vpack.c.b16 %v4577, %v4561
        %v4914 = vpack.c.b16 %v4594, %v4578
        %v4915 = vpack.c.b16 %v4595, %v4579
        %v4916 = vpack.c.b16 %v4596, %v4580
        %v4917 = vpack.c.b16 %v4597, %v4581
        %v4918 = vpack.c.b16 %v4598, %v4582
        %v4919 = vpack.c.b16 %v4599, %v4583
        %v4920 = vpack.c.b16 %v4600, %v4584
        %v4921 = vpack.c.b16 %v4601, %v4585
        %v4922 = vpack.c.b16 %v4602, %v4586
        %v4923 = vpack.c.b16 %v4603, %v4587
        %v4924 = vpack.c.b16 %v4604, %v4588
        %v4925 = vpack.c.b16 %v4605, %v4589
        %v4926 = vpack.c.b16 %v4606, %v4590
        %v4927 = vpack.c.b16 %v4607, %v4591
        %v4928 = vpack.c.b16 %v4608, %v4592
        %v4929 = vpack.c.b16 %v4609, %v4593
        %v4930 = vpack.c.b16 %v4626, %v4610
        %v4931 = vpack.c.b16 %v4627, %v4611
        %v4932 = vpack.c.b16 %v4628, %v4612
        %v4933 = vpack.c.b16 %v4629, %v4613
        %v4934 = vpack.c.b16 %v4630, %v4614
        %v4935 = vpack.c.b16 %v4631, %v4615
        %v4936 = vpack.c.b16 %v4632, %v4616
        %v4937 = vpack.c.b16 %v4633, %v4617
        %v4938 = vpack.c.b16 %v4634, %v4618
        %v4939 = vpack.c.b16 %v4635, %v4619
        %v4940 = vpack.c.b16 %v4636, %v4620
        %v4941 = vpack.c.b16 %v4637, %v4621
        %v4942 = vpack.c.b16 %v4638, %v4622
        %v4943 = vpack.c.b16 %v4639, %v4623
        %v4944 = vpack.c.b16 %v4640, %v4624
        %v4945 = vpack.c.b16 %v4641, %v4625
        %v4946 = vpack.c.b16 %v4658, %v4642
        %v4947 = vpack.c.b16 %v4659, %v4643
        %v4948 = vpack.c.b16 %v4660, %v4644
        %v4949 = vpack.c.b16 %v4661, %v4645
        %v4950 = vpack.c.b16 %v4662, %v4646
        %v4951 = vpack.c.b16 %v4663, %v4647
        %v4952 = vpack.c.b16 %v4664, %v4648
        %v4953 = vpack.c.b16 %v4665, %v4649
        %v4954 = vpack.c.b16 %v4666, %v4650
        %v4955 = vpack.c.b16 %v4667, %v4651
        %v4956 = vpack.c.b16 %v4668, %v4652
        %v4957 = vpack.c.b16 %v4669, %v4653
        %v4958 = vpack.c.b16 %v4670, %v4654
        %v4959 = vpack.c.b16 %v4671, %v4655
        %v4960 = vpack.c.b16 %v4672, %v4656
        %v4961 = vpack.c.b16 %v4673, %v4657
        %v4962 = vpack.c.b16 %v4690, %v4674
        %v4963 = vpack.c.b16 %v4691, %v4675
        %v4964 = vpack.c.b16 %v4692, %v4676
        %v4965 = vpack.c.b16 %v4693, %v4677
        %v4966 = vpack.c.b16 %v4694, %v4678
        %v4967 = vpack.c.b16 %v4695, %v4679
        %v4968 = vpack.c.b16 %v4696, %v4680
        %v4969 = vpack.c.b16 %v4697, %v4681
        %v4970 = vpack.c.b16 %v4698, %v4682
        %v4971 = vpack.c.b16 %v4699, %v4683
        %v4972 = vpack.c.b16 %v4700, %v4684
        %v4973 = vpack.c.b16 %v4701, %v4685
        %v4974 = vpack.c.b16 %v4702, %v4686
        %v4975 = vpack.c.b16 %v4703, %v4687
        %v4976 = vpack.c.b16 %v4704, %v4688
        %v4977 = vpack.c.b16 %v4705, %v4689
        %v4978 = vpack.c.b16 %v4722, %v4706
        %v4979 = vpack.c.b16 %v4723, %v4707
        %v4980 = vpack.c.b16 %v4724, %v4708
        %v4981 = vpack.c.b16 %v4725, %v4709
        %v4982 = vpack.c.b16 %v4726, %v4710
        %v4983 = vpack.c.b16 %v4727, %v4711
        %v4984 = vpack.c.b16 %v4728, %v4712
        %v4985 = vpack.c.b16 %v4729, %v4713
        %v4986 = vpack.c.b16 %v4730, %v4714
        %v4987 = vpack.c.b16 %v4731, %v4715
        %v4988 = vpack.c.b16 %v4732, %v4716
        %v4989 = vpack.c.b16 %v4733, %v4717
        %v4990 = vpack.c.b16 %v4734, %v4718
        %v4991 = vpack.c.b16 %v4735, %v4719
        %v4992 = vpack.c.b16 %v4736, %v4720
        %v4993 = vpack.c.b16 %v4737, %v4721
        %5250 = vmatprep.subr.bf16.mxu0 %v4851
        %5251 = vmatpush1.bf16.msra.mxu0 %v4850
        %5252 = vmatprep.subr.bf16.mxu0 %v4835
        %5253 = vmatpush1.bf16.msra.mxu0 %v4834
        %5254 = vmatprep.subr.bf16.mxu0 %v4819
        %5255 = vmatpush1.bf16.msra.mxu0 %v4818
        %5256 = vmatprep.subr.bf16.mxu0 %v4803
        %5257 = vmatpush1.bf16.msra.mxu0 %v4802
        %5258 = vmatprep.subr.bf16.mxu0 %v4787
        %5259 = vmatpush1.bf16.msra.mxu0 %v4786
        %5260 = vmatprep.subr.bf16.mxu0 %v4771
        %5261 = vmatpush1.bf16.msra.mxu0 %v4770
        %5262 = vmatprep.subr.bf16.mxu0 %v4755
        %5263 = vmatpush1.bf16.msra.mxu0 %v4754
        %5264 = vmatprep.subr.bf16.mxu0 %v4739
        %5265 = vmatpush1.bf16.msra.mxu0 %v4738
        %5266 = vmatprep.subr.bf16.mxu0 %v4979
        %5267 = vmatpush2.bf16.msra.mxu0 %v4978
        %5268 = vmatprep.subr.bf16.mxu0 %v4963
        %5269 = vmatpush2.bf16.msra.mxu0 %v4962
        %5270 = vmatprep.subr.bf16.mxu0 %v4947
        %5271 = vmatpush2.bf16.msra.mxu0 %v4946
        %5272 = vmatprep.subr.bf16.mxu0 %v4931
        %5273 = vmatpush2.bf16.msra.mxu0 %v4930
        %5274 = vmatprep.subr.bf16.mxu0 %v4915
        %5275 = vmatpush2.bf16.msra.mxu0 %v4914
        %5276 = vmatprep.subr.bf16.mxu0 %v4899
        %5277 = vmatpush2.bf16.msra.mxu0 %v4898
        %5278 = vmatprep.subr.bf16.mxu0 %v4883
        %5279 = vmatpush2.bf16.msra.mxu0 %v4882
        %5280 = vmatprep.subr.bf16.mxu0 %v4867
        %5281 = vmatpush2.bf16.msra.mxu0 %v4866
        %5282 = vmatprep.mubr.bf16.mxu0 %v3887
        %5283 = vmatmul.mubr.bf16.gmra.mxu0 %v3886
        %v5284 = vpop.f32.mrf.mxu0
        %v5285 = vadd.f32 %v3893, %v5284
        %v5286 = vpop.f32.mrf.mxu0
        %v5287 = vadd.f32 %v3897, %v5286
        %v5288 = vpop.f32.mrf.mxu0
        %v5289 = vadd.f32 %v3893, %v5288
        %v5290 = vpop.f32.mrf.mxu0
        %v5291 = vadd.f32 %v3897, %v5290
        %5292 = vdwg.mxu0
        %5293 = vmatprep.subr.bf16.mxu0 %v4853
        %5294 = vmatpush1.bf16.msra.mxu0 %v4852
        %5295 = vmatprep.subr.bf16.mxu0 %v4837
        %5296 = vmatpush1.bf16.msra.mxu0 %v4836
        %5297 = vmatprep.subr.bf16.mxu0 %v4821
        %5298 = vmatpush1.bf16.msra.mxu0 %v4820
        %5299 = vmatprep.subr.bf16.mxu0 %v4805
        %5300 = vmatpush1.bf16.msra.mxu0 %v4804
        %5301 = vmatprep.subr.bf16.mxu0 %v4789
        %5302 = vmatpush1.bf16.msra.mxu0 %v4788
        %5303 = vmatprep.subr.bf16.mxu0 %v4773
        %5304 = vmatpush1.bf16.msra.mxu0 %v4772
        %5305 = vmatprep.subr.bf16.mxu0 %v4757
        %5306 = vmatpush1.bf16.msra.mxu0 %v4756
        %5307 = vmatprep.subr.bf16.mxu0 %v4741
        %5308 = vmatpush1.bf16.msra.mxu0 %v4740
        %5309 = vmatprep.subr.bf16.mxu0 %v4981
        %5310 = vmatpush2.bf16.msra.mxu0 %v4980
        %5311 = vmatprep.subr.bf16.mxu0 %v4965
        %5312 = vmatpush2.bf16.msra.mxu0 %v4964
        %5313 = vmatprep.subr.bf16.mxu0 %v4949
        %5314 = vmatpush2.bf16.msra.mxu0 %v4948
        %5315 = vmatprep.subr.bf16.mxu0 %v4933
        %5316 = vmatpush2.bf16.msra.mxu0 %v4932
        %5317 = vmatprep.subr.bf16.mxu0 %v4917
        %5318 = vmatpush2.bf16.msra.mxu0 %v4916
        %5319 = vmatprep.subr.bf16.mxu0 %v4901
        %5320 = vmatpush2.bf16.msra.mxu0 %v4900
        %5321 = vmatprep.subr.bf16.mxu0 %v4885
        %5322 = vmatpush2.bf16.msra.mxu0 %v4884
        %5323 = vmatprep.subr.bf16.mxu0 %v4869
        %5324 = vmatpush2.bf16.msra.mxu0 %v4868
        %5325 = vmatprep.mubr.bf16.mxu0 %v3887
        %5326 = vmatmul.mubr.bf16.gmra.mxu0 %v3886
        %v5327 = vpop.f32.mrf.mxu0
        %v5328 = vadd.f32 %v3901, %v5327
        %v5329 = vpop.f32.mrf.mxu0
        %v5330 = vadd.f32 %v3905, %v5329
        %v5331 = vpop.f32.mrf.mxu0
        %v5332 = vadd.f32 %v3901, %v5331
        %v5333 = vpop.f32.mrf.mxu0
        %v5334 = vadd.f32 %v3905, %v5333
        %5335 = vdwg.mxu0
        %5336 = vmatprep.subr.bf16.mxu0 %v4855
        %5337 = vmatpush1.bf16.msra.mxu0 %v4854
        %5338 = vmatprep.subr.bf16.mxu0 %v4839
        %5339 = vmatpush1.bf16.msra.mxu0 %v4838
        %5340 = vmatprep.subr.bf16.mxu0 %v4823
        %5341 = vmatpush1.bf16.msra.mxu0 %v4822
        %5342 = vmatprep.subr.bf16.mxu0 %v4807
        %5343 = vmatpush1.bf16.msra.mxu0 %v4806
        %5344 = vmatprep.subr.bf16.mxu0 %v4791
        %5345 = vmatpush1.bf16.msra.mxu0 %v4790
        %5346 = vmatprep.subr.bf16.mxu0 %v4775
        %5347 = vmatpush1.bf16.msra.mxu0 %v4774
        %5348 = vmatprep.subr.bf16.mxu0 %v4759
        %5349 = vmatpush1.bf16.msra.mxu0 %v4758
        %5350 = vmatprep.subr.bf16.mxu0 %v4743
        %5351 = vmatpush1.bf16.msra.mxu0 %v4742
        %5352 = vmatprep.subr.bf16.mxu0 %v4983
        %5353 = vmatpush2.bf16.msra.mxu0 %v4982
        %5354 = vmatprep.subr.bf16.mxu0 %v4967
        %5355 = vmatpush2.bf16.msra.mxu0 %v4966
        %5356 = vmatprep.subr.bf16.mxu0 %v4951
        %5357 = vmatpush2.bf16.msra.mxu0 %v4950
        %5358 = vmatprep.subr.bf16.mxu0 %v4935
        %5359 = vmatpush2.bf16.msra.mxu0 %v4934
        %5360 = vmatprep.subr.bf16.mxu0 %v4919
        %5361 = vmatpush2.bf16.msra.mxu0 %v4918
        %5362 = vmatprep.subr.bf16.mxu0 %v4903
        %5363 = vmatpush2.bf16.msra.mxu0 %v4902
        %5364 = vmatprep.subr.bf16.mxu0 %v4887
        %5365 = vmatpush2.bf16.msra.mxu0 %v4886
        %5366 = vmatprep.subr.bf16.mxu0 %v4871
        %5367 = vmatpush2.bf16.msra.mxu0 %v4870
        %5368 = vmatprep.mubr.bf16.mxu0 %v3887
        %5369 = vmatmul.mubr.bf16.gmra.mxu0 %v3886
        %v5370 = vpop.f32.mrf.mxu0
        %v5371 = vadd.f32 %v3909, %v5370
        %v5372 = vpop.f32.mrf.mxu0
        %v5373 = vadd.f32 %v3913, %v5372
        %v5374 = vpop.f32.mrf.mxu0
        %v5375 = vadd.f32 %v3909, %v5374
        %v5376 = vpop.f32.mrf.mxu0
        %v5377 = vadd.f32 %v3913, %v5376
        %5378 = vdwg.mxu0
        %5379 = vmatprep.subr.bf16.mxu0 %v4857
        %5380 = vmatpush1.bf16.msra.mxu0 %v4856
        %5381 = vmatprep.subr.bf16.mxu0 %v4841
        %5382 = vmatpush1.bf16.msra.mxu0 %v4840
        %5383 = vmatprep.subr.bf16.mxu0 %v4825
        %5384 = vmatpush1.bf16.msra.mxu0 %v4824
        %5385 = vmatprep.subr.bf16.mxu0 %v4809
        %5386 = vmatpush1.bf16.msra.mxu0 %v4808
        %5387 = vmatprep.subr.bf16.mxu0 %v4793
        %5388 = vmatpush1.bf16.msra.mxu0 %v4792
        %5389 = vmatprep.subr.bf16.mxu0 %v4777
        %5390 = vmatpush1.bf16.msra.mxu0 %v4776
        %5391 = vmatprep.subr.bf16.mxu0 %v4761
        %5392 = vmatpush1.bf16.msra.mxu0 %v4760
        %5393 = vmatprep.subr.bf16.mxu0 %v4745
        %5394 = vmatpush1.bf16.msra.mxu0 %v4744
        %5395 = vmatprep.subr.bf16.mxu0 %v4985
        %5396 = vmatpush2.bf16.msra.mxu0 %v4984
        %5397 = vmatprep.subr.bf16.mxu0 %v4969
        %5398 = vmatpush2.bf16.msra.mxu0 %v4968
        %5399 = vmatprep.subr.bf16.mxu0 %v4953
        %5400 = vmatpush2.bf16.msra.mxu0 %v4952
        %5401 = vmatprep.subr.bf16.mxu0 %v4937
        %5402 = vmatpush2.bf16.msra.mxu0 %v4936
        %5403 = vmatprep.subr.bf16.mxu0 %v4921
        %5404 = vmatpush2.bf16.msra.mxu0 %v4920
        %5405 = vmatprep.subr.bf16.mxu0 %v4905
        %5406 = vmatpush2.bf16.msra.mxu0 %v4904
        %5407 = vmatprep.subr.bf16.mxu0 %v4889
        %5408 = vmatpush2.bf16.msra.mxu0 %v4888
        %5409 = vmatprep.subr.bf16.mxu0 %v4873
        %5410 = vmatpush2.bf16.msra.mxu0 %v4872
        %5411 = vmatprep.mubr.bf16.mxu0 %v3887
        %5412 = vmatmul.mubr.bf16.gmra.mxu0 %v3886
        %v5413 = vpop.f32.mrf.mxu0
        %v5414 = vadd.f32 %v3917, %v5413
        %v5415 = vpop.f32.mrf.mxu0
        %v5416 = vadd.f32 %v3921, %v5415
        %v5417 = vpop.f32.mrf.mxu0
        %v5418 = vadd.f32 %v3917, %v5417
        %v5419 = vpop.f32.mrf.mxu0
        %v5420 = vadd.f32 %v3921, %v5419
        %5421 = vdwg.mxu0
        %5422 = vmatprep.subr.bf16.mxu0 %v4859
        %5423 = vmatpush1.bf16.msra.mxu0 %v4858
        %5424 = vmatprep.subr.bf16.mxu0 %v4843
        %5425 = vmatpush1.bf16.msra.mxu0 %v4842
        %5426 = vmatprep.subr.bf16.mxu0 %v4827
        %5427 = vmatpush1.bf16.msra.mxu0 %v4826
        %5428 = vmatprep.subr.bf16.mxu0 %v4811
        %5429 = vmatpush1.bf16.msra.mxu0 %v4810
        %5430 = vmatprep.subr.bf16.mxu0 %v4795
        %5431 = vmatpush1.bf16.msra.mxu0 %v4794
        %5432 = vmatprep.subr.bf16.mxu0 %v4779
        %5433 = vmatpush1.bf16.msra.mxu0 %v4778
        %5434 = vmatprep.subr.bf16.mxu0 %v4763
        %5435 = vmatpush1.bf16.msra.mxu0 %v4762
        %5436 = vmatprep.subr.bf16.mxu0 %v4747
        %5437 = vmatpush1.bf16.msra.mxu0 %v4746
        %5438 = vmatprep.subr.bf16.mxu0 %v4987
        %5439 = vmatpush2.bf16.msra.mxu0 %v4986
        %5440 = vmatprep.subr.bf16.mxu0 %v4971
        %5441 = vmatpush2.bf16.msra.mxu0 %v4970
        %5442 = vmatprep.subr.bf16.mxu0 %v4955
        %5443 = vmatpush2.bf16.msra.mxu0 %v4954
        %5444 = vmatprep.subr.bf16.mxu0 %v4939
        %5445 = vmatpush2.bf16.msra.mxu0 %v4938
        %5446 = vmatprep.subr.bf16.mxu0 %v4923
        %5447 = vmatpush2.bf16.msra.mxu0 %v4922
        %5448 = vmatprep.subr.bf16.mxu0 %v4907
        %5449 = vmatpush2.bf16.msra.mxu0 %v4906
        %5450 = vmatprep.subr.bf16.mxu0 %v4891
        %5451 = vmatpush2.bf16.msra.mxu0 %v4890
        %5452 = vmatprep.subr.bf16.mxu0 %v4875
        %5453 = vmatpush2.bf16.msra.mxu0 %v4874
        %5454 = vmatprep.mubr.bf16.mxu0 %v3887
        %5455 = vmatmul.mubr.bf16.gmra.mxu0 %v3886
        %v5456 = vpop.f32.mrf.mxu0
        %v5457 = vadd.f32 %v3925, %v5456
        %v5458 = vpop.f32.mrf.mxu0
        %v5459 = vadd.f32 %v3929, %v5458
        %v5460 = vpop.f32.mrf.mxu0
        %v5461 = vadd.f32 %v3925, %v5460
        %v5462 = vpop.f32.mrf.mxu0
        %v5463 = vadd.f32 %v3929, %v5462
        %5464 = vdwg.mxu0
        %5465 = vmatprep.subr.bf16.mxu0 %v4861
        %5466 = vmatpush1.bf16.msra.mxu0 %v4860
        %5467 = vmatprep.subr.bf16.mxu0 %v4845
        %5468 = vmatpush1.bf16.msra.mxu0 %v4844
        %5469 = vmatprep.subr.bf16.mxu0 %v4829
        %5470 = vmatpush1.bf16.msra.mxu0 %v4828
        %5471 = vmatprep.subr.bf16.mxu0 %v4813
        %5472 = vmatpush1.bf16.msra.mxu0 %v4812
        %5473 = vmatprep.subr.bf16.mxu0 %v4797
        %5474 = vmatpush1.bf16.msra.mxu0 %v4796
        %5475 = vmatprep.subr.bf16.mxu0 %v4781
        %5476 = vmatpush1.bf16.msra.mxu0 %v4780
        %5477 = vmatprep.subr.bf16.mxu0 %v4765
        %5478 = vmatpush1.bf16.msra.mxu0 %v4764
        %5479 = vmatprep.subr.bf16.mxu0 %v4749
        %5480 = vmatpush1.bf16.msra.mxu0 %v4748
        %5481 = vmatprep.subr.bf16.mxu0 %v4989
        %5482 = vmatpush2.bf16.msra.mxu0 %v4988
        %5483 = vmatprep.subr.bf16.mxu0 %v4973
        %5484 = vmatpush2.bf16.msra.mxu0 %v4972
        %5485 = vmatprep.subr.bf16.mxu0 %v4957
        %5486 = vmatpush2.bf16.msra.mxu0 %v4956
        %5487 = vmatprep.subr.bf16.mxu0 %v4941
        %5488 = vmatpush2.bf16.msra.mxu0 %v4940
        %5489 = vmatprep.subr.bf16.mxu0 %v4925
        %5490 = vmatpush2.bf16.msra.mxu0 %v4924
        %5491 = vmatprep.subr.bf16.mxu0 %v4909
        %5492 = vmatpush2.bf16.msra.mxu0 %v4908
        %5493 = vmatprep.subr.bf16.mxu0 %v4893
        %5494 = vmatpush2.bf16.msra.mxu0 %v4892
        %5495 = vmatprep.subr.bf16.mxu0 %v4877
        %5496 = vmatpush2.bf16.msra.mxu0 %v4876
        %5497 = vmatprep.mubr.bf16.mxu0 %v3887
        %5498 = vmatmul.mubr.bf16.gmra.mxu0 %v3886
        %v5499 = vpop.f32.mrf.mxu0
        %v5500 = vadd.f32 %v3933, %v5499
        %v5501 = vpop.f32.mrf.mxu0
        %v5502 = vadd.f32 %v3937, %v5501
        %v5503 = vpop.f32.mrf.mxu0
        %v5504 = vadd.f32 %v3933, %v5503
        %v5505 = vpop.f32.mrf.mxu0
        %v5506 = vadd.f32 %v3937, %v5505
        %5507 = vdwg.mxu0
        %5508 = vmatprep.subr.bf16.mxu0 %v4863
        %5509 = vmatpush1.bf16.msra.mxu0 %v4862
        %5510 = vmatprep.subr.bf16.mxu0 %v4847
        %5511 = vmatpush1.bf16.msra.mxu0 %v4846
        %5512 = vmatprep.subr.bf16.mxu0 %v4831
        %5513 = vmatpush1.bf16.msra.mxu0 %v4830
        %5514 = vmatprep.subr.bf16.mxu0 %v4815
        %5515 = vmatpush1.bf16.msra.mxu0 %v4814
        %5516 = vmatprep.subr.bf16.mxu0 %v4799
        %5517 = vmatpush1.bf16.msra.mxu0 %v4798
        %5518 = vmatprep.subr.bf16.mxu0 %v4783
        %5519 = vmatpush1.bf16.msra.mxu0 %v4782
        %5520 = vmatprep.subr.bf16.mxu0 %v4767
        %5521 = vmatpush1.bf16.msra.mxu0 %v4766
        %5522 = vmatprep.subr.bf16.mxu0 %v4751
        %5523 = vmatpush1.bf16.msra.mxu0 %v4750
        %5524 = vmatprep.subr.bf16.mxu0 %v4991
        %5525 = vmatpush2.bf16.msra.mxu0 %v4990
        %5526 = vmatprep.subr.bf16.mxu0 %v4975
        %5527 = vmatpush2.bf16.msra.mxu0 %v4974
        %5528 = vmatprep.subr.bf16.mxu0 %v4959
        %5529 = vmatpush2.bf16.msra.mxu0 %v4958
        %5530 = vmatprep.subr.bf16.mxu0 %v4943
        %5531 = vmatpush2.bf16.msra.mxu0 %v4942
        %5532 = vmatprep.subr.bf16.mxu0 %v4927
        %5533 = vmatpush2.bf16.msra.mxu0 %v4926
        %5534 = vmatprep.subr.bf16.mxu0 %v4911
        %5535 = vmatpush2.bf16.msra.mxu0 %v4910
        %5536 = vmatprep.subr.bf16.mxu0 %v4895
        %5537 = vmatpush2.bf16.msra.mxu0 %v4894
        %5538 = vmatprep.subr.bf16.mxu0 %v4879
        %5539 = vmatpush2.bf16.msra.mxu0 %v4878
        %5540 = vmatprep.mubr.bf16.mxu0 %v3887
        %5541 = vmatmul.mubr.bf16.gmra.mxu0 %v3886
        %v5542 = vpop.f32.mrf.mxu0
        %v5543 = vadd.f32 %v3941, %v5542
        %v5544 = vpop.f32.mrf.mxu0
        %v5545 = vadd.f32 %v3945, %v5544
        %v5546 = vpop.f32.mrf.mxu0
        %v5547 = vadd.f32 %v3941, %v5546
        %v5548 = vpop.f32.mrf.mxu0
        %v5549 = vadd.f32 %v3945, %v5548
        %5550 = vdwg.mxu0
        %5551 = vmatprep.subr.bf16.mxu0 %v4865
        %5552 = vmatpush1.bf16.msra.mxu0 %v4864
        %5553 = vmatprep.subr.bf16.mxu0 %v4849
        %5554 = vmatpush1.bf16.msra.mxu0 %v4848
        %5555 = vmatprep.subr.bf16.mxu0 %v4833
        %5556 = vmatpush1.bf16.msra.mxu0 %v4832
        %5557 = vmatprep.subr.bf16.mxu0 %v4817
        %5558 = vmatpush1.bf16.msra.mxu0 %v4816
        %5559 = vmatprep.subr.bf16.mxu0 %v4801
        %5560 = vmatpush1.bf16.msra.mxu0 %v4800
        %5561 = vmatprep.subr.bf16.mxu0 %v4785
        %5562 = vmatpush1.bf16.msra.mxu0 %v4784
        %5563 = vmatprep.subr.bf16.mxu0 %v4769
        %5564 = vmatpush1.bf16.msra.mxu0 %v4768
        %5565 = vmatprep.subr.bf16.mxu0 %v4753
        %5566 = vmatpush1.bf16.msra.mxu0 %v4752
        %5567 = vmatprep.subr.bf16.mxu0 %v4993
        %5568 = vmatpush2.bf16.msra.mxu0 %v4992
        %5569 = vmatprep.subr.bf16.mxu0 %v4977
        %5570 = vmatpush2.bf16.msra.mxu0 %v4976
        %5571 = vmatprep.subr.bf16.mxu0 %v4961
        %5572 = vmatpush2.bf16.msra.mxu0 %v4960
        %5573 = vmatprep.subr.bf16.mxu0 %v4945
        %5574 = vmatpush2.bf16.msra.mxu0 %v4944
        %5575 = vmatprep.subr.bf16.mxu0 %v4929
        %5576 = vmatpush2.bf16.msra.mxu0 %v4928
        %5577 = vmatprep.subr.bf16.mxu0 %v4913
        %5578 = vmatpush2.bf16.msra.mxu0 %v4912
        %5579 = vmatprep.subr.bf16.mxu0 %v4897
        %5580 = vmatpush2.bf16.msra.mxu0 %v4896
        %5581 = vmatprep.subr.bf16.mxu0 %v4881
        %5582 = vmatpush2.bf16.msra.mxu0 %v4880
        %5583 = vmatprep.mubr.bf16.mxu0 %v3887
        %5584 = vmatmul.mubr.bf16.gmra.mxu0 %v3886
        %v5585 = vpop.f32.mrf.mxu0
        %v5586 = vadd.f32 %v3949, %v5585
        %v5587 = vpop.f32.mrf.mxu0
        %v5588 = vadd.f32 %v3953, %v5587
        %v5589 = vpop.f32.mrf.mxu0
        %v5590 = vadd.f32 %v3949, %v5589
        %v5591 = vpop.f32.mrf.mxu0
        %v5592 = vadd.f32 %v3953, %v5591
        %5593 = vdwg.mxu0
        %v5594 = vmax.f32 %v5285, 0.0
        %v5595 = vmax.f32 %v5287, 0.0
        %v5596 = vmax.f32 %v5328, 0.0
        %v5597 = vmax.f32 %v5330, 0.0
        %v5598 = vmax.f32 %v5371, 0.0
        %v5599 = vmax.f32 %v5373, 0.0
        %v5600 = vmax.f32 %v5414, 0.0
        %v5601 = vmax.f32 %v5416, 0.0
        %v5602 = vmax.f32 %v5457, 0.0
        %v5603 = vmax.f32 %v5459, 0.0
        %v5604 = vmax.f32 %v5500, 0.0
        %v5605 = vmax.f32 %v5502, 0.0
        %v5606 = vmax.f32 %v5543, 0.0
        %v5607 = vmax.f32 %v5545, 0.0
        %v5608 = vmax.f32 %v5586, 0.0
        %v5609 = vmax.f32 %v5588, 0.0
        %v5610 = vmax.f32 %v5289, 0.0
        %v5611 = vmax.f32 %v5291, 0.0
        %v5612 = vmax.f32 %v5332, 0.0
        %v5613 = vmax.f32 %v5334, 0.0
        %v5614 = vmax.f32 %v5375, 0.0
        %v5615 = vmax.f32 %v5377, 0.0
        %v5616 = vmax.f32 %v5418, 0.0
        %v5617 = vmax.f32 %v5420, 0.0
        %v5618 = vmax.f32 %v5461, 0.0
        %v5619 = vmax.f32 %v5463, 0.0
        %v5620 = vmax.f32 %v5504, 0.0
        %v5621 = vmax.f32 %v5506, 0.0
        %v5622 = vmax.f32 %v5547, 0.0
        %v5623 = vmax.f32 %v5549, 0.0
        %v5624 = vmax.f32 %v5590, 0.0
        %v5625 = vmax.f32 %v5592, 0.0
        %v5626 = vld [vmem:[%s466] sm:$0xff]
        %v5627 = vld [vmem:[%s466 + $0x8] sm:$0xff]
        %v5628 = vld [vmem:[%s466 + $0x10] sm:$0xff]
        %v5629 = vld [vmem:[%s466 + $0x18] sm:$0xff]
        %v5630 = vld [vmem:[%s466 + $0x20] sm:$0xff]
        %v5631 = vld [vmem:[%s466 + $0x28] sm:$0xff]
        %v5632 = vld [vmem:[%s466 + $0x30] sm:$0xff]
        %v5633 = vld [vmem:[%s466 + $0x38] sm:$0xff]
        %v5634 = vld [vmem:[%s466 + $0x40] sm:$0xff]
        %v5635 = vld [vmem:[%s466 + $0x48] sm:$0xff]
        %v5636 = vld [vmem:[%s466 + $0x50] sm:$0xff]
        %v5637 = vld [vmem:[%s466 + $0x58] sm:$0xff]
        %v5638 = vld [vmem:[%s466 + $0x60] sm:$0xff]
        %v5639 = vld [vmem:[%s466 + $0x68] sm:$0xff]
        %v5640 = vld [vmem:[%s466 + $0x70] sm:$0xff]
        %v5641 = vld [vmem:[%s466 + $0x78] sm:$0xff]
        %v5642 = vld [vmem:[%s466 + $0x80] sm:$0xff]
        %v5643 = vld [vmem:[%s466 + $0x88] sm:$0xff]
        %v5644 = vld [vmem:[%s466 + $0x90] sm:$0xff]
        %v5645 = vld [vmem:[%s466 + $0x98] sm:$0xff]
        %v5646 = vld [vmem:[%s466 + $0xa0] sm:$0xff]
        %v5647 = vld [vmem:[%s466 + $0xa8] sm:$0xff]
        %v5648 = vld [vmem:[%s466 + $0xb0] sm:$0xff]
        %v5649 = vld [vmem:[%s466 + $0xb8] sm:$0xff]
        %v5650 = vld [vmem:[%s466 + $0xc0] sm:$0xff]
        %v5651 = vld [vmem:[%s466 + $0xc8] sm:$0xff]
        %v5652 = vld [vmem:[%s466 + $0xd0] sm:$0xff]
        %v5653 = vld [vmem:[%s466 + $0xd8] sm:$0xff]
        %v5654 = vld [vmem:[%s466 + $0xe0] sm:$0xff]
        %v5655 = vld [vmem:[%s466 + $0xe8] sm:$0xff]
        %v5656 = vld [vmem:[%s466 + $0xf0] sm:$0xff]
        %v5657 = vld [vmem:[%s466 + $0xf8] sm:$0xff]
        %v5658 = vld [vmem:[%s466 + $0x100] sm:$0xff]
        %v5659 = vld [vmem:[%s466 + $0x108] sm:$0xff]
        %v5660 = vld [vmem:[%s466 + $0x110] sm:$0xff]
        %v5661 = vld [vmem:[%s466 + $0x118] sm:$0xff]
        %v5662 = vld [vmem:[%s466 + $0x120] sm:$0xff]
        %v5663 = vld [vmem:[%s466 + $0x128] sm:$0xff]
        %v5664 = vld [vmem:[%s466 + $0x130] sm:$0xff]
        %v5665 = vld [vmem:[%s466 + $0x138] sm:$0xff]
        %v5666 = vld [vmem:[%s466 + $0x140] sm:$0xff]
        %v5667 = vld [vmem:[%s466 + $0x148] sm:$0xff]
        %v5668 = vld [vmem:[%s466 + $0x150] sm:$0xff]
        %v5669 = vld [vmem:[%s466 + $0x158] sm:$0xff]
        %v5670 = vld [vmem:[%s466 + $0x160] sm:$0xff]
        %v5671 = vld [vmem:[%s466 + $0x168] sm:$0xff]
        %v5672 = vld [vmem:[%s466 + $0x170] sm:$0xff]
        %v5673 = vld [vmem:[%s466 + $0x178] sm:$0xff]
        %v5674 = vld [vmem:[%s466 + $0x180] sm:$0xff]
        %v5675 = vld [vmem:[%s466 + $0x188] sm:$0xff]
        %v5676 = vld [vmem:[%s466 + $0x190] sm:$0xff]
        %v5677 = vld [vmem:[%s466 + $0x198] sm:$0xff]
        %v5678 = vld [vmem:[%s466 + $0x1a0] sm:$0xff]
        %v5679 = vld [vmem:[%s466 + $0x1a8] sm:$0xff]
        %v5680 = vld [vmem:[%s466 + $0x1b0] sm:$0xff]
        %v5681 = vld [vmem:[%s466 + $0x1b8] sm:$0xff]
        %v5682 = vld [vmem:[%s466 + $0x1c0] sm:$0xff]
        %v5683 = vld [vmem:[%s466 + $0x1c8] sm:$0xff]
        %v5684 = vld [vmem:[%s466 + $0x1d0] sm:$0xff]
        %v5685 = vld [vmem:[%s466 + $0x1d8] sm:$0xff]
        %v5686 = vld [vmem:[%s466 + $0x1e0] sm:$0xff]
        %v5687 = vld [vmem:[%s466 + $0x1e8] sm:$0xff]
        %v5688 = vld [vmem:[%s466 + $0x1f0] sm:$0xff]
        %v5689 = vld [vmem:[%s466 + $0x1f8] sm:$0xff]
        %v5690 = vld [vmem:[%s466 + $0x200] sm:$0xff]
        %v5691 = vld [vmem:[%s466 + $0x208] sm:$0xff]
        %v5692 = vld [vmem:[%s466 + $0x210] sm:$0xff]
        %v5693 = vld [vmem:[%s466 + $0x218] sm:$0xff]
        %v5694 = vld [vmem:[%s466 + $0x220] sm:$0xff]
        %v5695 = vld [vmem:[%s466 + $0x228] sm:$0xff]
        %v5696 = vld [vmem:[%s466 + $0x230] sm:$0xff]
        %v5697 = vld [vmem:[%s466 + $0x238] sm:$0xff]
        %v5698 = vld [vmem:[%s466 + $0x240] sm:$0xff]
        %v5699 = vld [vmem:[%s466 + $0x248] sm:$0xff]
        %v5700 = vld [vmem:[%s466 + $0x250] sm:$0xff]
        %v5701 = vld [vmem:[%s466 + $0x258] sm:$0xff]
        %v5702 = vld [vmem:[%s466 + $0x260] sm:$0xff]
        %v5703 = vld [vmem:[%s466 + $0x268] sm:$0xff]
        %v5704 = vld [vmem:[%s466 + $0x270] sm:$0xff]
        %v5705 = vld [vmem:[%s466 + $0x278] sm:$0xff]
        %v5706 = vld [vmem:[%s466 + $0x280] sm:$0xff]
        %v5707 = vld [vmem:[%s466 + $0x288] sm:$0xff]
        %v5708 = vld [vmem:[%s466 + $0x290] sm:$0xff]
        %v5709 = vld [vmem:[%s466 + $0x298] sm:$0xff]
        %v5710 = vld [vmem:[%s466 + $0x2a0] sm:$0xff]
        %v5711 = vld [vmem:[%s466 + $0x2a8] sm:$0xff]
        %v5712 = vld [vmem:[%s466 + $0x2b0] sm:$0xff]
        %v5713 = vld [vmem:[%s466 + $0x2b8] sm:$0xff]
        %v5714 = vld [vmem:[%s466 + $0x2c0] sm:$0xff]
        %v5715 = vld [vmem:[%s466 + $0x2c8] sm:$0xff]
        %v5716 = vld [vmem:[%s466 + $0x2d0] sm:$0xff]
        %v5717 = vld [vmem:[%s466 + $0x2d8] sm:$0xff]
        %v5718 = vld [vmem:[%s466 + $0x2e0] sm:$0xff]
        %v5719 = vld [vmem:[%s466 + $0x2e8] sm:$0xff]
        %v5720 = vld [vmem:[%s466 + $0x2f0] sm:$0xff]
        %v5721 = vld [vmem:[%s466 + $0x2f8] sm:$0xff]
        %v5722 = vld [vmem:[%s466 + $0x300] sm:$0xff]
        %v5723 = vld [vmem:[%s466 + $0x308] sm:$0xff]
        %v5724 = vld [vmem:[%s466 + $0x310] sm:$0xff]
        %v5725 = vld [vmem:[%s466 + $0x318] sm:$0xff]
        %v5726 = vld [vmem:[%s466 + $0x320] sm:$0xff]
        %v5727 = vld [vmem:[%s466 + $0x328] sm:$0xff]
        %v5728 = vld [vmem:[%s466 + $0x330] sm:$0xff]
        %v5729 = vld [vmem:[%s466 + $0x338] sm:$0xff]
        %v5730 = vld [vmem:[%s466 + $0x340] sm:$0xff]
        %v5731 = vld [vmem:[%s466 + $0x348] sm:$0xff]
        %v5732 = vld [vmem:[%s466 + $0x350] sm:$0xff]
        %v5733 = vld [vmem:[%s466 + $0x358] sm:$0xff]
        %v5734 = vld [vmem:[%s466 + $0x360] sm:$0xff]
        %v5735 = vld [vmem:[%s466 + $0x368] sm:$0xff]
        %v5736 = vld [vmem:[%s466 + $0x370] sm:$0xff]
        %v5737 = vld [vmem:[%s466 + $0x378] sm:$0xff]
        %v5738 = vld [vmem:[%s466 + $0x380] sm:$0xff]
        %v5739 = vld [vmem:[%s466 + $0x388] sm:$0xff]
        %v5740 = vld [vmem:[%s466 + $0x390] sm:$0xff]
        %v5741 = vld [vmem:[%s466 + $0x398] sm:$0xff]
        %v5742 = vld [vmem:[%s466 + $0x3a0] sm:$0xff]
        %v5743 = vld [vmem:[%s466 + $0x3a8] sm:$0xff]
        %v5744 = vld [vmem:[%s466 + $0x3b0] sm:$0xff]
        %v5745 = vld [vmem:[%s466 + $0x3b8] sm:$0xff]
        %v5746 = vld [vmem:[%s466 + $0x3c0] sm:$0xff]
        %v5747 = vld [vmem:[%s466 + $0x3c8] sm:$0xff]
        %v5748 = vld [vmem:[%s466 + $0x3d0] sm:$0xff]
        %v5749 = vld [vmem:[%s466 + $0x3d8] sm:$0xff]
        %v5750 = vld [vmem:[%s466 + $0x3e0] sm:$0xff]
        %v5751 = vld [vmem:[%s466 + $0x3e8] sm:$0xff]
        %v5752 = vld [vmem:[%s466 + $0x3f0] sm:$0xff]
        %v5753 = vld [vmem:[%s466 + $0x3f8] sm:$0xff]
        %v5754 = vld [vmem:[%s466 + $0x400] sm:$0xff]
        %v5755 = vld [vmem:[%s466 + $0x408] sm:$0xff]
        %v5756 = vld [vmem:[%s466 + $0x410] sm:$0xff]
        %v5757 = vld [vmem:[%s466 + $0x418] sm:$0xff]
        %v5758 = vld [vmem:[%s466 + $0x420] sm:$0xff]
        %v5759 = vld [vmem:[%s466 + $0x428] sm:$0xff]
        %v5760 = vld [vmem:[%s466 + $0x430] sm:$0xff]
        %v5761 = vld [vmem:[%s466 + $0x438] sm:$0xff]
        %v5762 = vld [vmem:[%s466 + $0x440] sm:$0xff]
        %v5763 = vld [vmem:[%s466 + $0x448] sm:$0xff]
        %v5764 = vld [vmem:[%s466 + $0x450] sm:$0xff]
        %v5765 = vld [vmem:[%s466 + $0x458] sm:$0xff]
        %v5766 = vld [vmem:[%s466 + $0x460] sm:$0xff]
        %v5767 = vld [vmem:[%s466 + $0x468] sm:$0xff]
        %v5768 = vld [vmem:[%s466 + $0x470] sm:$0xff]
        %v5769 = vld [vmem:[%s466 + $0x478] sm:$0xff]
        %v5770 = vld [vmem:[%s466 + $0x480] sm:$0xff]
        %v5771 = vld [vmem:[%s466 + $0x488] sm:$0xff]
        %v5772 = vld [vmem:[%s466 + $0x490] sm:$0xff]
        %v5773 = vld [vmem:[%s466 + $0x498] sm:$0xff]
        %v5774 = vld [vmem:[%s466 + $0x4a0] sm:$0xff]
        %v5775 = vld [vmem:[%s466 + $0x4a8] sm:$0xff]
        %v5776 = vld [vmem:[%s466 + $0x4b0] sm:$0xff]
        %v5777 = vld [vmem:[%s466 + $0x4b8] sm:$0xff]
        %v5778 = vld [vmem:[%s466 + $0x4c0] sm:$0xff]
        %v5779 = vld [vmem:[%s466 + $0x4c8] sm:$0xff]
        %v5780 = vld [vmem:[%s466 + $0x4d0] sm:$0xff]
        %v5781 = vld [vmem:[%s466 + $0x4d8] sm:$0xff]
        %v5782 = vld [vmem:[%s466 + $0x4e0] sm:$0xff]
        %v5783 = vld [vmem:[%s466 + $0x4e8] sm:$0xff]
        %v5784 = vld [vmem:[%s466 + $0x4f0] sm:$0xff]
        %v5785 = vld [vmem:[%s466 + $0x4f8] sm:$0xff]
        %v5786 = vld [vmem:[%s466 + $0x500] sm:$0xff]
        %v5787 = vld [vmem:[%s466 + $0x508] sm:$0xff]
        %v5788 = vld [vmem:[%s466 + $0x510] sm:$0xff]
        %v5789 = vld [vmem:[%s466 + $0x518] sm:$0xff]
        %v5790 = vld [vmem:[%s466 + $0x520] sm:$0xff]
        %v5791 = vld [vmem:[%s466 + $0x528] sm:$0xff]
        %v5792 = vld [vmem:[%s466 + $0x530] sm:$0xff]
        %v5793 = vld [vmem:[%s466 + $0x538] sm:$0xff]
        %v5794 = vld [vmem:[%s466 + $0x540] sm:$0xff]
        %v5795 = vld [vmem:[%s466 + $0x548] sm:$0xff]
        %v5796 = vld [vmem:[%s466 + $0x550] sm:$0xff]
        %v5797 = vld [vmem:[%s466 + $0x558] sm:$0xff]
        %v5798 = vld [vmem:[%s466 + $0x560] sm:$0xff]
        %v5799 = vld [vmem:[%s466 + $0x568] sm:$0xff]
        %v5800 = vld [vmem:[%s466 + $0x570] sm:$0xff]
        %v5801 = vld [vmem:[%s466 + $0x578] sm:$0xff]
        %v5802 = vld [vmem:[%s466 + $0x580] sm:$0xff]
        %v5803 = vld [vmem:[%s466 + $0x588] sm:$0xff]
        %v5804 = vld [vmem:[%s466 + $0x590] sm:$0xff]
        %v5805 = vld [vmem:[%s466 + $0x598] sm:$0xff]
        %v5806 = vld [vmem:[%s466 + $0x5a0] sm:$0xff]
        %v5807 = vld [vmem:[%s466 + $0x5a8] sm:$0xff]
        %v5808 = vld [vmem:[%s466 + $0x5b0] sm:$0xff]
        %v5809 = vld [vmem:[%s466 + $0x5b8] sm:$0xff]
        %v5810 = vld [vmem:[%s466 + $0x5c0] sm:$0xff]
        %v5811 = vld [vmem:[%s466 + $0x5c8] sm:$0xff]
        %v5812 = vld [vmem:[%s466 + $0x5d0] sm:$0xff]
        %v5813 = vld [vmem:[%s466 + $0x5d8] sm:$0xff]
        %v5814 = vld [vmem:[%s466 + $0x5e0] sm:$0xff]
        %v5815 = vld [vmem:[%s466 + $0x5e8] sm:$0xff]
        %v5816 = vld [vmem:[%s466 + $0x5f0] sm:$0xff]
        %v5817 = vld [vmem:[%s466 + $0x5f8] sm:$0xff]
        %v5818 = vld [vmem:[%s466 + $0x600] sm:$0xff]
        %v5819 = vld [vmem:[%s466 + $0x608] sm:$0xff]
        %v5820 = vld [vmem:[%s466 + $0x610] sm:$0xff]
        %v5821 = vld [vmem:[%s466 + $0x618] sm:$0xff]
        %v5822 = vld [vmem:[%s466 + $0x620] sm:$0xff]
        %v5823 = vld [vmem:[%s466 + $0x628] sm:$0xff]
        %v5824 = vld [vmem:[%s466 + $0x630] sm:$0xff]
        %v5825 = vld [vmem:[%s466 + $0x638] sm:$0xff]
        %v5826 = vld [vmem:[%s466 + $0x640] sm:$0xff]
        %v5827 = vld [vmem:[%s466 + $0x648] sm:$0xff]
        %v5828 = vld [vmem:[%s466 + $0x650] sm:$0xff]
        %v5829 = vld [vmem:[%s466 + $0x658] sm:$0xff]
        %v5830 = vld [vmem:[%s466 + $0x660] sm:$0xff]
        %v5831 = vld [vmem:[%s466 + $0x668] sm:$0xff]
        %v5832 = vld [vmem:[%s466 + $0x670] sm:$0xff]
        %v5833 = vld [vmem:[%s466 + $0x678] sm:$0xff]
        %v5834 = vld [vmem:[%s466 + $0x680] sm:$0xff]
        %v5835 = vld [vmem:[%s466 + $0x688] sm:$0xff]
        %v5836 = vld [vmem:[%s466 + $0x690] sm:$0xff]
        %v5837 = vld [vmem:[%s466 + $0x698] sm:$0xff]
        %v5838 = vld [vmem:[%s466 + $0x6a0] sm:$0xff]
        %v5839 = vld [vmem:[%s466 + $0x6a8] sm:$0xff]
        %v5840 = vld [vmem:[%s466 + $0x6b0] sm:$0xff]
        %v5841 = vld [vmem:[%s466 + $0x6b8] sm:$0xff]
        %v5842 = vld [vmem:[%s466 + $0x6c0] sm:$0xff]
        %v5843 = vld [vmem:[%s466 + $0x6c8] sm:$0xff]
        %v5844 = vld [vmem:[%s466 + $0x6d0] sm:$0xff]
        %v5845 = vld [vmem:[%s466 + $0x6d8] sm:$0xff]
        %v5846 = vld [vmem:[%s466 + $0x6e0] sm:$0xff]
        %v5847 = vld [vmem:[%s466 + $0x6e8] sm:$0xff]
        %v5848 = vld [vmem:[%s466 + $0x6f0] sm:$0xff]
        %v5849 = vld [vmem:[%s466 + $0x6f8] sm:$0xff]
        %v5850 = vld [vmem:[%s466 + $0x700] sm:$0xff]
        %v5851 = vld [vmem:[%s466 + $0x708] sm:$0xff]
        %v5852 = vld [vmem:[%s466 + $0x710] sm:$0xff]
        %v5853 = vld [vmem:[%s466 + $0x718] sm:$0xff]
        %v5854 = vld [vmem:[%s466 + $0x720] sm:$0xff]
        %v5855 = vld [vmem:[%s466 + $0x728] sm:$0xff]
        %v5856 = vld [vmem:[%s466 + $0x730] sm:$0xff]
        %v5857 = vld [vmem:[%s466 + $0x738] sm:$0xff]
        %v5858 = vld [vmem:[%s466 + $0x740] sm:$0xff]
        %v5859 = vld [vmem:[%s466 + $0x748] sm:$0xff]
        %v5860 = vld [vmem:[%s466 + $0x750] sm:$0xff]
        %v5861 = vld [vmem:[%s466 + $0x758] sm:$0xff]
        %v5862 = vld [vmem:[%s466 + $0x760] sm:$0xff]
        %v5863 = vld [vmem:[%s466 + $0x768] sm:$0xff]
        %v5864 = vld [vmem:[%s466 + $0x770] sm:$0xff]
        %v5865 = vld [vmem:[%s466 + $0x778] sm:$0xff]
        %v5866 = vld [vmem:[%s466 + $0x780] sm:$0xff]
        %v5867 = vld [vmem:[%s466 + $0x788] sm:$0xff]
        %v5868 = vld [vmem:[%s466 + $0x790] sm:$0xff]
        %v5869 = vld [vmem:[%s466 + $0x798] sm:$0xff]
        %v5870 = vld [vmem:[%s466 + $0x7a0] sm:$0xff]
        %v5871 = vld [vmem:[%s466 + $0x7a8] sm:$0xff]
        %v5872 = vld [vmem:[%s466 + $0x7b0] sm:$0xff]
        %v5873 = vld [vmem:[%s466 + $0x7b8] sm:$0xff]
        %v5874 = vld [vmem:[%s466 + $0x7c0] sm:$0xff]
        %v5875 = vld [vmem:[%s466 + $0x7c8] sm:$0xff]
        %v5876 = vld [vmem:[%s466 + $0x7d0] sm:$0xff]
        %v5877 = vld [vmem:[%s466 + $0x7d8] sm:$0xff]
        %v5878 = vld [vmem:[%s466 + $0x7e0] sm:$0xff]
        %v5879 = vld [vmem:[%s466 + $0x7e8] sm:$0xff]
        %v5880 = vld [vmem:[%s466 + $0x7f0] sm:$0xff]
        %v5881 = vld [vmem:[%s466 + $0x7f8] sm:$0xff]
        %v5882 = vld [vmem:[%s475 + $0x18] sm:$0x3]
        %v5883 = vpack.c.bf16 %v5610, %v5594
        %v5884 = vpack.c.bf16 %v5611, %v5595
        %v5885 = vpack.c.bf16 %v5612, %v5596
        %v5886 = vpack.c.bf16 %v5613, %v5597
        %v5887 = vpack.c.bf16 %v5614, %v5598
        %v5888 = vpack.c.bf16 %v5615, %v5599
        %v5889 = vpack.c.bf16 %v5616, %v5600
        %v5890 = vpack.c.bf16 %v5617, %v5601
        %v5891 = vpack.c.bf16 %v5618, %v5602
        %v5892 = vpack.c.bf16 %v5619, %v5603
        %v5893 = vpack.c.bf16 %v5620, %v5604
        %v5894 = vpack.c.bf16 %v5621, %v5605
        %v5895 = vpack.c.bf16 %v5622, %v5606
        %v5896 = vpack.c.bf16 %v5623, %v5607
        %v5897 = vpack.c.bf16 %v5624, %v5608
        %v5898 = vpack.c.bf16 %v5625, %v5609
        %v5900 = vlaneseq
        %v5901 = vshrl.u32 %v5900, 7
        %v5902 = vsub.s32 0, %v5901
        %v5903 = vrot.slane %v5882, %v5902
        %v5904 = vlaneseq
        %v5905 = vshrl.u32 %v5904, 7
        %v5906 = vsub.s32 1, %v5905
        %v5907 = vrot.slane %v5882, %v5906
        %v6166 = vunpack.c.l.b16 %v5626
        %v6167 = vunpack.c.h.b16 %v5626
        %v6168 = vunpack.c.l.b16 %v5627
        %v6169 = vunpack.c.h.b16 %v5627
        %v6170 = vunpack.c.l.b16 %v5628
        %v6171 = vunpack.c.h.b16 %v5628
        %v6172 = vunpack.c.l.b16 %v5629
        %v6173 = vunpack.c.h.b16 %v5629
        %v6174 = vunpack.c.l.b16 %v5630
        %v6175 = vunpack.c.h.b16 %v5630
        %v6176 = vunpack.c.l.b16 %v5631
        %v6177 = vunpack.c.h.b16 %v5631
        %v6178 = vunpack.c.l.b16 %v5632
        %v6179 = vunpack.c.h.b16 %v5632
        %v6180 = vunpack.c.l.b16 %v5633
        %v6181 = vunpack.c.h.b16 %v5633
        %v6182 = vunpack.c.l.b16 %v5634
        %v6183 = vunpack.c.h.b16 %v5634
        %v6184 = vunpack.c.l.b16 %v5635
        %v6185 = vunpack.c.h.b16 %v5635
        %v6186 = vunpack.c.l.b16 %v5636
        %v6187 = vunpack.c.h.b16 %v5636
        %v6188 = vunpack.c.l.b16 %v5637
        %v6189 = vunpack.c.h.b16 %v5637
        %v6190 = vunpack.c.l.b16 %v5638
        %v6191 = vunpack.c.h.b16 %v5638
        %v6192 = vunpack.c.l.b16 %v5639
        %v6193 = vunpack.c.h.b16 %v5639
        %v6194 = vunpack.c.l.b16 %v5640
        %v6195 = vunpack.c.h.b16 %v5640
        %v6196 = vunpack.c.l.b16 %v5641
        %v6197 = vunpack.c.h.b16 %v5641
        %v6198 = vunpack.c.l.b16 %v5642
        %v6199 = vunpack.c.h.b16 %v5642
        %v6200 = vunpack.c.l.b16 %v5643
        %v6201 = vunpack.c.h.b16 %v5643
        %v6202 = vunpack.c.l.b16 %v5644
        %v6203 = vunpack.c.h.b16 %v5644
        %v6204 = vunpack.c.l.b16 %v5645
        %v6205 = vunpack.c.h.b16 %v5645
        %v6206 = vunpack.c.l.b16 %v5646
        %v6207 = vunpack.c.h.b16 %v5646
        %v6208 = vunpack.c.l.b16 %v5647
        %v6209 = vunpack.c.h.b16 %v5647
        %v6210 = vunpack.c.l.b16 %v5648
        %v6211 = vunpack.c.h.b16 %v5648
        %v6212 = vunpack.c.l.b16 %v5649
        %v6213 = vunpack.c.h.b16 %v5649
        %v6214 = vunpack.c.l.b16 %v5650
        %v6215 = vunpack.c.h.b16 %v5650
        %v6216 = vunpack.c.l.b16 %v5651
        %v6217 = vunpack.c.h.b16 %v5651
        %v6218 = vunpack.c.l.b16 %v5652
        %v6219 = vunpack.c.h.b16 %v5652
        %v6220 = vunpack.c.l.b16 %v5653
        %v6221 = vunpack.c.h.b16 %v5653
        %v6222 = vunpack.c.l.b16 %v5654
        %v6223 = vunpack.c.h.b16 %v5654
        %v6224 = vunpack.c.l.b16 %v5655
        %v6225 = vunpack.c.h.b16 %v5655
        %v6226 = vunpack.c.l.b16 %v5656
        %v6227 = vunpack.c.h.b16 %v5656
        %v6228 = vunpack.c.l.b16 %v5657
        %v6229 = vunpack.c.h.b16 %v5657
        %v6230 = vunpack.c.l.b16 %v5658
        %v6231 = vunpack.c.h.b16 %v5658
        %v6232 = vunpack.c.l.b16 %v5659
        %v6233 = vunpack.c.h.b16 %v5659
        %v6234 = vunpack.c.l.b16 %v5660
        %v6235 = vunpack.c.h.b16 %v5660
        %v6236 = vunpack.c.l.b16 %v5661
        %v6237 = vunpack.c.h.b16 %v5661
        %v6238 = vunpack.c.l.b16 %v5662
        %v6239 = vunpack.c.h.b16 %v5662
        %v6240 = vunpack.c.l.b16 %v5663
        %v6241 = vunpack.c.h.b16 %v5663
        %v6242 = vunpack.c.l.b16 %v5664
        %v6243 = vunpack.c.h.b16 %v5664
        %v6244 = vunpack.c.l.b16 %v5665
        %v6245 = vunpack.c.h.b16 %v5665
        %v6246 = vunpack.c.l.b16 %v5666
        %v6247 = vunpack.c.h.b16 %v5666
        %v6248 = vunpack.c.l.b16 %v5667
        %v6249 = vunpack.c.h.b16 %v5667
        %v6250 = vunpack.c.l.b16 %v5668
        %v6251 = vunpack.c.h.b16 %v5668
        %v6252 = vunpack.c.l.b16 %v5669
        %v6253 = vunpack.c.h.b16 %v5669
        %v6254 = vunpack.c.l.b16 %v5670
        %v6255 = vunpack.c.h.b16 %v5670
        %v6256 = vunpack.c.l.b16 %v5671
        %v6257 = vunpack.c.h.b16 %v5671
        %v6258 = vunpack.c.l.b16 %v5672
        %v6259 = vunpack.c.h.b16 %v5672
        %v6260 = vunpack.c.l.b16 %v5673
        %v6261 = vunpack.c.h.b16 %v5673
        %v6262 = vunpack.c.l.b16 %v5674
        %v6263 = vunpack.c.h.b16 %v5674
        %v6264 = vunpack.c.l.b16 %v5675
        %v6265 = vunpack.c.h.b16 %v5675
        %v6266 = vunpack.c.l.b16 %v5676
        %v6267 = vunpack.c.h.b16 %v5676
        %v6268 = vunpack.c.l.b16 %v5677
        %v6269 = vunpack.c.h.b16 %v5677
        %v6270 = vunpack.c.l.b16 %v5678
        %v6271 = vunpack.c.h.b16 %v5678
        %v6272 = vunpack.c.l.b16 %v5679
        %v6273 = vunpack.c.h.b16 %v5679
        %v6274 = vunpack.c.l.b16 %v5680
        %v6275 = vunpack.c.h.b16 %v5680
        %v6276 = vunpack.c.l.b16 %v5681
        %v6277 = vunpack.c.h.b16 %v5681
        %v6278 = vunpack.c.l.b16 %v5682
        %v6279 = vunpack.c.h.b16 %v5682
        %v6280 = vunpack.c.l.b16 %v5683
        %v6281 = vunpack.c.h.b16 %v5683
        %v6282 = vunpack.c.l.b16 %v5684
        %v6283 = vunpack.c.h.b16 %v5684
        %v6284 = vunpack.c.l.b16 %v5685
        %v6285 = vunpack.c.h.b16 %v5685
        %v6286 = vunpack.c.l.b16 %v5686
        %v6287 = vunpack.c.h.b16 %v5686
        %v6288 = vunpack.c.l.b16 %v5687
        %v6289 = vunpack.c.h.b16 %v5687
        %v6290 = vunpack.c.l.b16 %v5688
        %v6291 = vunpack.c.h.b16 %v5688
        %v6292 = vunpack.c.l.b16 %v5689
        %v6293 = vunpack.c.h.b16 %v5689
        %v6294 = vunpack.c.l.b16 %v5690
        %v6295 = vunpack.c.h.b16 %v5690
        %v6296 = vunpack.c.l.b16 %v5691
        %v6297 = vunpack.c.h.b16 %v5691
        %v6298 = vunpack.c.l.b16 %v5692
        %v6299 = vunpack.c.h.b16 %v5692
        %v6300 = vunpack.c.l.b16 %v5693
        %v6301 = vunpack.c.h.b16 %v5693
        %v6302 = vunpack.c.l.b16 %v5694
        %v6303 = vunpack.c.h.b16 %v5694
        %v6304 = vunpack.c.l.b16 %v5695
        %v6305 = vunpack.c.h.b16 %v5695
        %v6306 = vunpack.c.l.b16 %v5696
        %v6307 = vunpack.c.h.b16 %v5696
        %v6308 = vunpack.c.l.b16 %v5697
        %v6309 = vunpack.c.h.b16 %v5697
        %v6310 = vunpack.c.l.b16 %v5698
        %v6311 = vunpack.c.h.b16 %v5698
        %v6312 = vunpack.c.l.b16 %v5699
        %v6313 = vunpack.c.h.b16 %v5699
        %v6314 = vunpack.c.l.b16 %v5700
        %v6315 = vunpack.c.h.b16 %v5700
        %v6316 = vunpack.c.l.b16 %v5701
        %v6317 = vunpack.c.h.b16 %v5701
        %v6318 = vunpack.c.l.b16 %v5702
        %v6319 = vunpack.c.h.b16 %v5702
        %v6320 = vunpack.c.l.b16 %v5703
        %v6321 = vunpack.c.h.b16 %v5703
        %v6322 = vunpack.c.l.b16 %v5704
        %v6323 = vunpack.c.h.b16 %v5704
        %v6324 = vunpack.c.l.b16 %v5705
        %v6325 = vunpack.c.h.b16 %v5705
        %v6326 = vunpack.c.l.b16 %v5706
        %v6327 = vunpack.c.h.b16 %v5706
        %v6328 = vunpack.c.l.b16 %v5707
        %v6329 = vunpack.c.h.b16 %v5707
        %v6330 = vunpack.c.l.b16 %v5708
        %v6331 = vunpack.c.h.b16 %v5708
        %v6332 = vunpack.c.l.b16 %v5709
        %v6333 = vunpack.c.h.b16 %v5709
        %v6334 = vunpack.c.l.b16 %v5710
        %v6335 = vunpack.c.h.b16 %v5710
        %v6336 = vunpack.c.l.b16 %v5711
        %v6337 = vunpack.c.h.b16 %v5711
        %v6338 = vunpack.c.l.b16 %v5712
        %v6339 = vunpack.c.h.b16 %v5712
        %v6340 = vunpack.c.l.b16 %v5713
        %v6341 = vunpack.c.h.b16 %v5713
        %v6342 = vunpack.c.l.b16 %v5714
        %v6343 = vunpack.c.h.b16 %v5714
        %v6344 = vunpack.c.l.b16 %v5715
        %v6345 = vunpack.c.h.b16 %v5715
        %v6346 = vunpack.c.l.b16 %v5716
        %v6347 = vunpack.c.h.b16 %v5716
        %v6348 = vunpack.c.l.b16 %v5717
        %v6349 = vunpack.c.h.b16 %v5717
        %v6350 = vunpack.c.l.b16 %v5718
        %v6351 = vunpack.c.h.b16 %v5718
        %v6352 = vunpack.c.l.b16 %v5719
        %v6353 = vunpack.c.h.b16 %v5719
        %v6354 = vunpack.c.l.b16 %v5720
        %v6355 = vunpack.c.h.b16 %v5720
        %v6356 = vunpack.c.l.b16 %v5721
        %v6357 = vunpack.c.h.b16 %v5721
        %v6358 = vunpack.c.l.b16 %v5722
        %v6359 = vunpack.c.h.b16 %v5722
        %v6360 = vunpack.c.l.b16 %v5723
        %v6361 = vunpack.c.h.b16 %v5723
        %v6362 = vunpack.c.l.b16 %v5724
        %v6363 = vunpack.c.h.b16 %v5724
        %v6364 = vunpack.c.l.b16 %v5725
        %v6365 = vunpack.c.h.b16 %v5725
        %v6366 = vunpack.c.l.b16 %v5726
        %v6367 = vunpack.c.h.b16 %v5726
        %v6368 = vunpack.c.l.b16 %v5727
        %v6369 = vunpack.c.h.b16 %v5727
        %v6370 = vunpack.c.l.b16 %v5728
        %v6371 = vunpack.c.h.b16 %v5728
        %v6372 = vunpack.c.l.b16 %v5729
        %v6373 = vunpack.c.h.b16 %v5729
        %v6374 = vunpack.c.l.b16 %v5730
        %v6375 = vunpack.c.h.b16 %v5730
        %v6376 = vunpack.c.l.b16 %v5731
        %v6377 = vunpack.c.h.b16 %v5731
        %v6378 = vunpack.c.l.b16 %v5732
        %v6379 = vunpack.c.h.b16 %v5732
        %v6380 = vunpack.c.l.b16 %v5733
        %v6381 = vunpack.c.h.b16 %v5733
        %v6382 = vunpack.c.l.b16 %v5734
        %v6383 = vunpack.c.h.b16 %v5734
        %v6384 = vunpack.c.l.b16 %v5735
        %v6385 = vunpack.c.h.b16 %v5735
        %v6386 = vunpack.c.l.b16 %v5736
        %v6387 = vunpack.c.h.b16 %v5736
        %v6388 = vunpack.c.l.b16 %v5737
        %v6389 = vunpack.c.h.b16 %v5737
        %v6390 = vunpack.c.l.b16 %v5738
        %v6391 = vunpack.c.h.b16 %v5738
        %v6392 = vunpack.c.l.b16 %v5739
        %v6393 = vunpack.c.h.b16 %v5739
        %v6394 = vunpack.c.l.b16 %v5740
        %v6395 = vunpack.c.h.b16 %v5740
        %v6396 = vunpack.c.l.b16 %v5741
        %v6397 = vunpack.c.h.b16 %v5741
        %v6398 = vunpack.c.l.b16 %v5742
        %v6399 = vunpack.c.h.b16 %v5742
        %v6400 = vunpack.c.l.b16 %v5743
        %v6401 = vunpack.c.h.b16 %v5743
        %v6402 = vunpack.c.l.b16 %v5744
        %v6403 = vunpack.c.h.b16 %v5744
        %v6404 = vunpack.c.l.b16 %v5745
        %v6405 = vunpack.c.h.b16 %v5745
        %v6406 = vunpack.c.l.b16 %v5746
        %v6407 = vunpack.c.h.b16 %v5746
        %v6408 = vunpack.c.l.b16 %v5747
        %v6409 = vunpack.c.h.b16 %v5747
        %v6410 = vunpack.c.l.b16 %v5748
        %v6411 = vunpack.c.h.b16 %v5748
        %v6412 = vunpack.c.l.b16 %v5749
        %v6413 = vunpack.c.h.b16 %v5749
        %v6414 = vunpack.c.l.b16 %v5750
        %v6415 = vunpack.c.h.b16 %v5750
        %v6416 = vunpack.c.l.b16 %v5751
        %v6417 = vunpack.c.h.b16 %v5751
        %v6418 = vunpack.c.l.b16 %v5752
        %v6419 = vunpack.c.h.b16 %v5752
        %v6420 = vunpack.c.l.b16 %v5753
        %v6421 = vunpack.c.h.b16 %v5753
        %v6422 = vunpack.c.l.b16 %v5754
        %v6423 = vunpack.c.h.b16 %v5754
        %v6424 = vunpack.c.l.b16 %v5755
        %v6425 = vunpack.c.h.b16 %v5755
        %v6426 = vunpack.c.l.b16 %v5756
        %v6427 = vunpack.c.h.b16 %v5756
        %v6428 = vunpack.c.l.b16 %v5757
        %v6429 = vunpack.c.h.b16 %v5757
        %v6430 = vunpack.c.l.b16 %v5758
        %v6431 = vunpack.c.h.b16 %v5758
        %v6432 = vunpack.c.l.b16 %v5759
        %v6433 = vunpack.c.h.b16 %v5759
        %v6434 = vunpack.c.l.b16 %v5760
        %v6435 = vunpack.c.h.b16 %v5760
        %v6436 = vunpack.c.l.b16 %v5761
        %v6437 = vunpack.c.h.b16 %v5761
        %v6438 = vunpack.c.l.b16 %v5762
        %v6439 = vunpack.c.h.b16 %v5762
        %v6440 = vunpack.c.l.b16 %v5763
        %v6441 = vunpack.c.h.b16 %v5763
        %v6442 = vunpack.c.l.b16 %v5764
        %v6443 = vunpack.c.h.b16 %v5764
        %v6444 = vunpack.c.l.b16 %v5765
        %v6445 = vunpack.c.h.b16 %v5765
        %v6446 = vunpack.c.l.b16 %v5766
        %v6447 = vunpack.c.h.b16 %v5766
        %v6448 = vunpack.c.l.b16 %v5767
        %v6449 = vunpack.c.h.b16 %v5767
        %v6450 = vunpack.c.l.b16 %v5768
        %v6451 = vunpack.c.h.b16 %v5768
        %v6452 = vunpack.c.l.b16 %v5769
        %v6453 = vunpack.c.h.b16 %v5769
        %v6454 = vunpack.c.l.b16 %v5770
        %v6455 = vunpack.c.h.b16 %v5770
        %v6456 = vunpack.c.l.b16 %v5771
        %v6457 = vunpack.c.h.b16 %v5771
        %v6458 = vunpack.c.l.b16 %v5772
        %v6459 = vunpack.c.h.b16 %v5772
        %v6460 = vunpack.c.l.b16 %v5773
        %v6461 = vunpack.c.h.b16 %v5773
        %v6462 = vunpack.c.l.b16 %v5774
        %v6463 = vunpack.c.h.b16 %v5774
        %v6464 = vunpack.c.l.b16 %v5775
        %v6465 = vunpack.c.h.b16 %v5775
        %v6466 = vunpack.c.l.b16 %v5776
        %v6467 = vunpack.c.h.b16 %v5776
        %v6468 = vunpack.c.l.b16 %v5777
        %v6469 = vunpack.c.h.b16 %v5777
        %v6470 = vunpack.c.l.b16 %v5778
        %v6471 = vunpack.c.h.b16 %v5778
        %v6472 = vunpack.c.l.b16 %v5779
        %v6473 = vunpack.c.h.b16 %v5779
        %v6474 = vunpack.c.l.b16 %v5780
        %v6475 = vunpack.c.h.b16 %v5780
        %v6476 = vunpack.c.l.b16 %v5781
        %v6477 = vunpack.c.h.b16 %v5781
        %v6478 = vunpack.c.l.b16 %v5782
        %v6479 = vunpack.c.h.b16 %v5782
        %v6480 = vunpack.c.l.b16 %v5783
        %v6481 = vunpack.c.h.b16 %v5783
        %v6482 = vunpack.c.l.b16 %v5784
        %v6483 = vunpack.c.h.b16 %v5784
        %v6484 = vunpack.c.l.b16 %v5785
        %v6485 = vunpack.c.h.b16 %v5785
        %v6486 = vunpack.c.l.b16 %v5786
        %v6487 = vunpack.c.h.b16 %v5786
        %v6488 = vunpack.c.l.b16 %v5787
        %v6489 = vunpack.c.h.b16 %v5787
        %v6490 = vunpack.c.l.b16 %v5788
        %v6491 = vunpack.c.h.b16 %v5788
        %v6492 = vunpack.c.l.b16 %v5789
        %v6493 = vunpack.c.h.b16 %v5789
        %v6494 = vunpack.c.l.b16 %v5790
        %v6495 = vunpack.c.h.b16 %v5790
        %v6496 = vunpack.c.l.b16 %v5791
        %v6497 = vunpack.c.h.b16 %v5791
        %v6498 = vunpack.c.l.b16 %v5792
        %v6499 = vunpack.c.h.b16 %v5792
        %v6500 = vunpack.c.l.b16 %v5793
        %v6501 = vunpack.c.h.b16 %v5793
        %v6502 = vunpack.c.l.b16 %v5794
        %v6503 = vunpack.c.h.b16 %v5794
        %v6504 = vunpack.c.l.b16 %v5795
        %v6505 = vunpack.c.h.b16 %v5795
        %v6506 = vunpack.c.l.b16 %v5796
        %v6507 = vunpack.c.h.b16 %v5796
        %v6508 = vunpack.c.l.b16 %v5797
        %v6509 = vunpack.c.h.b16 %v5797
        %v6510 = vunpack.c.l.b16 %v5798
        %v6511 = vunpack.c.h.b16 %v5798
        %v6512 = vunpack.c.l.b16 %v5799
        %v6513 = vunpack.c.h.b16 %v5799
        %v6514 = vunpack.c.l.b16 %v5800
        %v6515 = vunpack.c.h.b16 %v5800
        %v6516 = vunpack.c.l.b16 %v5801
        %v6517 = vunpack.c.h.b16 %v5801
        %v6518 = vunpack.c.l.b16 %v5802
        %v6519 = vunpack.c.h.b16 %v5802
        %v6520 = vunpack.c.l.b16 %v5803
        %v6521 = vunpack.c.h.b16 %v5803
        %v6522 = vunpack.c.l.b16 %v5804
        %v6523 = vunpack.c.h.b16 %v5804
        %v6524 = vunpack.c.l.b16 %v5805
        %v6525 = vunpack.c.h.b16 %v5805
        %v6526 = vunpack.c.l.b16 %v5806
        %v6527 = vunpack.c.h.b16 %v5806
        %v6528 = vunpack.c.l.b16 %v5807
        %v6529 = vunpack.c.h.b16 %v5807
        %v6530 = vunpack.c.l.b16 %v5808
        %v6531 = vunpack.c.h.b16 %v5808
        %v6532 = vunpack.c.l.b16 %v5809
        %v6533 = vunpack.c.h.b16 %v5809
        %v6534 = vunpack.c.l.b16 %v5810
        %v6535 = vunpack.c.h.b16 %v5810
        %v6536 = vunpack.c.l.b16 %v5811
        %v6537 = vunpack.c.h.b16 %v5811
        %v6538 = vunpack.c.l.b16 %v5812
        %v6539 = vunpack.c.h.b16 %v5812
        %v6540 = vunpack.c.l.b16 %v5813
        %v6541 = vunpack.c.h.b16 %v5813
        %v6542 = vunpack.c.l.b16 %v5814
        %v6543 = vunpack.c.h.b16 %v5814
        %v6544 = vunpack.c.l.b16 %v5815
        %v6545 = vunpack.c.h.b16 %v5815
        %v6546 = vunpack.c.l.b16 %v5816
        %v6547 = vunpack.c.h.b16 %v5816
        %v6548 = vunpack.c.l.b16 %v5817
        %v6549 = vunpack.c.h.b16 %v5817
        %v6550 = vunpack.c.l.b16 %v5818
        %v6551 = vunpack.c.h.b16 %v5818
        %v6552 = vunpack.c.l.b16 %v5819
        %v6553 = vunpack.c.h.b16 %v5819
        %v6554 = vunpack.c.l.b16 %v5820
        %v6555 = vunpack.c.h.b16 %v5820
        %v6556 = vunpack.c.l.b16 %v5821
        %v6557 = vunpack.c.h.b16 %v5821
        %v6558 = vunpack.c.l.b16 %v5822
        %v6559 = vunpack.c.h.b16 %v5822
        %v6560 = vunpack.c.l.b16 %v5823
        %v6561 = vunpack.c.h.b16 %v5823
        %v6562 = vunpack.c.l.b16 %v5824
        %v6563 = vunpack.c.h.b16 %v5824
        %v6564 = vunpack.c.l.b16 %v5825
        %v6565 = vunpack.c.h.b16 %v5825
        %v6566 = vunpack.c.l.b16 %v5826
        %v6567 = vunpack.c.h.b16 %v5826
        %v6568 = vunpack.c.l.b16 %v5827
        %v6569 = vunpack.c.h.b16 %v5827
        %v6570 = vunpack.c.l.b16 %v5828
        %v6571 = vunpack.c.h.b16 %v5828
        %v6572 = vunpack.c.l.b16 %v5829
        %v6573 = vunpack.c.h.b16 %v5829
        %v6574 = vunpack.c.l.b16 %v5830
        %v6575 = vunpack.c.h.b16 %v5830
        %v6576 = vunpack.c.l.b16 %v5831
        %v6577 = vunpack.c.h.b16 %v5831
        %v6578 = vunpack.c.l.b16 %v5832
        %v6579 = vunpack.c.h.b16 %v5832
        %v6580 = vunpack.c.l.b16 %v5833
        %v6581 = vunpack.c.h.b16 %v5833
        %v6582 = vunpack.c.l.b16 %v5834
        %v6583 = vunpack.c.h.b16 %v5834
        %v6584 = vunpack.c.l.b16 %v5835
        %v6585 = vunpack.c.h.b16 %v5835
        %v6586 = vunpack.c.l.b16 %v5836
        %v6587 = vunpack.c.h.b16 %v5836
        %v6588 = vunpack.c.l.b16 %v5837
        %v6589 = vunpack.c.h.b16 %v5837
        %v6590 = vunpack.c.l.b16 %v5838
        %v6591 = vunpack.c.h.b16 %v5838
        %v6592 = vunpack.c.l.b16 %v5839
        %v6593 = vunpack.c.h.b16 %v5839
        %v6594 = vunpack.c.l.b16 %v5840
        %v6595 = vunpack.c.h.b16 %v5840
        %v6596 = vunpack.c.l.b16 %v5841
        %v6597 = vunpack.c.h.b16 %v5841
        %v6598 = vunpack.c.l.b16 %v5842
        %v6599 = vunpack.c.h.b16 %v5842
        %v6600 = vunpack.c.l.b16 %v5843
        %v6601 = vunpack.c.h.b16 %v5843
        %v6602 = vunpack.c.l.b16 %v5844
        %v6603 = vunpack.c.h.b16 %v5844
        %v6604 = vunpack.c.l.b16 %v5845
        %v6605 = vunpack.c.h.b16 %v5845
        %v6606 = vunpack.c.l.b16 %v5846
        %v6607 = vunpack.c.h.b16 %v5846
        %v6608 = vunpack.c.l.b16 %v5847
        %v6609 = vunpack.c.h.b16 %v5847
        %v6610 = vunpack.c.l.b16 %v5848
        %v6611 = vunpack.c.h.b16 %v5848
        %v6612 = vunpack.c.l.b16 %v5849
        %v6613 = vunpack.c.h.b16 %v5849
        %v6614 = vunpack.c.l.b16 %v5850
        %v6615 = vunpack.c.h.b16 %v5850
        %v6616 = vunpack.c.l.b16 %v5851
        %v6617 = vunpack.c.h.b16 %v5851
        %v6618 = vunpack.c.l.b16 %v5852
        %v6619 = vunpack.c.h.b16 %v5852
        %v6620 = vunpack.c.l.b16 %v5853
        %v6621 = vunpack.c.h.b16 %v5853
        %v6622 = vunpack.c.l.b16 %v5854
        %v6623 = vunpack.c.h.b16 %v5854
        %v6624 = vunpack.c.l.b16 %v5855
        %v6625 = vunpack.c.h.b16 %v5855
        %v6626 = vunpack.c.l.b16 %v5856
        %v6627 = vunpack.c.h.b16 %v5856
        %v6628 = vunpack.c.l.b16 %v5857
        %v6629 = vunpack.c.h.b16 %v5857
        %v6630 = vunpack.c.l.b16 %v5858
        %v6631 = vunpack.c.h.b16 %v5858
        %v6632 = vunpack.c.l.b16 %v5859
        %v6633 = vunpack.c.h.b16 %v5859
        %v6634 = vunpack.c.l.b16 %v5860
        %v6635 = vunpack.c.h.b16 %v5860
        %v6636 = vunpack.c.l.b16 %v5861
        %v6637 = vunpack.c.h.b16 %v5861
        %v6638 = vunpack.c.l.b16 %v5862
        %v6639 = vunpack.c.h.b16 %v5862
        %v6640 = vunpack.c.l.b16 %v5863
        %v6641 = vunpack.c.h.b16 %v5863
        %v6642 = vunpack.c.l.b16 %v5864
        %v6643 = vunpack.c.h.b16 %v5864
        %v6644 = vunpack.c.l.b16 %v5865
        %v6645 = vunpack.c.h.b16 %v5865
        %v6646 = vunpack.c.l.b16 %v5866
        %v6647 = vunpack.c.h.b16 %v5866
        %v6648 = vunpack.c.l.b16 %v5867
        %v6649 = vunpack.c.h.b16 %v5867
        %v6650 = vunpack.c.l.b16 %v5868
        %v6651 = vunpack.c.h.b16 %v5868
        %v6652 = vunpack.c.l.b16 %v5869
        %v6653 = vunpack.c.h.b16 %v5869
        %v6654 = vunpack.c.l.b16 %v5870
        %v6655 = vunpack.c.h.b16 %v5870
        %v6656 = vunpack.c.l.b16 %v5871
        %v6657 = vunpack.c.h.b16 %v5871
        %v6658 = vunpack.c.l.b16 %v5872
        %v6659 = vunpack.c.h.b16 %v5872
        %v6660 = vunpack.c.l.b16 %v5873
        %v6661 = vunpack.c.h.b16 %v5873
        %v6662 = vunpack.c.l.b16 %v5874
        %v6663 = vunpack.c.h.b16 %v5874
        %v6664 = vunpack.c.l.b16 %v5875
        %v6665 = vunpack.c.h.b16 %v5875
        %v6666 = vunpack.c.l.b16 %v5876
        %v6667 = vunpack.c.h.b16 %v5876
        %v6668 = vunpack.c.l.b16 %v5877
        %v6669 = vunpack.c.h.b16 %v5877
        %v6670 = vunpack.c.l.b16 %v5878
        %v6671 = vunpack.c.h.b16 %v5878
        %v6672 = vunpack.c.l.b16 %v5879
        %v6673 = vunpack.c.h.b16 %v5879
        %v6674 = vunpack.c.l.b16 %v5880
        %v6675 = vunpack.c.h.b16 %v5880
        %v6676 = vunpack.c.l.b16 %v5881
        %v6677 = vunpack.c.h.b16 %v5881
        %v6678 = vpack.c.b16 %v6168, %v6166
        %v6679 = vpack.c.b16 %v6169, %v6167
        %v6680 = vpack.c.b16 %v6172, %v6170
        %v6681 = vpack.c.b16 %v6173, %v6171
        %v6682 = vpack.c.b16 %v6176, %v6174
        %v6683 = vpack.c.b16 %v6177, %v6175
        %v6684 = vpack.c.b16 %v6180, %v6178
        %v6685 = vpack.c.b16 %v6181, %v6179
        %v6686 = vpack.c.b16 %v6184, %v6182
        %v6687 = vpack.c.b16 %v6185, %v6183
        %v6688 = vpack.c.b16 %v6188, %v6186
        %v6689 = vpack.c.b16 %v6189, %v6187
        %v6690 = vpack.c.b16 %v6192, %v6190
        %v6691 = vpack.c.b16 %v6193, %v6191
        %v6692 = vpack.c.b16 %v6196, %v6194
        %v6693 = vpack.c.b16 %v6197, %v6195
        %v6694 = vpack.c.b16 %v6200, %v6198
        %v6695 = vpack.c.b16 %v6201, %v6199
        %v6696 = vpack.c.b16 %v6204, %v6202
        %v6697 = vpack.c.b16 %v6205, %v6203
        %v6698 = vpack.c.b16 %v6208, %v6206
        %v6699 = vpack.c.b16 %v6209, %v6207
        %v6700 = vpack.c.b16 %v6212, %v6210
        %v6701 = vpack.c.b16 %v6213, %v6211
        %v6702 = vpack.c.b16 %v6216, %v6214
        %v6703 = vpack.c.b16 %v6217, %v6215
        %v6704 = vpack.c.b16 %v6220, %v6218
        %v6705 = vpack.c.b16 %v6221, %v6219
        %v6706 = vpack.c.b16 %v6224, %v6222
        %v6707 = vpack.c.b16 %v6225, %v6223
        %v6708 = vpack.c.b16 %v6228, %v6226
        %v6709 = vpack.c.b16 %v6229, %v6227
        %v6710 = vpack.c.b16 %v6232, %v6230
        %v6711 = vpack.c.b16 %v6233, %v6231
        %v6712 = vpack.c.b16 %v6236, %v6234
        %v6713 = vpack.c.b16 %v6237, %v6235
        %v6714 = vpack.c.b16 %v6240, %v6238
        %v6715 = vpack.c.b16 %v6241, %v6239
        %v6716 = vpack.c.b16 %v6244, %v6242
        %v6717 = vpack.c.b16 %v6245, %v6243
        %v6718 = vpack.c.b16 %v6248, %v6246
        %v6719 = vpack.c.b16 %v6249, %v6247
        %v6720 = vpack.c.b16 %v6252, %v6250
        %v6721 = vpack.c.b16 %v6253, %v6251
        %v6722 = vpack.c.b16 %v6256, %v6254
        %v6723 = vpack.c.b16 %v6257, %v6255
        %v6724 = vpack.c.b16 %v6260, %v6258
        %v6725 = vpack.c.b16 %v6261, %v6259
        %v6726 = vpack.c.b16 %v6264, %v6262
        %v6727 = vpack.c.b16 %v6265, %v6263
        %v6728 = vpack.c.b16 %v6268, %v6266
        %v6729 = vpack.c.b16 %v6269, %v6267
        %v6730 = vpack.c.b16 %v6272, %v6270
        %v6731 = vpack.c.b16 %v6273, %v6271
        %v6732 = vpack.c.b16 %v6276, %v6274
        %v6733 = vpack.c.b16 %v6277, %v6275
        %v6734 = vpack.c.b16 %v6280, %v6278
        %v6735 = vpack.c.b16 %v6281, %v6279
        %v6736 = vpack.c.b16 %v6284, %v6282
        %v6737 = vpack.c.b16 %v6285, %v6283
        %v6738 = vpack.c.b16 %v6288, %v6286
        %v6739 = vpack.c.b16 %v6289, %v6287
        %v6740 = vpack.c.b16 %v6292, %v6290
        %v6741 = vpack.c.b16 %v6293, %v6291
        %v6742 = vpack.c.b16 %v6296, %v6294
        %v6743 = vpack.c.b16 %v6297, %v6295
        %v6744 = vpack.c.b16 %v6300, %v6298
        %v6745 = vpack.c.b16 %v6301, %v6299
        %v6746 = vpack.c.b16 %v6304, %v6302
        %v6747 = vpack.c.b16 %v6305, %v6303
        %v6748 = vpack.c.b16 %v6308, %v6306
        %v6749 = vpack.c.b16 %v6309, %v6307
        %v6750 = vpack.c.b16 %v6312, %v6310
        %v6751 = vpack.c.b16 %v6313, %v6311
        %v6752 = vpack.c.b16 %v6316, %v6314
        %v6753 = vpack.c.b16 %v6317, %v6315
        %v6754 = vpack.c.b16 %v6320, %v6318
        %v6755 = vpack.c.b16 %v6321, %v6319
        %v6756 = vpack.c.b16 %v6324, %v6322
        %v6757 = vpack.c.b16 %v6325, %v6323
        %v6758 = vpack.c.b16 %v6328, %v6326
        %v6759 = vpack.c.b16 %v6329, %v6327
        %v6760 = vpack.c.b16 %v6332, %v6330
        %v6761 = vpack.c.b16 %v6333, %v6331
        %v6762 = vpack.c.b16 %v6336, %v6334
        %v6763 = vpack.c.b16 %v6337, %v6335
        %v6764 = vpack.c.b16 %v6340, %v6338
        %v6765 = vpack.c.b16 %v6341, %v6339
        %v6766 = vpack.c.b16 %v6344, %v6342
        %v6767 = vpack.c.b16 %v6345, %v6343
        %v6768 = vpack.c.b16 %v6348, %v6346
        %v6769 = vpack.c.b16 %v6349, %v6347
        %v6770 = vpack.c.b16 %v6352, %v6350
        %v6771 = vpack.c.b16 %v6353, %v6351
        %v6772 = vpack.c.b16 %v6356, %v6354
        %v6773 = vpack.c.b16 %v6357, %v6355
        %v6774 = vpack.c.b16 %v6360, %v6358
        %v6775 = vpack.c.b16 %v6361, %v6359
        %v6776 = vpack.c.b16 %v6364, %v6362
        %v6777 = vpack.c.b16 %v6365, %v6363
        %v6778 = vpack.c.b16 %v6368, %v6366
        %v6779 = vpack.c.b16 %v6369, %v6367
        %v6780 = vpack.c.b16 %v6372, %v6370
        %v6781 = vpack.c.b16 %v6373, %v6371
        %v6782 = vpack.c.b16 %v6376, %v6374
        %v6783 = vpack.c.b16 %v6377, %v6375
        %v6784 = vpack.c.b16 %v6380, %v6378
        %v6785 = vpack.c.b16 %v6381, %v6379
        %v6786 = vpack.c.b16 %v6384, %v6382
        %v6787 = vpack.c.b16 %v6385, %v6383
        %v6788 = vpack.c.b16 %v6388, %v6386
        %v6789 = vpack.c.b16 %v6389, %v6387
        %v6790 = vpack.c.b16 %v6392, %v6390
        %v6791 = vpack.c.b16 %v6393, %v6391
        %v6792 = vpack.c.b16 %v6396, %v6394
        %v6793 = vpack.c.b16 %v6397, %v6395
        %v6794 = vpack.c.b16 %v6400, %v6398
        %v6795 = vpack.c.b16 %v6401, %v6399
        %v6796 = vpack.c.b16 %v6404, %v6402
        %v6797 = vpack.c.b16 %v6405, %v6403
        %v6798 = vpack.c.b16 %v6408, %v6406
        %v6799 = vpack.c.b16 %v6409, %v6407
        %v6800 = vpack.c.b16 %v6412, %v6410
        %v6801 = vpack.c.b16 %v6413, %v6411
        %v6802 = vpack.c.b16 %v6416, %v6414
        %v6803 = vpack.c.b16 %v6417, %v6415
        %v6804 = vpack.c.b16 %v6420, %v6418
        %v6805 = vpack.c.b16 %v6421, %v6419
        %v6806 = vpack.c.b16 %v6424, %v6422
        %v6807 = vpack.c.b16 %v6425, %v6423
        %v6808 = vpack.c.b16 %v6428, %v6426
        %v6809 = vpack.c.b16 %v6429, %v6427
        %v6810 = vpack.c.b16 %v6432, %v6430
        %v6811 = vpack.c.b16 %v6433, %v6431
        %v6812 = vpack.c.b16 %v6436, %v6434
        %v6813 = vpack.c.b16 %v6437, %v6435
        %v6814 = vpack.c.b16 %v6440, %v6438
        %v6815 = vpack.c.b16 %v6441, %v6439
        %v6816 = vpack.c.b16 %v6444, %v6442
        %v6817 = vpack.c.b16 %v6445, %v6443
        %v6818 = vpack.c.b16 %v6448, %v6446
        %v6819 = vpack.c.b16 %v6449, %v6447
        %v6820 = vpack.c.b16 %v6452, %v6450
        %v6821 = vpack.c.b16 %v6453, %v6451
        %v6822 = vpack.c.b16 %v6456, %v6454
        %v6823 = vpack.c.b16 %v6457, %v6455
        %v6824 = vpack.c.b16 %v6460, %v6458
        %v6825 = vpack.c.b16 %v6461, %v6459
        %v6826 = vpack.c.b16 %v6464, %v6462
        %v6827 = vpack.c.b16 %v6465, %v6463
        %v6828 = vpack.c.b16 %v6468, %v6466
        %v6829 = vpack.c.b16 %v6469, %v6467
        %v6830 = vpack.c.b16 %v6472, %v6470
        %v6831 = vpack.c.b16 %v6473, %v6471
        %v6832 = vpack.c.b16 %v6476, %v6474
        %v6833 = vpack.c.b16 %v6477, %v6475
        %v6834 = vpack.c.b16 %v6480, %v6478
        %v6835 = vpack.c.b16 %v6481, %v6479
        %v6836 = vpack.c.b16 %v6484, %v6482
        %v6837 = vpack.c.b16 %v6485, %v6483
        %v6838 = vpack.c.b16 %v6488, %v6486
        %v6839 = vpack.c.b16 %v6489, %v6487
        %v6840 = vpack.c.b16 %v6492, %v6490
        %v6841 = vpack.c.b16 %v6493, %v6491
        %v6842 = vpack.c.b16 %v6496, %v6494
        %v6843 = vpack.c.b16 %v6497, %v6495
        %v6844 = vpack.c.b16 %v6500, %v6498
        %v6845 = vpack.c.b16 %v6501, %v6499
        %v6846 = vpack.c.b16 %v6504, %v6502
        %v6847 = vpack.c.b16 %v6505, %v6503
        %v6848 = vpack.c.b16 %v6508, %v6506
        %v6849 = vpack.c.b16 %v6509, %v6507
        %v6850 = vpack.c.b16 %v6512, %v6510
        %v6851 = vpack.c.b16 %v6513, %v6511
        %v6852 = vpack.c.b16 %v6516, %v6514
        %v6853 = vpack.c.b16 %v6517, %v6515
        %v6854 = vpack.c.b16 %v6520, %v6518
        %v6855 = vpack.c.b16 %v6521, %v6519
        %v6856 = vpack.c.b16 %v6524, %v6522
        %v6857 = vpack.c.b16 %v6525, %v6523
        %v6858 = vpack.c.b16 %v6528, %v6526
        %v6859 = vpack.c.b16 %v6529, %v6527
        %v6860 = vpack.c.b16 %v6532, %v6530
        %v6861 = vpack.c.b16 %v6533, %v6531
        %v6862 = vpack.c.b16 %v6536, %v6534
        %v6863 = vpack.c.b16 %v6537, %v6535
        %v6864 = vpack.c.b16 %v6540, %v6538
        %v6865 = vpack.c.b16 %v6541, %v6539
        %v6866 = vpack.c.b16 %v6544, %v6542
        %v6867 = vpack.c.b16 %v6545, %v6543
        %v6868 = vpack.c.b16 %v6548, %v6546
        %v6869 = vpack.c.b16 %v6549, %v6547
        %v6870 = vpack.c.b16 %v6552, %v6550
        %v6871 = vpack.c.b16 %v6553, %v6551
        %v6872 = vpack.c.b16 %v6556, %v6554
        %v6873 = vpack.c.b16 %v6557, %v6555
        %v6874 = vpack.c.b16 %v6560, %v6558
        %v6875 = vpack.c.b16 %v6561, %v6559
        %v6876 = vpack.c.b16 %v6564, %v6562
        %v6877 = vpack.c.b16 %v6565, %v6563
        %v6878 = vpack.c.b16 %v6568, %v6566
        %v6879 = vpack.c.b16 %v6569, %v6567
        %v6880 = vpack.c.b16 %v6572, %v6570
        %v6881 = vpack.c.b16 %v6573, %v6571
        %v6882 = vpack.c.b16 %v6576, %v6574
        %v6883 = vpack.c.b16 %v6577, %v6575
        %v6884 = vpack.c.b16 %v6580, %v6578
        %v6885 = vpack.c.b16 %v6581, %v6579
        %v6886 = vpack.c.b16 %v6584, %v6582
        %v6887 = vpack.c.b16 %v6585, %v6583
        %v6888 = vpack.c.b16 %v6588, %v6586
        %v6889 = vpack.c.b16 %v6589, %v6587
        %v6890 = vpack.c.b16 %v6592, %v6590
        %v6891 = vpack.c.b16 %v6593, %v6591
        %v6892 = vpack.c.b16 %v6596, %v6594
        %v6893 = vpack.c.b16 %v6597, %v6595
        %v6894 = vpack.c.b16 %v6600, %v6598
        %v6895 = vpack.c.b16 %v6601, %v6599
        %v6896 = vpack.c.b16 %v6604, %v6602
        %v6897 = vpack.c.b16 %v6605, %v6603
        %v6898 = vpack.c.b16 %v6608, %v6606
        %v6899 = vpack.c.b16 %v6609, %v6607
        %v6900 = vpack.c.b16 %v6612, %v6610
        %v6901 = vpack.c.b16 %v6613, %v6611
        %v6902 = vpack.c.b16 %v6616, %v6614
        %v6903 = vpack.c.b16 %v6617, %v6615
        %v6904 = vpack.c.b16 %v6620, %v6618
        %v6905 = vpack.c.b16 %v6621, %v6619
        %v6906 = vpack.c.b16 %v6624, %v6622
        %v6907 = vpack.c.b16 %v6625, %v6623
        %v6908 = vpack.c.b16 %v6628, %v6626
        %v6909 = vpack.c.b16 %v6629, %v6627
        %v6910 = vpack.c.b16 %v6632, %v6630
        %v6911 = vpack.c.b16 %v6633, %v6631
        %v6912 = vpack.c.b16 %v6636, %v6634
        %v6913 = vpack.c.b16 %v6637, %v6635
        %v6914 = vpack.c.b16 %v6640, %v6638
        %v6915 = vpack.c.b16 %v6641, %v6639
        %v6916 = vpack.c.b16 %v6644, %v6642
        %v6917 = vpack.c.b16 %v6645, %v6643
        %v6918 = vpack.c.b16 %v6648, %v6646
        %v6919 = vpack.c.b16 %v6649, %v6647
        %v6920 = vpack.c.b16 %v6652, %v6650
        %v6921 = vpack.c.b16 %v6653, %v6651
        %v6922 = vpack.c.b16 %v6656, %v6654
        %v6923 = vpack.c.b16 %v6657, %v6655
        %v6924 = vpack.c.b16 %v6660, %v6658
        %v6925 = vpack.c.b16 %v6661, %v6659
        %v6926 = vpack.c.b16 %v6664, %v6662
        %v6927 = vpack.c.b16 %v6665, %v6663
        %v6928 = vpack.c.b16 %v6668, %v6666
        %v6929 = vpack.c.b16 %v6669, %v6667
        %v6930 = vpack.c.b16 %v6672, %v6670
        %v6931 = vpack.c.b16 %v6673, %v6671
        %v6932 = vpack.c.b16 %v6676, %v6674
        %v6933 = vpack.c.b16 %v6677, %v6675
        %7190 = vmatprep.subr.bf16.mxu0 %v6693
        %7191 = vmatpush1.bf16.msra.mxu0 %v6692
        %7192 = vmatprep.subr.bf16.mxu0 %v6691
        %7193 = vmatpush1.bf16.msra.mxu0 %v6690
        %7194 = vmatprep.subr.bf16.mxu0 %v6689
        %7195 = vmatpush1.bf16.msra.mxu0 %v6688
        %7196 = vmatprep.subr.bf16.mxu0 %v6687
        %7197 = vmatpush1.bf16.msra.mxu0 %v6686
        %7198 = vmatprep.subr.bf16.mxu0 %v6685
        %7199 = vmatpush1.bf16.msra.mxu0 %v6684
        %7200 = vmatprep.subr.bf16.mxu0 %v6683
        %7201 = vmatpush1.bf16.msra.mxu0 %v6682
        %7202 = vmatprep.subr.bf16.mxu0 %v6681
        %7203 = vmatpush1.bf16.msra.mxu0 %v6680
        %7204 = vmatprep.subr.bf16.mxu0 %v6679
        %7205 = vmatpush1.bf16.msra.mxu0 %v6678
        %7206 = vmatprep.subr.bf16.mxu0 %v6709
        %7207 = vmatpush2.bf16.msra.mxu0 %v6708
        %7208 = vmatprep.subr.bf16.mxu0 %v6707
        %7209 = vmatpush2.bf16.msra.mxu0 %v6706
        %7210 = vmatprep.subr.bf16.mxu0 %v6705
        %7211 = vmatpush2.bf16.msra.mxu0 %v6704
        %7212 = vmatprep.subr.bf16.mxu0 %v6703
        %7213 = vmatpush2.bf16.msra.mxu0 %v6702
        %7214 = vmatprep.subr.bf16.mxu0 %v6701
        %7215 = vmatpush2.bf16.msra.mxu0 %v6700
        %7216 = vmatprep.subr.bf16.mxu0 %v6699
        %7217 = vmatpush2.bf16.msra.mxu0 %v6698
        %7218 = vmatprep.subr.bf16.mxu0 %v6697
        %7219 = vmatpush2.bf16.msra.mxu0 %v6696
        %7220 = vmatprep.subr.bf16.mxu0 %v6695
        %7221 = vmatpush2.bf16.msra.mxu0 %v6694
        %7222 = vmatprep.mubr.bf16.mxu0 %v5884
        %7223 = vmatmul.mubr.bf16.gmra.mxu0 %v5883
        %v7224 = vpop.f32.mrf.mxu0
        %v7225 = vadd.f32 %v5903, %v7224
        %v7226 = vpop.f32.mrf.mxu0
        %v7227 = vadd.f32 %v5907, %v7226
        %v7228 = vpop.f32.mrf.mxu0
        %v7229 = vadd.f32 %v5903, %v7228
        %v7230 = vpop.f32.mrf.mxu0
        %v7231 = vadd.f32 %v5907, %v7230
        %7232 = vdwg.mxu0
        %7233 = vmatprep.subr.bf16.mxu0 %v6725
        %7234 = vmatpush1.bf16.msra.mxu0 %v6724
        %7235 = vmatprep.subr.bf16.mxu0 %v6723
        %7236 = vmatpush1.bf16.msra.mxu0 %v6722
        %7237 = vmatprep.subr.bf16.mxu0 %v6721
        %7238 = vmatpush1.bf16.msra.mxu0 %v6720
        %7239 = vmatprep.subr.bf16.mxu0 %v6719
        %7240 = vmatpush1.bf16.msra.mxu0 %v6718
        %7241 = vmatprep.subr.bf16.mxu0 %v6717
        %7242 = vmatpush1.bf16.msra.mxu0 %v6716
        %7243 = vmatprep.subr.bf16.mxu0 %v6715
        %7244 = vmatpush1.bf16.msra.mxu0 %v6714
        %7245 = vmatprep.subr.bf16.mxu0 %v6713
        %7246 = vmatpush1.bf16.msra.mxu0 %v6712
        %7247 = vmatprep.subr.bf16.mxu0 %v6711
        %7248 = vmatpush1.bf16.msra.mxu0 %v6710
        %7249 = vmatprep.subr.bf16.mxu0 %v6741
        %7250 = vmatpush2.bf16.msra.mxu0 %v6740
        %7251 = vmatprep.subr.bf16.mxu0 %v6739
        %7252 = vmatpush2.bf16.msra.mxu0 %v6738
        %7253 = vmatprep.subr.bf16.mxu0 %v6737
        %7254 = vmatpush2.bf16.msra.mxu0 %v6736
        %7255 = vmatprep.subr.bf16.mxu0 %v6735
        %7256 = vmatpush2.bf16.msra.mxu0 %v6734
        %7257 = vmatprep.subr.bf16.mxu0 %v6733
        %7258 = vmatpush2.bf16.msra.mxu0 %v6732
        %7259 = vmatprep.subr.bf16.mxu0 %v6731
        %7260 = vmatpush2.bf16.msra.mxu0 %v6730
        %7261 = vmatprep.subr.bf16.mxu0 %v6729
        %7262 = vmatpush2.bf16.msra.mxu0 %v6728
        %7263 = vmatprep.subr.bf16.mxu0 %v6727
        %7264 = vmatpush2.bf16.msra.mxu0 %v6726
        %7265 = vmatprep.mubr.bf16.mxu0 %v5886
        %7266 = vmatmul.mubr.bf16.gmra.mxu0 %v5885
        %v7267 = vpop.f32.mrf.mxu0
        %v7268 = vadd.f32 %v7225, %v7267
        %v7269 = vpop.f32.mrf.mxu0
        %v7270 = vadd.f32 %v7227, %v7269
        %v7271 = vpop.f32.mrf.mxu0
        %v7272 = vadd.f32 %v7229, %v7271
        %v7273 = vpop.f32.mrf.mxu0
        %v7274 = vadd.f32 %v7231, %v7273
        %7275 = vdwg.mxu0
        %7276 = vmatprep.subr.bf16.mxu0 %v6757
        %7277 = vmatpush1.bf16.msra.mxu0 %v6756
        %7278 = vmatprep.subr.bf16.mxu0 %v6755
        %7279 = vmatpush1.bf16.msra.mxu0 %v6754
        %7280 = vmatprep.subr.bf16.mxu0 %v6753
        %7281 = vmatpush1.bf16.msra.mxu0 %v6752
        %7282 = vmatprep.subr.bf16.mxu0 %v6751
        %7283 = vmatpush1.bf16.msra.mxu0 %v6750
        %7284 = vmatprep.subr.bf16.mxu0 %v6749
        %7285 = vmatpush1.bf16.msra.mxu0 %v6748
        %7286 = vmatprep.subr.bf16.mxu0 %v6747
        %7287 = vmatpush1.bf16.msra.mxu0 %v6746
        %7288 = vmatprep.subr.bf16.mxu0 %v6745
        %7289 = vmatpush1.bf16.msra.mxu0 %v6744
        %7290 = vmatprep.subr.bf16.mxu0 %v6743
        %7291 = vmatpush1.bf16.msra.mxu0 %v6742
        %7292 = vmatprep.subr.bf16.mxu0 %v6773
        %7293 = vmatpush2.bf16.msra.mxu0 %v6772
        %7294 = vmatprep.subr.bf16.mxu0 %v6771
        %7295 = vmatpush2.bf16.msra.mxu0 %v6770
        %7296 = vmatprep.subr.bf16.mxu0 %v6769
        %7297 = vmatpush2.bf16.msra.mxu0 %v6768
        %7298 = vmatprep.subr.bf16.mxu0 %v6767
        %7299 = vmatpush2.bf16.msra.mxu0 %v6766
        %7300 = vmatprep.subr.bf16.mxu0 %v6765
        %7301 = vmatpush2.bf16.msra.mxu0 %v6764
        %7302 = vmatprep.subr.bf16.mxu0 %v6763
        %7303 = vmatpush2.bf16.msra.mxu0 %v6762
        %7304 = vmatprep.subr.bf16.mxu0 %v6761
        %7305 = vmatpush2.bf16.msra.mxu0 %v6760
        %7306 = vmatprep.subr.bf16.mxu0 %v6759
        %7307 = vmatpush2.bf16.msra.mxu0 %v6758
        %7308 = vmatprep.mubr.bf16.mxu0 %v5888
        %7309 = vmatmul.mubr.bf16.gmra.mxu0 %v5887
        %v7310 = vpop.f32.mrf.mxu0
        %v7311 = vadd.f32 %v7268, %v7310
        %v7312 = vpop.f32.mrf.mxu0
        %v7313 = vadd.f32 %v7270, %v7312
        %v7314 = vpop.f32.mrf.mxu0
        %v7315 = vadd.f32 %v7272, %v7314
        %v7316 = vpop.f32.mrf.mxu0
        %v7317 = vadd.f32 %v7274, %v7316
        %7318 = vdwg.mxu0
        %7319 = vmatprep.subr.bf16.mxu0 %v6789
        %7320 = vmatpush1.bf16.msra.mxu0 %v6788
        %7321 = vmatprep.subr.bf16.mxu0 %v6787
        %7322 = vmatpush1.bf16.msra.mxu0 %v6786
        %7323 = vmatprep.subr.bf16.mxu0 %v6785
        %7324 = vmatpush1.bf16.msra.mxu0 %v6784
        %7325 = vmatprep.subr.bf16.mxu0 %v6783
        %7326 = vmatpush1.bf16.msra.mxu0 %v6782
        %7327 = vmatprep.subr.bf16.mxu0 %v6781
        %7328 = vmatpush1.bf16.msra.mxu0 %v6780
        %7329 = vmatprep.subr.bf16.mxu0 %v6779
        %7330 = vmatpush1.bf16.msra.mxu0 %v6778
        %7331 = vmatprep.subr.bf16.mxu0 %v6777
        %7332 = vmatpush1.bf16.msra.mxu0 %v6776
        %7333 = vmatprep.subr.bf16.mxu0 %v6775
        %7334 = vmatpush1.bf16.msra.mxu0 %v6774
        %7335 = vmatprep.subr.bf16.mxu0 %v6805
        %7336 = vmatpush2.bf16.msra.mxu0 %v6804
        %7337 = vmatprep.subr.bf16.mxu0 %v6803
        %7338 = vmatpush2.bf16.msra.mxu0 %v6802
        %7339 = vmatprep.subr.bf16.mxu0 %v6801
        %7340 = vmatpush2.bf16.msra.mxu0 %v6800
        %7341 = vmatprep.subr.bf16.mxu0 %v6799
        %7342 = vmatpush2.bf16.msra.mxu0 %v6798
        %7343 = vmatprep.subr.bf16.mxu0 %v6797
        %7344 = vmatpush2.bf16.msra.mxu0 %v6796
        %7345 = vmatprep.subr.bf16.mxu0 %v6795
        %7346 = vmatpush2.bf16.msra.mxu0 %v6794
        %7347 = vmatprep.subr.bf16.mxu0 %v6793
        %7348 = vmatpush2.bf16.msra.mxu0 %v6792
        %7349 = vmatprep.subr.bf16.mxu0 %v6791
        %7350 = vmatpush2.bf16.msra.mxu0 %v6790
        %7351 = vmatprep.mubr.bf16.mxu0 %v5890
        %7352 = vmatmul.mubr.bf16.gmra.mxu0 %v5889
        %v7353 = vpop.f32.mrf.mxu0
        %v7354 = vadd.f32 %v7311, %v7353
        %v7355 = vpop.f32.mrf.mxu0
        %v7356 = vadd.f32 %v7313, %v7355
        %v7357 = vpop.f32.mrf.mxu0
        %v7358 = vadd.f32 %v7315, %v7357
        %v7359 = vpop.f32.mrf.mxu0
        %v7360 = vadd.f32 %v7317, %v7359
        %7361 = vdwg.mxu0
        %7362 = vmatprep.subr.bf16.mxu0 %v6821
        %7363 = vmatpush1.bf16.msra.mxu0 %v6820
        %7364 = vmatprep.subr.bf16.mxu0 %v6819
        %7365 = vmatpush1.bf16.msra.mxu0 %v6818
        %7366 = vmatprep.subr.bf16.mxu0 %v6817
        %7367 = vmatpush1.bf16.msra.mxu0 %v6816
        %7368 = vmatprep.subr.bf16.mxu0 %v6815
        %7369 = vmatpush1.bf16.msra.mxu0 %v6814
        %7370 = vmatprep.subr.bf16.mxu0 %v6813
        %7371 = vmatpush1.bf16.msra.mxu0 %v6812
        %7372 = vmatprep.subr.bf16.mxu0 %v6811
        %7373 = vmatpush1.bf16.msra.mxu0 %v6810
        %7374 = vmatprep.subr.bf16.mxu0 %v6809
        %7375 = vmatpush1.bf16.msra.mxu0 %v6808
        %7376 = vmatprep.subr.bf16.mxu0 %v6807
        %7377 = vmatpush1.bf16.msra.mxu0 %v6806
        %7378 = vmatprep.subr.bf16.mxu0 %v6837
        %7379 = vmatpush2.bf16.msra.mxu0 %v6836
        %7380 = vmatprep.subr.bf16.mxu0 %v6835
        %7381 = vmatpush2.bf16.msra.mxu0 %v6834
        %7382 = vmatprep.subr.bf16.mxu0 %v6833
        %7383 = vmatpush2.bf16.msra.mxu0 %v6832
        %7384 = vmatprep.subr.bf16.mxu0 %v6831
        %7385 = vmatpush2.bf16.msra.mxu0 %v6830
        %7386 = vmatprep.subr.bf16.mxu0 %v6829
        %7387 = vmatpush2.bf16.msra.mxu0 %v6828
        %7388 = vmatprep.subr.bf16.mxu0 %v6827
        %7389 = vmatpush2.bf16.msra.mxu0 %v6826
        %7390 = vmatprep.subr.bf16.mxu0 %v6825
        %7391 = vmatpush2.bf16.msra.mxu0 %v6824
        %7392 = vmatprep.subr.bf16.mxu0 %v6823
        %7393 = vmatpush2.bf16.msra.mxu0 %v6822
        %7394 = vmatprep.mubr.bf16.mxu0 %v5892
        %7395 = vmatmul.mubr.bf16.gmra.mxu0 %v5891
        %v7396 = vpop.f32.mrf.mxu0
        %v7397 = vadd.f32 %v7354, %v7396
        %v7398 = vpop.f32.mrf.mxu0
        %v7399 = vadd.f32 %v7356, %v7398
        %v7400 = vpop.f32.mrf.mxu0
        %v7401 = vadd.f32 %v7358, %v7400
        %v7402 = vpop.f32.mrf.mxu0
        %v7403 = vadd.f32 %v7360, %v7402
        %7404 = vdwg.mxu0
        %7405 = vmatprep.subr.bf16.mxu0 %v6853
        %7406 = vmatpush1.bf16.msra.mxu0 %v6852
        %7407 = vmatprep.subr.bf16.mxu0 %v6851
        %7408 = vmatpush1.bf16.msra.mxu0 %v6850
        %7409 = vmatprep.subr.bf16.mxu0 %v6849
        %7410 = vmatpush1.bf16.msra.mxu0 %v6848
        %7411 = vmatprep.subr.bf16.mxu0 %v6847
        %7412 = vmatpush1.bf16.msra.mxu0 %v6846
        %7413 = vmatprep.subr.bf16.mxu0 %v6845
        %7414 = vmatpush1.bf16.msra.mxu0 %v6844
        %7415 = vmatprep.subr.bf16.mxu0 %v6843
        %7416 = vmatpush1.bf16.msra.mxu0 %v6842
        %7417 = vmatprep.subr.bf16.mxu0 %v6841
        %7418 = vmatpush1.bf16.msra.mxu0 %v6840
        %7419 = vmatprep.subr.bf16.mxu0 %v6839
        %7420 = vmatpush1.bf16.msra.mxu0 %v6838
        %7421 = vmatprep.subr.bf16.mxu0 %v6869
        %7422 = vmatpush2.bf16.msra.mxu0 %v6868
        %7423 = vmatprep.subr.bf16.mxu0 %v6867
        %7424 = vmatpush2.bf16.msra.mxu0 %v6866
        %7425 = vmatprep.subr.bf16.mxu0 %v6865
        %7426 = vmatpush2.bf16.msra.mxu0 %v6864
        %7427 = vmatprep.subr.bf16.mxu0 %v6863
        %7428 = vmatpush2.bf16.msra.mxu0 %v6862
        %7429 = vmatprep.subr.bf16.mxu0 %v6861
        %7430 = vmatpush2.bf16.msra.mxu0 %v6860
        %7431 = vmatprep.subr.bf16.mxu0 %v6859
        %7432 = vmatpush2.bf16.msra.mxu0 %v6858
        %7433 = vmatprep.subr.bf16.mxu0 %v6857
        %7434 = vmatpush2.bf16.msra.mxu0 %v6856
        %7435 = vmatprep.subr.bf16.mxu0 %v6855
        %7436 = vmatpush2.bf16.msra.mxu0 %v6854
        %7437 = vmatprep.mubr.bf16.mxu0 %v5894
        %7438 = vmatmul.mubr.bf16.gmra.mxu0 %v5893
        %v7439 = vpop.f32.mrf.mxu0
        %v7440 = vadd.f32 %v7397, %v7439
        %v7441 = vpop.f32.mrf.mxu0
        %v7442 = vadd.f32 %v7399, %v7441
        %v7443 = vpop.f32.mrf.mxu0
        %v7444 = vadd.f32 %v7401, %v7443
        %v7445 = vpop.f32.mrf.mxu0
        %v7446 = vadd.f32 %v7403, %v7445
        %7447 = vdwg.mxu0
        %7448 = vmatprep.subr.bf16.mxu0 %v6885
        %7449 = vmatpush1.bf16.msra.mxu0 %v6884
        %7450 = vmatprep.subr.bf16.mxu0 %v6883
        %7451 = vmatpush1.bf16.msra.mxu0 %v6882
        %7452 = vmatprep.subr.bf16.mxu0 %v6881
        %7453 = vmatpush1.bf16.msra.mxu0 %v6880
        %7454 = vmatprep.subr.bf16.mxu0 %v6879
        %7455 = vmatpush1.bf16.msra.mxu0 %v6878
        %7456 = vmatprep.subr.bf16.mxu0 %v6877
        %7457 = vmatpush1.bf16.msra.mxu0 %v6876
        %7458 = vmatprep.subr.bf16.mxu0 %v6875
        %7459 = vmatpush1.bf16.msra.mxu0 %v6874
        %7460 = vmatprep.subr.bf16.mxu0 %v6873
        %7461 = vmatpush1.bf16.msra.mxu0 %v6872
        %7462 = vmatprep.subr.bf16.mxu0 %v6871
        %7463 = vmatpush1.bf16.msra.mxu0 %v6870
        %7464 = vmatprep.subr.bf16.mxu0 %v6901
        %7465 = vmatpush2.bf16.msra.mxu0 %v6900
        %7466 = vmatprep.subr.bf16.mxu0 %v6899
        %7467 = vmatpush2.bf16.msra.mxu0 %v6898
        %7468 = vmatprep.subr.bf16.mxu0 %v6897
        %7469 = vmatpush2.bf16.msra.mxu0 %v6896
        %7470 = vmatprep.subr.bf16.mxu0 %v6895
        %7471 = vmatpush2.bf16.msra.mxu0 %v6894
        %7472 = vmatprep.subr.bf16.mxu0 %v6893
        %7473 = vmatpush2.bf16.msra.mxu0 %v6892
        %7474 = vmatprep.subr.bf16.mxu0 %v6891
        %7475 = vmatpush2.bf16.msra.mxu0 %v6890
        %7476 = vmatprep.subr.bf16.mxu0 %v6889
        %7477 = vmatpush2.bf16.msra.mxu0 %v6888
        %7478 = vmatprep.subr.bf16.mxu0 %v6887
        %7479 = vmatpush2.bf16.msra.mxu0 %v6886
        %7480 = vmatprep.mubr.bf16.mxu0 %v5896
        %7481 = vmatmul.mubr.bf16.gmra.mxu0 %v5895
        %v7482 = vpop.f32.mrf.mxu0
        %v7483 = vadd.f32 %v7440, %v7482
        %v7484 = vpop.f32.mrf.mxu0
        %v7485 = vadd.f32 %v7442, %v7484
        %v7486 = vpop.f32.mrf.mxu0
        %v7487 = vadd.f32 %v7444, %v7486
        %v7488 = vpop.f32.mrf.mxu0
        %v7489 = vadd.f32 %v7446, %v7488
        %7490 = vdwg.mxu0
        %7491 = vmatprep.subr.bf16.mxu0 %v6917
        %7492 = vmatpush1.bf16.msra.mxu0 %v6916
        %7493 = vmatprep.subr.bf16.mxu0 %v6915
        %7494 = vmatpush1.bf16.msra.mxu0 %v6914
        %7495 = vmatprep.subr.bf16.mxu0 %v6913
        %7496 = vmatpush1.bf16.msra.mxu0 %v6912
        %7497 = vmatprep.subr.bf16.mxu0 %v6911
        %7498 = vmatpush1.bf16.msra.mxu0 %v6910
        %7499 = vmatprep.subr.bf16.mxu0 %v6909
        %7500 = vmatpush1.bf16.msra.mxu0 %v6908
        %7501 = vmatprep.subr.bf16.mxu0 %v6907
        %7502 = vmatpush1.bf16.msra.mxu0 %v6906
        %7503 = vmatprep.subr.bf16.mxu0 %v6905
        %7504 = vmatpush1.bf16.msra.mxu0 %v6904
        %7505 = vmatprep.subr.bf16.mxu0 %v6903
        %7506 = vmatpush1.bf16.msra.mxu0 %v6902
        %7507 = vmatprep.subr.bf16.mxu0 %v6933
        %7508 = vmatpush2.bf16.msra.mxu0 %v6932
        %7509 = vmatprep.subr.bf16.mxu0 %v6931
        %7510 = vmatpush2.bf16.msra.mxu0 %v6930
        %7511 = vmatprep.subr.bf16.mxu0 %v6929
        %7512 = vmatpush2.bf16.msra.mxu0 %v6928
        %7513 = vmatprep.subr.bf16.mxu0 %v6927
        %7514 = vmatpush2.bf16.msra.mxu0 %v6926
        %7515 = vmatprep.subr.bf16.mxu0 %v6925
        %7516 = vmatpush2.bf16.msra.mxu0 %v6924
        %7517 = vmatprep.subr.bf16.mxu0 %v6923
        %7518 = vmatpush2.bf16.msra.mxu0 %v6922
        %7519 = vmatprep.subr.bf16.mxu0 %v6921
        %7520 = vmatpush2.bf16.msra.mxu0 %v6920
        %7521 = vmatprep.subr.bf16.mxu0 %v6919
        %7522 = vmatpush2.bf16.msra.mxu0 %v6918
        %7523 = vmatprep.mubr.bf16.mxu0 %v5898
        %7524 = vmatmul.mubr.bf16.gmra.mxu0 %v5897
        %v7525 = vpop.f32.mrf.mxu0
        %v7526 = vadd.f32 %v7483, %v7525
        %v7527 = vpop.f32.mrf.mxu0
        %v7528 = vadd.f32 %v7485, %v7527
        %v7529 = vpop.f32.mrf.mxu0
        %v7530 = vadd.f32 %v7487, %v7529
        %v7531 = vpop.f32.mrf.mxu0
        %v7532 = vadd.f32 %v7489, %v7531
        %7533 = vdwg.mxu0
        %v7534 = vadd.f32 %v7526, %v3624
        %v7535 = vadd.f32 %v7528, %v3625
        %v7536 = vadd.f32 %v7530, %v3626
        %v7537 = vadd.f32 %v7532, %v3627
        %v7538 = vld [vmem:[%s475 + $0x1e] sm:$0x3]
        %v7539 = vld [vmem:[%s475 + $0x20] sm:$0x3]
        %v7540 = vadd.f32 %v7534, %v7535
        %7541 = vadd.xlane.f32.xlu0 %v7540
        %v7542 = vpop.xlane.xlu0 %7541
        %v7543 = vadd.f32 %v7536, %v7537
        %7544 = vadd.xlane.f32.xlu0 %v7543
        %v7545 = vpop.xlane.xlu0 %7544
        %v7546 = vmul.f32 %v7542, %v3571
        %v7547 = vmul.f32 %v7545, %v3571
        %v7548 = vsub.f32 %v7534, %v7546
        %v7549 = vsub.f32 %v7535, %v7546
        %v7550 = vsub.f32 %v7536, %v7547
        %v7551 = vsub.f32 %v7537, %v7547
        %v7552 = vmul.f32 %v7548, %v7548
        %v7553 = vmul.f32 %v7549, %v7549
        %v7554 = vmul.f32 %v7550, %v7550
        %v7555 = vmul.f32 %v7551, %v7551
        %v7556 = vadd.f32 %v7552, %v7553
        %7557 = vadd.xlane.f32.xlu0 %v7556
        %v7558 = vpop.xlane.xlu0 %7557
        %v7559 = vadd.f32 %v7554, %v7555
        %7560 = vadd.xlane.f32.xlu0 %v7559
        %v7561 = vpop.xlane.xlu0 %7560
        %v7562 = vmul.f32 %v7558, %v3571
        %v7563 = vmul.f32 %v7561, %v3571
        %v7564 = vadd.f32 %v7562, 1e-05
        %v7565 = vadd.f32 %v7563, 1e-05
        %v7566 = vrsqrt.pop %v7564
        %v7567 = vrsqrt.pop %v7565
        %v7568 = vmul.f32 %v7548, %v7566
        %v7569 = vmul.f32 %v7549, %v7566
        %v7570 = vmul.f32 %v7550, %v7567
        %v7571 = vmul.f32 %v7551, %v7567
        %v7573 = vlaneseq
        %v7574 = vshrl.u32 %v7573, 7
        %v7575 = vsub.s32 0, %v7574
        %v7576 = vrot.slane %v7538, %v7575
        %v7577 = vlaneseq
        %v7578 = vshrl.u32 %v7577, 7
        %v7579 = vsub.s32 1, %v7578
        %v7580 = vrot.slane %v7538, %v7579
        %v7583 = vmul.f32 %v7568, %v7576
        %v7584 = vmul.f32 %v7569, %v7580
        %v7585 = vmul.f32 %v7570, %v7576
        %v7586 = vmul.f32 %v7571, %v7580
        %v7588 = vlaneseq
        %v7589 = vshrl.u32 %v7588, 7
        %v7590 = vsub.s32 0, %v7589
        %v7591 = vrot.slane %v7539, %v7590
        %v7592 = vlaneseq
        %v7593 = vshrl.u32 %v7592, 7
        %v7594 = vsub.s32 1, %v7593
        %v7595 = vrot.slane %v7539, %v7594
        %v7598 = vadd.f32 %v7583, %v7591
        %v7599 = vadd.f32 %v7584, %v7595
        %v7600 = vadd.f32 %v7585, %v7591
        %v7601 = vadd.f32 %v7586, %v7595
        %7602 = vst [vmem:[#allocation2] sm:$0xff] %v7598
        %7603 = vst [vmem:[#allocation2 + $0x8] sm:$0xff] %v7599
        %7604 = vst [vmem:[#allocation2 + $0x10] sm:$0xff] %v7600
        %7605 = vst [vmem:[#allocation2 + $0x18] sm:$0xff] %v7601
        %p7606 = scmp.eq.s32.totalorder %s35, 5
        // Predicated region
        $region89: #{transformer_forward.1} parent=51 // pred_check
          %p7607 = pneg %p7606
        $region90: #{transformer_forward.1} parent=51 // pred_check_branch
          %7609 = sbr.rel (%p7607) target = $region92
        $region91: #{transformer_forward.1} parent=51 // pred_region
          %v7610 = vld [vmem:[#allocation14] sm:$0xf]
          %v7611 = vld [vmem:[#allocation14 + $0x4] sm:$0xf]
          %v7612 = vld [vmem:[#allocation14 + $0x8] sm:$0xf]
          %v7613 = vld [vmem:[#allocation14 + $0xc] sm:$0xf]
          %v7614 = vld [vmem:[#allocation14 + $0x10] sm:$0xf]
          %v7615 = vld [vmem:[#allocation14 + $0x14] sm:$0xf]
          %v7616 = vld [vmem:[#allocation14 + $0x18] sm:$0xf]
          %v7617 = vld [vmem:[#allocation14 + $0x1c] sm:$0xf]
          %v7618 = vld [vmem:[#allocation14 + $0x20] sm:$0xf]
          %v7619 = vld [vmem:[#allocation14 + $0x24] sm:$0xf]
          %v7620 = vld [vmem:[#allocation14 + $0x28] sm:$0xf]
          %v7621 = vld [vmem:[#allocation14 + $0x2c] sm:$0xf]
          %v7622 = vld [vmem:[#allocation14 + $0x30] sm:$0xf]
          %v7623 = vld [vmem:[#allocation14 + $0x34] sm:$0xf]
          %v7624 = vld [vmem:[#allocation14 + $0x38] sm:$0xf]
          %v7625 = vld [vmem:[#allocation14 + $0x3c] sm:$0xf]
          %v7626 = vld [vmem:[#allocation14 + $0x40] sm:$0xf]
          %v7627 = vld [vmem:[#allocation14 + $0x44] sm:$0xf]
          %v7628 = vld [vmem:[#allocation14 + $0x48] sm:$0xf]
          %v7629 = vld [vmem:[#allocation14 + $0x4c] sm:$0xf]
          %v7630 = vld [vmem:[#allocation14 + $0x50] sm:$0xf]
          %v7631 = vld [vmem:[#allocation14 + $0x54] sm:$0xf]
          %v7632 = vld [vmem:[#allocation14 + $0x58] sm:$0xf]
          %v7633 = vld [vmem:[#allocation14 + $0x5c] sm:$0xf]
          %v7634 = vld [vmem:[#allocation14 + $0x60] sm:$0xf]
          %v7635 = vld [vmem:[#allocation14 + $0x64] sm:$0xf]
          %v7636 = vld [vmem:[#allocation14 + $0x68] sm:$0xf]
          %v7637 = vld [vmem:[#allocation14 + $0x6c] sm:$0xf]
          %v7638 = vld [vmem:[#allocation14 + $0x70] sm:$0xf]
          %v7639 = vld [vmem:[#allocation14 + $0x74] sm:$0xf]
          %v7640 = vld [vmem:[#allocation14 + $0x78] sm:$0xf]
          %v7641 = vld [vmem:[#allocation14 + $0x7c] sm:$0xf]
          %v7642 = vld [vmem:[#allocation15] sm:$0x1]
          %v7643 = vpack.c.bf16 %v7600, %v7598
          %v7644 = vpack.c.bf16 %v7601, %v7599
          %v7646 = vlaneseq
          %v7647 = vshrl.u32 %v7646, 7
          %v7648 = vsub.s32 0, %v7647
          %v7649 = vrot.slane %v7642, %v7648
          %v7683 = vunpack.c.l.b16 %v7610
          %v7684 = vunpack.c.l.b16 %v7611
          %v7685 = vunpack.c.l.b16 %v7612
          %v7686 = vunpack.c.l.b16 %v7613
          %v7687 = vunpack.c.l.b16 %v7614
          %v7688 = vunpack.c.l.b16 %v7615
          %v7689 = vunpack.c.l.b16 %v7616
          %v7690 = vunpack.c.l.b16 %v7617
          %v7691 = vunpack.c.l.b16 %v7618
          %v7692 = vunpack.c.l.b16 %v7619
          %v7693 = vunpack.c.l.b16 %v7620
          %v7694 = vunpack.c.l.b16 %v7621
          %v7695 = vunpack.c.l.b16 %v7622
          %v7696 = vunpack.c.l.b16 %v7623
          %v7697 = vunpack.c.l.b16 %v7624
          %v7698 = vunpack.c.l.b16 %v7625
          %v7699 = vunpack.c.l.b16 %v7626
          %v7700 = vunpack.c.l.b16 %v7627
          %v7701 = vunpack.c.l.b16 %v7628
          %v7702 = vunpack.c.l.b16 %v7629
          %v7703 = vunpack.c.l.b16 %v7630
          %v7704 = vunpack.c.l.b16 %v7631
          %v7705 = vunpack.c.l.b16 %v7632
          %v7706 = vunpack.c.l.b16 %v7633
          %v7707 = vunpack.c.l.b16 %v7634
          %v7708 = vunpack.c.l.b16 %v7635
          %v7709 = vunpack.c.l.b16 %v7636
          %v7710 = vunpack.c.l.b16 %v7637
          %v7711 = vunpack.c.l.b16 %v7638
          %v7712 = vunpack.c.l.b16 %v7639
          %v7713 = vunpack.c.l.b16 %v7640
          %v7714 = vunpack.c.l.b16 %v7641
          %v7715 = vpack.c.b16 %v7684, %v7683
          %v7716 = vpack.c.b16 %v7686, %v7685
          %v7717 = vpack.c.b16 %v7688, %v7687
          %v7718 = vpack.c.b16 %v7690, %v7689
          %v7719 = vpack.c.b16 %v7692, %v7691
          %v7720 = vpack.c.b16 %v7694, %v7693
          %v7721 = vpack.c.b16 %v7696, %v7695
          %v7722 = vpack.c.b16 %v7698, %v7697
          %v7723 = vpack.c.b16 %v7700, %v7699
          %v7724 = vpack.c.b16 %v7702, %v7701
          %v7725 = vpack.c.b16 %v7704, %v7703
          %v7726 = vpack.c.b16 %v7706, %v7705
          %v7727 = vpack.c.b16 %v7708, %v7707
          %v7728 = vpack.c.b16 %v7710, %v7709
          %v7729 = vpack.c.b16 %v7712, %v7711
          %v7730 = vpack.c.b16 %v7714, %v7713
          %7747 = vmatprep.subr.bf16.mxu0 0
          %7748 = vmatpush1.bf16.msra.mxu0 %v7722
          %7749 = vmatprep.subr.bf16.mxu0 0
          %7750 = vmatpush1.bf16.msra.mxu0 %v7721
          %7751 = vmatprep.subr.bf16.mxu0 0
          %7752 = vmatpush1.bf16.msra.mxu0 %v7720
          %7753 = vmatprep.subr.bf16.mxu0 0
          %7754 = vmatpush1.bf16.msra.mxu0 %v7719
          %7755 = vmatprep.subr.bf16.mxu0 0
          %7756 = vmatpush1.bf16.msra.mxu0 %v7718
          %7757 = vmatprep.subr.bf16.mxu0 0
          %7758 = vmatpush1.bf16.msra.mxu0 %v7717
          %7759 = vmatprep.subr.bf16.mxu0 0
          %7760 = vmatpush1.bf16.msra.mxu0 %v7716
          %7761 = vmatprep.subr.bf16.mxu0 0
          %7762 = vmatpush1.bf16.msra.mxu0 %v7715
          %7763 = vmatprep.subr.bf16.mxu0 0
          %7764 = vmatpush2.bf16.msra.mxu0 %v7730
          %7765 = vmatprep.subr.bf16.mxu0 0
          %7766 = vmatpush2.bf16.msra.mxu0 %v7729
          %7767 = vmatprep.subr.bf16.mxu0 0
          %7768 = vmatpush2.bf16.msra.mxu0 %v7728
          %7769 = vmatprep.subr.bf16.mxu0 0
          %7770 = vmatpush2.bf16.msra.mxu0 %v7727
          %7771 = vmatprep.subr.bf16.mxu0 0
          %7772 = vmatpush2.bf16.msra.mxu0 %v7726
          %7773 = vmatprep.subr.bf16.mxu0 0
          %7774 = vmatpush2.bf16.msra.mxu0 %v7725
          %7775 = vmatprep.subr.bf16.mxu0 0
          %7776 = vmatpush2.bf16.msra.mxu0 %v7724
          %7777 = vmatprep.subr.bf16.mxu0 0
          %7778 = vmatpush2.bf16.msra.mxu0 %v7723
          %7779 = vmatprep.mubr.bf16.mxu0 %v7644
          %7780 = vmatmul.mubr.bf16.gmra.mxu0 %v7643
          %v7781 = vpop.f32.mrf.mxu0
          %v7782 = vadd.f32 %v7649, %v7781
          %v7783 = vpop.f32.mrf.mxu0
          %v7784 = vpop.f32.mrf.mxu0
          %v7785 = vadd.f32 %v7649, %v7784
          %v7786 = vpop.f32.mrf.mxu0
          %7787 = vdwg.mxu0
          %7788 = vst [vmem:[%s541] sm:$0xff] %v7782
          %7789 = vst [vmem:[%s541 + $0x8] sm:$0xff] %v7785
        $region92: #{transformer_forward.1} parent=51 // pred_fallthru
          _
        %s7790 = smul.u32 2, %s34
        %p7791 = scmp.lt.s32.totalorder %s7790, 1
        %s7792 = scalar_select %p7791, %s7790, 1
        %s7793 = smul.addr %s7792, 8
        %s7794 = scalar_lea.vmem %s8, %s7793
        // Predicated region
        $region93: #{transformer_forward.1} parent=51 // pred_check
          %p7795 = pneg %p258
        $region94: #{transformer_forward.1} parent=51 // pred_check_branch
          %7797 = sbr.rel (%p7795) target = $region96
        $region95: #{transformer_forward.1} parent=51 // pred_region
          %s7798 = smul.u32 2, %s34
        $region96: #{transformer_forward.1} parent=51 // pred_fallthru
          _
        // Predicated region
        $region97: #{transformer_forward.1} parent=51 // pred_check
          %p7799 = pneg %p258
        $region98: #{transformer_forward.1} parent=51 // pred_check_branch
          %7801 = sbr.rel (%p7799) target = $region100
        $region99: #{transformer_forward.1} parent=51 // pred_region
          %s7802 = smul.u32 2, %s34
          %p7803 = scmp.lt.s32.totalorder %s7802, 1
          %s7804 = scalar_select %p7803, %s7802, 1
          %s7805 = smul.addr %s7804, 8
          %s7806 = scalar_lea.vmem %s8, %s7805
        $region100: #{transformer_forward.1} parent=51 // pred_fallthru
          _
      $region52: #{transformer_forward.1} parent=5 // pred_fallthru
        _
      %p7807 = scmp.le.s32.totalorder 2, %s25
      // Predicated region
      $region101: #{transformer_forward.1} parent=5 // pred_check
        %p7808 = pneg %p7807
      $region102: #{transformer_forward.1} parent=5 // pred_check_branch
        %7810 = sbr.rel (%p7808) target = $region104
      $region103: #{transformer_forward.1} parent=5 // pred_region
        %s7811 = ssub.s32 %s25, 2
      $region104: #{transformer_forward.1} parent=5 // pred_fallthru
        _
    $region6: #{transformer_forward.1} parent=1 // loop_footer
      %s29 = sadd.s32 1, %s25
    $region7: #{transformer_forward.1} parent=1 // loop_footer_branch
      %24 = sbr.rel target = $region3
    $region8: #{transformer_forward.1} parent=1 // loop_exit
      _
    %7812 = vsyncpa [#allocation5], 1
    %s7813 = scalar_lea.sflag [#allocation5], 1
    %7814 = vsyncpa %s7813, 1
    %7815 = vsyncpa [#allocation7], 1
    %s7816 = scalar_lea.sflag [#allocation7], 1
    %7817 = vsyncpa %s7816, 1
    %7818 = vsyncpa [#allocation10], 1
    %s7819 = scalar_lea.sflag [#allocation10], 1
    %7820 = vsyncpa %s7819, 1
    %7821 = vsyncpa [#allocation13], 1
    %s7822 = scalar_lea.sflag [#allocation13], 1
    %7823 = vsyncpa %s7822, 1
    %7824 = vsyncpa [#allocation16], 1

</llo_original>
